<compile_context>
chip_gen: v6e
topology: v6e:2x2x1
jax: 0.10.0
libtpu: 0.0.40
codegen_flags: <defaults>
</compile_context>

<pallas_src>
import functools

import jax
import jax.numpy as jnp
from jax import lax
from jax.experimental import pallas as pl
from jax.experimental.pallas import tpu as pltpu

# ---- auraloss.freq.MultiResolutionSTFTLoss defaults ------------------------
FFT_SIZES = (1024, 2048, 512)
HOP_SIZES = (120, 240, 50)
WIN_LENGTHS = (600, 1200, 240)
EPS = 1e-8
W_SC = 1.0        # spectral convergence weight
W_LOG_MAG = 1.0   # log-magnitude L1 weight

TB = 128          # frequency bins per bin tile (fused basis width = 2*TB lanes)
TF_MAX = 1024     # max frames per frame tile; <=1024 keeps the footprint safe
                  # on v7x (64 MiB VMEM) while amortizing per-step overhead on
                  # v5e/v6e (128 MiB VMEM).
VMEM_LIMIT_BYTES = 48 * 1024 * 1024


def _round_up(v, m):
    return ((v + m - 1) // m) * m


def _cdiv(a, b):
    return (a + b - 1) // b


# -----------------------------------------------------------------------------
# Pallas kernel.
# Grid = (frame tiles, bin tiles), both "parallel".
#   frames_ref : (2*tf, n_fft) bf16 -- rows [0:tf] = x frames, [tf:2*tf] = y
#                frames (resident across the inner bin axis).
#   basis_ref  : (nb, n_fft, 2*TB) bf16 fused [cos | sin] windowed DFT basis,
#                constant block index -> DMA'd once, resident for the grid.
#   out_ref    : (1, 1, 3, TB) f32 per-(i, j) partial sums:
#                row 0 = sum (y_mag - x_mag)^2, row 1 = sum y_mag^2,
#                row 2 = sum |log x_mag - log y_mag|
# -----------------------------------------------------------------------------
def _stft_sums_kernel(frames_ref, basis_ref, out_ref, *, tf, tb):
    j = pl.program_id(1)
    basis = basis_ref[j]                                     # (n_fft, 2*tb)

    # One fused MXU matmul for both signals and both (cos, sin) halves.
    ri = jnp.dot(frames_ref[...], basis, preferred_element_type=jnp.float32)
    xr, xi = ri[:tf, :tb], ri[:tf, tb:]
    yr, yi = ri[tf:, :tb], ri[tf:, tb:]

    msq_x = jnp.maximum(xr * xr + xi * xi, EPS)              # x_mag^2 (clamped)
    msq_y = jnp.maximum(yr * yr + yi * yi, EPS)              # y_mag^2 (clamped)
    diff = jnp.sqrt(msq_y) - jnp.sqrt(msq_x)

    # Row-reduce per step: no (tf, tb) VMEM accumulators (no acc load/store
    # traffic, no init/finalize phases) and both grid axes stay "parallel".
    # Three separate (1, tb) stores -> no sublane concatenate / relayout.
    out_ref[0, 0, 0:1, :] = jnp.sum(diff * diff, axis=0, keepdims=True)
    out_ref[0, 0, 1:2, :] = jnp.sum(msq_y, axis=0, keepdims=True)
    # |log x_mag - log y_mag| = 0.5 * |log msq_x - log msq_y|
    out_ref[0, 0, 2:3, :] = 0.5 * jnp.sum(
        jnp.abs(jnp.log(msq_x) - jnp.log(msq_y)), axis=0, keepdims=True)


def _stft_loss_partials(stacked_frames, basis, tf):
    """stacked_frames: (nt*2*tf, n_fft) bf16; basis: (nb, n_fft, 2*TB) bf16.
    Returns (nt, nb, 3, TB) f32 partial sums."""
    n_rows, n_fft = stacked_frames.shape
    nt = n_rows // (2 * tf)
    nb = basis.shape[0]
    kernel = functools.partial(_stft_sums_kernel, tf=tf, tb=TB)
    return pl.pallas_call(
        kernel,
        out_shape=jax.ShapeDtypeStruct((nt, nb, 3, TB), jnp.float32),
        grid_spec=pltpu.PrefetchScalarGridSpec(
            num_scalar_prefetch=0,
            grid=(nt, nb),
            in_specs=[
                # Frame tile i stays resident across the inner bin axis.
                pl.BlockSpec((2 * tf, n_fft), lambda i, j: (i, 0)),
                # Full fused basis, constant index -> fetched from HBM once.
                pl.BlockSpec((nb, n_fft, 2 * TB), lambda i, j: (0, 0, 0)),
            ],
            out_specs=pl.BlockSpec((1, 1, 3, TB), lambda i, j: (i, j, 0, 0)),
        ),
        compiler_params=pltpu.CompilerParams(
            # Distinct output block per (i, j): no cross-step dependence, so
            # both axes can shard across v7x's two TensorCores.
            dimension_semantics=("parallel", "parallel"),
            vmem_limit_bytes=VMEM_LIMIT_BYTES,
        ),
    )(stacked_frames, basis)


# -----------------------------------------------------------------------------
# Glue (plain JAX): framing (torch.stft center=True, reflect pad), windowed DFT
# basis construction, Nyquist bin, and the final scalar combination.
# -----------------------------------------------------------------------------
def _frame_signals(x, n_fft, hop, dtype=jnp.bfloat16):
    """x: (S, T) f32 -> (S * n_frames, n_fft) frames (torch.stft center=True).
    The padded signal is cast to `dtype` before the gather so the materialized
    frames array is written/read once at that width."""
    pad = n_fft // 2
    xp = jnp.pad(x, ((0, 0), (pad, pad)), mode="reflect").astype(dtype)
    t_pad = xp.shape[1]
    n_frames = 1 + (t_pad - n_fft) // hop
    idx = (jnp.arange(n_frames) * hop)[:, None] + jnp.arange(n_fft)[None, :]
    frames = xp[:, idx]                      # (S, n_frames, n_fft)
    return frames.reshape(-1, n_fft)


def _hann_window_padded(n_fft, win_length):
    """Periodic Hann of length win_length, zero-padded & centered to n_fft."""
    n = jnp.arange(win_length, dtype=jnp.float32)
    w = 0.5 * (1.0 - jnp.cos(2.0 * jnp.pi * n / win_length))
    left = (n_fft - win_length) // 2
    return jnp.zeros((n_fft,), jnp.float32).at[left:left + win_length].set(w)


def _dft_matrices(n_fft, win_length, n_cols):
    """Windowed real-DFT basis for bins 0..n_cols-1: cos part (n_fft, n_cols),
    sin part idem."""
    w_full = _hann_window_padded(n_fft, win_length)
    k = jnp.arange(n_fft, dtype=jnp.int32)[:, None]
    f = jnp.arange(n_cols, dtype=jnp.int32)[None, :]
    kf_mod = (k * f) % n_fft                 # exact angle mod 2*pi
    ang = (2.0 * jnp.pi / n_fft) * kf_mod.astype(jnp.float32)
    cos_m = w_full[:, None] * jnp.cos(ang)
    sin_m = -w_full[:, None] * jnp.sin(ang)
    return cos_m, sin_m


def _fused_dft_basis(n_fft, win_length):
    """(nb, n_fft, 2*TB) bf16 basis over bins 0..n_fft//2-1 (no Nyquist, no
    zero-padded columns); tile j's columns are [cos(bins j*TB..) | sin(...)]."""
    n_kbins = n_fft // 2
    assert n_kbins % TB == 0
    nb = n_kbins // TB
    cos_m, sin_m = _dft_matrices(n_fft, win_length, n_kbins)
    cos_t = cos_m.reshape(n_fft, nb, TB).transpose(1, 0, 2)
    sin_t = sin_m.reshape(n_fft, nb, TB).transpose(1, 0, 2)
    return jnp.concatenate([cos_t, sin_t], axis=-1).astype(jnp.bfloat16)


def _nyquist_column(n_fft, win_length):
    """Windowed cos column for bin k = n_fft//2 (cos(pi*n)=(-1)^n; sin part 0).
    Kept as a separate wrapper-side column (never packed into the kernel basis,
    which would corrupt the paired-lane magnitude sums)."""
    w_full = _hann_window_padded(n_fft, win_length)
    sign = 1.0 - 2.0 * (jnp.arange(n_fft, dtype=jnp.float32) % 2.0)
    return w_full * sign


def multi_reso_stft(rir1, rir2):
    """Equivalent of MultiResoSTFT.forward(rir1, rir2); inputs are (B, T, C)."""
    b, t, c = rir1.shape
    x = jnp.transpose(rir1, (0, 2, 1)).reshape(b * c, t).astype(jnp.float32)
    y = jnp.transpose(rir2, (0, 2, 1)).reshape(b * c, t).astype(jnp.float32)

    total = jnp.float32(0.0)
    for n_fft, hop, win in zip(FFT_SIZES, HOP_SIZES, WIN_LENGTHS):
        n_bins = n_fft // 2 + 1           # onesided bins incl. Nyquist
        n_kbins = n_fft // 2              # bins handled in the kernel

        xf = _frame_signals(x, n_fft, hop)        # (f_true, n_fft) bf16
        yf = _frame_signals(y, n_fft, hop)
        f_true = xf.shape[0]

        # Nyquist bin in the wrapper: one bf16 matvec (f32 accumulation) per
        # signal, so the kernel bin count stays an exact multiple of TB.
        nyq = _nyquist_column(n_fft, win).astype(jnp.bfloat16)
        x_nyq = jnp.dot(xf, nyq, preferred_element_type=jnp.float32)
        y_nyq = jnp.dot(yf, nyq, preferred_element_type=jnp.float32)
        msq_x_n = jnp.maximum(x_nyq * x_nyq, EPS)
        msq_y_n = jnp.maximum(y_nyq * y_nyq, EPS)
        d_n = jnp.sqrt(msq_y_n) - jnp.sqrt(msq_x_n)
        nyq_sq_diff = jnp.sum(d_n * d_n)
        nyq_sq_y = jnp.sum(msq_y_n)
        nyq_logdiff = 0.5 * jnp.sum(jnp.abs(jnp.log(msq_x_n) - jnp.log(msq_y_n)))

        # Frame tiling: smallest 16-aligned tile covering f_true in
        # cdiv(f_true, TF_MAX) tiles (<16 padded rows per tile; 16-row
        # alignment keeps bf16 (16,128) sublane packing of the LHS).
        nt = _cdiv(f_true, TF_MAX)
        tf = _round_up(_cdiv(f_true, nt), 16)
        fp = nt * tf
        xf = jnp.pad(xf, ((0, fp - f_true), (0, 0)))
        yf = jnp.pad(yf, ((0, fp - f_true), (0, 0)))
        # Stacked LHS per tile: [x tile rows ; y tile rows] -> one DMA stream
        # and a single MXU matmul per grid step.
        stacked = jnp.concatenate(
            [xf.reshape(nt, tf, n_fft), yf.reshape(nt, tf, n_fft)], axis=1
        ).reshape(nt * 2 * tf, n_fft)

        basis = _fused_dft_basis(n_fft, win)      # (nb, n_fft, 2*TB) bf16

        partials = _stft_loss_partials(stacked, basis, tf)   # (nt, nb, 3, TB)
        sums = jnp.sum(partials, axis=(0, 1, 3))              # (3,) f32

        # Zero-padded frame rows contribute exactly 0 to the diff and log terms
        # and exactly EPS per kernel bin to sum(y_mag^2); remove analytically.
        # (Some EPS additions may be absorbed by f32 rounding inside the row
        # sums; the resulting over-correction is < n_pad*EPS ~ 1e-4 absolute,
        # negligible against sum_sq_y.)
        n_pad_elems = (fp - f_true) * n_kbins
        sum_sq_diff = sums[0] + nyq_sq_diff
        sum_sq_y = sums[1] + nyq_sq_y - jnp.float32(EPS) * n_pad_elems
        sum_abs_logdiff = sums[2] + nyq_logdiff

        sc_loss = jnp.sqrt(sum_sq_diff) / jnp.sqrt(sum_sq_y)
        log_mag_loss = sum_abs_logdiff / jnp.float32(f_true * n_bins)
        total = total + W_SC * sc_loss + W_LOG_MAG * log_mag_loss

    return total / jnp.float32(len(FFT_SIZES))


# -----------------------------------------------------------------------------
# Pure-JAX f32 reference (HIGHEST precision matmuls) for a sanity check.
# -----------------------------------------------------------------------------
def multi_reso_stft_ref(rir1, rir2):
    b, t, c = rir1.shape
    x = jnp.transpose(rir1, (0, 2, 1)).reshape(b * c, t).astype(jnp.float32)
    y = jnp.transpose(rir2, (0, 2, 1)).reshape(b * c, t).astype(jnp.float32)

    total = jnp.float32(0.0)
    for n_fft, hop, win in zip(FFT_SIZES, HOP_SIZES, WIN_LENGTHS):
        n_bins = n_fft // 2 + 1
        xf = _frame_signals(x, n_fft, hop, dtype=jnp.float32)
        yf = _frame_signals(y, n_fft, hop, dtype=jnp.float32)
        cos_m, sin_m = _dft_matrices(n_fft, win, n_bins)

        def mag(fr):
            re = jnp.dot(fr, cos_m, precision=lax.Precision.HIGHEST)
            im = jnp.dot(fr, sin_m, precision=lax.Precision.HIGHEST)
            return jnp.sqrt(jnp.maximum(re * re + im * im, EPS))

        x_mag, y_mag = mag(xf), mag(yf)
        sc = jnp.linalg.norm(y_mag - x_mag) / jnp.linalg.norm(y_mag)
        log_mag = jnp.mean(jnp.abs(jnp.log(x_mag) - jnp.log(y_mag)))
        total = total + W_SC * sc + W_LOG_MAG * log_mag
    return total / jnp.float32(len(FFT_SIZES))


if __name__ == "__main__":
    # T must exceed n_fft//2 = 1024 for reflect padding of the largest FFT.
    B, T, C = 2, 2048, 2
    key = jax.random.PRNGKey(0)
    k1, k2 = jax.random.split(key)
    rir1 = jax.random.normal(k1, (B, T, C), dtype=jnp.float32)
    rir2 = jax.random.normal(k2, (B, T, C), dtype=jnp.float32)

    loss = jax.block_until_ready(jax.jit(multi_reso_stft)(rir1, rir2))
    loss_ref = jax.block_until_ready(jax.jit(multi_reso_stft_ref)(rir1, rir2))

    assert bool(jnp.isfinite(loss)), "kernel produced non-finite loss"
    # bf16 frame/basis quantization gives a few 1e-3 relative error vs the f32
    # reference for independent random signals.
    rel = abs(float(loss) - float(loss_ref)) / max(1.0, abs(float(loss_ref)))
    assert rel <= 1e-2, f"pallas={float(loss)} vs ref={float(loss_ref)} (rel={rel})"

    print("KERNEL_OK")
</pallas_src>

<mosaic_0001>
module attributes {stable_mosaic.version = 11 : i64} {
  func.func @_stft_sums_kernel(%arg0: i32, %arg1: i32, %arg2: memref<160x1024xbf16, #tpu.memory_space<vmem>>, %arg3: memref<4x1024x256xbf16, #tpu.memory_space<vmem>>, %arg4: memref<1x1x3x128xf32, #tpu.memory_space<vmem>>) attributes {dimension_semantics = [#tpu.dimension_semantics<parallel>, #tpu.dimension_semantics<parallel>], iteration_bounds = array<i64: 1, 4>, scalar_prefetch = 0 : i64, scratch_operands = 0 : i64, tpu.core_type = #tpu.core_type<tc>, window_params = [{transform_indices = @transform_0, window_bounds = array<i64: 160, 1024>}, {pipeline_mode = #tpu.pipeline_mode<synchronous>, transform_indices = @transform_1, window_bounds = array<i64: 4, 1024, 256>}, {transform_indices = @transform_2, window_bounds = array<i64: 1, 1, 3, 128>}]} {
    %0 = arith.index_cast %arg1 : i32 to index
    %c0 = arith.constant 0 : index
    %c0_0 = arith.constant 0 : index
    %1 = vector.load %arg3[%0, %c0, %c0_0] : memref<4x1024x256xbf16, #tpu.memory_space<vmem>>, vector<1x1024x256xbf16>
    %2 = vector.shape_cast %1 : vector<1x1024x256xbf16> to vector<1024x256xbf16>
    %c0_1 = arith.constant 0 : index
    %c0_2 = arith.constant 0 : index
    %3 = vector.load %arg2[%c0_1, %c0_2] : memref<160x1024xbf16, #tpu.memory_space<vmem>>, vector<160x1024xbf16>
    %cst = arith.constant dense<0.000000e+00> : vector<160x256xf32>
    %4 = tpu.matmul %3, %2, %cst {dimension_numbers = #tpu.dot_dimension_numbers<[1], [0], [0], [1], [0, 0, 1, 1], [], []>} : vector<160x1024xbf16>, vector<1024x256xbf16>, vector<160x256xf32> -> vector<160x256xf32>
    %5 = vector.extract_strided_slice %4 {offsets = [0, 0], sizes = [80, 128], strides = [1, 1]} : vector<160x256xf32> to vector<80x128xf32>
    %6 = vector.extract_strided_slice %4 {offsets = [0, 128], sizes = [80, 128], strides = [1, 1]} : vector<160x256xf32> to vector<80x128xf32>
    %7 = vector.extract_strided_slice %4 {offsets = [80, 0], sizes = [80, 128], strides = [1, 1]} : vector<160x256xf32> to vector<80x128xf32>
    %8 = vector.extract_strided_slice %4 {offsets = [80, 128], sizes = [80, 128], strides = [1, 1]} : vector<160x256xf32> to vector<80x128xf32>
    %9 = arith.mulf %5, %5 : vector<80x128xf32>
    %10 = arith.mulf %6, %6 : vector<80x128xf32>
    %11 = arith.addf %9, %10 : vector<80x128xf32>
    %cst_3 = arith.constant 9.99999993E-9 : f32
    %12 = vector.broadcast %cst_3 : f32 to vector<80x128xf32>
    %13 = arith.maximumf %11, %12 : vector<80x128xf32>
    %14 = arith.mulf %7, %7 : vector<80x128xf32>
    %15 = arith.mulf %8, %8 : vector<80x128xf32>
    %16 = arith.addf %14, %15 : vector<80x128xf32>
    %cst_4 = arith.constant 9.99999993E-9 : f32
    %17 = vector.broadcast %cst_4 : f32 to vector<80x128xf32>
    %18 = arith.maximumf %16, %17 : vector<80x128xf32>
    %19 = math.sqrt %18 : vector<80x128xf32>
    %20 = math.sqrt %13 : vector<80x128xf32>
    %21 = arith.subf %19, %20 : vector<80x128xf32>
    %22 = arith.mulf %21, %21 : vector<80x128xf32>
    %cst_5 = arith.constant dense<0.000000e+00> : vector<128xf32>
    %23 = vector.multi_reduction <add>, %22, %cst_5 [0] : vector<80x128xf32> to vector<128xf32>
    %24 = vector.shape_cast %23 : vector<128xf32> to vector<1x128xf32>
    %c0_6 = arith.constant 0 : index
    %c0_7 = arith.constant 0 : index
    %c0_8 = arith.constant 0 : index
    %c0_9 = arith.constant 0 : index
    %25 = vector.load %arg4[%c0_6, %c0_7, %c0_8, %c0_9] : memref<1x1x3x128xf32, #tpu.memory_space<vmem>>, vector<1x1x1x128xf32>
    %26 = vector.shape_cast %25 : vector<1x1x1x128xf32> to vector<1x128xf32>
    %27 = vector.shape_cast %24 : vector<1x128xf32> to vector<1x1x1x128xf32>
    tpu.vector_store %arg4[%c0_6, %c0_7, %c0_8, %c0_9], %27 {strides = array<i32>} : memref<1x1x3x128xf32, #tpu.memory_space<vmem>>, vector<1x1x1x128xf32>,
    %cst_10 = arith.constant dense<0.000000e+00> : vector<128xf32>
    %28 = vector.multi_reduction <add>, %18, %cst_10 [0] : vector<80x128xf32> to vector<128xf32>
    %29 = vector.shape_cast %28 : vector<128xf32> to vector<1x128xf32>
    %c0_11 = arith.constant 0 : index
    %c0_12 = arith.constant 0 : index
    %c1 = arith.constant 1 : index
    %c0_13 = arith.constant 0 : index
    %30 = vector.load %arg4[%c0_11, %c0_12, %c1, %c0_13] : memref<1x1x3x128xf32, #tpu.memory_space<vmem>>, vector<1x1x1x128xf32>
    %31 = vector.shape_cast %30 : vector<1x1x1x128xf32> to vector<1x128xf32>
    %32 = vector.shape_cast %29 : vector<1x128xf32> to vector<1x1x1x128xf32>
    tpu.vector_store %arg4[%c0_11, %c0_12, %c1, %c0_13], %32 {strides = array<i32>} : memref<1x1x3x128xf32, #tpu.memory_space<vmem>>, vector<1x1x1x128xf32>,
    %33 = math.log %13 : vector<80x128xf32>
    %34 = math.log %18 : vector<80x128xf32>
    %35 = arith.subf %33, %34 : vector<80x128xf32>
    %36 = math.absf %35 : vector<80x128xf32>
    %cst_14 = arith.constant dense<0.000000e+00> : vector<128xf32>
    %37 = vector.multi_reduction <add>, %36, %cst_14 [0] : vector<80x128xf32> to vector<128xf32>
    %38 = vector.shape_cast %37 : vector<128xf32> to vector<1x128xf32>
    %cst_15 = arith.constant 5.000000e-01 : f32
    %39 = vector.broadcast %cst_15 : f32 to vector<1x128xf32>
    %40 = arith.mulf %39, %38 : vector<1x128xf32>
    %c0_16 = arith.constant 0 : index
    %c0_17 = arith.constant 0 : index
    %c2 = arith.constant 2 : index
    %c0_18 = arith.constant 0 : index
    %41 = vector.load %arg4[%c0_16, %c0_17, %c2, %c0_18] : memref<1x1x3x128xf32, #tpu.memory_space<vmem>>, vector<1x1x1x128xf32>
    %42 = vector.shape_cast %41 : vector<1x1x1x128xf32> to vector<1x128xf32>
    %43 = vector.shape_cast %40 : vector<1x128xf32> to vector<1x1x1x128xf32>
    tpu.vector_store %arg4[%c0_16, %c0_17, %c2, %c0_18], %43 {strides = array<i32>} : memref<1x1x3x128xf32, #tpu.memory_space<vmem>>, vector<1x1x1x128xf32>,
    return
  }
  func.func @transform_0(%arg0: i32, %arg1: i32) -> (i32, i32) {
    %c0_i32 = arith.constant 0 : i32
    %c0_i32_0 = arith.constant 0 : i32
    return %arg0, %c0_i32 : i32, i32
  }
  func.func @transform_1(%arg0: i32, %arg1: i32) -> (i32, i32, i32) {
    %c0_i32 = arith.constant 0 : i32
    %c0_i32_0 = arith.constant 0 : i32
    %c0_i32_1 = arith.constant 0 : i32
    %c0_i32_2 = arith.constant 0 : i32
    return %c0_i32, %c0_i32_0, %c0_i32_1 : i32, i32, i32
  }
  func.func @transform_2(%arg0: i32, %arg1: i32) -> (i32, i32, i32, i32) {
    %c0_i32 = arith.constant 0 : i32
    %c0_i32_0 = arith.constant 0 : i32
    %c0_i32_1 = arith.constant 0 : i32
    return %arg0, %arg1, %c0_i32, %c0_i32_0 : i32, i32, i32, i32
  }
}

module attributes {stable_mosaic.version = 11 : i64} {
  func.func @_stft_sums_kernel(%arg0: i32, %arg1: i32, %arg2: memref<352x512xbf16, #tpu.memory_space<vmem>>, %arg3: memref<2x512x256xbf16, #tpu.memory_space<vmem>>, %arg4: memref<1x1x3x128xf32, #tpu.memory_space<vmem>>) attributes {dimension_semantics = [#tpu.dimension_semantics<parallel>, #tpu.dimension_semantics<parallel>], iteration_bounds = array<i64: 1, 2>, scalar_prefetch = 0 : i64, scratch_operands = 0 : i64, tpu.core_type = #tpu.core_type<tc>, window_params = [{transform_indices = @transform_0, window_bounds = array<i64: 352, 512>}, {pipeline_mode = #tpu.pipeline_mode<synchronous>, transform_indices = @transform_1, window_bounds = array<i64: 2, 512, 256>}, {transform_indices = @transform_2, window_bounds = array<i64: 1, 1, 3, 128>}]} {
    %0 = arith.index_cast %arg1 : i32 to index
    %c0 = arith.constant 0 : index
    %c0_0 = arith.constant 0 : index
    %1 = vector.load %arg3[%0, %c0, %c0_0] : memref<2x512x256xbf16, #tpu.memory_space<vmem>>, vector<1x512x256xbf16>
    %2 = vector.shape_cast %1 : vector<1x512x256xbf16> to vector<512x256xbf16>
    %c0_1 = arith.constant 0 : index
    %c0_2 = arith.constant 0 : index
    %3 = vector.load %arg2[%c0_1, %c0_2] : memref<352x512xbf16, #tpu.memory_space<vmem>>, vector<352x512xbf16>
    %cst = arith.constant dense<0.000000e+00> : vector<352x256xf32>
    %4 = tpu.matmul %3, %2, %cst {dimension_numbers = #tpu.dot_dimension_numbers<[1], [0], [0], [1], [0, 0, 1, 1], [], []>} : vector<352x512xbf16>, vector<512x256xbf16>, vector<352x256xf32> -> vector<352x256xf32>
    %5 = vector.extract_strided_slice %4 {offsets = [0, 0], sizes = [176, 128], strides = [1, 1]} : vector<352x256xf32> to vector<176x128xf32>
    %6 = vector.extract_strided_slice %4 {offsets = [0, 128], sizes = [176, 128], strides = [1, 1]} : vector<352x256xf32> to vector<176x128xf32>
    %7 = vector.extract_strided_slice %4 {offsets = [176, 0], sizes = [176, 128], strides = [1, 1]} : vector<352x256xf32> to vector<176x128xf32>
    %8 = vector.extract_strided_slice %4 {offsets = [176, 128], sizes = [176, 128], strides = [1, 1]} : vector<352x256xf32> to vector<176x128xf32>
    %9 = arith.mulf %5, %5 : vector<176x128xf32>
    %10 = arith.mulf %6, %6 : vector<176x128xf32>
    %11 = arith.addf %9, %10 : vector<176x128xf32>
    %cst_3 = arith.constant 9.99999993E-9 : f32
    %12 = vector.broadcast %cst_3 : f32 to vector<176x128xf32>
    %13 = arith.maximumf %11, %12 : vector<176x128xf32>
    %14 = arith.mulf %7, %7 : vector<176x128xf32>
    %15 = arith.mulf %8, %8 : vector<176x128xf32>
    %16 = arith.addf %14, %15 : vector<176x128xf32>
    %cst_4 = arith.constant 9.99999993E-9 : f32
    %17 = vector.broadcast %cst_4 : f32 to vector<176x128xf32>
    %18 = arith.maximumf %16, %17 : vector<176x128xf32>
    %19 = math.sqrt %18 : vector<176x128xf32>
    %20 = math.sqrt %13 : vector<176x128xf32>
    %21 = arith.subf %19, %20 : vector<176x128xf32>
    %22 = arith.mulf %21, %21 : vector<176x128xf32>
    %cst_5 = arith.constant dense<0.000000e+00> : vector<128xf32>
    %23 = vector.multi_reduction <add>, %22, %cst_5 [0] : vector<176x128xf32> to vector<128xf32>
    %24 = vector.shape_cast %23 : vector<128xf32> to vector<1x128xf32>
    %c0_6 = arith.constant 0 : index
    %c0_7 = arith.constant 0 : index
    %c0_8 = arith.constant 0 : index
    %c0_9 = arith.constant 0 : index
    %25 = vector.load %arg4[%c0_6, %c0_7, %c0_8, %c0_9] : memref<1x1x3x128xf32, #tpu.memory_space<vmem>>, vector<1x1x1x128xf32>
    %26 = vector.shape_cast %25 : vector<1x1x1x128xf32> to vector<1x128xf32>
    %27 = vector.shape_cast %24 : vector<1x128xf32> to vector<1x1x1x128xf32>
    tpu.vector_store %arg4[%c0_6, %c0_7, %c0_8, %c0_9], %27 {strides = array<i32>} : memref<1x1x3x128xf32, #tpu.memory_space<vmem>>, vector<1x1x1x128xf32>,
    %cst_10 = arith.constant dense<0.000000e+00> : vector<128xf32>
    %28 = vector.multi_reduction <add>, %18, %cst_10 [0] : vector<176x128xf32> to vector<128xf32>
    %29 = vector.shape_cast %28 : vector<128xf32> to vector<1x128xf32>
    %c0_11 = arith.constant 0 : index
    %c0_12 = arith.constant 0 : index
    %c1 = arith.constant 1 : index
    %c0_13 = arith.constant 0 : index
    %30 = vector.load %arg4[%c0_11, %c0_12, %c1, %c0_13] : memref<1x1x3x128xf32, #tpu.memory_space<vmem>>, vector<1x1x1x128xf32>
    %31 = vector.shape_cast %30 : vector<1x1x1x128xf32> to vector<1x128xf32>
    %32 = vector.shape_cast %29 : vector<1x128xf32> to vector<1x1x1x128xf32>
    tpu.vector_store %arg4[%c0_11, %c0_12, %c1, %c0_13], %32 {strides = array<i32>} : memref<1x1x3x128xf32, #tpu.memory_space<vmem>>, vector<1x1x1x128xf32>,
    %33 = math.log %13 : vector<176x128xf32>
    %34 = math.log %18 : vector<176x128xf32>
    %35 = arith.subf %33, %34 : vector<176x128xf32>
    %36 = math.absf %35 : vector<176x128xf32>
    %cst_14 = arith.constant dense<0.000000e+00> : vector<128xf32>
    %37 = vector.multi_reduction <add>, %36, %cst_14 [0] : vector<176x128xf32> to vector<128xf32>
    %38 = vector.shape_cast %37 : vector<128xf32> to vector<1x128xf32>
    %cst_15 = arith.constant 5.000000e-01 : f32
    %39 = vector.broadcast %cst_15 : f32 to vector<1x128xf32>
    %40 = arith.mulf %39, %38 : vector<1x128xf32>
    %c0_16 = arith.constant 0 : index
    %c0_17 = arith.constant 0 : index
    %c2 = arith.constant 2 : index
    %c0_18 = arith.constant 0 : index
    %41 = vector.load %arg4[%c0_16, %c0_17, %c2, %c0_18] : memref<1x1x3x128xf32, #tpu.memory_space<vmem>>, vector<1x1x1x128xf32>
    %42 = vector.shape_cast %41 : vector<1x1x1x128xf32> to vector<1x128xf32>
    %43 = vector.shape_cast %40 : vector<1x128xf32> to vector<1x1x1x128xf32>
    tpu.vector_store %arg4[%c0_16, %c0_17, %c2, %c0_18], %43 {strides = array<i32>} : memref<1x1x3x128xf32, #tpu.memory_space<vmem>>, vector<1x1x1x128xf32>,
    return
  }
  func.func @transform_0(%arg0: i32, %arg1: i32) -> (i32, i32) {
    %c0_i32 = arith.constant 0 : i32
    %c0_i32_0 = arith.constant 0 : i32
    return %arg0, %c0_i32 : i32, i32
  }
  func.func @transform_1(%arg0: i32, %arg1: i32) -> (i32, i32, i32) {
    %c0_i32 = arith.constant 0 : i32
    %c0_i32_0 = arith.constant 0 : i32
    %c0_i32_1 = arith.constant 0 : i32
    %c0_i32_2 = arith.constant 0 : i32
    return %c0_i32, %c0_i32_0, %c0_i32_1 : i32, i32, i32
  }
  func.func @transform_2(%arg0: i32, %arg1: i32) -> (i32, i32, i32, i32) {
    %c0_i32 = arith.constant 0 : i32
    %c0_i32_0 = arith.constant 0 : i32
    %c0_i32_1 = arith.constant 0 : i32
    return %arg0, %arg1, %c0_i32, %c0_i32_0 : i32, i32, i32, i32
  }
}

module attributes {stable_mosaic.version = 11 : i64} {
  func.func @_stft_sums_kernel(%arg0: i32, %arg1: i32, %arg2: memref<96x2048xbf16, #tpu.memory_space<vmem>>, %arg3: memref<8x2048x256xbf16, #tpu.memory_space<vmem>>, %arg4: memref<1x1x3x128xf32, #tpu.memory_space<vmem>>) attributes {dimension_semantics = [#tpu.dimension_semantics<parallel>, #tpu.dimension_semantics<parallel>], iteration_bounds = array<i64: 1, 8>, scalar_prefetch = 0 : i64, scratch_operands = 0 : i64, tpu.core_type = #tpu.core_type<tc>, window_params = [{transform_indices = @transform_0, window_bounds = array<i64: 96, 2048>}, {pipeline_mode = #tpu.pipeline_mode<synchronous>, transform_indices = @transform_1, window_bounds = array<i64: 8, 2048, 256>}, {transform_indices = @transform_2, window_bounds = array<i64: 1, 1, 3, 128>}]} {
    %0 = arith.index_cast %arg1 : i32 to index
    %c0 = arith.constant 0 : index
    %c0_0 = arith.constant 0 : index
    %1 = vector.load %arg3[%0, %c0, %c0_0] : memref<8x2048x256xbf16, #tpu.memory_space<vmem>>, vector<1x2048x256xbf16>
    %2 = vector.shape_cast %1 : vector<1x2048x256xbf16> to vector<2048x256xbf16>
    %c0_1 = arith.constant 0 : index
    %c0_2 = arith.constant 0 : index
    %3 = vector.load %arg2[%c0_1, %c0_2] : memref<96x2048xbf16, #tpu.memory_space<vmem>>, vector<96x2048xbf16>
    %cst = arith.constant dense<0.000000e+00> : vector<96x256xf32>
    %4 = tpu.matmul %3, %2, %cst {dimension_numbers = #tpu.dot_dimension_numbers<[1], [0], [0], [1], [0, 0, 1, 1], [], []>} : vector<96x2048xbf16>, vector<2048x256xbf16>, vector<96x256xf32> -> vector<96x256xf32>
    %5 = vector.extract_strided_slice %4 {offsets = [0, 0], sizes = [48, 128], strides = [1, 1]} : vector<96x256xf32> to vector<48x128xf32>
    %6 = vector.extract_strided_slice %4 {offsets = [0, 128], sizes = [48, 128], strides = [1, 1]} : vector<96x256xf32> to vector<48x128xf32>
    %7 = vector.extract_strided_slice %4 {offsets = [48, 0], sizes = [48, 128], strides = [1, 1]} : vector<96x256xf32> to vector<48x128xf32>
    %8 = vector.extract_strided_slice %4 {offsets = [48, 128], sizes = [48, 128], strides = [1, 1]} : vector<96x256xf32> to vector<48x128xf32>
    %9 = arith.mulf %5, %5 : vector<48x128xf32>
    %10 = arith.mulf %6, %6 : vector<48x128xf32>
    %11 = arith.addf %9, %10 : vector<48x128xf32>
    %cst_3 = arith.constant 9.99999993E-9 : f32
    %12 = vector.broadcast %cst_3 : f32 to vector<48x128xf32>
    %13 = arith.maximumf %11, %12 : vector<48x128xf32>
    %14 = arith.mulf %7, %7 : vector<48x128xf32>
    %15 = arith.mulf %8, %8 : vector<48x128xf32>
    %16 = arith.addf %14, %15 : vector<48x128xf32>
    %cst_4 = arith.constant 9.99999993E-9 : f32
    %17 = vector.broadcast %cst_4 : f32 to vector<48x128xf32>
    %18 = arith.maximumf %16, %17 : vector<48x128xf32>
    %19 = math.sqrt %18 : vector<48x128xf32>
    %20 = math.sqrt %13 : vector<48x128xf32>
    %21 = arith.subf %19, %20 : vector<48x128xf32>
    %22 = arith.mulf %21, %21 : vector<48x128xf32>
    %cst_5 = arith.constant dense<0.000000e+00> : vector<128xf32>
    %23 = vector.multi_reduction <add>, %22, %cst_5 [0] : vector<48x128xf32> to vector<128xf32>
    %24 = vector.shape_cast %23 : vector<128xf32> to vector<1x128xf32>
    %c0_6 = arith.constant 0 : index
    %c0_7 = arith.constant 0 : index
    %c0_8 = arith.constant 0 : index
    %c0_9 = arith.constant 0 : index
    %25 = vector.load %arg4[%c0_6, %c0_7, %c0_8, %c0_9] : memref<1x1x3x128xf32, #tpu.memory_space<vmem>>, vector<1x1x1x128xf32>
    %26 = vector.shape_cast %25 : vector<1x1x1x128xf32> to vector<1x128xf32>
    %27 = vector.shape_cast %24 : vector<1x128xf32> to vector<1x1x1x128xf32>
    tpu.vector_store %arg4[%c0_6, %c0_7, %c0_8, %c0_9], %27 {strides = array<i32>} : memref<1x1x3x128xf32, #tpu.memory_space<vmem>>, vector<1x1x1x128xf32>,
    %cst_10 = arith.constant dense<0.000000e+00> : vector<128xf32>
    %28 = vector.multi_reduction <add>, %18, %cst_10 [0] : vector<48x128xf32> to vector<128xf32>
    %29 = vector.shape_cast %28 : vector<128xf32> to vector<1x128xf32>
    %c0_11 = arith.constant 0 : index
    %c0_12 = arith.constant 0 : index
    %c1 = arith.constant 1 : index
    %c0_13 = arith.constant 0 : index
    %30 = vector.load %arg4[%c0_11, %c0_12, %c1, %c0_13] : memref<1x1x3x128xf32, #tpu.memory_space<vmem>>, vector<1x1x1x128xf32>
    %31 = vector.shape_cast %30 : vector<1x1x1x128xf32> to vector<1x128xf32>
    %32 = vector.shape_cast %29 : vector<1x128xf32> to vector<1x1x1x128xf32>
    tpu.vector_store %arg4[%c0_11, %c0_12, %c1, %c0_13], %32 {strides = array<i32>} : memref<1x1x3x128xf32, #tpu.memory_space<vmem>>, vector<1x1x1x128xf32>,
    %33 = math.log %13 : vector<48x128xf32>
    %34 = math.log %18 : vector<48x128xf32>
    %35 = arith.subf %33, %34 : vector<48x128xf32>
    %36 = math.absf %35 : vector<48x128xf32>
    %cst_14 = arith.constant dense<0.000000e+00> : vector<128xf32>
    %37 = vector.multi_reduction <add>, %36, %cst_14 [0] : vector<48x128xf32> to vector<128xf32>
    %38 = vector.shape_cast %37 : vector<128xf32> to vector<1x128xf32>
    %cst_15 = arith.constant 5.000000e-01 : f32
    %39 = vector.broadcast %cst_15 : f32 to vector<1x128xf32>
    %40 = arith.mulf %39, %38 : vector<1x128xf32>
    %c0_16 = arith.constant 0 : index
    %c0_17 = arith.constant 0 : index
    %c2 = arith.constant 2 : index
    %c0_18 = arith.constant 0 : index
    %41 = vector.load %arg4[%c0_16, %c0_17, %c2, %c0_18] : memref<1x1x3x128xf32, #tpu.memory_space<vmem>>, vector<1x1x1x128xf32>
    %42 = vector.shape_cast %41 : vector<1x1x1x128xf32> to vector<1x128xf32>
    %43 = vector.shape_cast %40 : vector<1x128xf32> to vector<1x1x1x128xf32>
    tpu.vector_store %arg4[%c0_16, %c0_17, %c2, %c0_18], %43 {strides = array<i32>} : memref<1x1x3x128xf32, #tpu.memory_space<vmem>>, vector<1x1x1x128xf32>,
    return
  }
  func.func @transform_0(%arg0: i32, %arg1: i32) -> (i32, i32) {
    %c0_i32 = arith.constant 0 : i32
    %c0_i32_0 = arith.constant 0 : i32
    return %arg0, %c0_i32 : i32, i32
  }
  func.func @transform_1(%arg0: i32, %arg1: i32) -> (i32, i32, i32) {
    %c0_i32 = arith.constant 0 : i32
    %c0_i32_0 = arith.constant 0 : i32
    %c0_i32_1 = arith.constant 0 : i32
    %c0_i32_2 = arith.constant 0 : i32
    return %c0_i32, %c0_i32_0, %c0_i32_1 : i32, i32, i32
  }
  func.func @transform_2(%arg0: i32, %arg1: i32) -> (i32, i32, i32, i32) {
    %c0_i32 = arith.constant 0 : i32
    %c0_i32_0 = arith.constant 0 : i32
    %c0_i32_1 = arith.constant 0 : i32
    return %arg0, %arg1, %c0_i32, %c0_i32_0 : i32, i32, i32, i32
  }
}

</mosaic_0001>

<llo_original>
// kernel: multi_reso_stft.3
$region0: #{multi_reso_stft.3}
  #allocation0 [shape = 'u32[]', space=smem, size = 0x4, offset = 0x4, fixed_abs, tag = 'smem constant byte address 0x4 - core index']
  #allocation1 [shape = 'u32[144,128]{1,0:T(1,128)}', space=vmem, size = 0x12000, scoped, tag = 'internal scratch']
  %s0 = inlined_call_operand.vmem [shape: bf16[160,1024], index: 0, kind: input, shape index: {}]
  %s1 = inlined_call_operand.vmem [shape: bf16[4,1024,256], index: 1, kind: input, shape index: {}]
  %s2 = inlined_call_operand.vmem [shape: f32[1,4,3,128], index: 2, kind: output, shape index: {}]
  %s3 = sld [smem:[#allocation0]]
  $region41: #{multi_reso_stft.3} parent=0
    _
  %s5 = ssub.s32 1, %s3
  %s6 = scalar_select 0, %s5, %s3
  loop: start=0, step=1, limit=6
  $region2: #{multi_reso_stft.3} parent=0 // loop_pre_header
    _
  $region3: #{multi_reso_stft.3} parent=0 // loop_header
    %s8 = sphi 0, %s12
    %p9 = scmp.ge.s32.totalorder %s8, 6
    %s15 = sphi 0, %s27
    %s16 = sphi 0, %s23
    %s17 = sphi 0, %s15
    %s18 = sphi 0, %s16
    %s19 = sphi 0, %s17
    %s20 = sphi 0, %s18
    %s30 = sphi 0, %s32
    %s33 = sphi 0, %s30
    %s34 = sphi 0, %s33
    %s50 = sphi 0, %s34
    %s54 = sphi 0, %s54
    %s56 = sphi 0, %s54
    %s57 = sphi 0, %s56
    %s71 = sphi 0, %s57
    %s79 = sphi 0, %s81
    %s82 = sphi 0, %s79
    %s83 = sphi 0, %s82
    %s99 = sphi 0, %s83
  $region4: #{multi_reso_stft.3} parent=0 // loop_header_branch
    %11 = sbr.rel (%p9) target = $region8
  $region5: #{multi_reso_stft.3} parent=0 // loop_body
    %s13 = ssub.s32 %s8, 1
    %s14 = ssub.s32 %s8, 2
    %s21 = sadd.s32 1, %s16
    %p22 = scmp.ge.s32.totalorder %s21, 4
    %s23 = scalar_select %p22, 0, %s21
    %s24 = sadd.s32 1, %s15
    %s25 = scalar_select %p22, %s24, %s15
    %p26 = scmp.ge.s32.totalorder %s25, 1
    %s27 = scalar_select %p26, 0, %s25
    %s28 = ssub.s32 %s15, %s27
    %p29 = scmp.eq.s32.totalorder %s28, 0
    %s31 = sadd.s32 %s30, 1
    %s32 = scalar_select %p29, %s30, %s31
    %p35 = pneg %p29
    %p36 = scmp.eq.s32.totalorder %s8, 3
    %p37 = por %p35, %p36
    %p38 = scmp.ne.s32.totalorder %s30, %s33
    %p39 = scmp.eq.s32.totalorder %s8, 0
    %p40 = por %p38, %p39
    %p41 = scmp.ne.s32.totalorder %s30, %s33
    %p42 = scmp.eq.s32.totalorder %s13, 3
    %p43 = por %p41, %p42
    %p44 = scmp.ne.s32.totalorder %s33, %s34
    %p45 = scmp.eq.s32.totalorder %s13, 0
    %p46 = por %p44, %p45
    %p47 = scmp.ne.s32.totalorder %s33, %s34
    %p48 = scmp.eq.s32.totalorder %s14, 3
    %p49 = por %p47, %p48
    %p51 = scmp.ne.s32.totalorder %s34, %s50
    %p52 = scmp.eq.s32.totalorder %s14, 0
    %p53 = por %p51, %p52
    %s55 = sadd.s32 %s54, 1
    %p58 = scmp.eq.s32.totalorder %s8, 3
    %p59 = scmp.ne.s32.totalorder %s54, %s56
    %p60 = scmp.eq.s32.totalorder %s8, 0
    %p61 = por %p59, %p60
    %p62 = scmp.ne.s32.totalorder %s54, %s56
    %p63 = scmp.eq.s32.totalorder %s13, 3
    %p64 = por %p62, %p63
    %p65 = scmp.ne.s32.totalorder %s56, %s57
    %p66 = scmp.eq.s32.totalorder %s13, 0
    %p67 = por %p65, %p66
    %p68 = scmp.ne.s32.totalorder %s56, %s57
    %p69 = scmp.eq.s32.totalorder %s14, 3
    %p70 = por %p68, %p69
    %p72 = scmp.ne.s32.totalorder %s57, %s71
    %p73 = scmp.eq.s32.totalorder %s14, 0
    %p74 = por %p72, %p73
    %s75 = ssub.s32 %s15, %s27
    %s76 = ssub.s32 %s16, %s23
    %s77 = sor.u32 %s75, %s76
    %p78 = scmp.eq.s32.totalorder %s77, 0
    %s80 = sadd.s32 %s79, 1
    %s81 = scalar_select %p78, %s79, %s80
    %p84 = pneg %p78
    %p85 = scmp.eq.s32.totalorder %s8, 3
    %p86 = por %p84, %p85
    %p87 = scmp.ne.s32.totalorder %s79, %s82
    %p88 = scmp.eq.s32.totalorder %s8, 0
    %p89 = por %p87, %p88
    %p90 = scmp.ne.s32.totalorder %s79, %s82
    %p91 = scmp.eq.s32.totalorder %s13, 3
    %p92 = por %p90, %p91
    %p93 = scmp.ne.s32.totalorder %s82, %s83
    %p94 = scmp.eq.s32.totalorder %s13, 0
    %p95 = por %p93, %p94
    %p96 = scmp.ne.s32.totalorder %s82, %s83
    %p97 = scmp.eq.s32.totalorder %s14, 3
    %p98 = por %p96, %p97
    %p100 = scmp.ne.s32.totalorder %s83, %s99
    %p101 = scmp.eq.s32.totalorder %s14, 0
    %p102 = por %p100, %p101
    %p103 = scmp.le.s32.totalorder 1, %s8
    %p104 = scmp.lt.s32.totalorder %s8, 5
    %p105 = pnand %p103, %p104
    %p106 = pneg %p105
    // Predicated region
    $region9: #{multi_reso_stft.3} parent=5 // pred_check
      _
    $region10: #{multi_reso_stft.3} parent=5 // pred_check_branch
      %108 = sbr.rel (%p105) target = $region12
    $region11: #{multi_reso_stft.3} parent=5 // pred_region
      %s109 = ssub.s32 %s8, 1
      // Predicated region
      $region13: #{multi_reso_stft.3} parent=11 // pred_check
        %p110 = pneg %p46
      $region14: #{multi_reso_stft.3} parent=11 // pred_check_branch
        %112 = sbr.rel (%p110) target = $region16
      $region15: #{multi_reso_stft.3} parent=11 // pred_region
        %s113 = smul.u32 20, %s17
        %p114 = scmp.lt.s32.totalorder %s113, 19
        %s115 = scalar_select %p114, %s113, 19
        %s116 = smul.addr %s115, 8
        %s117 = smul.addr %s116, 4
        %s118 = scalar_lea.vmem %s0, %s117
        %s119 = smul.u32 20, %s17
      $region16: #{multi_reso_stft.3} parent=11 // pred_fallthru
        _
      // Predicated region
      $region17: #{multi_reso_stft.3} parent=11 // pred_check
        %p120 = pneg %p67
      $region18: #{multi_reso_stft.3} parent=11 // pred_check_branch
        %122 = sbr.rel (%p120) target = $region20
      $region19: #{multi_reso_stft.3} parent=11 // pred_region
        _
      $region20: #{multi_reso_stft.3} parent=11 // pred_fallthru
        _
    $region12: #{multi_reso_stft.3} parent=5 // pred_fallthru
      _
    %p123 = scmp.lt.s32.totalorder %s8, 4
    // Predicated region
    $region21: #{multi_reso_stft.3} parent=5 // pred_check
      %p124 = pneg %p123
    $region22: #{multi_reso_stft.3} parent=5 // pred_check_branch
      %126 = sbr.rel (%p124) target = $region24
    $region23: #{multi_reso_stft.3} parent=5 // pred_region
      _
    $region24: #{multi_reso_stft.3} parent=5 // pred_fallthru
      _
    %p127 = scmp.le.s32.totalorder 1, %s8
    %p128 = scmp.lt.s32.totalorder %s8, 5
    %p129 = pnand %p127, %p128
    %p130 = pneg %p129
    // Predicated region
    $region25: #{multi_reso_stft.3} parent=5 // pred_check
      _
    $region26: #{multi_reso_stft.3} parent=5 // pred_check_branch
      %132 = sbr.rel (%p129) target = $region28
    $region27: #{multi_reso_stft.3} parent=5 // pred_region
      %s133 = ssub.s32 %s8, 1
      %s134 = smul.u32 20, %s17
      %p135 = scmp.lt.s32.totalorder %s134, 19
      %s136 = scalar_select %p135, %s134, 19
      %s137 = smul.addr %s136, 8
      %s138 = smul.addr %s137, 4
      %s139 = scalar_lea.vmem %s0, %s138
      %p140 = pneg %p46
      %p141 = pneg %p43
      %p142 = pneg %p67
      %p143 = pneg %p64
      %p144 = pneg %p95
      %p145 = pneg %p92
      %p146 = scmp.lt.s32.totalorder %s17, 0
      %s147 = scalar_select %p146, %s17, 0
      %p148 = scmp.lt.s32.totalorder %s18, 3
      %s149 = scalar_select %p148, %s18, 3
      %s150 = smul.addr %s147, 4
      %s151 = sadd.s32 %s149, %s150
      %s152 = smul.addr %s151, 4
      %s153 = scalar_lea.vmem %s2, %s152
      %s154 = smul.u32 20, %s17
      %p155 = scmp.lt.s32.totalorder %s154, 19
      %s156 = scalar_select %p155, %s154, 19
      %s157 = smul.addr %s156, 8
      %s158 = smul.addr %s157, 4
      %s159 = scalar_lea.vmem %s0, %s158
      %s160 = smul.u32 20, %s17
      %p161 = scmp.lt.s32.totalorder %s17, 0
      %s162 = scalar_select %p161, %s17, 0
      %p163 = scmp.lt.s32.totalorder %s18, 3
      %s164 = scalar_select %p163, %s18, 3
      %s165 = smul.addr %s162, 4
      %s166 = sadd.s32 %s164, %s165
      %s167 = smul.addr %s166, 4
      %s168 = scalar_lea.vmem %s2, %s167
      %s169 = smul.u32 %s18, 256
      %s170 = smul.addr %s169, 4
      %s171 = scalar_lea.vmem %s1, %s170
      %v172 = vld [vmem:[%s171] sm:$0xff]
      %v173 = vld [vmem:[%s171 + $0x8] sm:$0xff]
      %v174 = vld [vmem:[%s171 + $0x10] sm:$0xff]
      %v175 = vld [vmem:[%s171 + $0x18] sm:$0xff]
      %v176 = vld [vmem:[%s171 + $0x20] sm:$0xff]
      %v177 = vld [vmem:[%s171 + $0x28] sm:$0xff]
      %v178 = vld [vmem:[%s171 + $0x30] sm:$0xff]
      %v179 = vld [vmem:[%s171 + $0x38] sm:$0xff]
      %v180 = vld [vmem:[%s171 + $0x40] sm:$0xff]
      %v181 = vld [vmem:[%s171 + $0x48] sm:$0xff]
      %v182 = vld [vmem:[%s171 + $0x50] sm:$0xff]
      %v183 = vld [vmem:[%s171 + $0x58] sm:$0xff]
      %v184 = vld [vmem:[%s171 + $0x60] sm:$0xff]
      %v185 = vld [vmem:[%s171 + $0x68] sm:$0xff]
      %v186 = vld [vmem:[%s171 + $0x70] sm:$0xff]
      %v187 = vld [vmem:[%s171 + $0x78] sm:$0xff]
      %v188 = vld [vmem:[%s171 + $0x80] sm:$0xff]
      %v189 = vld [vmem:[%s171 + $0x88] sm:$0xff]
      %v190 = vld [vmem:[%s171 + $0x90] sm:$0xff]
      %v191 = vld [vmem:[%s171 + $0x98] sm:$0xff]
      %v192 = vld [vmem:[%s171 + $0xa0] sm:$0xff]
      %v193 = vld [vmem:[%s171 + $0xa8] sm:$0xff]
      %v194 = vld [vmem:[%s171 + $0xb0] sm:$0xff]
      %v195 = vld [vmem:[%s171 + $0xb8] sm:$0xff]
      %v196 = vld [vmem:[%s171 + $0xc0] sm:$0xff]
      %v197 = vld [vmem:[%s171 + $0xc8] sm:$0xff]
      %v198 = vld [vmem:[%s171 + $0xd0] sm:$0xff]
      %v199 = vld [vmem:[%s171 + $0xd8] sm:$0xff]
      %v200 = vld [vmem:[%s171 + $0xe0] sm:$0xff]
      %v201 = vld [vmem:[%s171 + $0xe8] sm:$0xff]
      %v202 = vld [vmem:[%s171 + $0xf0] sm:$0xff]
      %v203 = vld [vmem:[%s171 + $0xf8] sm:$0xff]
      %v204 = vld [vmem:[%s171 + $0x100] sm:$0xff]
      %v205 = vld [vmem:[%s171 + $0x108] sm:$0xff]
      %v206 = vld [vmem:[%s171 + $0x110] sm:$0xff]
      %v207 = vld [vmem:[%s171 + $0x118] sm:$0xff]
      %v208 = vld [vmem:[%s171 + $0x120] sm:$0xff]
      %v209 = vld [vmem:[%s171 + $0x128] sm:$0xff]
      %v210 = vld [vmem:[%s171 + $0x130] sm:$0xff]
      %v211 = vld [vmem:[%s171 + $0x138] sm:$0xff]
      %v212 = vld [vmem:[%s171 + $0x140] sm:$0xff]
      %v213 = vld [vmem:[%s171 + $0x148] sm:$0xff]
      %v214 = vld [vmem:[%s171 + $0x150] sm:$0xff]
      %v215 = vld [vmem:[%s171 + $0x158] sm:$0xff]
      %v216 = vld [vmem:[%s171 + $0x160] sm:$0xff]
      %v217 = vld [vmem:[%s171 + $0x168] sm:$0xff]
      %v218 = vld [vmem:[%s171 + $0x170] sm:$0xff]
      %v219 = vld [vmem:[%s171 + $0x178] sm:$0xff]
      %v220 = vld [vmem:[%s171 + $0x180] sm:$0xff]
      %v221 = vld [vmem:[%s171 + $0x188] sm:$0xff]
      %v222 = vld [vmem:[%s171 + $0x190] sm:$0xff]
      %v223 = vld [vmem:[%s171 + $0x198] sm:$0xff]
      %v224 = vld [vmem:[%s171 + $0x1a0] sm:$0xff]
      %v225 = vld [vmem:[%s171 + $0x1a8] sm:$0xff]
      %v226 = vld [vmem:[%s171 + $0x1b0] sm:$0xff]
      %v227 = vld [vmem:[%s171 + $0x1b8] sm:$0xff]
      %v228 = vld [vmem:[%s171 + $0x1c0] sm:$0xff]
      %v229 = vld [vmem:[%s171 + $0x1c8] sm:$0xff]
      %v230 = vld [vmem:[%s171 + $0x1d0] sm:$0xff]
      %v231 = vld [vmem:[%s171 + $0x1d8] sm:$0xff]
      %v232 = vld [vmem:[%s171 + $0x1e0] sm:$0xff]
      %v233 = vld [vmem:[%s171 + $0x1e8] sm:$0xff]
      %v234 = vld [vmem:[%s171 + $0x1f0] sm:$0xff]
      %v235 = vld [vmem:[%s171 + $0x1f8] sm:$0xff]
      %v236 = vld [vmem:[%s171 + $0x200] sm:$0xff]
      %v237 = vld [vmem:[%s171 + $0x208] sm:$0xff]
      %v238 = vld [vmem:[%s171 + $0x210] sm:$0xff]
      %v239 = vld [vmem:[%s171 + $0x218] sm:$0xff]
      %v240 = vld [vmem:[%s171 + $0x220] sm:$0xff]
      %v241 = vld [vmem:[%s171 + $0x228] sm:$0xff]
      %v242 = vld [vmem:[%s171 + $0x230] sm:$0xff]
      %v243 = vld [vmem:[%s171 + $0x238] sm:$0xff]
      %v244 = vld [vmem:[%s171 + $0x240] sm:$0xff]
      %v245 = vld [vmem:[%s171 + $0x248] sm:$0xff]
      %v246 = vld [vmem:[%s171 + $0x250] sm:$0xff]
      %v247 = vld [vmem:[%s171 + $0x258] sm:$0xff]
      %v248 = vld [vmem:[%s171 + $0x260] sm:$0xff]
      %v249 = vld [vmem:[%s171 + $0x268] sm:$0xff]
      %v250 = vld [vmem:[%s171 + $0x270] sm:$0xff]
      %v251 = vld [vmem:[%s171 + $0x278] sm:$0xff]
      %v252 = vld [vmem:[%s171 + $0x280] sm:$0xff]
      %v253 = vld [vmem:[%s171 + $0x288] sm:$0xff]
      %v254 = vld [vmem:[%s171 + $0x290] sm:$0xff]
      %v255 = vld [vmem:[%s171 + $0x298] sm:$0xff]
      %v256 = vld [vmem:[%s171 + $0x2a0] sm:$0xff]
      %v257 = vld [vmem:[%s171 + $0x2a8] sm:$0xff]
      %v258 = vld [vmem:[%s171 + $0x2b0] sm:$0xff]
      %v259 = vld [vmem:[%s171 + $0x2b8] sm:$0xff]
      %v260 = vld [vmem:[%s171 + $0x2c0] sm:$0xff]
      %v261 = vld [vmem:[%s171 + $0x2c8] sm:$0xff]
      %v262 = vld [vmem:[%s171 + $0x2d0] sm:$0xff]
      %v263 = vld [vmem:[%s171 + $0x2d8] sm:$0xff]
      %v264 = vld [vmem:[%s171 + $0x2e0] sm:$0xff]
      %v265 = vld [vmem:[%s171 + $0x2e8] sm:$0xff]
      %v266 = vld [vmem:[%s171 + $0x2f0] sm:$0xff]
      %v267 = vld [vmem:[%s171 + $0x2f8] sm:$0xff]
      %v268 = vld [vmem:[%s171 + $0x300] sm:$0xff]
      %v269 = vld [vmem:[%s171 + $0x308] sm:$0xff]
      %v270 = vld [vmem:[%s171 + $0x310] sm:$0xff]
      %v271 = vld [vmem:[%s171 + $0x318] sm:$0xff]
      %v272 = vld [vmem:[%s171 + $0x320] sm:$0xff]
      %v273 = vld [vmem:[%s171 + $0x328] sm:$0xff]
      %v274 = vld [vmem:[%s171 + $0x330] sm:$0xff]
      %v275 = vld [vmem:[%s171 + $0x338] sm:$0xff]
      %v276 = vld [vmem:[%s171 + $0x340] sm:$0xff]
      %v277 = vld [vmem:[%s171 + $0x348] sm:$0xff]
      %v278 = vld [vmem:[%s171 + $0x350] sm:$0xff]
      %v279 = vld [vmem:[%s171 + $0x358] sm:$0xff]
      %v280 = vld [vmem:[%s171 + $0x360] sm:$0xff]
      %v281 = vld [vmem:[%s171 + $0x368] sm:$0xff]
      %v282 = vld [vmem:[%s171 + $0x370] sm:$0xff]
      %v283 = vld [vmem:[%s171 + $0x378] sm:$0xff]
      %v284 = vld [vmem:[%s171 + $0x380] sm:$0xff]
      %v285 = vld [vmem:[%s171 + $0x388] sm:$0xff]
      %v286 = vld [vmem:[%s171 + $0x390] sm:$0xff]
      %v287 = vld [vmem:[%s171 + $0x398] sm:$0xff]
      %v288 = vld [vmem:[%s171 + $0x3a0] sm:$0xff]
      %v289 = vld [vmem:[%s171 + $0x3a8] sm:$0xff]
      %v290 = vld [vmem:[%s171 + $0x3b0] sm:$0xff]
      %v291 = vld [vmem:[%s171 + $0x3b8] sm:$0xff]
      %v292 = vld [vmem:[%s171 + $0x3c0] sm:$0xff]
      %v293 = vld [vmem:[%s171 + $0x3c8] sm:$0xff]
      %v294 = vld [vmem:[%s171 + $0x3d0] sm:$0xff]
      %v295 = vld [vmem:[%s171 + $0x3d8] sm:$0xff]
      %v296 = vld [vmem:[%s171 + $0x3e0] sm:$0xff]
      %v297 = vld [vmem:[%s171 + $0x3e8] sm:$0xff]
      %v298 = vld [vmem:[%s171 + $0x3f0] sm:$0xff]
      %v299 = vld [vmem:[%s171 + $0x3f8] sm:$0xff]
      %v300 = vld [vmem:[%s159] sm:$0xff]
      %v301 = vld [vmem:[%s159 + $0x8] sm:$0xff]
      %v302 = vld [vmem:[%s159 + $0x10] sm:$0xff]
      %v303 = vld [vmem:[%s159 + $0x18] sm:$0xff]
      %v304 = vld [vmem:[%s159 + $0x20] sm:$0xff]
      %v305 = vld [vmem:[%s159 + $0x28] sm:$0xff]
      %v306 = vld [vmem:[%s159 + $0x30] sm:$0xff]
      %v307 = vld [vmem:[%s159 + $0x38] sm:$0xff]
      %v308 = vld [vmem:[%s159 + $0x40] sm:$0xff]
      %v309 = vld [vmem:[%s159 + $0x48] sm:$0xff]
      %v310 = vld [vmem:[%s159 + $0x50] sm:$0xff]
      %v311 = vld [vmem:[%s159 + $0x58] sm:$0xff]
      %v312 = vld [vmem:[%s159 + $0x60] sm:$0xff]
      %v313 = vld [vmem:[%s159 + $0x68] sm:$0xff]
      %v314 = vld [vmem:[%s159 + $0x70] sm:$0xff]
      %v315 = vld [vmem:[%s159 + $0x78] sm:$0xff]
      %v316 = vld [vmem:[%s159 + $0x80] sm:$0xff]
      %v317 = vld [vmem:[%s159 + $0x88] sm:$0xff]
      %v318 = vld [vmem:[%s159 + $0x90] sm:$0xff]
      %v319 = vld [vmem:[%s159 + $0x98] sm:$0xff]
      %v320 = vld [vmem:[%s159 + $0xa0] sm:$0xff]
      %v321 = vld [vmem:[%s159 + $0xa8] sm:$0xff]
      %v322 = vld [vmem:[%s159 + $0xb0] sm:$0xff]
      %v323 = vld [vmem:[%s159 + $0xb8] sm:$0xff]
      %v324 = vld [vmem:[%s159 + $0xc0] sm:$0xff]
      %v325 = vld [vmem:[%s159 + $0xc8] sm:$0xff]
      %v326 = vld [vmem:[%s159 + $0xd0] sm:$0xff]
      %v327 = vld [vmem:[%s159 + $0xd8] sm:$0xff]
      %v328 = vld [vmem:[%s159 + $0xe0] sm:$0xff]
      %v329 = vld [vmem:[%s159 + $0xe8] sm:$0xff]
      %v330 = vld [vmem:[%s159 + $0xf0] sm:$0xff]
      %v331 = vld [vmem:[%s159 + $0xf8] sm:$0xff]
      %v332 = vld [vmem:[%s159 + $0x100] sm:$0xff]
      %v333 = vld [vmem:[%s159 + $0x108] sm:$0xff]
      %v334 = vld [vmem:[%s159 + $0x110] sm:$0xff]
      %v335 = vld [vmem:[%s159 + $0x118] sm:$0xff]
      %v336 = vld [vmem:[%s159 + $0x120] sm:$0xff]
      %v337 = vld [vmem:[%s159 + $0x128] sm:$0xff]
      %v338 = vld [vmem:[%s159 + $0x130] sm:$0xff]
      %v339 = vld [vmem:[%s159 + $0x138] sm:$0xff]
      %v340 = vld [vmem:[%s159 + $0x140] sm:$0xff]
      %v341 = vld [vmem:[%s159 + $0x148] sm:$0xff]
      %v342 = vld [vmem:[%s159 + $0x150] sm:$0xff]
      %v343 = vld [vmem:[%s159 + $0x158] sm:$0xff]
      %v344 = vld [vmem:[%s159 + $0x160] sm:$0xff]
      %v345 = vld [vmem:[%s159 + $0x168] sm:$0xff]
      %v346 = vld [vmem:[%s159 + $0x170] sm:$0xff]
      %v347 = vld [vmem:[%s159 + $0x178] sm:$0xff]
      %v348 = vld [vmem:[%s159 + $0x180] sm:$0xff]
      %v349 = vld [vmem:[%s159 + $0x188] sm:$0xff]
      %v350 = vld [vmem:[%s159 + $0x190] sm:$0xff]
      %v351 = vld [vmem:[%s159 + $0x198] sm:$0xff]
      %v352 = vld [vmem:[%s159 + $0x1a0] sm:$0xff]
      %v353 = vld [vmem:[%s159 + $0x1a8] sm:$0xff]
      %v354 = vld [vmem:[%s159 + $0x1b0] sm:$0xff]
      %v355 = vld [vmem:[%s159 + $0x1b8] sm:$0xff]
      %v356 = vld [vmem:[%s159 + $0x1c0] sm:$0xff]
      %v357 = vld [vmem:[%s159 + $0x1c8] sm:$0xff]
      %v358 = vld [vmem:[%s159 + $0x1d0] sm:$0xff]
      %v359 = vld [vmem:[%s159 + $0x1d8] sm:$0xff]
      %v360 = vld [vmem:[%s159 + $0x1e0] sm:$0xff]
      %v361 = vld [vmem:[%s159 + $0x1e8] sm:$0xff]
      %v362 = vld [vmem:[%s159 + $0x1f0] sm:$0xff]
      %v363 = vld [vmem:[%s159 + $0x1f8] sm:$0xff]
      %v364 = vld [vmem:[%s159 + $0x200] sm:$0xff]
      %v365 = vld [vmem:[%s159 + $0x208] sm:$0xff]
      %v366 = vld [vmem:[%s159 + $0x210] sm:$0xff]
      %v367 = vld [vmem:[%s159 + $0x218] sm:$0xff]
      %v368 = vld [vmem:[%s159 + $0x220] sm:$0xff]
      %v369 = vld [vmem:[%s159 + $0x228] sm:$0xff]
      %v370 = vld [vmem:[%s159 + $0x230] sm:$0xff]
      %v371 = vld [vmem:[%s159 + $0x238] sm:$0xff]
      %v372 = vld [vmem:[%s159 + $0x240] sm:$0xff]
      %v373 = vld [vmem:[%s159 + $0x248] sm:$0xff]
      %v374 = vld [vmem:[%s159 + $0x250] sm:$0xff]
      %v375 = vld [vmem:[%s159 + $0x258] sm:$0xff]
      %v376 = vld [vmem:[%s159 + $0x260] sm:$0xff]
      %v377 = vld [vmem:[%s159 + $0x268] sm:$0xff]
      %v378 = vld [vmem:[%s159 + $0x270] sm:$0xff]
      %v379 = vld [vmem:[%s159 + $0x278] sm:$0xff]
      %v460 = vunpack.c.l.b16 %v300
      %v461 = vunpack.c.h.b16 %v300
      %v462 = vunpack.c.l.b16 %v301
      %v463 = vunpack.c.h.b16 %v301
      %v464 = vunpack.c.l.b16 %v302
      %v465 = vunpack.c.h.b16 %v302
      %v466 = vunpack.c.l.b16 %v303
      %v467 = vunpack.c.h.b16 %v303
      %v468 = vunpack.c.l.b16 %v304
      %v469 = vunpack.c.h.b16 %v304
      %v470 = vunpack.c.l.b16 %v305
      %v471 = vunpack.c.h.b16 %v305
      %v472 = vunpack.c.l.b16 %v306
      %v473 = vunpack.c.h.b16 %v306
      %v474 = vunpack.c.l.b16 %v307
      %v475 = vunpack.c.h.b16 %v307
      %v476 = vunpack.c.l.b16 %v308
      %v477 = vunpack.c.h.b16 %v308
      %v478 = vunpack.c.l.b16 %v309
      %v479 = vunpack.c.h.b16 %v309
      %v480 = vunpack.c.l.b16 %v310
      %v481 = vunpack.c.h.b16 %v310
      %v482 = vunpack.c.l.b16 %v311
      %v483 = vunpack.c.h.b16 %v311
      %v484 = vunpack.c.l.b16 %v312
      %v485 = vunpack.c.h.b16 %v312
      %v486 = vunpack.c.l.b16 %v313
      %v487 = vunpack.c.h.b16 %v313
      %v488 = vunpack.c.l.b16 %v314
      %v489 = vunpack.c.h.b16 %v314
      %v490 = vunpack.c.l.b16 %v315
      %v491 = vunpack.c.h.b16 %v315
      %v492 = vunpack.c.l.b16 %v316
      %v493 = vunpack.c.h.b16 %v316
      %v494 = vunpack.c.l.b16 %v317
      %v495 = vunpack.c.h.b16 %v317
      %v496 = vunpack.c.l.b16 %v318
      %v497 = vunpack.c.h.b16 %v318
      %v498 = vunpack.c.l.b16 %v319
      %v499 = vunpack.c.h.b16 %v319
      %v500 = vunpack.c.l.b16 %v320
      %v501 = vunpack.c.h.b16 %v320
      %v502 = vunpack.c.l.b16 %v321
      %v503 = vunpack.c.h.b16 %v321
      %v504 = vunpack.c.l.b16 %v322
      %v505 = vunpack.c.h.b16 %v322
      %v506 = vunpack.c.l.b16 %v323
      %v507 = vunpack.c.h.b16 %v323
      %v508 = vunpack.c.l.b16 %v324
      %v509 = vunpack.c.h.b16 %v324
      %v510 = vunpack.c.l.b16 %v325
      %v511 = vunpack.c.h.b16 %v325
      %v512 = vunpack.c.l.b16 %v326
      %v513 = vunpack.c.h.b16 %v326
      %v514 = vunpack.c.l.b16 %v327
      %v515 = vunpack.c.h.b16 %v327
      %v516 = vunpack.c.l.b16 %v328
      %v517 = vunpack.c.h.b16 %v328
      %v518 = vunpack.c.l.b16 %v329
      %v519 = vunpack.c.h.b16 %v329
      %v520 = vunpack.c.l.b16 %v330
      %v521 = vunpack.c.h.b16 %v330
      %v522 = vunpack.c.l.b16 %v331
      %v523 = vunpack.c.h.b16 %v331
      %v524 = vunpack.c.l.b16 %v332
      %v525 = vunpack.c.h.b16 %v332
      %v526 = vunpack.c.l.b16 %v333
      %v527 = vunpack.c.h.b16 %v333
      %v528 = vunpack.c.l.b16 %v334
      %v529 = vunpack.c.h.b16 %v334
      %v530 = vunpack.c.l.b16 %v335
      %v531 = vunpack.c.h.b16 %v335
      %v532 = vunpack.c.l.b16 %v336
      %v533 = vunpack.c.h.b16 %v336
      %v534 = vunpack.c.l.b16 %v337
      %v535 = vunpack.c.h.b16 %v337
      %v536 = vunpack.c.l.b16 %v338
      %v537 = vunpack.c.h.b16 %v338
      %v538 = vunpack.c.l.b16 %v339
      %v539 = vunpack.c.h.b16 %v339
      %v540 = vunpack.c.l.b16 %v340
      %v541 = vunpack.c.h.b16 %v340
      %v542 = vunpack.c.l.b16 %v341
      %v543 = vunpack.c.h.b16 %v341
      %v544 = vunpack.c.l.b16 %v342
      %v545 = vunpack.c.h.b16 %v342
      %v546 = vunpack.c.l.b16 %v343
      %v547 = vunpack.c.h.b16 %v343
      %v548 = vunpack.c.l.b16 %v344
      %v549 = vunpack.c.h.b16 %v344
      %v550 = vunpack.c.l.b16 %v345
      %v551 = vunpack.c.h.b16 %v345
      %v552 = vunpack.c.l.b16 %v346
      %v553 = vunpack.c.h.b16 %v346
      %v554 = vunpack.c.l.b16 %v347
      %v555 = vunpack.c.h.b16 %v347
      %v556 = vunpack.c.l.b16 %v348
      %v557 = vunpack.c.h.b16 %v348
      %v558 = vunpack.c.l.b16 %v349
      %v559 = vunpack.c.h.b16 %v349
      %v560 = vunpack.c.l.b16 %v350
      %v561 = vunpack.c.h.b16 %v350
      %v562 = vunpack.c.l.b16 %v351
      %v563 = vunpack.c.h.b16 %v351
      %v564 = vunpack.c.l.b16 %v352
      %v565 = vunpack.c.h.b16 %v352
      %v566 = vunpack.c.l.b16 %v353
      %v567 = vunpack.c.h.b16 %v353
      %v568 = vunpack.c.l.b16 %v354
      %v569 = vunpack.c.h.b16 %v354
      %v570 = vunpack.c.l.b16 %v355
      %v571 = vunpack.c.h.b16 %v355
      %v572 = vunpack.c.l.b16 %v356
      %v573 = vunpack.c.h.b16 %v356
      %v574 = vunpack.c.l.b16 %v357
      %v575 = vunpack.c.h.b16 %v357
      %v576 = vunpack.c.l.b16 %v358
      %v577 = vunpack.c.h.b16 %v358
      %v578 = vunpack.c.l.b16 %v359
      %v579 = vunpack.c.h.b16 %v359
      %v580 = vunpack.c.l.b16 %v360
      %v581 = vunpack.c.h.b16 %v360
      %v582 = vunpack.c.l.b16 %v361
      %v583 = vunpack.c.h.b16 %v361
      %v584 = vunpack.c.l.b16 %v362
      %v585 = vunpack.c.h.b16 %v362
      %v586 = vunpack.c.l.b16 %v363
      %v587 = vunpack.c.h.b16 %v363
      %v588 = vunpack.c.l.b16 %v364
      %v589 = vunpack.c.h.b16 %v364
      %v590 = vunpack.c.l.b16 %v365
      %v591 = vunpack.c.h.b16 %v365
      %v592 = vunpack.c.l.b16 %v366
      %v593 = vunpack.c.h.b16 %v366
      %v594 = vunpack.c.l.b16 %v367
      %v595 = vunpack.c.h.b16 %v367
      %v596 = vunpack.c.l.b16 %v368
      %v597 = vunpack.c.h.b16 %v368
      %v598 = vunpack.c.l.b16 %v369
      %v599 = vunpack.c.h.b16 %v369
      %v600 = vunpack.c.l.b16 %v370
      %v601 = vunpack.c.h.b16 %v370
      %v602 = vunpack.c.l.b16 %v371
      %v603 = vunpack.c.h.b16 %v371
      %v604 = vunpack.c.l.b16 %v372
      %v605 = vunpack.c.h.b16 %v372
      %v606 = vunpack.c.l.b16 %v373
      %v607 = vunpack.c.h.b16 %v373
      %v608 = vunpack.c.l.b16 %v374
      %v609 = vunpack.c.h.b16 %v374
      %v610 = vunpack.c.l.b16 %v375
      %v611 = vunpack.c.h.b16 %v375
      %v612 = vunpack.c.l.b16 %v376
      %v613 = vunpack.c.h.b16 %v376
      %v614 = vunpack.c.l.b16 %v377
      %v615 = vunpack.c.h.b16 %v377
      %v616 = vunpack.c.l.b16 %v378
      %v617 = vunpack.c.h.b16 %v378
      %v618 = vunpack.c.l.b16 %v379
      %v619 = vunpack.c.h.b16 %v379
      %v620 = vpack.c.b16 %v468, %v460
      %v621 = vpack.c.b16 %v469, %v461
      %v622 = vpack.c.b16 %v470, %v462
      %v623 = vpack.c.b16 %v471, %v463
      %v624 = vpack.c.b16 %v472, %v464
      %v625 = vpack.c.b16 %v473, %v465
      %v626 = vpack.c.b16 %v474, %v466
      %v627 = vpack.c.b16 %v475, %v467
      %v628 = vpack.c.b16 %v484, %v476
      %v629 = vpack.c.b16 %v485, %v477
      %v630 = vpack.c.b16 %v486, %v478
      %v631 = vpack.c.b16 %v487, %v479
      %v632 = vpack.c.b16 %v488, %v480
      %v633 = vpack.c.b16 %v489, %v481
      %v634 = vpack.c.b16 %v490, %v482
      %v635 = vpack.c.b16 %v491, %v483
      %v636 = vpack.c.b16 %v500, %v492
      %v637 = vpack.c.b16 %v501, %v493
      %v638 = vpack.c.b16 %v502, %v494
      %v639 = vpack.c.b16 %v503, %v495
      %v640 = vpack.c.b16 %v504, %v496
      %v641 = vpack.c.b16 %v505, %v497
      %v642 = vpack.c.b16 %v506, %v498
      %v643 = vpack.c.b16 %v507, %v499
      %v644 = vpack.c.b16 %v516, %v508
      %v645 = vpack.c.b16 %v517, %v509
      %v646 = vpack.c.b16 %v518, %v510
      %v647 = vpack.c.b16 %v519, %v511
      %v648 = vpack.c.b16 %v520, %v512
      %v649 = vpack.c.b16 %v521, %v513
      %v650 = vpack.c.b16 %v522, %v514
      %v651 = vpack.c.b16 %v523, %v515
      %v652 = vpack.c.b16 %v532, %v524
      %v653 = vpack.c.b16 %v533, %v525
      %v654 = vpack.c.b16 %v534, %v526
      %v655 = vpack.c.b16 %v535, %v527
      %v656 = vpack.c.b16 %v536, %v528
      %v657 = vpack.c.b16 %v537, %v529
      %v658 = vpack.c.b16 %v538, %v530
      %v659 = vpack.c.b16 %v539, %v531
      %v660 = vpack.c.b16 %v548, %v540
      %v661 = vpack.c.b16 %v549, %v541
      %v662 = vpack.c.b16 %v550, %v542
      %v663 = vpack.c.b16 %v551, %v543
      %v664 = vpack.c.b16 %v552, %v544
      %v665 = vpack.c.b16 %v553, %v545
      %v666 = vpack.c.b16 %v554, %v546
      %v667 = vpack.c.b16 %v555, %v547
      %v668 = vpack.c.b16 %v564, %v556
      %v669 = vpack.c.b16 %v565, %v557
      %v670 = vpack.c.b16 %v566, %v558
      %v671 = vpack.c.b16 %v567, %v559
      %v672 = vpack.c.b16 %v568, %v560
      %v673 = vpack.c.b16 %v569, %v561
      %v674 = vpack.c.b16 %v570, %v562
      %v675 = vpack.c.b16 %v571, %v563
      %v676 = vpack.c.b16 %v580, %v572
      %v677 = vpack.c.b16 %v581, %v573
      %v678 = vpack.c.b16 %v582, %v574
      %v679 = vpack.c.b16 %v583, %v575
      %v680 = vpack.c.b16 %v584, %v576
      %v681 = vpack.c.b16 %v585, %v577
      %v682 = vpack.c.b16 %v586, %v578
      %v683 = vpack.c.b16 %v587, %v579
      %v684 = vpack.c.b16 %v596, %v588
      %v685 = vpack.c.b16 %v597, %v589
      %v686 = vpack.c.b16 %v598, %v590
      %v687 = vpack.c.b16 %v599, %v591
      %v688 = vpack.c.b16 %v600, %v592
      %v689 = vpack.c.b16 %v601, %v593
      %v690 = vpack.c.b16 %v602, %v594
      %v691 = vpack.c.b16 %v603, %v595
      %v692 = vpack.c.b16 %v612, %v604
      %v693 = vpack.c.b16 %v613, %v605
      %v694 = vpack.c.b16 %v614, %v606
      %v695 = vpack.c.b16 %v615, %v607
      %v696 = vpack.c.b16 %v616, %v608
      %v697 = vpack.c.b16 %v617, %v609
      %v698 = vpack.c.b16 %v618, %v610
      %v699 = vpack.c.b16 %v619, %v611
      %v908 = vunpack.c.l.b16 %v172
      %v909 = vunpack.c.h.b16 %v172
      %v910 = vunpack.c.l.b16 %v173
      %v911 = vunpack.c.h.b16 %v173
      %v912 = vunpack.c.l.b16 %v174
      %v913 = vunpack.c.h.b16 %v174
      %v914 = vunpack.c.l.b16 %v175
      %v915 = vunpack.c.h.b16 %v175
      %v916 = vunpack.c.l.b16 %v176
      %v917 = vunpack.c.h.b16 %v176
      %v918 = vunpack.c.l.b16 %v177
      %v919 = vunpack.c.h.b16 %v177
      %v920 = vunpack.c.l.b16 %v178
      %v921 = vunpack.c.h.b16 %v178
      %v922 = vunpack.c.l.b16 %v179
      %v923 = vunpack.c.h.b16 %v179
      %v924 = vunpack.c.l.b16 %v180
      %v925 = vunpack.c.h.b16 %v180
      %v926 = vunpack.c.l.b16 %v181
      %v927 = vunpack.c.h.b16 %v181
      %v928 = vunpack.c.l.b16 %v182
      %v929 = vunpack.c.h.b16 %v182
      %v930 = vunpack.c.l.b16 %v183
      %v931 = vunpack.c.h.b16 %v183
      %v932 = vunpack.c.l.b16 %v184
      %v933 = vunpack.c.h.b16 %v184
      %v934 = vunpack.c.l.b16 %v185
      %v935 = vunpack.c.h.b16 %v185
      %v936 = vunpack.c.l.b16 %v186
      %v937 = vunpack.c.h.b16 %v186
      %v938 = vunpack.c.l.b16 %v187
      %v939 = vunpack.c.h.b16 %v187
      %v940 = vunpack.c.l.b16 %v188
      %v941 = vunpack.c.h.b16 %v188
      %v942 = vunpack.c.l.b16 %v189
      %v943 = vunpack.c.h.b16 %v189
      %v944 = vunpack.c.l.b16 %v190
      %v945 = vunpack.c.h.b16 %v190
      %v946 = vunpack.c.l.b16 %v191
      %v947 = vunpack.c.h.b16 %v191
      %v948 = vunpack.c.l.b16 %v192
      %v949 = vunpack.c.h.b16 %v192
      %v950 = vunpack.c.l.b16 %v193
      %v951 = vunpack.c.h.b16 %v193
      %v952 = vunpack.c.l.b16 %v194
      %v953 = vunpack.c.h.b16 %v194
      %v954 = vunpack.c.l.b16 %v195
      %v955 = vunpack.c.h.b16 %v195
      %v956 = vunpack.c.l.b16 %v196
      %v957 = vunpack.c.h.b16 %v196
      %v958 = vunpack.c.l.b16 %v197
      %v959 = vunpack.c.h.b16 %v197
      %v960 = vunpack.c.l.b16 %v198
      %v961 = vunpack.c.h.b16 %v198
      %v962 = vunpack.c.l.b16 %v199
      %v963 = vunpack.c.h.b16 %v199
      %v964 = vunpack.c.l.b16 %v200
      %v965 = vunpack.c.h.b16 %v200
      %v966 = vunpack.c.l.b16 %v201
      %v967 = vunpack.c.h.b16 %v201
      %v968 = vunpack.c.l.b16 %v202
      %v969 = vunpack.c.h.b16 %v202
      %v970 = vunpack.c.l.b16 %v203
      %v971 = vunpack.c.h.b16 %v203
      %v972 = vunpack.c.l.b16 %v204
      %v973 = vunpack.c.h.b16 %v204
      %v974 = vunpack.c.l.b16 %v205
      %v975 = vunpack.c.h.b16 %v205
      %v976 = vunpack.c.l.b16 %v206
      %v977 = vunpack.c.h.b16 %v206
      %v978 = vunpack.c.l.b16 %v207
      %v979 = vunpack.c.h.b16 %v207
      %v980 = vunpack.c.l.b16 %v208
      %v981 = vunpack.c.h.b16 %v208
      %v982 = vunpack.c.l.b16 %v209
      %v983 = vunpack.c.h.b16 %v209
      %v984 = vunpack.c.l.b16 %v210
      %v985 = vunpack.c.h.b16 %v210
      %v986 = vunpack.c.l.b16 %v211
      %v987 = vunpack.c.h.b16 %v211
      %v988 = vunpack.c.l.b16 %v212
      %v989 = vunpack.c.h.b16 %v212
      %v990 = vunpack.c.l.b16 %v213
      %v991 = vunpack.c.h.b16 %v213
      %v992 = vunpack.c.l.b16 %v214
      %v993 = vunpack.c.h.b16 %v214
      %v994 = vunpack.c.l.b16 %v215
      %v995 = vunpack.c.h.b16 %v215
      %v996 = vunpack.c.l.b16 %v216
      %v997 = vunpack.c.h.b16 %v216
      %v998 = vunpack.c.l.b16 %v217
      %v999 = vunpack.c.h.b16 %v217
      %v1000 = vunpack.c.l.b16 %v218
      %v1001 = vunpack.c.h.b16 %v218
      %v1002 = vunpack.c.l.b16 %v219
      %v1003 = vunpack.c.h.b16 %v219
      %v1004 = vunpack.c.l.b16 %v220
      %v1005 = vunpack.c.h.b16 %v220
      %v1006 = vunpack.c.l.b16 %v221
      %v1007 = vunpack.c.h.b16 %v221
      %v1008 = vunpack.c.l.b16 %v222
      %v1009 = vunpack.c.h.b16 %v222
      %v1010 = vunpack.c.l.b16 %v223
      %v1011 = vunpack.c.h.b16 %v223
      %v1012 = vunpack.c.l.b16 %v224
      %v1013 = vunpack.c.h.b16 %v224
      %v1014 = vunpack.c.l.b16 %v225
      %v1015 = vunpack.c.h.b16 %v225
      %v1016 = vunpack.c.l.b16 %v226
      %v1017 = vunpack.c.h.b16 %v226
      %v1018 = vunpack.c.l.b16 %v227
      %v1019 = vunpack.c.h.b16 %v227
      %v1020 = vunpack.c.l.b16 %v228
      %v1021 = vunpack.c.h.b16 %v228
      %v1022 = vunpack.c.l.b16 %v229
      %v1023 = vunpack.c.h.b16 %v229
      %v1024 = vunpack.c.l.b16 %v230
      %v1025 = vunpack.c.h.b16 %v230
      %v1026 = vunpack.c.l.b16 %v231
      %v1027 = vunpack.c.h.b16 %v231
      %v1028 = vunpack.c.l.b16 %v232
      %v1029 = vunpack.c.h.b16 %v232
      %v1030 = vunpack.c.l.b16 %v233
      %v1031 = vunpack.c.h.b16 %v233
      %v1032 = vunpack.c.l.b16 %v234
      %v1033 = vunpack.c.h.b16 %v234
      %v1034 = vunpack.c.l.b16 %v235
      %v1035 = vunpack.c.h.b16 %v235
      %v1036 = vunpack.c.l.b16 %v236
      %v1037 = vunpack.c.h.b16 %v236
      %v1038 = vunpack.c.l.b16 %v237
      %v1039 = vunpack.c.h.b16 %v237
      %v1040 = vunpack.c.l.b16 %v238
      %v1041 = vunpack.c.h.b16 %v238
      %v1042 = vunpack.c.l.b16 %v239
      %v1043 = vunpack.c.h.b16 %v239
      %v1044 = vunpack.c.l.b16 %v240
      %v1045 = vunpack.c.h.b16 %v240
      %v1046 = vunpack.c.l.b16 %v241
      %v1047 = vunpack.c.h.b16 %v241
      %v1048 = vunpack.c.l.b16 %v242
      %v1049 = vunpack.c.h.b16 %v242
      %v1050 = vunpack.c.l.b16 %v243
      %v1051 = vunpack.c.h.b16 %v243
      %v1052 = vunpack.c.l.b16 %v244
      %v1053 = vunpack.c.h.b16 %v244
      %v1054 = vunpack.c.l.b16 %v245
      %v1055 = vunpack.c.h.b16 %v245
      %v1056 = vunpack.c.l.b16 %v246
      %v1057 = vunpack.c.h.b16 %v246
      %v1058 = vunpack.c.l.b16 %v247
      %v1059 = vunpack.c.h.b16 %v247
      %v1060 = vunpack.c.l.b16 %v248
      %v1061 = vunpack.c.h.b16 %v248
      %v1062 = vunpack.c.l.b16 %v249
      %v1063 = vunpack.c.h.b16 %v249
      %v1064 = vunpack.c.l.b16 %v250
      %v1065 = vunpack.c.h.b16 %v250
      %v1066 = vunpack.c.l.b16 %v251
      %v1067 = vunpack.c.h.b16 %v251
      %v1068 = vunpack.c.l.b16 %v252
      %v1069 = vunpack.c.h.b16 %v252
      %v1070 = vunpack.c.l.b16 %v253
      %v1071 = vunpack.c.h.b16 %v253
      %v1072 = vunpack.c.l.b16 %v254
      %v1073 = vunpack.c.h.b16 %v254
      %v1074 = vunpack.c.l.b16 %v255
      %v1075 = vunpack.c.h.b16 %v255
      %v1076 = vunpack.c.l.b16 %v256
      %v1077 = vunpack.c.h.b16 %v256
      %v1078 = vunpack.c.l.b16 %v257
      %v1079 = vunpack.c.h.b16 %v257
      %v1080 = vunpack.c.l.b16 %v258
      %v1081 = vunpack.c.h.b16 %v258
      %v1082 = vunpack.c.l.b16 %v259
      %v1083 = vunpack.c.h.b16 %v259
      %v1084 = vunpack.c.l.b16 %v260
      %v1085 = vunpack.c.h.b16 %v260
      %v1086 = vunpack.c.l.b16 %v261
      %v1087 = vunpack.c.h.b16 %v261
      %v1088 = vunpack.c.l.b16 %v262
      %v1089 = vunpack.c.h.b16 %v262
      %v1090 = vunpack.c.l.b16 %v263
      %v1091 = vunpack.c.h.b16 %v263
      %v1092 = vunpack.c.l.b16 %v264
      %v1093 = vunpack.c.h.b16 %v264
      %v1094 = vunpack.c.l.b16 %v265
      %v1095 = vunpack.c.h.b16 %v265
      %v1096 = vunpack.c.l.b16 %v266
      %v1097 = vunpack.c.h.b16 %v266
      %v1098 = vunpack.c.l.b16 %v267
      %v1099 = vunpack.c.h.b16 %v267
      %v1100 = vunpack.c.l.b16 %v268
      %v1101 = vunpack.c.h.b16 %v268
      %v1102 = vunpack.c.l.b16 %v269
      %v1103 = vunpack.c.h.b16 %v269
      %v1104 = vunpack.c.l.b16 %v270
      %v1105 = vunpack.c.h.b16 %v270
      %v1106 = vunpack.c.l.b16 %v271
      %v1107 = vunpack.c.h.b16 %v271
      %v1108 = vunpack.c.l.b16 %v272
      %v1109 = vunpack.c.h.b16 %v272
      %v1110 = vunpack.c.l.b16 %v273
      %v1111 = vunpack.c.h.b16 %v273
      %v1112 = vunpack.c.l.b16 %v274
      %v1113 = vunpack.c.h.b16 %v274
      %v1114 = vunpack.c.l.b16 %v275
      %v1115 = vunpack.c.h.b16 %v275
      %v1116 = vunpack.c.l.b16 %v276
      %v1117 = vunpack.c.h.b16 %v276
      %v1118 = vunpack.c.l.b16 %v277
      %v1119 = vunpack.c.h.b16 %v277
      %v1120 = vunpack.c.l.b16 %v278
      %v1121 = vunpack.c.h.b16 %v278
      %v1122 = vunpack.c.l.b16 %v279
      %v1123 = vunpack.c.h.b16 %v279
      %v1124 = vunpack.c.l.b16 %v280
      %v1125 = vunpack.c.h.b16 %v280
      %v1126 = vunpack.c.l.b16 %v281
      %v1127 = vunpack.c.h.b16 %v281
      %v1128 = vunpack.c.l.b16 %v282
      %v1129 = vunpack.c.h.b16 %v282
      %v1130 = vunpack.c.l.b16 %v283
      %v1131 = vunpack.c.h.b16 %v283
      %v1132 = vunpack.c.l.b16 %v284
      %v1133 = vunpack.c.h.b16 %v284
      %v1134 = vunpack.c.l.b16 %v285
      %v1135 = vunpack.c.h.b16 %v285
      %v1136 = vunpack.c.l.b16 %v286
      %v1137 = vunpack.c.h.b16 %v286
      %v1138 = vunpack.c.l.b16 %v287
      %v1139 = vunpack.c.h.b16 %v287
      %v1140 = vunpack.c.l.b16 %v288
      %v1141 = vunpack.c.h.b16 %v288
      %v1142 = vunpack.c.l.b16 %v289
      %v1143 = vunpack.c.h.b16 %v289
      %v1144 = vunpack.c.l.b16 %v290
      %v1145 = vunpack.c.h.b16 %v290
      %v1146 = vunpack.c.l.b16 %v291
      %v1147 = vunpack.c.h.b16 %v291
      %v1148 = vunpack.c.l.b16 %v292
      %v1149 = vunpack.c.h.b16 %v292
      %v1150 = vunpack.c.l.b16 %v293
      %v1151 = vunpack.c.h.b16 %v293
      %v1152 = vunpack.c.l.b16 %v294
      %v1153 = vunpack.c.h.b16 %v294
      %v1154 = vunpack.c.l.b16 %v295
      %v1155 = vunpack.c.h.b16 %v295
      %v1156 = vunpack.c.l.b16 %v296
      %v1157 = vunpack.c.h.b16 %v296
      %v1158 = vunpack.c.l.b16 %v297
      %v1159 = vunpack.c.h.b16 %v297
      %v1160 = vunpack.c.l.b16 %v298
      %v1161 = vunpack.c.h.b16 %v298
      %v1162 = vunpack.c.l.b16 %v299
      %v1163 = vunpack.c.h.b16 %v299
      %v1164 = vpack.c.b16 %v910, %v908
      %v1165 = vpack.c.b16 %v911, %v909
      %v1166 = vpack.c.b16 %v914, %v912
      %v1167 = vpack.c.b16 %v915, %v913
      %v1168 = vpack.c.b16 %v918, %v916
      %v1169 = vpack.c.b16 %v919, %v917
      %v1170 = vpack.c.b16 %v922, %v920
      %v1171 = vpack.c.b16 %v923, %v921
      %v1172 = vpack.c.b16 %v926, %v924
      %v1173 = vpack.c.b16 %v927, %v925
      %v1174 = vpack.c.b16 %v930, %v928
      %v1175 = vpack.c.b16 %v931, %v929
      %v1176 = vpack.c.b16 %v934, %v932
      %v1177 = vpack.c.b16 %v935, %v933
      %v1178 = vpack.c.b16 %v938, %v936
      %v1179 = vpack.c.b16 %v939, %v937
      %v1180 = vpack.c.b16 %v942, %v940
      %v1181 = vpack.c.b16 %v943, %v941
      %v1182 = vpack.c.b16 %v946, %v944
      %v1183 = vpack.c.b16 %v947, %v945
      %v1184 = vpack.c.b16 %v950, %v948
      %v1185 = vpack.c.b16 %v951, %v949
      %v1186 = vpack.c.b16 %v954, %v952
      %v1187 = vpack.c.b16 %v955, %v953
      %v1188 = vpack.c.b16 %v958, %v956
      %v1189 = vpack.c.b16 %v959, %v957
      %v1190 = vpack.c.b16 %v962, %v960
      %v1191 = vpack.c.b16 %v963, %v961
      %v1192 = vpack.c.b16 %v966, %v964
      %v1193 = vpack.c.b16 %v967, %v965
      %v1194 = vpack.c.b16 %v970, %v968
      %v1195 = vpack.c.b16 %v971, %v969
      %v1196 = vpack.c.b16 %v974, %v972
      %v1197 = vpack.c.b16 %v975, %v973
      %v1198 = vpack.c.b16 %v978, %v976
      %v1199 = vpack.c.b16 %v979, %v977
      %v1200 = vpack.c.b16 %v982, %v980
      %v1201 = vpack.c.b16 %v983, %v981
      %v1202 = vpack.c.b16 %v986, %v984
      %v1203 = vpack.c.b16 %v987, %v985
      %v1204 = vpack.c.b16 %v990, %v988
      %v1205 = vpack.c.b16 %v991, %v989
      %v1206 = vpack.c.b16 %v994, %v992
      %v1207 = vpack.c.b16 %v995, %v993
      %v1208 = vpack.c.b16 %v998, %v996
      %v1209 = vpack.c.b16 %v999, %v997
      %v1210 = vpack.c.b16 %v1002, %v1000
      %v1211 = vpack.c.b16 %v1003, %v1001
      %v1212 = vpack.c.b16 %v1006, %v1004
      %v1213 = vpack.c.b16 %v1007, %v1005
      %v1214 = vpack.c.b16 %v1010, %v1008
      %v1215 = vpack.c.b16 %v1011, %v1009
      %v1216 = vpack.c.b16 %v1014, %v1012
      %v1217 = vpack.c.b16 %v1015, %v1013
      %v1218 = vpack.c.b16 %v1018, %v1016
      %v1219 = vpack.c.b16 %v1019, %v1017
      %v1220 = vpack.c.b16 %v1022, %v1020
      %v1221 = vpack.c.b16 %v1023, %v1021
      %v1222 = vpack.c.b16 %v1026, %v1024
      %v1223 = vpack.c.b16 %v1027, %v1025
      %v1224 = vpack.c.b16 %v1030, %v1028
      %v1225 = vpack.c.b16 %v1031, %v1029
      %v1226 = vpack.c.b16 %v1034, %v1032
      %v1227 = vpack.c.b16 %v1035, %v1033
      %v1228 = vpack.c.b16 %v1038, %v1036
      %v1229 = vpack.c.b16 %v1039, %v1037
      %v1230 = vpack.c.b16 %v1042, %v1040
      %v1231 = vpack.c.b16 %v1043, %v1041
      %v1232 = vpack.c.b16 %v1046, %v1044
      %v1233 = vpack.c.b16 %v1047, %v1045
      %v1234 = vpack.c.b16 %v1050, %v1048
      %v1235 = vpack.c.b16 %v1051, %v1049
      %v1236 = vpack.c.b16 %v1054, %v1052
      %v1237 = vpack.c.b16 %v1055, %v1053
      %v1238 = vpack.c.b16 %v1058, %v1056
      %v1239 = vpack.c.b16 %v1059, %v1057
      %v1240 = vpack.c.b16 %v1062, %v1060
      %v1241 = vpack.c.b16 %v1063, %v1061
      %v1242 = vpack.c.b16 %v1066, %v1064
      %v1243 = vpack.c.b16 %v1067, %v1065
      %v1244 = vpack.c.b16 %v1070, %v1068
      %v1245 = vpack.c.b16 %v1071, %v1069
      %v1246 = vpack.c.b16 %v1074, %v1072
      %v1247 = vpack.c.b16 %v1075, %v1073
      %v1248 = vpack.c.b16 %v1078, %v1076
      %v1249 = vpack.c.b16 %v1079, %v1077
      %v1250 = vpack.c.b16 %v1082, %v1080
      %v1251 = vpack.c.b16 %v1083, %v1081
      %v1252 = vpack.c.b16 %v1086, %v1084
      %v1253 = vpack.c.b16 %v1087, %v1085
      %v1254 = vpack.c.b16 %v1090, %v1088
      %v1255 = vpack.c.b16 %v1091, %v1089
      %v1256 = vpack.c.b16 %v1094, %v1092
      %v1257 = vpack.c.b16 %v1095, %v1093
      %v1258 = vpack.c.b16 %v1098, %v1096
      %v1259 = vpack.c.b16 %v1099, %v1097
      %v1260 = vpack.c.b16 %v1102, %v1100
      %v1261 = vpack.c.b16 %v1103, %v1101
      %v1262 = vpack.c.b16 %v1106, %v1104
      %v1263 = vpack.c.b16 %v1107, %v1105
      %v1264 = vpack.c.b16 %v1110, %v1108
      %v1265 = vpack.c.b16 %v1111, %v1109
      %v1266 = vpack.c.b16 %v1114, %v1112
      %v1267 = vpack.c.b16 %v1115, %v1113
      %v1268 = vpack.c.b16 %v1118, %v1116
      %v1269 = vpack.c.b16 %v1119, %v1117
      %v1270 = vpack.c.b16 %v1122, %v1120
      %v1271 = vpack.c.b16 %v1123, %v1121
      %v1272 = vpack.c.b16 %v1126, %v1124
      %v1273 = vpack.c.b16 %v1127, %v1125
      %v1274 = vpack.c.b16 %v1130, %v1128
      %v1275 = vpack.c.b16 %v1131, %v1129
      %v1276 = vpack.c.b16 %v1134, %v1132
      %v1277 = vpack.c.b16 %v1135, %v1133
      %v1278 = vpack.c.b16 %v1138, %v1136
      %v1279 = vpack.c.b16 %v1139, %v1137
      %v1280 = vpack.c.b16 %v1142, %v1140
      %v1281 = vpack.c.b16 %v1143, %v1141
      %v1282 = vpack.c.b16 %v1146, %v1144
      %v1283 = vpack.c.b16 %v1147, %v1145
      %v1284 = vpack.c.b16 %v1150, %v1148
      %v1285 = vpack.c.b16 %v1151, %v1149
      %v1286 = vpack.c.b16 %v1154, %v1152
      %v1287 = vpack.c.b16 %v1155, %v1153
      %v1288 = vpack.c.b16 %v1158, %v1156
      %v1289 = vpack.c.b16 %v1159, %v1157
      %v1290 = vpack.c.b16 %v1162, %v1160
      %v1291 = vpack.c.b16 %v1163, %v1161
      %1420 = vmatprep.subr.bf16.mxu0 %v1179
      %1421 = vmatpush1.bf16.msra.mxu0 %v1178
      %1422 = vmatprep.subr.bf16.mxu0 %v1177
      %1423 = vmatpush1.bf16.msra.mxu0 %v1176
      %1424 = vmatprep.subr.bf16.mxu0 %v1175
      %1425 = vmatpush1.bf16.msra.mxu0 %v1174
      %1426 = vmatprep.subr.bf16.mxu0 %v1173
      %1427 = vmatpush1.bf16.msra.mxu0 %v1172
      %1428 = vmatprep.subr.bf16.mxu0 %v1171
      %1429 = vmatpush1.bf16.msra.mxu0 %v1170
      %1430 = vmatprep.subr.bf16.mxu0 %v1169
      %1431 = vmatpush1.bf16.msra.mxu0 %v1168
      %1432 = vmatprep.subr.bf16.mxu0 %v1167
      %1433 = vmatpush1.bf16.msra.mxu0 %v1166
      %1434 = vmatprep.subr.bf16.mxu0 %v1165
      %1435 = vmatpush1.bf16.msra.mxu0 %v1164
      %1436 = vmatprep.subr.bf16.mxu0 %v1195
      %1437 = vmatpush2.bf16.msra.mxu0 %v1194
      %1438 = vmatprep.subr.bf16.mxu0 %v1193
      %1439 = vmatpush2.bf16.msra.mxu0 %v1192
      %1440 = vmatprep.subr.bf16.mxu0 %v1191
      %1441 = vmatpush2.bf16.msra.mxu0 %v1190
      %1442 = vmatprep.subr.bf16.mxu0 %v1189
      %1443 = vmatpush2.bf16.msra.mxu0 %v1188
      %1444 = vmatprep.subr.bf16.mxu0 %v1187
      %1445 = vmatpush2.bf16.msra.mxu0 %v1186
      %1446 = vmatprep.subr.bf16.mxu0 %v1185
      %1447 = vmatpush2.bf16.msra.mxu0 %v1184
      %1448 = vmatprep.subr.bf16.mxu0 %v1183
      %1449 = vmatpush2.bf16.msra.mxu0 %v1182
      %1450 = vmatprep.subr.bf16.mxu0 %v1181
      %1451 = vmatpush2.bf16.msra.mxu0 %v1180
      %1452 = vmatprep.mubr.bf16.mxu0 %v621
      %1453 = vmatmul.mubr.bf16.gmra.mxu0 %v620
      %v1454 = vpop.f32.mrf.mxu0
      %v1455 = vadd.f32 0.0, %v1454
      %v1456 = vpop.f32.mrf.mxu0
      %v1457 = vadd.f32 0.0, %v1456
      %v1458 = vpop.f32.mrf.mxu0
      %v1459 = vadd.f32 0.0, %v1458
      %v1460 = vpop.f32.mrf.mxu0
      %v1461 = vadd.f32 0.0, %v1460
      %1462 = vmatprep.mubr.bf16.mxu0 %v629
      %1463 = vmatmul.mubr.bf16.gmra.mxu0 %v628
      %v1464 = vpop.f32.mrf.mxu0
      %v1465 = vadd.f32 0.0, %v1464
      %v1466 = vpop.f32.mrf.mxu0
      %v1467 = vadd.f32 0.0, %v1466
      %v1468 = vpop.f32.mrf.mxu0
      %v1469 = vadd.f32 0.0, %v1468
      %v1470 = vpop.f32.mrf.mxu0
      %v1471 = vadd.f32 0.0, %v1470
      %1472 = vmatprep.mubr.bf16.mxu0 %v637
      %1473 = vmatmul.mubr.bf16.gmra.mxu0 %v636
      %v1474 = vpop.f32.mrf.mxu0
      %v1475 = vadd.f32 0.0, %v1474
      %v1476 = vpop.f32.mrf.mxu0
      %v1477 = vadd.f32 0.0, %v1476
      %v1478 = vpop.f32.mrf.mxu0
      %v1479 = vadd.f32 0.0, %v1478
      %v1480 = vpop.f32.mrf.mxu0
      %v1481 = vadd.f32 0.0, %v1480
      %1482 = vmatprep.mubr.bf16.mxu0 %v645
      %1483 = vmatmul.mubr.bf16.gmra.mxu0 %v644
      %v1484 = vpop.f32.mrf.mxu0
      %v1485 = vadd.f32 0.0, %v1484
      %v1486 = vpop.f32.mrf.mxu0
      %v1487 = vadd.f32 0.0, %v1486
      %v1488 = vpop.f32.mrf.mxu0
      %v1489 = vadd.f32 0.0, %v1488
      %v1490 = vpop.f32.mrf.mxu0
      %v1491 = vadd.f32 0.0, %v1490
      %1492 = vmatprep.mubr.bf16.mxu0 %v653
      %1493 = vmatmul.mubr.bf16.gmra.mxu0 %v652
      %v1494 = vpop.f32.mrf.mxu0
      %v1495 = vadd.f32 0.0, %v1494
      %v1496 = vpop.f32.mrf.mxu0
      %v1497 = vadd.f32 0.0, %v1496
      %v1498 = vpop.f32.mrf.mxu0
      %v1499 = vadd.f32 0.0, %v1498
      %v1500 = vpop.f32.mrf.mxu0
      %v1501 = vadd.f32 0.0, %v1500
      %1502 = vmatprep.mubr.bf16.mxu0 %v661
      %1503 = vmatmul.mubr.bf16.gmra.mxu0 %v660
      %v1504 = vpop.f32.mrf.mxu0
      %v1505 = vadd.f32 0.0, %v1504
      %v1506 = vpop.f32.mrf.mxu0
      %v1507 = vadd.f32 0.0, %v1506
      %v1508 = vpop.f32.mrf.mxu0
      %v1509 = vadd.f32 0.0, %v1508
      %v1510 = vpop.f32.mrf.mxu0
      %v1511 = vadd.f32 0.0, %v1510
      %1512 = vmatprep.mubr.bf16.mxu0 %v669
      %1513 = vmatmul.mubr.bf16.gmra.mxu0 %v668
      %v1514 = vpop.f32.mrf.mxu0
      %v1515 = vadd.f32 0.0, %v1514
      %v1516 = vpop.f32.mrf.mxu0
      %v1517 = vadd.f32 0.0, %v1516
      %v1518 = vpop.f32.mrf.mxu0
      %v1519 = vadd.f32 0.0, %v1518
      %v1520 = vpop.f32.mrf.mxu0
      %v1521 = vadd.f32 0.0, %v1520
      %1522 = vmatprep.mubr.bf16.mxu0 %v677
      %1523 = vmatmul.mubr.bf16.gmra.mxu0 %v676
      %v1524 = vpop.f32.mrf.mxu0
      %v1525 = vadd.f32 0.0, %v1524
      %v1526 = vpop.f32.mrf.mxu0
      %v1527 = vadd.f32 0.0, %v1526
      %v1528 = vpop.f32.mrf.mxu0
      %v1529 = vadd.f32 0.0, %v1528
      %v1530 = vpop.f32.mrf.mxu0
      %v1531 = vadd.f32 0.0, %v1530
      %1532 = vmatprep.mubr.bf16.mxu0 %v685
      %1533 = vmatmul.mubr.bf16.gmra.mxu0 %v684
      %v1534 = vpop.f32.mrf.mxu0
      %v1535 = vadd.f32 0.0, %v1534
      %v1536 = vpop.f32.mrf.mxu0
      %v1537 = vadd.f32 0.0, %v1536
      %v1538 = vpop.f32.mrf.mxu0
      %v1539 = vadd.f32 0.0, %v1538
      %v1540 = vpop.f32.mrf.mxu0
      %v1541 = vadd.f32 0.0, %v1540
      %1542 = vmatprep.mubr.bf16.mxu0 %v693
      %1543 = vmatmul.mubr.bf16.gmra.mxu0 %v692
      %v1544 = vpop.f32.mrf.mxu0
      %v1545 = vadd.f32 0.0, %v1544
      %v1546 = vpop.f32.mrf.mxu0
      %v1547 = vadd.f32 0.0, %v1546
      %v1548 = vpop.f32.mrf.mxu0
      %v1549 = vadd.f32 0.0, %v1548
      %v1550 = vpop.f32.mrf.mxu0
      %v1551 = vadd.f32 0.0, %v1550
      %1552 = vdwg.mxu0
      %1553 = vmatprep.subr.bf16.mxu0 %v1211
      %1554 = vmatpush1.bf16.msra.mxu0 %v1210
      %1555 = vmatprep.subr.bf16.mxu0 %v1209
      %1556 = vmatpush1.bf16.msra.mxu0 %v1208
      %1557 = vmatprep.subr.bf16.mxu0 %v1207
      %1558 = vmatpush1.bf16.msra.mxu0 %v1206
      %1559 = vmatprep.subr.bf16.mxu0 %v1205
      %1560 = vmatpush1.bf16.msra.mxu0 %v1204
      %1561 = vmatprep.subr.bf16.mxu0 %v1203
      %1562 = vmatpush1.bf16.msra.mxu0 %v1202
      %1563 = vmatprep.subr.bf16.mxu0 %v1201
      %1564 = vmatpush1.bf16.msra.mxu0 %v1200
      %1565 = vmatprep.subr.bf16.mxu0 %v1199
      %1566 = vmatpush1.bf16.msra.mxu0 %v1198
      %1567 = vmatprep.subr.bf16.mxu0 %v1197
      %1568 = vmatpush1.bf16.msra.mxu0 %v1196
      %1569 = vmatprep.subr.bf16.mxu0 %v1227
      %1570 = vmatpush2.bf16.msra.mxu0 %v1226
      %1571 = vmatprep.subr.bf16.mxu0 %v1225
      %1572 = vmatpush2.bf16.msra.mxu0 %v1224
      %1573 = vmatprep.subr.bf16.mxu0 %v1223
      %1574 = vmatpush2.bf16.msra.mxu0 %v1222
      %1575 = vmatprep.subr.bf16.mxu0 %v1221
      %1576 = vmatpush2.bf16.msra.mxu0 %v1220
      %1577 = vmatprep.subr.bf16.mxu0 %v1219
      %1578 = vmatpush2.bf16.msra.mxu0 %v1218
      %1579 = vmatprep.subr.bf16.mxu0 %v1217
      %1580 = vmatpush2.bf16.msra.mxu0 %v1216
      %1581 = vmatprep.subr.bf16.mxu0 %v1215
      %1582 = vmatpush2.bf16.msra.mxu0 %v1214
      %1583 = vmatprep.subr.bf16.mxu0 %v1213
      %1584 = vmatpush2.bf16.msra.mxu0 %v1212
      %1585 = vmatprep.mubr.bf16.mxu0 %v623
      %1586 = vmatmul.mubr.bf16.gmra.mxu0 %v622
      %v1587 = vpop.f32.mrf.mxu0
      %v1588 = vadd.f32 %v1455, %v1587
      %v1589 = vpop.f32.mrf.mxu0
      %v1590 = vadd.f32 %v1457, %v1589
      %v1591 = vpop.f32.mrf.mxu0
      %v1592 = vadd.f32 %v1459, %v1591
      %v1593 = vpop.f32.mrf.mxu0
      %v1594 = vadd.f32 %v1461, %v1593
      %1595 = vmatprep.mubr.bf16.mxu0 %v631
      %1596 = vmatmul.mubr.bf16.gmra.mxu0 %v630
      %v1597 = vpop.f32.mrf.mxu0
      %v1598 = vadd.f32 %v1465, %v1597
      %v1599 = vpop.f32.mrf.mxu0
      %v1600 = vadd.f32 %v1467, %v1599
      %v1601 = vpop.f32.mrf.mxu0
      %v1602 = vadd.f32 %v1469, %v1601
      %v1603 = vpop.f32.mrf.mxu0
      %v1604 = vadd.f32 %v1471, %v1603
      %1605 = vmatprep.mubr.bf16.mxu0 %v639
      %1606 = vmatmul.mubr.bf16.gmra.mxu0 %v638
      %v1607 = vpop.f32.mrf.mxu0
      %v1608 = vadd.f32 %v1475, %v1607
      %v1609 = vpop.f32.mrf.mxu0
      %v1610 = vadd.f32 %v1477, %v1609
      %v1611 = vpop.f32.mrf.mxu0
      %v1612 = vadd.f32 %v1479, %v1611
      %v1613 = vpop.f32.mrf.mxu0
      %v1614 = vadd.f32 %v1481, %v1613
      %1615 = vmatprep.mubr.bf16.mxu0 %v647
      %1616 = vmatmul.mubr.bf16.gmra.mxu0 %v646
      %v1617 = vpop.f32.mrf.mxu0
      %v1618 = vadd.f32 %v1485, %v1617
      %v1619 = vpop.f32.mrf.mxu0
      %v1620 = vadd.f32 %v1487, %v1619
      %v1621 = vpop.f32.mrf.mxu0
      %v1622 = vadd.f32 %v1489, %v1621
      %v1623 = vpop.f32.mrf.mxu0
      %v1624 = vadd.f32 %v1491, %v1623
      %1625 = vmatprep.mubr.bf16.mxu0 %v655
      %1626 = vmatmul.mubr.bf16.gmra.mxu0 %v654
      %v1627 = vpop.f32.mrf.mxu0
      %v1628 = vadd.f32 %v1495, %v1627
      %v1629 = vpop.f32.mrf.mxu0
      %v1630 = vadd.f32 %v1497, %v1629
      %v1631 = vpop.f32.mrf.mxu0
      %v1632 = vadd.f32 %v1499, %v1631
      %v1633 = vpop.f32.mrf.mxu0
      %v1634 = vadd.f32 %v1501, %v1633
      %1635 = vmatprep.mubr.bf16.mxu0 %v663
      %1636 = vmatmul.mubr.bf16.gmra.mxu0 %v662
      %v1637 = vpop.f32.mrf.mxu0
      %v1638 = vadd.f32 %v1505, %v1637
      %v1639 = vpop.f32.mrf.mxu0
      %v1640 = vadd.f32 %v1507, %v1639
      %v1641 = vpop.f32.mrf.mxu0
      %v1642 = vadd.f32 %v1509, %v1641
      %v1643 = vpop.f32.mrf.mxu0
      %v1644 = vadd.f32 %v1511, %v1643
      %1645 = vmatprep.mubr.bf16.mxu0 %v671
      %1646 = vmatmul.mubr.bf16.gmra.mxu0 %v670
      %v1647 = vpop.f32.mrf.mxu0
      %v1648 = vadd.f32 %v1515, %v1647
      %v1649 = vpop.f32.mrf.mxu0
      %v1650 = vadd.f32 %v1517, %v1649
      %v1651 = vpop.f32.mrf.mxu0
      %v1652 = vadd.f32 %v1519, %v1651
      %v1653 = vpop.f32.mrf.mxu0
      %v1654 = vadd.f32 %v1521, %v1653
      %1655 = vmatprep.mubr.bf16.mxu0 %v679
      %1656 = vmatmul.mubr.bf16.gmra.mxu0 %v678
      %v1657 = vpop.f32.mrf.mxu0
      %v1658 = vadd.f32 %v1525, %v1657
      %v1659 = vpop.f32.mrf.mxu0
      %v1660 = vadd.f32 %v1527, %v1659
      %v1661 = vpop.f32.mrf.mxu0
      %v1662 = vadd.f32 %v1529, %v1661
      %v1663 = vpop.f32.mrf.mxu0
      %v1664 = vadd.f32 %v1531, %v1663
      %1665 = vmatprep.mubr.bf16.mxu0 %v687
      %1666 = vmatmul.mubr.bf16.gmra.mxu0 %v686
      %v1667 = vpop.f32.mrf.mxu0
      %v1668 = vadd.f32 %v1535, %v1667
      %v1669 = vpop.f32.mrf.mxu0
      %v1670 = vadd.f32 %v1537, %v1669
      %v1671 = vpop.f32.mrf.mxu0
      %v1672 = vadd.f32 %v1539, %v1671
      %v1673 = vpop.f32.mrf.mxu0
      %v1674 = vadd.f32 %v1541, %v1673
      %1675 = vmatprep.mubr.bf16.mxu0 %v695
      %1676 = vmatmul.mubr.bf16.gmra.mxu0 %v694
      %v1677 = vpop.f32.mrf.mxu0
      %v1678 = vadd.f32 %v1545, %v1677
      %v1679 = vpop.f32.mrf.mxu0
      %v1680 = vadd.f32 %v1547, %v1679
      %v1681 = vpop.f32.mrf.mxu0
      %v1682 = vadd.f32 %v1549, %v1681
      %v1683 = vpop.f32.mrf.mxu0
      %v1684 = vadd.f32 %v1551, %v1683
      %1685 = vdwg.mxu0
      %1686 = vmatprep.subr.bf16.mxu0 %v1243
      %1687 = vmatpush1.bf16.msra.mxu0 %v1242
      %1688 = vmatprep.subr.bf16.mxu0 %v1241
      %1689 = vmatpush1.bf16.msra.mxu0 %v1240
      %1690 = vmatprep.subr.bf16.mxu0 %v1239
      %1691 = vmatpush1.bf16.msra.mxu0 %v1238
      %1692 = vmatprep.subr.bf16.mxu0 %v1237
      %1693 = vmatpush1.bf16.msra.mxu0 %v1236
      %1694 = vmatprep.subr.bf16.mxu0 %v1235
      %1695 = vmatpush1.bf16.msra.mxu0 %v1234
      %1696 = vmatprep.subr.bf16.mxu0 %v1233
      %1697 = vmatpush1.bf16.msra.mxu0 %v1232
      %1698 = vmatprep.subr.bf16.mxu0 %v1231
      %1699 = vmatpush1.bf16.msra.mxu0 %v1230
      %1700 = vmatprep.subr.bf16.mxu0 %v1229
      %1701 = vmatpush1.bf16.msra.mxu0 %v1228
      %1702 = vmatprep.subr.bf16.mxu0 %v1259
      %1703 = vmatpush2.bf16.msra.mxu0 %v1258
      %1704 = vmatprep.subr.bf16.mxu0 %v1257
      %1705 = vmatpush2.bf16.msra.mxu0 %v1256
      %1706 = vmatprep.subr.bf16.mxu0 %v1255
      %1707 = vmatpush2.bf16.msra.mxu0 %v1254
      %1708 = vmatprep.subr.bf16.mxu0 %v1253
      %1709 = vmatpush2.bf16.msra.mxu0 %v1252
      %1710 = vmatprep.subr.bf16.mxu0 %v1251
      %1711 = vmatpush2.bf16.msra.mxu0 %v1250
      %1712 = vmatprep.subr.bf16.mxu0 %v1249
      %1713 = vmatpush2.bf16.msra.mxu0 %v1248
      %1714 = vmatprep.subr.bf16.mxu0 %v1247
      %1715 = vmatpush2.bf16.msra.mxu0 %v1246
      %1716 = vmatprep.subr.bf16.mxu0 %v1245
      %1717 = vmatpush2.bf16.msra.mxu0 %v1244
      %1718 = vmatprep.mubr.bf16.mxu0 %v625
      %1719 = vmatmul.mubr.bf16.gmra.mxu0 %v624
      %v1720 = vpop.f32.mrf.mxu0
      %v1721 = vadd.f32 %v1588, %v1720
      %v1722 = vpop.f32.mrf.mxu0
      %v1723 = vadd.f32 %v1590, %v1722
      %v1724 = vpop.f32.mrf.mxu0
      %v1725 = vadd.f32 %v1592, %v1724
      %v1726 = vpop.f32.mrf.mxu0
      %v1727 = vadd.f32 %v1594, %v1726
      %1728 = vmatprep.mubr.bf16.mxu0 %v633
      %1729 = vmatmul.mubr.bf16.gmra.mxu0 %v632
      %v1730 = vpop.f32.mrf.mxu0
      %v1731 = vadd.f32 %v1598, %v1730
      %v1732 = vpop.f32.mrf.mxu0
      %v1733 = vadd.f32 %v1600, %v1732
      %v1734 = vpop.f32.mrf.mxu0
      %v1735 = vadd.f32 %v1602, %v1734
      %v1736 = vpop.f32.mrf.mxu0
      %v1737 = vadd.f32 %v1604, %v1736
      %1738 = vmatprep.mubr.bf16.mxu0 %v641
      %1739 = vmatmul.mubr.bf16.gmra.mxu0 %v640
      %v1740 = vpop.f32.mrf.mxu0
      %v1741 = vadd.f32 %v1608, %v1740
      %v1742 = vpop.f32.mrf.mxu0
      %v1743 = vadd.f32 %v1610, %v1742
      %v1744 = vpop.f32.mrf.mxu0
      %v1745 = vadd.f32 %v1612, %v1744
      %v1746 = vpop.f32.mrf.mxu0
      %v1747 = vadd.f32 %v1614, %v1746
      %1748 = vmatprep.mubr.bf16.mxu0 %v649
      %1749 = vmatmul.mubr.bf16.gmra.mxu0 %v648
      %v1750 = vpop.f32.mrf.mxu0
      %v1751 = vadd.f32 %v1618, %v1750
      %v1752 = vpop.f32.mrf.mxu0
      %v1753 = vadd.f32 %v1620, %v1752
      %v1754 = vpop.f32.mrf.mxu0
      %v1755 = vadd.f32 %v1622, %v1754
      %v1756 = vpop.f32.mrf.mxu0
      %v1757 = vadd.f32 %v1624, %v1756
      %1758 = vmatprep.mubr.bf16.mxu0 %v657
      %1759 = vmatmul.mubr.bf16.gmra.mxu0 %v656
      %v1760 = vpop.f32.mrf.mxu0
      %v1761 = vadd.f32 %v1628, %v1760
      %v1762 = vpop.f32.mrf.mxu0
      %v1763 = vadd.f32 %v1630, %v1762
      %v1764 = vpop.f32.mrf.mxu0
      %v1765 = vadd.f32 %v1632, %v1764
      %v1766 = vpop.f32.mrf.mxu0
      %v1767 = vadd.f32 %v1634, %v1766
      %1768 = vmatprep.mubr.bf16.mxu0 %v665
      %1769 = vmatmul.mubr.bf16.gmra.mxu0 %v664
      %v1770 = vpop.f32.mrf.mxu0
      %v1771 = vadd.f32 %v1638, %v1770
      %v1772 = vpop.f32.mrf.mxu0
      %v1773 = vadd.f32 %v1640, %v1772
      %v1774 = vpop.f32.mrf.mxu0
      %v1775 = vadd.f32 %v1642, %v1774
      %v1776 = vpop.f32.mrf.mxu0
      %v1777 = vadd.f32 %v1644, %v1776
      %1778 = vmatprep.mubr.bf16.mxu0 %v673
      %1779 = vmatmul.mubr.bf16.gmra.mxu0 %v672
      %v1780 = vpop.f32.mrf.mxu0
      %v1781 = vadd.f32 %v1648, %v1780
      %v1782 = vpop.f32.mrf.mxu0
      %v1783 = vadd.f32 %v1650, %v1782
      %v1784 = vpop.f32.mrf.mxu0
      %v1785 = vadd.f32 %v1652, %v1784
      %v1786 = vpop.f32.mrf.mxu0
      %v1787 = vadd.f32 %v1654, %v1786
      %1788 = vmatprep.mubr.bf16.mxu0 %v681
      %1789 = vmatmul.mubr.bf16.gmra.mxu0 %v680
      %v1790 = vpop.f32.mrf.mxu0
      %v1791 = vadd.f32 %v1658, %v1790
      %v1792 = vpop.f32.mrf.mxu0
      %v1793 = vadd.f32 %v1660, %v1792
      %v1794 = vpop.f32.mrf.mxu0
      %v1795 = vadd.f32 %v1662, %v1794
      %v1796 = vpop.f32.mrf.mxu0
      %v1797 = vadd.f32 %v1664, %v1796
      %1798 = vmatprep.mubr.bf16.mxu0 %v689
      %1799 = vmatmul.mubr.bf16.gmra.mxu0 %v688
      %v1800 = vpop.f32.mrf.mxu0
      %v1801 = vadd.f32 %v1668, %v1800
      %v1802 = vpop.f32.mrf.mxu0
      %v1803 = vadd.f32 %v1670, %v1802
      %v1804 = vpop.f32.mrf.mxu0
      %v1805 = vadd.f32 %v1672, %v1804
      %v1806 = vpop.f32.mrf.mxu0
      %v1807 = vadd.f32 %v1674, %v1806
      %1808 = vmatprep.mubr.bf16.mxu0 %v697
      %1809 = vmatmul.mubr.bf16.gmra.mxu0 %v696
      %v1810 = vpop.f32.mrf.mxu0
      %v1811 = vadd.f32 %v1678, %v1810
      %v1812 = vpop.f32.mrf.mxu0
      %v1813 = vadd.f32 %v1680, %v1812
      %v1814 = vpop.f32.mrf.mxu0
      %v1815 = vadd.f32 %v1682, %v1814
      %v1816 = vpop.f32.mrf.mxu0
      %v1817 = vadd.f32 %v1684, %v1816
      %1818 = vdwg.mxu0
      %1819 = vmatprep.subr.bf16.mxu0 %v1275
      %1820 = vmatpush1.bf16.msra.mxu0 %v1274
      %1821 = vmatprep.subr.bf16.mxu0 %v1273
      %1822 = vmatpush1.bf16.msra.mxu0 %v1272
      %1823 = vmatprep.subr.bf16.mxu0 %v1271
      %1824 = vmatpush1.bf16.msra.mxu0 %v1270
      %1825 = vmatprep.subr.bf16.mxu0 %v1269
      %1826 = vmatpush1.bf16.msra.mxu0 %v1268
      %1827 = vmatprep.subr.bf16.mxu0 %v1267
      %1828 = vmatpush1.bf16.msra.mxu0 %v1266
      %1829 = vmatprep.subr.bf16.mxu0 %v1265
      %1830 = vmatpush1.bf16.msra.mxu0 %v1264
      %1831 = vmatprep.subr.bf16.mxu0 %v1263
      %1832 = vmatpush1.bf16.msra.mxu0 %v1262
      %1833 = vmatprep.subr.bf16.mxu0 %v1261
      %1834 = vmatpush1.bf16.msra.mxu0 %v1260
      %1835 = vmatprep.subr.bf16.mxu0 %v1291
      %1836 = vmatpush2.bf16.msra.mxu0 %v1290
      %1837 = vmatprep.subr.bf16.mxu0 %v1289
      %1838 = vmatpush2.bf16.msra.mxu0 %v1288
      %1839 = vmatprep.subr.bf16.mxu0 %v1287
      %1840 = vmatpush2.bf16.msra.mxu0 %v1286
      %1841 = vmatprep.subr.bf16.mxu0 %v1285
      %1842 = vmatpush2.bf16.msra.mxu0 %v1284
      %1843 = vmatprep.subr.bf16.mxu0 %v1283
      %1844 = vmatpush2.bf16.msra.mxu0 %v1282
      %1845 = vmatprep.subr.bf16.mxu0 %v1281
      %1846 = vmatpush2.bf16.msra.mxu0 %v1280
      %1847 = vmatprep.subr.bf16.mxu0 %v1279
      %1848 = vmatpush2.bf16.msra.mxu0 %v1278
      %1849 = vmatprep.subr.bf16.mxu0 %v1277
      %1850 = vmatpush2.bf16.msra.mxu0 %v1276
      %1851 = vmatprep.mubr.bf16.mxu0 %v627
      %1852 = vmatmul.mubr.bf16.gmra.mxu0 %v626
      %v1853 = vpop.f32.mrf.mxu0
      %v1854 = vadd.f32 %v1721, %v1853
      %v1855 = vpop.f32.mrf.mxu0
      %v1856 = vadd.f32 %v1723, %v1855
      %v1857 = vpop.f32.mrf.mxu0
      %v1858 = vadd.f32 %v1725, %v1857
      %v1859 = vpop.f32.mrf.mxu0
      %v1860 = vadd.f32 %v1727, %v1859
      %1861 = vmatprep.mubr.bf16.mxu0 %v635
      %1862 = vmatmul.mubr.bf16.gmra.mxu0 %v634
      %v1863 = vpop.f32.mrf.mxu0
      %v1864 = vadd.f32 %v1731, %v1863
      %v1865 = vpop.f32.mrf.mxu0
      %v1866 = vadd.f32 %v1733, %v1865
      %v1867 = vpop.f32.mrf.mxu0
      %v1868 = vadd.f32 %v1735, %v1867
      %v1869 = vpop.f32.mrf.mxu0
      %v1870 = vadd.f32 %v1737, %v1869
      %1871 = vmatprep.mubr.bf16.mxu0 %v643
      %1872 = vmatmul.mubr.bf16.gmra.mxu0 %v642
      %v1873 = vpop.f32.mrf.mxu0
      %v1874 = vadd.f32 %v1741, %v1873
      %v1875 = vpop.f32.mrf.mxu0
      %v1876 = vadd.f32 %v1743, %v1875
      %v1877 = vpop.f32.mrf.mxu0
      %v1878 = vadd.f32 %v1745, %v1877
      %v1879 = vpop.f32.mrf.mxu0
      %v1880 = vadd.f32 %v1747, %v1879
      %1881 = vmatprep.mubr.bf16.mxu0 %v651
      %1882 = vmatmul.mubr.bf16.gmra.mxu0 %v650
      %v1883 = vpop.f32.mrf.mxu0
      %v1884 = vadd.f32 %v1751, %v1883
      %v1885 = vpop.f32.mrf.mxu0
      %v1886 = vadd.f32 %v1753, %v1885
      %v1887 = vpop.f32.mrf.mxu0
      %v1888 = vadd.f32 %v1755, %v1887
      %v1889 = vpop.f32.mrf.mxu0
      %v1890 = vadd.f32 %v1757, %v1889
      %1891 = vmatprep.mubr.bf16.mxu0 %v659
      %1892 = vmatmul.mubr.bf16.gmra.mxu0 %v658
      %v1893 = vpop.f32.mrf.mxu0
      %v1894 = vadd.f32 %v1761, %v1893
      %v1895 = vpop.f32.mrf.mxu0
      %v1896 = vadd.f32 %v1763, %v1895
      %v1897 = vpop.f32.mrf.mxu0
      %v1898 = vadd.f32 %v1765, %v1897
      %v1899 = vpop.f32.mrf.mxu0
      %v1900 = vadd.f32 %v1767, %v1899
      %1901 = vmatprep.mubr.bf16.mxu0 %v667
      %1902 = vmatmul.mubr.bf16.gmra.mxu0 %v666
      %v1903 = vpop.f32.mrf.mxu0
      %v1904 = vadd.f32 %v1771, %v1903
      %v1905 = vpop.f32.mrf.mxu0
      %v1906 = vadd.f32 %v1773, %v1905
      %v1907 = vpop.f32.mrf.mxu0
      %v1908 = vadd.f32 %v1775, %v1907
      %v1909 = vpop.f32.mrf.mxu0
      %v1910 = vadd.f32 %v1777, %v1909
      %1911 = vmatprep.mubr.bf16.mxu0 %v675
      %1912 = vmatmul.mubr.bf16.gmra.mxu0 %v674
      %v1913 = vpop.f32.mrf.mxu0
      %v1914 = vadd.f32 %v1781, %v1913
      %v1915 = vpop.f32.mrf.mxu0
      %v1916 = vadd.f32 %v1783, %v1915
      %v1917 = vpop.f32.mrf.mxu0
      %v1918 = vadd.f32 %v1785, %v1917
      %v1919 = vpop.f32.mrf.mxu0
      %v1920 = vadd.f32 %v1787, %v1919
      %1921 = vmatprep.mubr.bf16.mxu0 %v683
      %1922 = vmatmul.mubr.bf16.gmra.mxu0 %v682
      %v1923 = vpop.f32.mrf.mxu0
      %v1924 = vadd.f32 %v1791, %v1923
      %v1925 = vpop.f32.mrf.mxu0
      %v1926 = vadd.f32 %v1793, %v1925
      %v1927 = vpop.f32.mrf.mxu0
      %v1928 = vadd.f32 %v1795, %v1927
      %v1929 = vpop.f32.mrf.mxu0
      %v1930 = vadd.f32 %v1797, %v1929
      %1931 = vmatprep.mubr.bf16.mxu0 %v691
      %1932 = vmatmul.mubr.bf16.gmra.mxu0 %v690
      %v1933 = vpop.f32.mrf.mxu0
      %v1934 = vadd.f32 %v1801, %v1933
      %v1935 = vpop.f32.mrf.mxu0
      %v1936 = vadd.f32 %v1803, %v1935
      %v1937 = vpop.f32.mrf.mxu0
      %v1938 = vadd.f32 %v1805, %v1937
      %v1939 = vpop.f32.mrf.mxu0
      %v1940 = vadd.f32 %v1807, %v1939
      %1941 = vmatprep.mubr.bf16.mxu0 %v699
      %1942 = vmatmul.mubr.bf16.gmra.mxu0 %v698
      %v1943 = vpop.f32.mrf.mxu0
      %v1944 = vadd.f32 %v1811, %v1943
      %v1945 = vpop.f32.mrf.mxu0
      %v1946 = vadd.f32 %v1813, %v1945
      %v1947 = vpop.f32.mrf.mxu0
      %v1948 = vadd.f32 %v1815, %v1947
      %v1949 = vpop.f32.mrf.mxu0
      %v1950 = vadd.f32 %v1817, %v1949
      %1951 = vdwg.mxu0
      %v1952 = vmul.f32 %v1854, %v1854
      %v1953 = vmul.f32 %v1858, %v1858
      %v1954 = vmul.f32 %v1864, %v1864
      %v1955 = vmul.f32 %v1868, %v1868
      %v1956 = vmul.f32 %v1874, %v1874
      %v1957 = vmul.f32 %v1878, %v1878
      %v1958 = vmul.f32 %v1884, %v1884
      %v1959 = vmul.f32 %v1888, %v1888
      %v1960 = vmul.f32 %v1894, %v1894
      %v1961 = vmul.f32 %v1898, %v1898
      %v1962 = vmul.f32 %v1856, %v1856
      %v1963 = vmul.f32 %v1860, %v1860
      %v1964 = vmul.f32 %v1866, %v1866
      %v1965 = vmul.f32 %v1870, %v1870
      %v1966 = vmul.f32 %v1876, %v1876
      %v1967 = vmul.f32 %v1880, %v1880
      %v1968 = vmul.f32 %v1886, %v1886
      %v1969 = vmul.f32 %v1890, %v1890
      %v1970 = vmul.f32 %v1896, %v1896
      %v1971 = vmul.f32 %v1900, %v1900
      %v1972 = vadd.f32 %v1952, %v1962
      %v1973 = vadd.f32 %v1953, %v1963
      %v1974 = vadd.f32 %v1954, %v1964
      %v1975 = vadd.f32 %v1955, %v1965
      %v1976 = vadd.f32 %v1956, %v1966
      %v1977 = vadd.f32 %v1957, %v1967
      %v1978 = vadd.f32 %v1958, %v1968
      %v1979 = vadd.f32 %v1959, %v1969
      %v1980 = vadd.f32 %v1960, %v1970
      %v1981 = vadd.f32 %v1961, %v1971
      %v1982 = vmax.f32 %v1972, 1e-08
      %v1983 = vmax.f32 %v1973, 1e-08
      %v1984 = vmax.f32 %v1974, 1e-08
      %v1985 = vmax.f32 %v1975, 1e-08
      %v1986 = vmax.f32 %v1976, 1e-08
      %v1987 = vmax.f32 %v1977, 1e-08
      %v1988 = vmax.f32 %v1978, 1e-08
      %v1989 = vmax.f32 %v1979, 1e-08
      %v1990 = vmax.f32 %v1980, 1e-08
      %v1991 = vmax.f32 %v1981, 1e-08
      %v1992 = vmul.f32 %v1904, %v1904
      %v1993 = vmul.f32 %v1908, %v1908
      %v1994 = vmul.f32 %v1914, %v1914
      %v1995 = vmul.f32 %v1918, %v1918
      %v1996 = vmul.f32 %v1924, %v1924
      %v1997 = vmul.f32 %v1928, %v1928
      %v1998 = vmul.f32 %v1934, %v1934
      %v1999 = vmul.f32 %v1938, %v1938
      %v2000 = vmul.f32 %v1944, %v1944
      %v2001 = vmul.f32 %v1948, %v1948
      %v2002 = vmul.f32 %v1906, %v1906
      %v2003 = vmul.f32 %v1910, %v1910
      %v2004 = vmul.f32 %v1916, %v1916
      %v2005 = vmul.f32 %v1920, %v1920
      %v2006 = vmul.f32 %v1926, %v1926
      %v2007 = vmul.f32 %v1930, %v1930
      %v2008 = vmul.f32 %v1936, %v1936
      %v2009 = vmul.f32 %v1940, %v1940
      %v2010 = vmul.f32 %v1946, %v1946
      %v2011 = vmul.f32 %v1950, %v1950
      %v2012 = vadd.f32 %v1992, %v2002
      %v2013 = vadd.f32 %v1993, %v2003
      %v2014 = vadd.f32 %v1994, %v2004
      %v2015 = vadd.f32 %v1995, %v2005
      %v2016 = vadd.f32 %v1996, %v2006
      %v2017 = vadd.f32 %v1997, %v2007
      %v2018 = vadd.f32 %v1998, %v2008
      %v2019 = vadd.f32 %v1999, %v2009
      %v2020 = vadd.f32 %v2000, %v2010
      %v2021 = vadd.f32 %v2001, %v2011
      %v2022 = vmax.f32 %v2012, 1e-08
      %v2023 = vmax.f32 %v2013, 1e-08
      %v2024 = vmax.f32 %v2014, 1e-08
      %v2025 = vmax.f32 %v2015, 1e-08
      %v2026 = vmax.f32 %v2016, 1e-08
      %v2027 = vmax.f32 %v2017, 1e-08
      %v2028 = vmax.f32 %v2018, 1e-08
      %v2029 = vmax.f32 %v2019, 1e-08
      %v2030 = vmax.f32 %v2020, 1e-08
      %v2031 = vmax.f32 %v2021, 1e-08
      %v2032 = vrsqrt.pop %v2022
      %v2033 = vmul.f32 %v2022, %v2032
      %vm2034 = vcmp.eq.f32.partialorder %v2022, inf
      %v2035 = vsel %vm2034, %v2022, %v2033
      %vm2036 = vcmp.eq.f32.partialorder %v2022, 0.0
      %v2037 = vand.u32 %v2022, 2147483648
      %v2038 = vsel %vm2036, %v2037, %v2035
      %v2039 = vrsqrt.pop %v2023
      %v2040 = vmul.f32 %v2023, %v2039
      %vm2041 = vcmp.eq.f32.partialorder %v2023, inf
      %v2042 = vsel %vm2041, %v2023, %v2040
      %vm2043 = vcmp.eq.f32.partialorder %v2023, 0.0
      %v2044 = vand.u32 %v2023, 2147483648
      %v2045 = vsel %vm2043, %v2044, %v2042
      %v2046 = vrsqrt.pop %v2024
      %v2047 = vmul.f32 %v2024, %v2046
      %vm2048 = vcmp.eq.f32.partialorder %v2024, inf
      %v2049 = vsel %vm2048, %v2024, %v2047
      %vm2050 = vcmp.eq.f32.partialorder %v2024, 0.0
      %v2051 = vand.u32 %v2024, 2147483648
      %v2052 = vsel %vm2050, %v2051, %v2049
      %v2053 = vrsqrt.pop %v2025
      %v2054 = vmul.f32 %v2025, %v2053
      %vm2055 = vcmp.eq.f32.partialorder %v2025, inf
      %v2056 = vsel %vm2055, %v2025, %v2054
      %vm2057 = vcmp.eq.f32.partialorder %v2025, 0.0
      %v2058 = vand.u32 %v2025, 2147483648
      %v2059 = vsel %vm2057, %v2058, %v2056
      %v2060 = vrsqrt.pop %v2026
      %v2061 = vmul.f32 %v2026, %v2060
      %vm2062 = vcmp.eq.f32.partialorder %v2026, inf
      %v2063 = vsel %vm2062, %v2026, %v2061
      %vm2064 = vcmp.eq.f32.partialorder %v2026, 0.0
      %v2065 = vand.u32 %v2026, 2147483648
      %v2066 = vsel %vm2064, %v2065, %v2063
      %v2067 = vrsqrt.pop %v2027
      %v2068 = vmul.f32 %v2027, %v2067
      %vm2069 = vcmp.eq.f32.partialorder %v2027, inf
      %v2070 = vsel %vm2069, %v2027, %v2068
      %vm2071 = vcmp.eq.f32.partialorder %v2027, 0.0
      %v2072 = vand.u32 %v2027, 2147483648
      %v2073 = vsel %vm2071, %v2072, %v2070
      %v2074 = vrsqrt.pop %v2028
      %v2075 = vmul.f32 %v2028, %v2074
      %vm2076 = vcmp.eq.f32.partialorder %v2028, inf
      %v2077 = vsel %vm2076, %v2028, %v2075
      %vm2078 = vcmp.eq.f32.partialorder %v2028, 0.0
      %v2079 = vand.u32 %v2028, 2147483648
      %v2080 = vsel %vm2078, %v2079, %v2077
      %v2081 = vrsqrt.pop %v2029
      %v2082 = vmul.f32 %v2029, %v2081
      %vm2083 = vcmp.eq.f32.partialorder %v2029, inf
      %v2084 = vsel %vm2083, %v2029, %v2082
      %vm2085 = vcmp.eq.f32.partialorder %v2029, 0.0
      %v2086 = vand.u32 %v2029, 2147483648
      %v2087 = vsel %vm2085, %v2086, %v2084
      %v2088 = vrsqrt.pop %v2030
      %v2089 = vmul.f32 %v2030, %v2088
      %vm2090 = vcmp.eq.f32.partialorder %v2030, inf
      %v2091 = vsel %vm2090, %v2030, %v2089
      %vm2092 = vcmp.eq.f32.partialorder %v2030, 0.0
      %v2093 = vand.u32 %v2030, 2147483648
      %v2094 = vsel %vm2092, %v2093, %v2091
      %v2095 = vrsqrt.pop %v2031
      %v2096 = vmul.f32 %v2031, %v2095
      %vm2097 = vcmp.eq.f32.partialorder %v2031, inf
      %v2098 = vsel %vm2097, %v2031, %v2096
      %vm2099 = vcmp.eq.f32.partialorder %v2031, 0.0
      %v2100 = vand.u32 %v2031, 2147483648
      %v2101 = vsel %vm2099, %v2100, %v2098
      %v2102 = vrsqrt.pop %v1982
      %v2103 = vmul.f32 %v1982, %v2102
      %vm2104 = vcmp.eq.f32.partialorder %v1982, inf
      %v2105 = vsel %vm2104, %v1982, %v2103
      %vm2106 = vcmp.eq.f32.partialorder %v1982, 0.0
      %v2107 = vand.u32 %v1982, 2147483648
      %v2108 = vsel %vm2106, %v2107, %v2105
      %v2109 = vrsqrt.pop %v1983
      %v2110 = vmul.f32 %v1983, %v2109
      %vm2111 = vcmp.eq.f32.partialorder %v1983, inf
      %v2112 = vsel %vm2111, %v1983, %v2110
      %vm2113 = vcmp.eq.f32.partialorder %v1983, 0.0
      %v2114 = vand.u32 %v1983, 2147483648
      %v2115 = vsel %vm2113, %v2114, %v2112
      %v2116 = vrsqrt.pop %v1984
      %v2117 = vmul.f32 %v1984, %v2116
      %vm2118 = vcmp.eq.f32.partialorder %v1984, inf
      %v2119 = vsel %vm2118, %v1984, %v2117
      %vm2120 = vcmp.eq.f32.partialorder %v1984, 0.0
      %v2121 = vand.u32 %v1984, 2147483648
      %v2122 = vsel %vm2120, %v2121, %v2119
      %v2123 = vrsqrt.pop %v1985
      %v2124 = vmul.f32 %v1985, %v2123
      %vm2125 = vcmp.eq.f32.partialorder %v1985, inf
      %v2126 = vsel %vm2125, %v1985, %v2124
      %vm2127 = vcmp.eq.f32.partialorder %v1985, 0.0
      %v2128 = vand.u32 %v1985, 2147483648
      %v2129 = vsel %vm2127, %v2128, %v2126
      %v2130 = vrsqrt.pop %v1986
      %v2131 = vmul.f32 %v1986, %v2130
      %vm2132 = vcmp.eq.f32.partialorder %v1986, inf
      %v2133 = vsel %vm2132, %v1986, %v2131
      %vm2134 = vcmp.eq.f32.partialorder %v1986, 0.0
      %v2135 = vand.u32 %v1986, 2147483648
      %v2136 = vsel %vm2134, %v2135, %v2133
      %v2137 = vrsqrt.pop %v1987
      %v2138 = vmul.f32 %v1987, %v2137
      %vm2139 = vcmp.eq.f32.partialorder %v1987, inf
      %v2140 = vsel %vm2139, %v1987, %v2138
      %vm2141 = vcmp.eq.f32.partialorder %v1987, 0.0
      %v2142 = vand.u32 %v1987, 2147483648
      %v2143 = vsel %vm2141, %v2142, %v2140
      %v2144 = vrsqrt.pop %v1988
      %v2145 = vmul.f32 %v1988, %v2144
      %vm2146 = vcmp.eq.f32.partialorder %v1988, inf
      %v2147 = vsel %vm2146, %v1988, %v2145
      %vm2148 = vcmp.eq.f32.partialorder %v1988, 0.0
      %v2149 = vand.u32 %v1988, 2147483648
      %v2150 = vsel %vm2148, %v2149, %v2147
      %v2151 = vrsqrt.pop %v1989
      %v2152 = vmul.f32 %v1989, %v2151
      %vm2153 = vcmp.eq.f32.partialorder %v1989, inf
      %v2154 = vsel %vm2153, %v1989, %v2152
      %vm2155 = vcmp.eq.f32.partialorder %v1989, 0.0
      %v2156 = vand.u32 %v1989, 2147483648
      %v2157 = vsel %vm2155, %v2156, %v2154
      %v2158 = vrsqrt.pop %v1990
      %v2159 = vmul.f32 %v1990, %v2158
      %vm2160 = vcmp.eq.f32.partialorder %v1990, inf
      %v2161 = vsel %vm2160, %v1990, %v2159
      %vm2162 = vcmp.eq.f32.partialorder %v1990, 0.0
      %v2163 = vand.u32 %v1990, 2147483648
      %v2164 = vsel %vm2162, %v2163, %v2161
      %v2165 = vrsqrt.pop %v1991
      %v2166 = vmul.f32 %v1991, %v2165
      %vm2167 = vcmp.eq.f32.partialorder %v1991, inf
      %v2168 = vsel %vm2167, %v1991, %v2166
      %vm2169 = vcmp.eq.f32.partialorder %v1991, 0.0
      %v2170 = vand.u32 %v1991, 2147483648
      %v2171 = vsel %vm2169, %v2170, %v2168
      %v2172 = vsub.f32 %v2038, %v2108
      %v2173 = vsub.f32 %v2045, %v2115
      %v2174 = vsub.f32 %v2052, %v2122
      %v2175 = vsub.f32 %v2059, %v2129
      %v2176 = vsub.f32 %v2066, %v2136
      %v2177 = vsub.f32 %v2073, %v2143
      %v2178 = vsub.f32 %v2080, %v2150
      %v2179 = vsub.f32 %v2087, %v2157
      %v2180 = vsub.f32 %v2094, %v2164
      %v2181 = vsub.f32 %v2101, %v2171
      %v2182 = vmul.f32 %v2172, %v2172
      %v2183 = vmul.f32 %v2173, %v2173
      %v2184 = vmul.f32 %v2174, %v2174
      %v2185 = vmul.f32 %v2175, %v2175
      %v2186 = vmul.f32 %v2176, %v2176
      %v2187 = vmul.f32 %v2177, %v2177
      %v2188 = vmul.f32 %v2178, %v2178
      %v2189 = vmul.f32 %v2179, %v2179
      %v2190 = vmul.f32 %v2180, %v2180
      %v2191 = vmul.f32 %v2181, %v2181
      %v2192 = vadd.f32 %v2182, %v2183
      %v2193 = vadd.f32 %v2192, %v2184
      %v2194 = vadd.f32 %v2193, %v2185
      %v2195 = vadd.f32 %v2194, %v2186
      %v2196 = vadd.f32 %v2195, %v2187
      %v2197 = vadd.f32 %v2196, %v2188
      %v2198 = vadd.f32 %v2197, %v2189
      %v2199 = vadd.f32 %v2198, %v2190
      %v2200 = vadd.f32 %v2199, %v2191
      %v2201 = vrot.slane %v2200, 4
      %v2202 = vadd.f32 %v2200, %v2201
      %v2203 = vrot.slane %v2202, 2
      %v2204 = vadd.f32 %v2202, %v2203
      %v2205 = vrot.slane %v2204, 1
      %v2206 = vadd.f32 %v2204, %v2205
      %2207 = vst [vmem:[%s168] sm:$0x1] %v2206
      %v2208 = vadd.f32 %v2022, %v2023
      %v2209 = vadd.f32 %v2208, %v2024
      %v2210 = vadd.f32 %v2209, %v2025
      %v2211 = vadd.f32 %v2210, %v2026
      %v2212 = vadd.f32 %v2211, %v2027
      %v2213 = vadd.f32 %v2212, %v2028
      %v2214 = vadd.f32 %v2213, %v2029
      %v2215 = vadd.f32 %v2214, %v2030
      %v2216 = vadd.f32 %v2215, %v2031
      %v2217 = vrot.slane %v2216, 4
      %v2218 = vadd.f32 %v2216, %v2217
      %v2219 = vrot.slane %v2218, 2
      %v2220 = vadd.f32 %v2218, %v2219
      %v2221 = vrot.slane %v2220, 1
      %v2222 = vadd.f32 %v2220, %v2221
      %2223 = vst [vmem:[%s168 + $0x1] sm:$0x1] %v2222
      %v2224 = vlog2.pop %v1982
      %v2225 = vmul.f32 %v2224, 0.6931472
      %v2226 = vlog2.pop %v1983
      %v2227 = vmul.f32 %v2226, 0.6931472
      %v2228 = vlog2.pop %v1984
      %v2229 = vmul.f32 %v2228, 0.6931472
      %v2230 = vlog2.pop %v1985
      %v2231 = vmul.f32 %v2230, 0.6931472
      %v2232 = vlog2.pop %v1986
      %v2233 = vmul.f32 %v2232, 0.6931472
      %v2234 = vlog2.pop %v1987
      %v2235 = vmul.f32 %v2234, 0.6931472
      %v2236 = vlog2.pop %v1988
      %v2237 = vmul.f32 %v2236, 0.6931472
      %v2238 = vlog2.pop %v1989
      %v2239 = vmul.f32 %v2238, 0.6931472
      %v2240 = vlog2.pop %v1990
      %v2241 = vmul.f32 %v2240, 0.6931472
      %v2242 = vlog2.pop %v1991
      %v2243 = vmul.f32 %v2242, 0.6931472
      %v2244 = vlog2.pop %v2022
      %v2245 = vmul.f32 %v2244, 0.6931472
      %v2246 = vlog2.pop %v2023
      %v2247 = vmul.f32 %v2246, 0.6931472
      %v2248 = vlog2.pop %v2024
      %v2249 = vmul.f32 %v2248, 0.6931472
      %v2250 = vlog2.pop %v2025
      %v2251 = vmul.f32 %v2250, 0.6931472
      %v2252 = vlog2.pop %v2026
      %v2253 = vmul.f32 %v2252, 0.6931472
      %v2254 = vlog2.pop %v2027
      %v2255 = vmul.f32 %v2254, 0.6931472
      %v2256 = vlog2.pop %v2028
      %v2257 = vmul.f32 %v2256, 0.6931472
      %v2258 = vlog2.pop %v2029
      %v2259 = vmul.f32 %v2258, 0.6931472
      %v2260 = vlog2.pop %v2030
      %v2261 = vmul.f32 %v2260, 0.6931472
      %v2262 = vlog2.pop %v2031
      %v2263 = vmul.f32 %v2262, 0.6931472
      %v2264 = vsub.f32 %v2225, %v2245
      %v2265 = vsub.f32 %v2227, %v2247
      %v2266 = vsub.f32 %v2229, %v2249
      %v2267 = vsub.f32 %v2231, %v2251
      %v2268 = vsub.f32 %v2233, %v2253
      %v2269 = vsub.f32 %v2235, %v2255
      %v2270 = vsub.f32 %v2237, %v2257
      %v2271 = vsub.f32 %v2239, %v2259
      %v2272 = vsub.f32 %v2241, %v2261
      %v2273 = vsub.f32 %v2243, %v2263
      %v2274 = vand.u32 2147483647, %v2264
      %v2275 = vand.u32 2147483647, %v2265
      %v2276 = vand.u32 2147483647, %v2266
      %v2277 = vand.u32 2147483647, %v2267
      %v2278 = vand.u32 2147483647, %v2268
      %v2279 = vand.u32 2147483647, %v2269
      %v2280 = vand.u32 2147483647, %v2270
      %v2281 = vand.u32 2147483647, %v2271
      %v2282 = vand.u32 2147483647, %v2272
      %v2283 = vand.u32 2147483647, %v2273
      %v2284 = vadd.f32 %v2274, %v2275
      %v2285 = vadd.f32 %v2284, %v2276
      %v2286 = vadd.f32 %v2285, %v2277
      %v2287 = vadd.f32 %v2286, %v2278
      %v2288 = vadd.f32 %v2287, %v2279
      %v2289 = vadd.f32 %v2288, %v2280
      %v2290 = vadd.f32 %v2289, %v2281
      %v2291 = vadd.f32 %v2290, %v2282
      %v2292 = vadd.f32 %v2291, %v2283
      %v2293 = vrot.slane %v2292, 4
      %v2294 = vadd.f32 %v2292, %v2293
      %v2295 = vrot.slane %v2294, 2
      %v2296 = vadd.f32 %v2294, %v2295
      %v2297 = vrot.slane %v2296, 1
      %v2298 = vadd.f32 %v2296, %v2297
      %v2299 = vmul.f32 %v2298, 0.5
      %2300 = vst [vmem:[%s168 + $0x2] sm:$0x1] %v2299
      %p2301 = scmp.lt.s32.totalorder %s17, 0
      %s2302 = scalar_select %p2301, %s17, 0
      %p2303 = scmp.lt.s32.totalorder %s18, 3
      %s2304 = scalar_select %p2303, %s18, 3
      %s2305 = smul.addr %s2302, 4
      %s2306 = sadd.s32 %s2304, %s2305
      %s2307 = smul.addr %s2306, 4
      %s2308 = scalar_lea.vmem %s2, %s2307
      // Predicated region
      $region29: #{multi_reso_stft.3} parent=27 // pred_check
        %p2309 = pneg %p92
      $region30: #{multi_reso_stft.3} parent=27 // pred_check_branch
        %2311 = sbr.rel (%p2309) target = $region32
      $region31: #{multi_reso_stft.3} parent=27 // pred_region
        _
      $region32: #{multi_reso_stft.3} parent=27 // pred_fallthru
        _
    $region28: #{multi_reso_stft.3} parent=5 // pred_fallthru
      _
    %p2312 = scmp.le.s32.totalorder 2, %s8
    // Predicated region
    $region33: #{multi_reso_stft.3} parent=5 // pred_check
      %p2313 = pneg %p2312
    $region34: #{multi_reso_stft.3} parent=5 // pred_check_branch
      %2315 = sbr.rel (%p2313) target = $region36
    $region35: #{multi_reso_stft.3} parent=5 // pred_region
      %s2316 = ssub.s32 %s8, 2
      // Predicated region
      $region37: #{multi_reso_stft.3} parent=35 // pred_check
        %p2317 = pneg %p98
      $region38: #{multi_reso_stft.3} parent=35 // pred_check_branch
        %2319 = sbr.rel (%p2317) target = $region40
      $region39: #{multi_reso_stft.3} parent=35 // pred_region
        %p2320 = scmp.lt.s32.totalorder %s19, 0
        %s2321 = scalar_select %p2320, %s19, 0
        %p2322 = scmp.lt.s32.totalorder %s20, 3
        %s2323 = scalar_select %p2322, %s20, 3
        %s2324 = smul.addr %s2321, 4
        %s2325 = sadd.s32 %s2323, %s2324
        %s2326 = smul.addr %s2325, 4
        %s2327 = scalar_lea.vmem %s2, %s2326
      $region40: #{multi_reso_stft.3} parent=35 // pred_fallthru
        _
    $region36: #{multi_reso_stft.3} parent=5 // pred_fallthru
      _
  $region6: #{multi_reso_stft.3} parent=0 // loop_footer
    %s12 = sadd.s32 1, %s8
  $region7: #{multi_reso_stft.3} parent=0 // loop_footer_branch
    %7 = sbr.rel target = $region3
  $region8: #{multi_reso_stft.3} parent=0 // loop_exit
    _

// kernel: multi_reso_stft.5
$region0: #{multi_reso_stft.5}
  #allocation0 [shape = 'u32[]', space=smem, size = 0x4, offset = 0x4, fixed_abs, tag = 'smem constant byte address 0x4 - core index']
  #allocation1 [shape = 'u32[144,128]{1,0:T(1,128)}', space=vmem, size = 0x12000, scoped, tag = 'internal scratch']
  %s0 = inlined_call_operand.vmem [shape: bf16[352,512], index: 0, kind: input, shape index: {}]
  %s1 = inlined_call_operand.vmem [shape: bf16[2,512,256], index: 1, kind: input, shape index: {}]
  %s2 = inlined_call_operand.vmem [shape: f32[1,2,3,128], index: 2, kind: output, shape index: {}]
  %s3 = sld [smem:[#allocation0]]
  $region41: #{multi_reso_stft.5} parent=0
    _
  %s5 = ssub.s32 1, %s3
  %s6 = scalar_select 0, %s5, %s3
  loop: start=0, step=1, limit=4
  $region2: #{multi_reso_stft.5} parent=0 // loop_pre_header
    _
  $region3: #{multi_reso_stft.5} parent=0 // loop_header
    %s8 = sphi 0, %s12
    %p9 = scmp.ge.s32.totalorder %s8, 4
    %s15 = sphi 0, %s27
    %s16 = sphi 0, %s23
    %s17 = sphi 0, %s15
    %s18 = sphi 0, %s16
    %s19 = sphi 0, %s17
    %s20 = sphi 0, %s18
    %s30 = sphi 0, %s32
    %s33 = sphi 0, %s30
    %s34 = sphi 0, %s33
    %s50 = sphi 0, %s34
    %s54 = sphi 0, %s54
    %s56 = sphi 0, %s54
    %s57 = sphi 0, %s56
    %s71 = sphi 0, %s57
    %s79 = sphi 0, %s81
    %s82 = sphi 0, %s79
    %s83 = sphi 0, %s82
    %s99 = sphi 0, %s83
  $region4: #{multi_reso_stft.5} parent=0 // loop_header_branch
    %11 = sbr.rel (%p9) target = $region8
  $region5: #{multi_reso_stft.5} parent=0 // loop_body
    %s13 = ssub.s32 %s8, 1
    %s14 = ssub.s32 %s8, 2
    %s21 = sadd.s32 1, %s16
    %p22 = scmp.ge.s32.totalorder %s21, 2
    %s23 = scalar_select %p22, 0, %s21
    %s24 = sadd.s32 1, %s15
    %s25 = scalar_select %p22, %s24, %s15
    %p26 = scmp.ge.s32.totalorder %s25, 1
    %s27 = scalar_select %p26, 0, %s25
    %s28 = ssub.s32 %s15, %s27
    %p29 = scmp.eq.s32.totalorder %s28, 0
    %s31 = sadd.s32 %s30, 1
    %s32 = scalar_select %p29, %s30, %s31
    %p35 = pneg %p29
    %p36 = scmp.eq.s32.totalorder %s8, 1
    %p37 = por %p35, %p36
    %p38 = scmp.ne.s32.totalorder %s30, %s33
    %p39 = scmp.eq.s32.totalorder %s8, 0
    %p40 = por %p38, %p39
    %p41 = scmp.ne.s32.totalorder %s30, %s33
    %p42 = scmp.eq.s32.totalorder %s13, 1
    %p43 = por %p41, %p42
    %p44 = scmp.ne.s32.totalorder %s33, %s34
    %p45 = scmp.eq.s32.totalorder %s13, 0
    %p46 = por %p44, %p45
    %p47 = scmp.ne.s32.totalorder %s33, %s34
    %p48 = scmp.eq.s32.totalorder %s14, 1
    %p49 = por %p47, %p48
    %p51 = scmp.ne.s32.totalorder %s34, %s50
    %p52 = scmp.eq.s32.totalorder %s14, 0
    %p53 = por %p51, %p52
    %s55 = sadd.s32 %s54, 1
    %p58 = scmp.eq.s32.totalorder %s8, 1
    %p59 = scmp.ne.s32.totalorder %s54, %s56
    %p60 = scmp.eq.s32.totalorder %s8, 0
    %p61 = por %p59, %p60
    %p62 = scmp.ne.s32.totalorder %s54, %s56
    %p63 = scmp.eq.s32.totalorder %s13, 1
    %p64 = por %p62, %p63
    %p65 = scmp.ne.s32.totalorder %s56, %s57
    %p66 = scmp.eq.s32.totalorder %s13, 0
    %p67 = por %p65, %p66
    %p68 = scmp.ne.s32.totalorder %s56, %s57
    %p69 = scmp.eq.s32.totalorder %s14, 1
    %p70 = por %p68, %p69
    %p72 = scmp.ne.s32.totalorder %s57, %s71
    %p73 = scmp.eq.s32.totalorder %s14, 0
    %p74 = por %p72, %p73
    %s75 = ssub.s32 %s15, %s27
    %s76 = ssub.s32 %s16, %s23
    %s77 = sor.u32 %s75, %s76
    %p78 = scmp.eq.s32.totalorder %s77, 0
    %s80 = sadd.s32 %s79, 1
    %s81 = scalar_select %p78, %s79, %s80
    %p84 = pneg %p78
    %p85 = scmp.eq.s32.totalorder %s8, 1
    %p86 = por %p84, %p85
    %p87 = scmp.ne.s32.totalorder %s79, %s82
    %p88 = scmp.eq.s32.totalorder %s8, 0
    %p89 = por %p87, %p88
    %p90 = scmp.ne.s32.totalorder %s79, %s82
    %p91 = scmp.eq.s32.totalorder %s13, 1
    %p92 = por %p90, %p91
    %p93 = scmp.ne.s32.totalorder %s82, %s83
    %p94 = scmp.eq.s32.totalorder %s13, 0
    %p95 = por %p93, %p94
    %p96 = scmp.ne.s32.totalorder %s82, %s83
    %p97 = scmp.eq.s32.totalorder %s14, 1
    %p98 = por %p96, %p97
    %p100 = scmp.ne.s32.totalorder %s83, %s99
    %p101 = scmp.eq.s32.totalorder %s14, 0
    %p102 = por %p100, %p101
    %p103 = scmp.le.s32.totalorder 1, %s8
    %p104 = scmp.lt.s32.totalorder %s8, 3
    %p105 = pnand %p103, %p104
    %p106 = pneg %p105
    // Predicated region
    $region9: #{multi_reso_stft.5} parent=5 // pred_check
      _
    $region10: #{multi_reso_stft.5} parent=5 // pred_check_branch
      %108 = sbr.rel (%p105) target = $region12
    $region11: #{multi_reso_stft.5} parent=5 // pred_region
      %s109 = ssub.s32 %s8, 1
      // Predicated region
      $region13: #{multi_reso_stft.5} parent=11 // pred_check
        %p110 = pneg %p46
      $region14: #{multi_reso_stft.5} parent=11 // pred_check_branch
        %112 = sbr.rel (%p110) target = $region16
      $region15: #{multi_reso_stft.5} parent=11 // pred_region
        %s113 = smul.u32 44, %s17
        %p114 = scmp.lt.s32.totalorder %s113, 43
        %s115 = scalar_select %p114, %s113, 43
        %s116 = smul.addr %s115, 4
        %s117 = smul.addr %s116, 4
        %s118 = scalar_lea.vmem %s0, %s117
        %s119 = smul.u32 44, %s17
      $region16: #{multi_reso_stft.5} parent=11 // pred_fallthru
        _
      // Predicated region
      $region17: #{multi_reso_stft.5} parent=11 // pred_check
        %p120 = pneg %p67
      $region18: #{multi_reso_stft.5} parent=11 // pred_check_branch
        %122 = sbr.rel (%p120) target = $region20
      $region19: #{multi_reso_stft.5} parent=11 // pred_region
        _
      $region20: #{multi_reso_stft.5} parent=11 // pred_fallthru
        _
    $region12: #{multi_reso_stft.5} parent=5 // pred_fallthru
      _
    %p123 = scmp.lt.s32.totalorder %s8, 2
    // Predicated region
    $region21: #{multi_reso_stft.5} parent=5 // pred_check
      %p124 = pneg %p123
    $region22: #{multi_reso_stft.5} parent=5 // pred_check_branch
      %126 = sbr.rel (%p124) target = $region24
    $region23: #{multi_reso_stft.5} parent=5 // pred_region
      _
    $region24: #{multi_reso_stft.5} parent=5 // pred_fallthru
      _
    %p127 = scmp.le.s32.totalorder 1, %s8
    %p128 = scmp.lt.s32.totalorder %s8, 3
    %p129 = pnand %p127, %p128
    %p130 = pneg %p129
    // Predicated region
    $region25: #{multi_reso_stft.5} parent=5 // pred_check
      _
    $region26: #{multi_reso_stft.5} parent=5 // pred_check_branch
      %132 = sbr.rel (%p129) target = $region28
    $region27: #{multi_reso_stft.5} parent=5 // pred_region
      %s133 = ssub.s32 %s8, 1
      %s134 = smul.u32 44, %s17
      %p135 = scmp.lt.s32.totalorder %s134, 43
      %s136 = scalar_select %p135, %s134, 43
      %s137 = smul.addr %s136, 4
      %s138 = smul.addr %s137, 4
      %s139 = scalar_lea.vmem %s0, %s138
      %p140 = pneg %p46
      %p141 = pneg %p43
      %p142 = pneg %p67
      %p143 = pneg %p64
      %p144 = pneg %p95
      %p145 = pneg %p92
      %p146 = scmp.lt.s32.totalorder %s17, 0
      %s147 = scalar_select %p146, %s17, 0
      %p148 = scmp.lt.s32.totalorder %s18, 1
      %s149 = scalar_select %p148, %s18, 1
      %s150 = smul.addr %s147, 2
      %s151 = sadd.s32 %s149, %s150
      %s152 = smul.addr %s151, 4
      %s153 = scalar_lea.vmem %s2, %s152
      %s154 = smul.u32 44, %s17
      %p155 = scmp.lt.s32.totalorder %s154, 43
      %s156 = scalar_select %p155, %s154, 43
      %s157 = smul.addr %s156, 4
      %s158 = smul.addr %s157, 4
      %s159 = scalar_lea.vmem %s0, %s158
      %s160 = smul.u32 44, %s17
      %p161 = scmp.lt.s32.totalorder %s17, 0
      %s162 = scalar_select %p161, %s17, 0
      %p163 = scmp.lt.s32.totalorder %s18, 1
      %s164 = scalar_select %p163, %s18, 1
      %s165 = smul.addr %s162, 2
      %s166 = sadd.s32 %s164, %s165
      %s167 = smul.addr %s166, 4
      %s168 = scalar_lea.vmem %s2, %s167
      %s169 = smul.u32 %s18, 128
      %s170 = smul.addr %s169, 4
      %s171 = scalar_lea.vmem %s1, %s170
      %v172 = vld [vmem:[%s171] sm:$0xff]
      %v173 = vld [vmem:[%s171 + $0x8] sm:$0xff]
      %v174 = vld [vmem:[%s171 + $0x10] sm:$0xff]
      %v175 = vld [vmem:[%s171 + $0x18] sm:$0xff]
      %v176 = vld [vmem:[%s171 + $0x20] sm:$0xff]
      %v177 = vld [vmem:[%s171 + $0x28] sm:$0xff]
      %v178 = vld [vmem:[%s171 + $0x30] sm:$0xff]
      %v179 = vld [vmem:[%s171 + $0x38] sm:$0xff]
      %v180 = vld [vmem:[%s171 + $0x40] sm:$0xff]
      %v181 = vld [vmem:[%s171 + $0x48] sm:$0xff]
      %v182 = vld [vmem:[%s171 + $0x50] sm:$0xff]
      %v183 = vld [vmem:[%s171 + $0x58] sm:$0xff]
      %v184 = vld [vmem:[%s171 + $0x60] sm:$0xff]
      %v185 = vld [vmem:[%s171 + $0x68] sm:$0xff]
      %v186 = vld [vmem:[%s171 + $0x70] sm:$0xff]
      %v187 = vld [vmem:[%s171 + $0x78] sm:$0xff]
      %v188 = vld [vmem:[%s171 + $0x80] sm:$0xff]
      %v189 = vld [vmem:[%s171 + $0x88] sm:$0xff]
      %v190 = vld [vmem:[%s171 + $0x90] sm:$0xff]
      %v191 = vld [vmem:[%s171 + $0x98] sm:$0xff]
      %v192 = vld [vmem:[%s171 + $0xa0] sm:$0xff]
      %v193 = vld [vmem:[%s171 + $0xa8] sm:$0xff]
      %v194 = vld [vmem:[%s171 + $0xb0] sm:$0xff]
      %v195 = vld [vmem:[%s171 + $0xb8] sm:$0xff]
      %v196 = vld [vmem:[%s171 + $0xc0] sm:$0xff]
      %v197 = vld [vmem:[%s171 + $0xc8] sm:$0xff]
      %v198 = vld [vmem:[%s171 + $0xd0] sm:$0xff]
      %v199 = vld [vmem:[%s171 + $0xd8] sm:$0xff]
      %v200 = vld [vmem:[%s171 + $0xe0] sm:$0xff]
      %v201 = vld [vmem:[%s171 + $0xe8] sm:$0xff]
      %v202 = vld [vmem:[%s171 + $0xf0] sm:$0xff]
      %v203 = vld [vmem:[%s171 + $0xf8] sm:$0xff]
      %v204 = vld [vmem:[%s171 + $0x100] sm:$0xff]
      %v205 = vld [vmem:[%s171 + $0x108] sm:$0xff]
      %v206 = vld [vmem:[%s171 + $0x110] sm:$0xff]
      %v207 = vld [vmem:[%s171 + $0x118] sm:$0xff]
      %v208 = vld [vmem:[%s171 + $0x120] sm:$0xff]
      %v209 = vld [vmem:[%s171 + $0x128] sm:$0xff]
      %v210 = vld [vmem:[%s171 + $0x130] sm:$0xff]
      %v211 = vld [vmem:[%s171 + $0x138] sm:$0xff]
      %v212 = vld [vmem:[%s171 + $0x140] sm:$0xff]
      %v213 = vld [vmem:[%s171 + $0x148] sm:$0xff]
      %v214 = vld [vmem:[%s171 + $0x150] sm:$0xff]
      %v215 = vld [vmem:[%s171 + $0x158] sm:$0xff]
      %v216 = vld [vmem:[%s171 + $0x160] sm:$0xff]
      %v217 = vld [vmem:[%s171 + $0x168] sm:$0xff]
      %v218 = vld [vmem:[%s171 + $0x170] sm:$0xff]
      %v219 = vld [vmem:[%s171 + $0x178] sm:$0xff]
      %v220 = vld [vmem:[%s171 + $0x180] sm:$0xff]
      %v221 = vld [vmem:[%s171 + $0x188] sm:$0xff]
      %v222 = vld [vmem:[%s171 + $0x190] sm:$0xff]
      %v223 = vld [vmem:[%s171 + $0x198] sm:$0xff]
      %v224 = vld [vmem:[%s171 + $0x1a0] sm:$0xff]
      %v225 = vld [vmem:[%s171 + $0x1a8] sm:$0xff]
      %v226 = vld [vmem:[%s171 + $0x1b0] sm:$0xff]
      %v227 = vld [vmem:[%s171 + $0x1b8] sm:$0xff]
      %v228 = vld [vmem:[%s171 + $0x1c0] sm:$0xff]
      %v229 = vld [vmem:[%s171 + $0x1c8] sm:$0xff]
      %v230 = vld [vmem:[%s171 + $0x1d0] sm:$0xff]
      %v231 = vld [vmem:[%s171 + $0x1d8] sm:$0xff]
      %v232 = vld [vmem:[%s171 + $0x1e0] sm:$0xff]
      %v233 = vld [vmem:[%s171 + $0x1e8] sm:$0xff]
      %v234 = vld [vmem:[%s171 + $0x1f0] sm:$0xff]
      %v235 = vld [vmem:[%s171 + $0x1f8] sm:$0xff]
      %v236 = vld [vmem:[%s159] sm:$0xff]
      %v237 = vld [vmem:[%s159 + $0x8] sm:$0xff]
      %v238 = vld [vmem:[%s159 + $0x10] sm:$0xff]
      %v239 = vld [vmem:[%s159 + $0x18] sm:$0xff]
      %v240 = vld [vmem:[%s159 + $0x20] sm:$0xff]
      %v241 = vld [vmem:[%s159 + $0x28] sm:$0xff]
      %v242 = vld [vmem:[%s159 + $0x30] sm:$0xff]
      %v243 = vld [vmem:[%s159 + $0x38] sm:$0xff]
      %v244 = vld [vmem:[%s159 + $0x40] sm:$0xff]
      %v245 = vld [vmem:[%s159 + $0x48] sm:$0xff]
      %v246 = vld [vmem:[%s159 + $0x50] sm:$0xff]
      %v247 = vld [vmem:[%s159 + $0x58] sm:$0xff]
      %v248 = vld [vmem:[%s159 + $0x60] sm:$0xff]
      %v249 = vld [vmem:[%s159 + $0x68] sm:$0xff]
      %v250 = vld [vmem:[%s159 + $0x70] sm:$0xff]
      %v251 = vld [vmem:[%s159 + $0x78] sm:$0xff]
      %v252 = vld [vmem:[%s159 + $0x80] sm:$0xff]
      %v253 = vld [vmem:[%s159 + $0x88] sm:$0xff]
      %v254 = vld [vmem:[%s159 + $0x90] sm:$0xff]
      %v255 = vld [vmem:[%s159 + $0x98] sm:$0xff]
      %v256 = vld [vmem:[%s159 + $0xa0] sm:$0xff]
      %v257 = vld [vmem:[%s159 + $0xa8] sm:$0xff]
      %v258 = vld [vmem:[%s159 + $0xb0] sm:$0xff]
      %v259 = vld [vmem:[%s159 + $0xb8] sm:$0xff]
      %v260 = vld [vmem:[%s159 + $0xc0] sm:$0xff]
      %v261 = vld [vmem:[%s159 + $0xc8] sm:$0xff]
      %v262 = vld [vmem:[%s159 + $0xd0] sm:$0xff]
      %v263 = vld [vmem:[%s159 + $0xd8] sm:$0xff]
      %v264 = vld [vmem:[%s159 + $0xe0] sm:$0xff]
      %v265 = vld [vmem:[%s159 + $0xe8] sm:$0xff]
      %v266 = vld [vmem:[%s159 + $0xf0] sm:$0xff]
      %v267 = vld [vmem:[%s159 + $0xf8] sm:$0xff]
      %v268 = vld [vmem:[%s159 + $0x100] sm:$0xff]
      %v269 = vld [vmem:[%s159 + $0x108] sm:$0xff]
      %v270 = vld [vmem:[%s159 + $0x110] sm:$0xff]
      %v271 = vld [vmem:[%s159 + $0x118] sm:$0xff]
      %v272 = vld [vmem:[%s159 + $0x120] sm:$0xff]
      %v273 = vld [vmem:[%s159 + $0x128] sm:$0xff]
      %v274 = vld [vmem:[%s159 + $0x130] sm:$0xff]
      %v275 = vld [vmem:[%s159 + $0x138] sm:$0xff]
      %v276 = vld [vmem:[%s159 + $0x140] sm:$0xff]
      %v277 = vld [vmem:[%s159 + $0x148] sm:$0xff]
      %v278 = vld [vmem:[%s159 + $0x150] sm:$0xff]
      %v279 = vld [vmem:[%s159 + $0x158] sm:$0xff]
      %v280 = vld [vmem:[%s159 + $0x160] sm:$0xff]
      %v281 = vld [vmem:[%s159 + $0x168] sm:$0xff]
      %v282 = vld [vmem:[%s159 + $0x170] sm:$0xff]
      %v283 = vld [vmem:[%s159 + $0x178] sm:$0xff]
      %v284 = vld [vmem:[%s159 + $0x180] sm:$0xff]
      %v285 = vld [vmem:[%s159 + $0x188] sm:$0xff]
      %v286 = vld [vmem:[%s159 + $0x190] sm:$0xff]
      %v287 = vld [vmem:[%s159 + $0x198] sm:$0xff]
      %v288 = vld [vmem:[%s159 + $0x1a0] sm:$0xff]
      %v289 = vld [vmem:[%s159 + $0x1a8] sm:$0xff]
      %v290 = vld [vmem:[%s159 + $0x1b0] sm:$0xff]
      %v291 = vld [vmem:[%s159 + $0x1b8] sm:$0xff]
      %v292 = vld [vmem:[%s159 + $0x1c0] sm:$0xff]
      %v293 = vld [vmem:[%s159 + $0x1c8] sm:$0xff]
      %v294 = vld [vmem:[%s159 + $0x1d0] sm:$0xff]
      %v295 = vld [vmem:[%s159 + $0x1d8] sm:$0xff]
      %v296 = vld [vmem:[%s159 + $0x1e0] sm:$0xff]
      %v297 = vld [vmem:[%s159 + $0x1e8] sm:$0xff]
      %v298 = vld [vmem:[%s159 + $0x1f0] sm:$0xff]
      %v299 = vld [vmem:[%s159 + $0x1f8] sm:$0xff]
      %v300 = vld [vmem:[%s159 + $0x200] sm:$0xff]
      %v301 = vld [vmem:[%s159 + $0x208] sm:$0xff]
      %v302 = vld [vmem:[%s159 + $0x210] sm:$0xff]
      %v303 = vld [vmem:[%s159 + $0x218] sm:$0xff]
      %v304 = vld [vmem:[%s159 + $0x220] sm:$0xff]
      %v305 = vld [vmem:[%s159 + $0x228] sm:$0xff]
      %v306 = vld [vmem:[%s159 + $0x230] sm:$0xff]
      %v307 = vld [vmem:[%s159 + $0x238] sm:$0xff]
      %v308 = vld [vmem:[%s159 + $0x240] sm:$0xff]
      %v309 = vld [vmem:[%s159 + $0x248] sm:$0xff]
      %v310 = vld [vmem:[%s159 + $0x250] sm:$0xff]
      %v311 = vld [vmem:[%s159 + $0x258] sm:$0xff]
      %v312 = vld [vmem:[%s159 + $0x260] sm:$0xff]
      %v313 = vld [vmem:[%s159 + $0x268] sm:$0xff]
      %v314 = vld [vmem:[%s159 + $0x270] sm:$0xff]
      %v315 = vld [vmem:[%s159 + $0x278] sm:$0xff]
      %v316 = vld [vmem:[%s159 + $0x280] sm:$0xff]
      %v317 = vld [vmem:[%s159 + $0x288] sm:$0xff]
      %v318 = vld [vmem:[%s159 + $0x290] sm:$0xff]
      %v319 = vld [vmem:[%s159 + $0x298] sm:$0xff]
      %v320 = vld [vmem:[%s159 + $0x2a0] sm:$0xff]
      %v321 = vld [vmem:[%s159 + $0x2a8] sm:$0xff]
      %v322 = vld [vmem:[%s159 + $0x2b0] sm:$0xff]
      %v323 = vld [vmem:[%s159 + $0x2b8] sm:$0xff]
      %v412 = vunpack.c.l.b16 %v236
      %v413 = vunpack.c.h.b16 %v236
      %v414 = vunpack.c.l.b16 %v237
      %v415 = vunpack.c.h.b16 %v237
      %v416 = vunpack.c.l.b16 %v238
      %v417 = vunpack.c.h.b16 %v238
      %v418 = vunpack.c.l.b16 %v239
      %v419 = vunpack.c.h.b16 %v239
      %v420 = vunpack.c.l.b16 %v240
      %v421 = vunpack.c.h.b16 %v240
      %v422 = vunpack.c.l.b16 %v241
      %v423 = vunpack.c.h.b16 %v241
      %v424 = vunpack.c.l.b16 %v242
      %v425 = vunpack.c.h.b16 %v242
      %v426 = vunpack.c.l.b16 %v243
      %v427 = vunpack.c.h.b16 %v243
      %v428 = vunpack.c.l.b16 %v244
      %v429 = vunpack.c.h.b16 %v244
      %v430 = vunpack.c.l.b16 %v245
      %v431 = vunpack.c.h.b16 %v245
      %v432 = vunpack.c.l.b16 %v246
      %v433 = vunpack.c.h.b16 %v246
      %v434 = vunpack.c.l.b16 %v247
      %v435 = vunpack.c.h.b16 %v247
      %v436 = vunpack.c.l.b16 %v248
      %v437 = vunpack.c.h.b16 %v248
      %v438 = vunpack.c.l.b16 %v249
      %v439 = vunpack.c.h.b16 %v249
      %v440 = vunpack.c.l.b16 %v250
      %v441 = vunpack.c.h.b16 %v250
      %v442 = vunpack.c.l.b16 %v251
      %v443 = vunpack.c.h.b16 %v251
      %v444 = vunpack.c.l.b16 %v252
      %v445 = vunpack.c.h.b16 %v252
      %v446 = vunpack.c.l.b16 %v253
      %v447 = vunpack.c.h.b16 %v253
      %v448 = vunpack.c.l.b16 %v254
      %v449 = vunpack.c.h.b16 %v254
      %v450 = vunpack.c.l.b16 %v255
      %v451 = vunpack.c.h.b16 %v255
      %v452 = vunpack.c.l.b16 %v256
      %v453 = vunpack.c.h.b16 %v256
      %v454 = vunpack.c.l.b16 %v257
      %v455 = vunpack.c.h.b16 %v257
      %v456 = vunpack.c.l.b16 %v258
      %v457 = vunpack.c.h.b16 %v258
      %v458 = vunpack.c.l.b16 %v259
      %v459 = vunpack.c.h.b16 %v259
      %v460 = vunpack.c.l.b16 %v260
      %v461 = vunpack.c.h.b16 %v260
      %v462 = vunpack.c.l.b16 %v261
      %v463 = vunpack.c.h.b16 %v261
      %v464 = vunpack.c.l.b16 %v262
      %v465 = vunpack.c.h.b16 %v262
      %v466 = vunpack.c.l.b16 %v263
      %v467 = vunpack.c.h.b16 %v263
      %v468 = vunpack.c.l.b16 %v264
      %v469 = vunpack.c.h.b16 %v264
      %v470 = vunpack.c.l.b16 %v265
      %v471 = vunpack.c.h.b16 %v265
      %v472 = vunpack.c.l.b16 %v266
      %v473 = vunpack.c.h.b16 %v266
      %v474 = vunpack.c.l.b16 %v267
      %v475 = vunpack.c.h.b16 %v267
      %v476 = vunpack.c.l.b16 %v268
      %v477 = vunpack.c.h.b16 %v268
      %v478 = vunpack.c.l.b16 %v269
      %v479 = vunpack.c.h.b16 %v269
      %v480 = vunpack.c.l.b16 %v270
      %v481 = vunpack.c.h.b16 %v270
      %v482 = vunpack.c.l.b16 %v271
      %v483 = vunpack.c.h.b16 %v271
      %v484 = vunpack.c.l.b16 %v272
      %v485 = vunpack.c.h.b16 %v272
      %v486 = vunpack.c.l.b16 %v273
      %v487 = vunpack.c.h.b16 %v273
      %v488 = vunpack.c.l.b16 %v274
      %v489 = vunpack.c.h.b16 %v274
      %v490 = vunpack.c.l.b16 %v275
      %v491 = vunpack.c.h.b16 %v275
      %v492 = vunpack.c.l.b16 %v276
      %v493 = vunpack.c.h.b16 %v276
      %v494 = vunpack.c.l.b16 %v277
      %v495 = vunpack.c.h.b16 %v277
      %v496 = vunpack.c.l.b16 %v278
      %v497 = vunpack.c.h.b16 %v278
      %v498 = vunpack.c.l.b16 %v279
      %v499 = vunpack.c.h.b16 %v279
      %v500 = vunpack.c.l.b16 %v280
      %v501 = vunpack.c.h.b16 %v280
      %v502 = vunpack.c.l.b16 %v281
      %v503 = vunpack.c.h.b16 %v281
      %v504 = vunpack.c.l.b16 %v282
      %v505 = vunpack.c.h.b16 %v282
      %v506 = vunpack.c.l.b16 %v283
      %v507 = vunpack.c.h.b16 %v283
      %v508 = vunpack.c.l.b16 %v284
      %v509 = vunpack.c.h.b16 %v284
      %v510 = vunpack.c.l.b16 %v285
      %v511 = vunpack.c.h.b16 %v285
      %v512 = vunpack.c.l.b16 %v286
      %v513 = vunpack.c.h.b16 %v286
      %v514 = vunpack.c.l.b16 %v287
      %v515 = vunpack.c.h.b16 %v287
      %v516 = vunpack.c.l.b16 %v288
      %v517 = vunpack.c.h.b16 %v288
      %v518 = vunpack.c.l.b16 %v289
      %v519 = vunpack.c.h.b16 %v289
      %v520 = vunpack.c.l.b16 %v290
      %v521 = vunpack.c.h.b16 %v290
      %v522 = vunpack.c.l.b16 %v291
      %v523 = vunpack.c.h.b16 %v291
      %v524 = vunpack.c.l.b16 %v292
      %v525 = vunpack.c.h.b16 %v292
      %v526 = vunpack.c.l.b16 %v293
      %v527 = vunpack.c.h.b16 %v293
      %v528 = vunpack.c.l.b16 %v294
      %v529 = vunpack.c.h.b16 %v294
      %v530 = vunpack.c.l.b16 %v295
      %v531 = vunpack.c.h.b16 %v295
      %v532 = vunpack.c.l.b16 %v296
      %v533 = vunpack.c.h.b16 %v296
      %v534 = vunpack.c.l.b16 %v297
      %v535 = vunpack.c.h.b16 %v297
      %v536 = vunpack.c.l.b16 %v298
      %v537 = vunpack.c.h.b16 %v298
      %v538 = vunpack.c.l.b16 %v299
      %v539 = vunpack.c.h.b16 %v299
      %v540 = vunpack.c.l.b16 %v300
      %v541 = vunpack.c.h.b16 %v300
      %v542 = vunpack.c.l.b16 %v301
      %v543 = vunpack.c.h.b16 %v301
      %v544 = vunpack.c.l.b16 %v302
      %v545 = vunpack.c.h.b16 %v302
      %v546 = vunpack.c.l.b16 %v303
      %v547 = vunpack.c.h.b16 %v303
      %v548 = vunpack.c.l.b16 %v304
      %v549 = vunpack.c.h.b16 %v304
      %v550 = vunpack.c.l.b16 %v305
      %v551 = vunpack.c.h.b16 %v305
      %v552 = vunpack.c.l.b16 %v306
      %v553 = vunpack.c.h.b16 %v306
      %v554 = vunpack.c.l.b16 %v307
      %v555 = vunpack.c.h.b16 %v307
      %v556 = vunpack.c.l.b16 %v308
      %v557 = vunpack.c.h.b16 %v308
      %v558 = vunpack.c.l.b16 %v309
      %v559 = vunpack.c.h.b16 %v309
      %v560 = vunpack.c.l.b16 %v310
      %v561 = vunpack.c.h.b16 %v310
      %v562 = vunpack.c.l.b16 %v311
      %v563 = vunpack.c.h.b16 %v311
      %v564 = vunpack.c.l.b16 %v312
      %v565 = vunpack.c.h.b16 %v312
      %v566 = vunpack.c.l.b16 %v313
      %v567 = vunpack.c.h.b16 %v313
      %v568 = vunpack.c.l.b16 %v314
      %v569 = vunpack.c.h.b16 %v314
      %v570 = vunpack.c.l.b16 %v315
      %v571 = vunpack.c.h.b16 %v315
      %v572 = vunpack.c.l.b16 %v316
      %v573 = vunpack.c.h.b16 %v316
      %v574 = vunpack.c.l.b16 %v317
      %v575 = vunpack.c.h.b16 %v317
      %v576 = vunpack.c.l.b16 %v318
      %v577 = vunpack.c.h.b16 %v318
      %v578 = vunpack.c.l.b16 %v319
      %v579 = vunpack.c.h.b16 %v319
      %v580 = vunpack.c.l.b16 %v320
      %v581 = vunpack.c.h.b16 %v320
      %v582 = vunpack.c.l.b16 %v321
      %v583 = vunpack.c.h.b16 %v321
      %v584 = vunpack.c.l.b16 %v322
      %v585 = vunpack.c.h.b16 %v322
      %v586 = vunpack.c.l.b16 %v323
      %v587 = vunpack.c.h.b16 %v323
      %v588 = vpack.c.b16 %v416, %v412
      %v589 = vpack.c.b16 %v417, %v413
      %v590 = vpack.c.b16 %v418, %v414
      %v591 = vpack.c.b16 %v419, %v415
      %v592 = vpack.c.b16 %v424, %v420
      %v593 = vpack.c.b16 %v425, %v421
      %v594 = vpack.c.b16 %v426, %v422
      %v595 = vpack.c.b16 %v427, %v423
      %v596 = vpack.c.b16 %v432, %v428
      %v597 = vpack.c.b16 %v433, %v429
      %v598 = vpack.c.b16 %v434, %v430
      %v599 = vpack.c.b16 %v435, %v431
      %v600 = vpack.c.b16 %v440, %v436
      %v601 = vpack.c.b16 %v441, %v437
      %v602 = vpack.c.b16 %v442, %v438
      %v603 = vpack.c.b16 %v443, %v439
      %v604 = vpack.c.b16 %v448, %v444
      %v605 = vpack.c.b16 %v449, %v445
      %v606 = vpack.c.b16 %v450, %v446
      %v607 = vpack.c.b16 %v451, %v447
      %v608 = vpack.c.b16 %v456, %v452
      %v609 = vpack.c.b16 %v457, %v453
      %v610 = vpack.c.b16 %v458, %v454
      %v611 = vpack.c.b16 %v459, %v455
      %v612 = vpack.c.b16 %v464, %v460
      %v613 = vpack.c.b16 %v465, %v461
      %v614 = vpack.c.b16 %v466, %v462
      %v615 = vpack.c.b16 %v467, %v463
      %v616 = vpack.c.b16 %v472, %v468
      %v617 = vpack.c.b16 %v473, %v469
      %v618 = vpack.c.b16 %v474, %v470
      %v619 = vpack.c.b16 %v475, %v471
      %v620 = vpack.c.b16 %v480, %v476
      %v621 = vpack.c.b16 %v481, %v477
      %v622 = vpack.c.b16 %v482, %v478
      %v623 = vpack.c.b16 %v483, %v479
      %v624 = vpack.c.b16 %v488, %v484
      %v625 = vpack.c.b16 %v489, %v485
      %v626 = vpack.c.b16 %v490, %v486
      %v627 = vpack.c.b16 %v491, %v487
      %v628 = vpack.c.b16 %v496, %v492
      %v629 = vpack.c.b16 %v497, %v493
      %v630 = vpack.c.b16 %v498, %v494
      %v631 = vpack.c.b16 %v499, %v495
      %v632 = vpack.c.b16 %v504, %v500
      %v633 = vpack.c.b16 %v505, %v501
      %v634 = vpack.c.b16 %v506, %v502
      %v635 = vpack.c.b16 %v507, %v503
      %v636 = vpack.c.b16 %v512, %v508
      %v637 = vpack.c.b16 %v513, %v509
      %v638 = vpack.c.b16 %v514, %v510
      %v639 = vpack.c.b16 %v515, %v511
      %v640 = vpack.c.b16 %v520, %v516
      %v641 = vpack.c.b16 %v521, %v517
      %v642 = vpack.c.b16 %v522, %v518
      %v643 = vpack.c.b16 %v523, %v519
      %v644 = vpack.c.b16 %v528, %v524
      %v645 = vpack.c.b16 %v529, %v525
      %v646 = vpack.c.b16 %v530, %v526
      %v647 = vpack.c.b16 %v531, %v527
      %v648 = vpack.c.b16 %v536, %v532
      %v649 = vpack.c.b16 %v537, %v533
      %v650 = vpack.c.b16 %v538, %v534
      %v651 = vpack.c.b16 %v539, %v535
      %v652 = vpack.c.b16 %v544, %v540
      %v653 = vpack.c.b16 %v545, %v541
      %v654 = vpack.c.b16 %v546, %v542
      %v655 = vpack.c.b16 %v547, %v543
      %v656 = vpack.c.b16 %v552, %v548
      %v657 = vpack.c.b16 %v553, %v549
      %v658 = vpack.c.b16 %v554, %v550
      %v659 = vpack.c.b16 %v555, %v551
      %v660 = vpack.c.b16 %v560, %v556
      %v661 = vpack.c.b16 %v561, %v557
      %v662 = vpack.c.b16 %v562, %v558
      %v663 = vpack.c.b16 %v563, %v559
      %v664 = vpack.c.b16 %v568, %v564
      %v665 = vpack.c.b16 %v569, %v565
      %v666 = vpack.c.b16 %v570, %v566
      %v667 = vpack.c.b16 %v571, %v567
      %v668 = vpack.c.b16 %v576, %v572
      %v669 = vpack.c.b16 %v577, %v573
      %v670 = vpack.c.b16 %v578, %v574
      %v671 = vpack.c.b16 %v579, %v575
      %v672 = vpack.c.b16 %v584, %v580
      %v673 = vpack.c.b16 %v585, %v581
      %v674 = vpack.c.b16 %v586, %v582
      %v675 = vpack.c.b16 %v587, %v583
      %v828 = vunpack.c.l.b16 %v172
      %v829 = vunpack.c.h.b16 %v172
      %v830 = vunpack.c.l.b16 %v173
      %v831 = vunpack.c.h.b16 %v173
      %v832 = vunpack.c.l.b16 %v174
      %v833 = vunpack.c.h.b16 %v174
      %v834 = vunpack.c.l.b16 %v175
      %v835 = vunpack.c.h.b16 %v175
      %v836 = vunpack.c.l.b16 %v176
      %v837 = vunpack.c.h.b16 %v176
      %v838 = vunpack.c.l.b16 %v177
      %v839 = vunpack.c.h.b16 %v177
      %v840 = vunpack.c.l.b16 %v178
      %v841 = vunpack.c.h.b16 %v178
      %v842 = vunpack.c.l.b16 %v179
      %v843 = vunpack.c.h.b16 %v179
      %v844 = vunpack.c.l.b16 %v180
      %v845 = vunpack.c.h.b16 %v180
      %v846 = vunpack.c.l.b16 %v181
      %v847 = vunpack.c.h.b16 %v181
      %v848 = vunpack.c.l.b16 %v182
      %v849 = vunpack.c.h.b16 %v182
      %v850 = vunpack.c.l.b16 %v183
      %v851 = vunpack.c.h.b16 %v183
      %v852 = vunpack.c.l.b16 %v184
      %v853 = vunpack.c.h.b16 %v184
      %v854 = vunpack.c.l.b16 %v185
      %v855 = vunpack.c.h.b16 %v185
      %v856 = vunpack.c.l.b16 %v186
      %v857 = vunpack.c.h.b16 %v186
      %v858 = vunpack.c.l.b16 %v187
      %v859 = vunpack.c.h.b16 %v187
      %v860 = vunpack.c.l.b16 %v188
      %v861 = vunpack.c.h.b16 %v188
      %v862 = vunpack.c.l.b16 %v189
      %v863 = vunpack.c.h.b16 %v189
      %v864 = vunpack.c.l.b16 %v190
      %v865 = vunpack.c.h.b16 %v190
      %v866 = vunpack.c.l.b16 %v191
      %v867 = vunpack.c.h.b16 %v191
      %v868 = vunpack.c.l.b16 %v192
      %v869 = vunpack.c.h.b16 %v192
      %v870 = vunpack.c.l.b16 %v193
      %v871 = vunpack.c.h.b16 %v193
      %v872 = vunpack.c.l.b16 %v194
      %v873 = vunpack.c.h.b16 %v194
      %v874 = vunpack.c.l.b16 %v195
      %v875 = vunpack.c.h.b16 %v195
      %v876 = vunpack.c.l.b16 %v196
      %v877 = vunpack.c.h.b16 %v196
      %v878 = vunpack.c.l.b16 %v197
      %v879 = vunpack.c.h.b16 %v197
      %v880 = vunpack.c.l.b16 %v198
      %v881 = vunpack.c.h.b16 %v198
      %v882 = vunpack.c.l.b16 %v199
      %v883 = vunpack.c.h.b16 %v199
      %v884 = vunpack.c.l.b16 %v200
      %v885 = vunpack.c.h.b16 %v200
      %v886 = vunpack.c.l.b16 %v201
      %v887 = vunpack.c.h.b16 %v201
      %v888 = vunpack.c.l.b16 %v202
      %v889 = vunpack.c.h.b16 %v202
      %v890 = vunpack.c.l.b16 %v203
      %v891 = vunpack.c.h.b16 %v203
      %v892 = vunpack.c.l.b16 %v204
      %v893 = vunpack.c.h.b16 %v204
      %v894 = vunpack.c.l.b16 %v205
      %v895 = vunpack.c.h.b16 %v205
      %v896 = vunpack.c.l.b16 %v206
      %v897 = vunpack.c.h.b16 %v206
      %v898 = vunpack.c.l.b16 %v207
      %v899 = vunpack.c.h.b16 %v207
      %v900 = vunpack.c.l.b16 %v208
      %v901 = vunpack.c.h.b16 %v208
      %v902 = vunpack.c.l.b16 %v209
      %v903 = vunpack.c.h.b16 %v209
      %v904 = vunpack.c.l.b16 %v210
      %v905 = vunpack.c.h.b16 %v210
      %v906 = vunpack.c.l.b16 %v211
      %v907 = vunpack.c.h.b16 %v211
      %v908 = vunpack.c.l.b16 %v212
      %v909 = vunpack.c.h.b16 %v212
      %v910 = vunpack.c.l.b16 %v213
      %v911 = vunpack.c.h.b16 %v213
      %v912 = vunpack.c.l.b16 %v214
      %v913 = vunpack.c.h.b16 %v214
      %v914 = vunpack.c.l.b16 %v215
      %v915 = vunpack.c.h.b16 %v215
      %v916 = vunpack.c.l.b16 %v216
      %v917 = vunpack.c.h.b16 %v216
      %v918 = vunpack.c.l.b16 %v217
      %v919 = vunpack.c.h.b16 %v217
      %v920 = vunpack.c.l.b16 %v218
      %v921 = vunpack.c.h.b16 %v218
      %v922 = vunpack.c.l.b16 %v219
      %v923 = vunpack.c.h.b16 %v219
      %v924 = vunpack.c.l.b16 %v220
      %v925 = vunpack.c.h.b16 %v220
      %v926 = vunpack.c.l.b16 %v221
      %v927 = vunpack.c.h.b16 %v221
      %v928 = vunpack.c.l.b16 %v222
      %v929 = vunpack.c.h.b16 %v222
      %v930 = vunpack.c.l.b16 %v223
      %v931 = vunpack.c.h.b16 %v223
      %v932 = vunpack.c.l.b16 %v224
      %v933 = vunpack.c.h.b16 %v224
      %v934 = vunpack.c.l.b16 %v225
      %v935 = vunpack.c.h.b16 %v225
      %v936 = vunpack.c.l.b16 %v226
      %v937 = vunpack.c.h.b16 %v226
      %v938 = vunpack.c.l.b16 %v227
      %v939 = vunpack.c.h.b16 %v227
      %v940 = vunpack.c.l.b16 %v228
      %v941 = vunpack.c.h.b16 %v228
      %v942 = vunpack.c.l.b16 %v229
      %v943 = vunpack.c.h.b16 %v229
      %v944 = vunpack.c.l.b16 %v230
      %v945 = vunpack.c.h.b16 %v230
      %v946 = vunpack.c.l.b16 %v231
      %v947 = vunpack.c.h.b16 %v231
      %v948 = vunpack.c.l.b16 %v232
      %v949 = vunpack.c.h.b16 %v232
      %v950 = vunpack.c.l.b16 %v233
      %v951 = vunpack.c.h.b16 %v233
      %v952 = vunpack.c.l.b16 %v234
      %v953 = vunpack.c.h.b16 %v234
      %v954 = vunpack.c.l.b16 %v235
      %v955 = vunpack.c.h.b16 %v235
      %v956 = vpack.c.b16 %v830, %v828
      %v957 = vpack.c.b16 %v831, %v829
      %v958 = vpack.c.b16 %v834, %v832
      %v959 = vpack.c.b16 %v835, %v833
      %v960 = vpack.c.b16 %v838, %v836
      %v961 = vpack.c.b16 %v839, %v837
      %v962 = vpack.c.b16 %v842, %v840
      %v963 = vpack.c.b16 %v843, %v841
      %v964 = vpack.c.b16 %v846, %v844
      %v965 = vpack.c.b16 %v847, %v845
      %v966 = vpack.c.b16 %v850, %v848
      %v967 = vpack.c.b16 %v851, %v849
      %v968 = vpack.c.b16 %v854, %v852
      %v969 = vpack.c.b16 %v855, %v853
      %v970 = vpack.c.b16 %v858, %v856
      %v971 = vpack.c.b16 %v859, %v857
      %v972 = vpack.c.b16 %v862, %v860
      %v973 = vpack.c.b16 %v863, %v861
      %v974 = vpack.c.b16 %v866, %v864
      %v975 = vpack.c.b16 %v867, %v865
      %v976 = vpack.c.b16 %v870, %v868
      %v977 = vpack.c.b16 %v871, %v869
      %v978 = vpack.c.b16 %v874, %v872
      %v979 = vpack.c.b16 %v875, %v873
      %v980 = vpack.c.b16 %v878, %v876
      %v981 = vpack.c.b16 %v879, %v877
      %v982 = vpack.c.b16 %v882, %v880
      %v983 = vpack.c.b16 %v883, %v881
      %v984 = vpack.c.b16 %v886, %v884
      %v985 = vpack.c.b16 %v887, %v885
      %v986 = vpack.c.b16 %v890, %v888
      %v987 = vpack.c.b16 %v891, %v889
      %v988 = vpack.c.b16 %v894, %v892
      %v989 = vpack.c.b16 %v895, %v893
      %v990 = vpack.c.b16 %v898, %v896
      %v991 = vpack.c.b16 %v899, %v897
      %v992 = vpack.c.b16 %v902, %v900
      %v993 = vpack.c.b16 %v903, %v901
      %v994 = vpack.c.b16 %v906, %v904
      %v995 = vpack.c.b16 %v907, %v905
      %v996 = vpack.c.b16 %v910, %v908
      %v997 = vpack.c.b16 %v911, %v909
      %v998 = vpack.c.b16 %v914, %v912
      %v999 = vpack.c.b16 %v915, %v913
      %v1000 = vpack.c.b16 %v918, %v916
      %v1001 = vpack.c.b16 %v919, %v917
      %v1002 = vpack.c.b16 %v922, %v920
      %v1003 = vpack.c.b16 %v923, %v921
      %v1004 = vpack.c.b16 %v926, %v924
      %v1005 = vpack.c.b16 %v927, %v925
      %v1006 = vpack.c.b16 %v930, %v928
      %v1007 = vpack.c.b16 %v931, %v929
      %v1008 = vpack.c.b16 %v934, %v932
      %v1009 = vpack.c.b16 %v935, %v933
      %v1010 = vpack.c.b16 %v938, %v936
      %v1011 = vpack.c.b16 %v939, %v937
      %v1012 = vpack.c.b16 %v942, %v940
      %v1013 = vpack.c.b16 %v943, %v941
      %v1014 = vpack.c.b16 %v946, %v944
      %v1015 = vpack.c.b16 %v947, %v945
      %v1016 = vpack.c.b16 %v950, %v948
      %v1017 = vpack.c.b16 %v951, %v949
      %v1018 = vpack.c.b16 %v954, %v952
      %v1019 = vpack.c.b16 %v955, %v953
      %1084 = vmatprep.subr.bf16.mxu0 %v971
      %1085 = vmatpush1.bf16.msra.mxu0 %v970
      %1086 = vmatprep.subr.bf16.mxu0 %v969
      %1087 = vmatpush1.bf16.msra.mxu0 %v968
      %1088 = vmatprep.subr.bf16.mxu0 %v967
      %1089 = vmatpush1.bf16.msra.mxu0 %v966
      %1090 = vmatprep.subr.bf16.mxu0 %v965
      %1091 = vmatpush1.bf16.msra.mxu0 %v964
      %1092 = vmatprep.subr.bf16.mxu0 %v963
      %1093 = vmatpush1.bf16.msra.mxu0 %v962
      %1094 = vmatprep.subr.bf16.mxu0 %v961
      %1095 = vmatpush1.bf16.msra.mxu0 %v960
      %1096 = vmatprep.subr.bf16.mxu0 %v959
      %1097 = vmatpush1.bf16.msra.mxu0 %v958
      %1098 = vmatprep.subr.bf16.mxu0 %v957
      %1099 = vmatpush1.bf16.msra.mxu0 %v956
      %1100 = vmatprep.subr.bf16.mxu0 %v987
      %1101 = vmatpush2.bf16.msra.mxu0 %v986
      %1102 = vmatprep.subr.bf16.mxu0 %v985
      %1103 = vmatpush2.bf16.msra.mxu0 %v984
      %1104 = vmatprep.subr.bf16.mxu0 %v983
      %1105 = vmatpush2.bf16.msra.mxu0 %v982
      %1106 = vmatprep.subr.bf16.mxu0 %v981
      %1107 = vmatpush2.bf16.msra.mxu0 %v980
      %1108 = vmatprep.subr.bf16.mxu0 %v979
      %1109 = vmatpush2.bf16.msra.mxu0 %v978
      %1110 = vmatprep.subr.bf16.mxu0 %v977
      %1111 = vmatpush2.bf16.msra.mxu0 %v976
      %1112 = vmatprep.subr.bf16.mxu0 %v975
      %1113 = vmatpush2.bf16.msra.mxu0 %v974
      %1114 = vmatprep.subr.bf16.mxu0 %v973
      %1115 = vmatpush2.bf16.msra.mxu0 %v972
      %1116 = vmatprep.mubr.bf16.mxu0 %v589
      %1117 = vmatmul.mubr.bf16.gmra.mxu0 %v588
      %v1118 = vpop.f32.mrf.mxu0
      %v1119 = vadd.f32 0.0, %v1118
      %v1120 = vpop.f32.mrf.mxu0
      %v1121 = vadd.f32 0.0, %v1120
      %v1122 = vpop.f32.mrf.mxu0
      %v1123 = vadd.f32 0.0, %v1122
      %v1124 = vpop.f32.mrf.mxu0
      %v1125 = vadd.f32 0.0, %v1124
      %1126 = vmatprep.mubr.bf16.mxu0 %v593
      %1127 = vmatmul.mubr.bf16.gmra.mxu0 %v592
      %v1128 = vpop.f32.mrf.mxu0
      %v1129 = vadd.f32 0.0, %v1128
      %v1130 = vpop.f32.mrf.mxu0
      %v1131 = vadd.f32 0.0, %v1130
      %v1132 = vpop.f32.mrf.mxu0
      %v1133 = vadd.f32 0.0, %v1132
      %v1134 = vpop.f32.mrf.mxu0
      %v1135 = vadd.f32 0.0, %v1134
      %1136 = vmatprep.mubr.bf16.mxu0 %v597
      %1137 = vmatmul.mubr.bf16.gmra.mxu0 %v596
      %v1138 = vpop.f32.mrf.mxu0
      %v1139 = vadd.f32 0.0, %v1138
      %v1140 = vpop.f32.mrf.mxu0
      %v1141 = vadd.f32 0.0, %v1140
      %v1142 = vpop.f32.mrf.mxu0
      %v1143 = vadd.f32 0.0, %v1142
      %v1144 = vpop.f32.mrf.mxu0
      %v1145 = vadd.f32 0.0, %v1144
      %1146 = vmatprep.mubr.bf16.mxu0 %v601
      %1147 = vmatmul.mubr.bf16.gmra.mxu0 %v600
      %v1148 = vpop.f32.mrf.mxu0
      %v1149 = vadd.f32 0.0, %v1148
      %v1150 = vpop.f32.mrf.mxu0
      %v1151 = vadd.f32 0.0, %v1150
      %v1152 = vpop.f32.mrf.mxu0
      %v1153 = vadd.f32 0.0, %v1152
      %v1154 = vpop.f32.mrf.mxu0
      %v1155 = vadd.f32 0.0, %v1154
      %1156 = vmatprep.mubr.bf16.mxu0 %v605
      %1157 = vmatmul.mubr.bf16.gmra.mxu0 %v604
      %v1158 = vpop.f32.mrf.mxu0
      %v1159 = vadd.f32 0.0, %v1158
      %v1160 = vpop.f32.mrf.mxu0
      %v1161 = vadd.f32 0.0, %v1160
      %v1162 = vpop.f32.mrf.mxu0
      %v1163 = vadd.f32 0.0, %v1162
      %v1164 = vpop.f32.mrf.mxu0
      %v1165 = vadd.f32 0.0, %v1164
      %1166 = vmatprep.mubr.bf16.mxu0 %v609
      %1167 = vmatmul.mubr.bf16.gmra.mxu0 %v608
      %v1168 = vpop.f32.mrf.mxu0
      %v1169 = vadd.f32 0.0, %v1168
      %v1170 = vpop.f32.mrf.mxu0
      %v1171 = vadd.f32 0.0, %v1170
      %v1172 = vpop.f32.mrf.mxu0
      %v1173 = vadd.f32 0.0, %v1172
      %v1174 = vpop.f32.mrf.mxu0
      %v1175 = vadd.f32 0.0, %v1174
      %1176 = vmatprep.mubr.bf16.mxu0 %v613
      %1177 = vmatmul.mubr.bf16.gmra.mxu0 %v612
      %v1178 = vpop.f32.mrf.mxu0
      %v1179 = vadd.f32 0.0, %v1178
      %v1180 = vpop.f32.mrf.mxu0
      %v1181 = vadd.f32 0.0, %v1180
      %v1182 = vpop.f32.mrf.mxu0
      %v1183 = vadd.f32 0.0, %v1182
      %v1184 = vpop.f32.mrf.mxu0
      %v1185 = vadd.f32 0.0, %v1184
      %1186 = vmatprep.mubr.bf16.mxu0 %v617
      %1187 = vmatmul.mubr.bf16.gmra.mxu0 %v616
      %v1188 = vpop.f32.mrf.mxu0
      %v1189 = vadd.f32 0.0, %v1188
      %v1190 = vpop.f32.mrf.mxu0
      %v1191 = vadd.f32 0.0, %v1190
      %v1192 = vpop.f32.mrf.mxu0
      %v1193 = vadd.f32 0.0, %v1192
      %v1194 = vpop.f32.mrf.mxu0
      %v1195 = vadd.f32 0.0, %v1194
      %1196 = vmatprep.mubr.bf16.mxu0 %v621
      %1197 = vmatmul.mubr.bf16.gmra.mxu0 %v620
      %v1198 = vpop.f32.mrf.mxu0
      %v1199 = vadd.f32 0.0, %v1198
      %v1200 = vpop.f32.mrf.mxu0
      %v1201 = vadd.f32 0.0, %v1200
      %v1202 = vpop.f32.mrf.mxu0
      %v1203 = vadd.f32 0.0, %v1202
      %v1204 = vpop.f32.mrf.mxu0
      %v1205 = vadd.f32 0.0, %v1204
      %1206 = vmatprep.mubr.bf16.mxu0 %v625
      %1207 = vmatmul.mubr.bf16.gmra.mxu0 %v624
      %v1208 = vpop.f32.mrf.mxu0
      %v1209 = vadd.f32 0.0, %v1208
      %v1210 = vpop.f32.mrf.mxu0
      %v1211 = vadd.f32 0.0, %v1210
      %v1212 = vpop.f32.mrf.mxu0
      %v1213 = vadd.f32 0.0, %v1212
      %v1214 = vpop.f32.mrf.mxu0
      %v1215 = vadd.f32 0.0, %v1214
      %1216 = vmatprep.mubr.bf16.mxu0 %v629
      %1217 = vmatmul.mubr.bf16.gmra.mxu0 %v628
      %v1218 = vpop.f32.mrf.mxu0
      %v1219 = vadd.f32 0.0, %v1218
      %v1220 = vpop.f32.mrf.mxu0
      %v1221 = vadd.f32 0.0, %v1220
      %v1222 = vpop.f32.mrf.mxu0
      %v1223 = vadd.f32 0.0, %v1222
      %v1224 = vpop.f32.mrf.mxu0
      %v1225 = vadd.f32 0.0, %v1224
      %1226 = vmatprep.mubr.bf16.mxu0 %v633
      %1227 = vmatmul.mubr.bf16.gmra.mxu0 %v632
      %v1228 = vpop.f32.mrf.mxu0
      %v1229 = vadd.f32 0.0, %v1228
      %v1230 = vpop.f32.mrf.mxu0
      %v1231 = vadd.f32 0.0, %v1230
      %v1232 = vpop.f32.mrf.mxu0
      %v1233 = vadd.f32 0.0, %v1232
      %v1234 = vpop.f32.mrf.mxu0
      %v1235 = vadd.f32 0.0, %v1234
      %1236 = vmatprep.mubr.bf16.mxu0 %v637
      %1237 = vmatmul.mubr.bf16.gmra.mxu0 %v636
      %v1238 = vpop.f32.mrf.mxu0
      %v1239 = vadd.f32 0.0, %v1238
      %v1240 = vpop.f32.mrf.mxu0
      %v1241 = vadd.f32 0.0, %v1240
      %v1242 = vpop.f32.mrf.mxu0
      %v1243 = vadd.f32 0.0, %v1242
      %v1244 = vpop.f32.mrf.mxu0
      %v1245 = vadd.f32 0.0, %v1244
      %1246 = vmatprep.mubr.bf16.mxu0 %v641
      %1247 = vmatmul.mubr.bf16.gmra.mxu0 %v640
      %v1248 = vpop.f32.mrf.mxu0
      %v1249 = vadd.f32 0.0, %v1248
      %v1250 = vpop.f32.mrf.mxu0
      %v1251 = vadd.f32 0.0, %v1250
      %v1252 = vpop.f32.mrf.mxu0
      %v1253 = vadd.f32 0.0, %v1252
      %v1254 = vpop.f32.mrf.mxu0
      %v1255 = vadd.f32 0.0, %v1254
      %1256 = vmatprep.mubr.bf16.mxu0 %v645
      %1257 = vmatmul.mubr.bf16.gmra.mxu0 %v644
      %v1258 = vpop.f32.mrf.mxu0
      %v1259 = vadd.f32 0.0, %v1258
      %v1260 = vpop.f32.mrf.mxu0
      %v1261 = vadd.f32 0.0, %v1260
      %v1262 = vpop.f32.mrf.mxu0
      %v1263 = vadd.f32 0.0, %v1262
      %v1264 = vpop.f32.mrf.mxu0
      %v1265 = vadd.f32 0.0, %v1264
      %1266 = vmatprep.mubr.bf16.mxu0 %v649
      %1267 = vmatmul.mubr.bf16.gmra.mxu0 %v648
      %v1268 = vpop.f32.mrf.mxu0
      %v1269 = vadd.f32 0.0, %v1268
      %v1270 = vpop.f32.mrf.mxu0
      %v1271 = vadd.f32 0.0, %v1270
      %v1272 = vpop.f32.mrf.mxu0
      %v1273 = vadd.f32 0.0, %v1272
      %v1274 = vpop.f32.mrf.mxu0
      %v1275 = vadd.f32 0.0, %v1274
      %1276 = vmatprep.mubr.bf16.mxu0 %v653
      %1277 = vmatmul.mubr.bf16.gmra.mxu0 %v652
      %v1278 = vpop.f32.mrf.mxu0
      %v1279 = vadd.f32 0.0, %v1278
      %v1280 = vpop.f32.mrf.mxu0
      %v1281 = vadd.f32 0.0, %v1280
      %v1282 = vpop.f32.mrf.mxu0
      %v1283 = vadd.f32 0.0, %v1282
      %v1284 = vpop.f32.mrf.mxu0
      %v1285 = vadd.f32 0.0, %v1284
      %1286 = vmatprep.mubr.bf16.mxu0 %v657
      %1287 = vmatmul.mubr.bf16.gmra.mxu0 %v656
      %v1288 = vpop.f32.mrf.mxu0
      %v1289 = vadd.f32 0.0, %v1288
      %v1290 = vpop.f32.mrf.mxu0
      %v1291 = vadd.f32 0.0, %v1290
      %v1292 = vpop.f32.mrf.mxu0
      %v1293 = vadd.f32 0.0, %v1292
      %v1294 = vpop.f32.mrf.mxu0
      %v1295 = vadd.f32 0.0, %v1294
      %1296 = vmatprep.mubr.bf16.mxu0 %v661
      %1297 = vmatmul.mubr.bf16.gmra.mxu0 %v660
      %v1298 = vpop.f32.mrf.mxu0
      %v1299 = vadd.f32 0.0, %v1298
      %v1300 = vpop.f32.mrf.mxu0
      %v1301 = vadd.f32 0.0, %v1300
      %v1302 = vpop.f32.mrf.mxu0
      %v1303 = vadd.f32 0.0, %v1302
      %v1304 = vpop.f32.mrf.mxu0
      %v1305 = vadd.f32 0.0, %v1304
      %1306 = vmatprep.mubr.bf16.mxu0 %v665
      %1307 = vmatmul.mubr.bf16.gmra.mxu0 %v664
      %v1308 = vpop.f32.mrf.mxu0
      %v1309 = vadd.f32 0.0, %v1308
      %v1310 = vpop.f32.mrf.mxu0
      %v1311 = vadd.f32 0.0, %v1310
      %v1312 = vpop.f32.mrf.mxu0
      %v1313 = vadd.f32 0.0, %v1312
      %v1314 = vpop.f32.mrf.mxu0
      %v1315 = vadd.f32 0.0, %v1314
      %1316 = vmatprep.mubr.bf16.mxu0 %v669
      %1317 = vmatmul.mubr.bf16.gmra.mxu0 %v668
      %v1318 = vpop.f32.mrf.mxu0
      %v1319 = vadd.f32 0.0, %v1318
      %v1320 = vpop.f32.mrf.mxu0
      %v1321 = vadd.f32 0.0, %v1320
      %v1322 = vpop.f32.mrf.mxu0
      %v1323 = vadd.f32 0.0, %v1322
      %v1324 = vpop.f32.mrf.mxu0
      %v1325 = vadd.f32 0.0, %v1324
      %1326 = vmatprep.mubr.bf16.mxu0 %v673
      %1327 = vmatmul.mubr.bf16.gmra.mxu0 %v672
      %v1328 = vpop.f32.mrf.mxu0
      %v1329 = vadd.f32 0.0, %v1328
      %v1330 = vpop.f32.mrf.mxu0
      %v1331 = vadd.f32 0.0, %v1330
      %v1332 = vpop.f32.mrf.mxu0
      %v1333 = vadd.f32 0.0, %v1332
      %v1334 = vpop.f32.mrf.mxu0
      %v1335 = vadd.f32 0.0, %v1334
      %1336 = vdwg.mxu0
      %1337 = vmatprep.subr.bf16.mxu0 %v1003
      %1338 = vmatpush1.bf16.msra.mxu0 %v1002
      %1339 = vmatprep.subr.bf16.mxu0 %v1001
      %1340 = vmatpush1.bf16.msra.mxu0 %v1000
      %1341 = vmatprep.subr.bf16.mxu0 %v999
      %1342 = vmatpush1.bf16.msra.mxu0 %v998
      %1343 = vmatprep.subr.bf16.mxu0 %v997
      %1344 = vmatpush1.bf16.msra.mxu0 %v996
      %1345 = vmatprep.subr.bf16.mxu0 %v995
      %1346 = vmatpush1.bf16.msra.mxu0 %v994
      %1347 = vmatprep.subr.bf16.mxu0 %v993
      %1348 = vmatpush1.bf16.msra.mxu0 %v992
      %1349 = vmatprep.subr.bf16.mxu0 %v991
      %1350 = vmatpush1.bf16.msra.mxu0 %v990
      %1351 = vmatprep.subr.bf16.mxu0 %v989
      %1352 = vmatpush1.bf16.msra.mxu0 %v988
      %1353 = vmatprep.subr.bf16.mxu0 %v1019
      %1354 = vmatpush2.bf16.msra.mxu0 %v1018
      %1355 = vmatprep.subr.bf16.mxu0 %v1017
      %1356 = vmatpush2.bf16.msra.mxu0 %v1016
      %1357 = vmatprep.subr.bf16.mxu0 %v1015
      %1358 = vmatpush2.bf16.msra.mxu0 %v1014
      %1359 = vmatprep.subr.bf16.mxu0 %v1013
      %1360 = vmatpush2.bf16.msra.mxu0 %v1012
      %1361 = vmatprep.subr.bf16.mxu0 %v1011
      %1362 = vmatpush2.bf16.msra.mxu0 %v1010
      %1363 = vmatprep.subr.bf16.mxu0 %v1009
      %1364 = vmatpush2.bf16.msra.mxu0 %v1008
      %1365 = vmatprep.subr.bf16.mxu0 %v1007
      %1366 = vmatpush2.bf16.msra.mxu0 %v1006
      %1367 = vmatprep.subr.bf16.mxu0 %v1005
      %1368 = vmatpush2.bf16.msra.mxu0 %v1004
      %1369 = vmatprep.mubr.bf16.mxu0 %v591
      %1370 = vmatmul.mubr.bf16.gmra.mxu0 %v590
      %v1371 = vpop.f32.mrf.mxu0
      %v1372 = vadd.f32 %v1119, %v1371
      %v1373 = vpop.f32.mrf.mxu0
      %v1374 = vadd.f32 %v1121, %v1373
      %v1375 = vpop.f32.mrf.mxu0
      %v1376 = vadd.f32 %v1123, %v1375
      %v1377 = vpop.f32.mrf.mxu0
      %v1378 = vadd.f32 %v1125, %v1377
      %1379 = vmatprep.mubr.bf16.mxu0 %v595
      %1380 = vmatmul.mubr.bf16.gmra.mxu0 %v594
      %v1381 = vpop.f32.mrf.mxu0
      %v1382 = vadd.f32 %v1129, %v1381
      %v1383 = vpop.f32.mrf.mxu0
      %v1384 = vadd.f32 %v1131, %v1383
      %v1385 = vpop.f32.mrf.mxu0
      %v1386 = vadd.f32 %v1133, %v1385
      %v1387 = vpop.f32.mrf.mxu0
      %v1388 = vadd.f32 %v1135, %v1387
      %1389 = vmatprep.mubr.bf16.mxu0 %v599
      %1390 = vmatmul.mubr.bf16.gmra.mxu0 %v598
      %v1391 = vpop.f32.mrf.mxu0
      %v1392 = vadd.f32 %v1139, %v1391
      %v1393 = vpop.f32.mrf.mxu0
      %v1394 = vadd.f32 %v1141, %v1393
      %v1395 = vpop.f32.mrf.mxu0
      %v1396 = vadd.f32 %v1143, %v1395
      %v1397 = vpop.f32.mrf.mxu0
      %v1398 = vadd.f32 %v1145, %v1397
      %1399 = vmatprep.mubr.bf16.mxu0 %v603
      %1400 = vmatmul.mubr.bf16.gmra.mxu0 %v602
      %v1401 = vpop.f32.mrf.mxu0
      %v1402 = vadd.f32 %v1149, %v1401
      %v1403 = vpop.f32.mrf.mxu0
      %v1404 = vadd.f32 %v1151, %v1403
      %v1405 = vpop.f32.mrf.mxu0
      %v1406 = vadd.f32 %v1153, %v1405
      %v1407 = vpop.f32.mrf.mxu0
      %v1408 = vadd.f32 %v1155, %v1407
      %1409 = vmatprep.mubr.bf16.mxu0 %v607
      %1410 = vmatmul.mubr.bf16.gmra.mxu0 %v606
      %v1411 = vpop.f32.mrf.mxu0
      %v1412 = vadd.f32 %v1159, %v1411
      %v1413 = vpop.f32.mrf.mxu0
      %v1414 = vadd.f32 %v1161, %v1413
      %v1415 = vpop.f32.mrf.mxu0
      %v1416 = vadd.f32 %v1163, %v1415
      %v1417 = vpop.f32.mrf.mxu0
      %v1418 = vadd.f32 %v1165, %v1417
      %1419 = vmatprep.mubr.bf16.mxu0 %v611
      %1420 = vmatmul.mubr.bf16.gmra.mxu0 %v610
      %v1421 = vpop.f32.mrf.mxu0
      %v1422 = vadd.f32 %v1169, %v1421
      %v1423 = vpop.f32.mrf.mxu0
      %v1424 = vadd.f32 %v1171, %v1423
      %v1425 = vpop.f32.mrf.mxu0
      %v1426 = vadd.f32 %v1173, %v1425
      %v1427 = vpop.f32.mrf.mxu0
      %v1428 = vadd.f32 %v1175, %v1427
      %1429 = vmatprep.mubr.bf16.mxu0 %v615
      %1430 = vmatmul.mubr.bf16.gmra.mxu0 %v614
      %v1431 = vpop.f32.mrf.mxu0
      %v1432 = vadd.f32 %v1179, %v1431
      %v1433 = vpop.f32.mrf.mxu0
      %v1434 = vadd.f32 %v1181, %v1433
      %v1435 = vpop.f32.mrf.mxu0
      %v1436 = vadd.f32 %v1183, %v1435
      %v1437 = vpop.f32.mrf.mxu0
      %v1438 = vadd.f32 %v1185, %v1437
      %1439 = vmatprep.mubr.bf16.mxu0 %v619
      %1440 = vmatmul.mubr.bf16.gmra.mxu0 %v618
      %v1441 = vpop.f32.mrf.mxu0
      %v1442 = vadd.f32 %v1189, %v1441
      %v1443 = vpop.f32.mrf.mxu0
      %v1444 = vadd.f32 %v1191, %v1443
      %v1445 = vpop.f32.mrf.mxu0
      %v1446 = vadd.f32 %v1193, %v1445
      %v1447 = vpop.f32.mrf.mxu0
      %v1448 = vadd.f32 %v1195, %v1447
      %1449 = vmatprep.mubr.bf16.mxu0 %v623
      %1450 = vmatmul.mubr.bf16.gmra.mxu0 %v622
      %v1451 = vpop.f32.mrf.mxu0
      %v1452 = vadd.f32 %v1199, %v1451
      %v1453 = vpop.f32.mrf.mxu0
      %v1454 = vadd.f32 %v1201, %v1453
      %v1455 = vpop.f32.mrf.mxu0
      %v1456 = vadd.f32 %v1203, %v1455
      %v1457 = vpop.f32.mrf.mxu0
      %v1458 = vadd.f32 %v1205, %v1457
      %1459 = vmatprep.mubr.bf16.mxu0 %v627
      %1460 = vmatmul.mubr.bf16.gmra.mxu0 %v626
      %v1461 = vpop.f32.mrf.mxu0
      %v1462 = vadd.f32 %v1209, %v1461
      %v1463 = vpop.f32.mrf.mxu0
      %v1464 = vadd.f32 %v1211, %v1463
      %v1465 = vpop.f32.mrf.mxu0
      %v1466 = vadd.f32 %v1213, %v1465
      %v1467 = vpop.f32.mrf.mxu0
      %v1468 = vadd.f32 %v1215, %v1467
      %1469 = vmatprep.mubr.bf16.mxu0 %v631
      %1470 = vmatmul.mubr.bf16.gmra.mxu0 %v630
      %v1471 = vpop.f32.mrf.mxu0
      %v1472 = vadd.f32 %v1219, %v1471
      %v1473 = vpop.f32.mrf.mxu0
      %v1474 = vadd.f32 %v1221, %v1473
      %v1475 = vpop.f32.mrf.mxu0
      %v1476 = vadd.f32 %v1223, %v1475
      %v1477 = vpop.f32.mrf.mxu0
      %v1478 = vadd.f32 %v1225, %v1477
      %1479 = vmatprep.mubr.bf16.mxu0 %v635
      %1480 = vmatmul.mubr.bf16.gmra.mxu0 %v634
      %v1481 = vpop.f32.mrf.mxu0
      %v1482 = vadd.f32 %v1229, %v1481
      %v1483 = vpop.f32.mrf.mxu0
      %v1484 = vadd.f32 %v1231, %v1483
      %v1485 = vpop.f32.mrf.mxu0
      %v1486 = vadd.f32 %v1233, %v1485
      %v1487 = vpop.f32.mrf.mxu0
      %v1488 = vadd.f32 %v1235, %v1487
      %1489 = vmatprep.mubr.bf16.mxu0 %v639
      %1490 = vmatmul.mubr.bf16.gmra.mxu0 %v638
      %v1491 = vpop.f32.mrf.mxu0
      %v1492 = vadd.f32 %v1239, %v1491
      %v1493 = vpop.f32.mrf.mxu0
      %v1494 = vadd.f32 %v1241, %v1493
      %v1495 = vpop.f32.mrf.mxu0
      %v1496 = vadd.f32 %v1243, %v1495
      %v1497 = vpop.f32.mrf.mxu0
      %v1498 = vadd.f32 %v1245, %v1497
      %1499 = vmatprep.mubr.bf16.mxu0 %v643
      %1500 = vmatmul.mubr.bf16.gmra.mxu0 %v642
      %v1501 = vpop.f32.mrf.mxu0
      %v1502 = vadd.f32 %v1249, %v1501
      %v1503 = vpop.f32.mrf.mxu0
      %v1504 = vadd.f32 %v1251, %v1503
      %v1505 = vpop.f32.mrf.mxu0
      %v1506 = vadd.f32 %v1253, %v1505
      %v1507 = vpop.f32.mrf.mxu0
      %v1508 = vadd.f32 %v1255, %v1507
      %1509 = vmatprep.mubr.bf16.mxu0 %v647
      %1510 = vmatmul.mubr.bf16.gmra.mxu0 %v646
      %v1511 = vpop.f32.mrf.mxu0
      %v1512 = vadd.f32 %v1259, %v1511
      %v1513 = vpop.f32.mrf.mxu0
      %v1514 = vadd.f32 %v1261, %v1513
      %v1515 = vpop.f32.mrf.mxu0
      %v1516 = vadd.f32 %v1263, %v1515
      %v1517 = vpop.f32.mrf.mxu0
      %v1518 = vadd.f32 %v1265, %v1517
      %1519 = vmatprep.mubr.bf16.mxu0 %v651
      %1520 = vmatmul.mubr.bf16.gmra.mxu0 %v650
      %v1521 = vpop.f32.mrf.mxu0
      %v1522 = vadd.f32 %v1269, %v1521
      %v1523 = vpop.f32.mrf.mxu0
      %v1524 = vadd.f32 %v1271, %v1523
      %v1525 = vpop.f32.mrf.mxu0
      %v1526 = vadd.f32 %v1273, %v1525
      %v1527 = vpop.f32.mrf.mxu0
      %v1528 = vadd.f32 %v1275, %v1527
      %1529 = vmatprep.mubr.bf16.mxu0 %v655
      %1530 = vmatmul.mubr.bf16.gmra.mxu0 %v654
      %v1531 = vpop.f32.mrf.mxu0
      %v1532 = vadd.f32 %v1279, %v1531
      %v1533 = vpop.f32.mrf.mxu0
      %v1534 = vadd.f32 %v1281, %v1533
      %v1535 = vpop.f32.mrf.mxu0
      %v1536 = vadd.f32 %v1283, %v1535
      %v1537 = vpop.f32.mrf.mxu0
      %v1538 = vadd.f32 %v1285, %v1537
      %1539 = vmatprep.mubr.bf16.mxu0 %v659
      %1540 = vmatmul.mubr.bf16.gmra.mxu0 %v658
      %v1541 = vpop.f32.mrf.mxu0
      %v1542 = vadd.f32 %v1289, %v1541
      %v1543 = vpop.f32.mrf.mxu0
      %v1544 = vadd.f32 %v1291, %v1543
      %v1545 = vpop.f32.mrf.mxu0
      %v1546 = vadd.f32 %v1293, %v1545
      %v1547 = vpop.f32.mrf.mxu0
      %v1548 = vadd.f32 %v1295, %v1547
      %1549 = vmatprep.mubr.bf16.mxu0 %v663
      %1550 = vmatmul.mubr.bf16.gmra.mxu0 %v662
      %v1551 = vpop.f32.mrf.mxu0
      %v1552 = vadd.f32 %v1299, %v1551
      %v1553 = vpop.f32.mrf.mxu0
      %v1554 = vadd.f32 %v1301, %v1553
      %v1555 = vpop.f32.mrf.mxu0
      %v1556 = vadd.f32 %v1303, %v1555
      %v1557 = vpop.f32.mrf.mxu0
      %v1558 = vadd.f32 %v1305, %v1557
      %1559 = vmatprep.mubr.bf16.mxu0 %v667
      %1560 = vmatmul.mubr.bf16.gmra.mxu0 %v666
      %v1561 = vpop.f32.mrf.mxu0
      %v1562 = vadd.f32 %v1309, %v1561
      %v1563 = vpop.f32.mrf.mxu0
      %v1564 = vadd.f32 %v1311, %v1563
      %v1565 = vpop.f32.mrf.mxu0
      %v1566 = vadd.f32 %v1313, %v1565
      %v1567 = vpop.f32.mrf.mxu0
      %v1568 = vadd.f32 %v1315, %v1567
      %1569 = vmatprep.mubr.bf16.mxu0 %v671
      %1570 = vmatmul.mubr.bf16.gmra.mxu0 %v670
      %v1571 = vpop.f32.mrf.mxu0
      %v1572 = vadd.f32 %v1319, %v1571
      %v1573 = vpop.f32.mrf.mxu0
      %v1574 = vadd.f32 %v1321, %v1573
      %v1575 = vpop.f32.mrf.mxu0
      %v1576 = vadd.f32 %v1323, %v1575
      %v1577 = vpop.f32.mrf.mxu0
      %v1578 = vadd.f32 %v1325, %v1577
      %1579 = vmatprep.mubr.bf16.mxu0 %v675
      %1580 = vmatmul.mubr.bf16.gmra.mxu0 %v674
      %v1581 = vpop.f32.mrf.mxu0
      %v1582 = vadd.f32 %v1329, %v1581
      %v1583 = vpop.f32.mrf.mxu0
      %v1584 = vadd.f32 %v1331, %v1583
      %v1585 = vpop.f32.mrf.mxu0
      %v1586 = vadd.f32 %v1333, %v1585
      %v1587 = vpop.f32.mrf.mxu0
      %v1588 = vadd.f32 %v1335, %v1587
      %1589 = vdwg.mxu0
      %v1590 = vmul.f32 %v1372, %v1372
      %v1591 = vmul.f32 %v1376, %v1376
      %v1592 = vmul.f32 %v1382, %v1382
      %v1593 = vmul.f32 %v1386, %v1386
      %v1594 = vmul.f32 %v1392, %v1392
      %v1595 = vmul.f32 %v1396, %v1396
      %v1596 = vmul.f32 %v1402, %v1402
      %v1597 = vmul.f32 %v1406, %v1406
      %v1598 = vmul.f32 %v1412, %v1412
      %v1599 = vmul.f32 %v1416, %v1416
      %v1600 = vmul.f32 %v1422, %v1422
      %v1601 = vmul.f32 %v1426, %v1426
      %v1602 = vmul.f32 %v1432, %v1432
      %v1603 = vmul.f32 %v1436, %v1436
      %v1604 = vmul.f32 %v1442, %v1442
      %v1605 = vmul.f32 %v1446, %v1446
      %v1606 = vmul.f32 %v1452, %v1452
      %v1607 = vmul.f32 %v1456, %v1456
      %v1608 = vmul.f32 %v1462, %v1462
      %v1609 = vmul.f32 %v1466, %v1466
      %v1610 = vmul.f32 %v1472, %v1472
      %v1611 = vmul.f32 %v1476, %v1476
      %v1612 = vmul.f32 %v1374, %v1374
      %v1613 = vmul.f32 %v1378, %v1378
      %v1614 = vmul.f32 %v1384, %v1384
      %v1615 = vmul.f32 %v1388, %v1388
      %v1616 = vmul.f32 %v1394, %v1394
      %v1617 = vmul.f32 %v1398, %v1398
      %v1618 = vmul.f32 %v1404, %v1404
      %v1619 = vmul.f32 %v1408, %v1408
      %v1620 = vmul.f32 %v1414, %v1414
      %v1621 = vmul.f32 %v1418, %v1418
      %v1622 = vmul.f32 %v1424, %v1424
      %v1623 = vmul.f32 %v1428, %v1428
      %v1624 = vmul.f32 %v1434, %v1434
      %v1625 = vmul.f32 %v1438, %v1438
      %v1626 = vmul.f32 %v1444, %v1444
      %v1627 = vmul.f32 %v1448, %v1448
      %v1628 = vmul.f32 %v1454, %v1454
      %v1629 = vmul.f32 %v1458, %v1458
      %v1630 = vmul.f32 %v1464, %v1464
      %v1631 = vmul.f32 %v1468, %v1468
      %v1632 = vmul.f32 %v1474, %v1474
      %v1633 = vmul.f32 %v1478, %v1478
      %v1634 = vadd.f32 %v1590, %v1612
      %v1635 = vadd.f32 %v1591, %v1613
      %v1636 = vadd.f32 %v1592, %v1614
      %v1637 = vadd.f32 %v1593, %v1615
      %v1638 = vadd.f32 %v1594, %v1616
      %v1639 = vadd.f32 %v1595, %v1617
      %v1640 = vadd.f32 %v1596, %v1618
      %v1641 = vadd.f32 %v1597, %v1619
      %v1642 = vadd.f32 %v1598, %v1620
      %v1643 = vadd.f32 %v1599, %v1621
      %v1644 = vadd.f32 %v1600, %v1622
      %v1645 = vadd.f32 %v1601, %v1623
      %v1646 = vadd.f32 %v1602, %v1624
      %v1647 = vadd.f32 %v1603, %v1625
      %v1648 = vadd.f32 %v1604, %v1626
      %v1649 = vadd.f32 %v1605, %v1627
      %v1650 = vadd.f32 %v1606, %v1628
      %v1651 = vadd.f32 %v1607, %v1629
      %v1652 = vadd.f32 %v1608, %v1630
      %v1653 = vadd.f32 %v1609, %v1631
      %v1654 = vadd.f32 %v1610, %v1632
      %v1655 = vadd.f32 %v1611, %v1633
      %v1656 = vmax.f32 %v1634, 1e-08
      %v1657 = vmax.f32 %v1635, 1e-08
      %v1658 = vmax.f32 %v1636, 1e-08
      %v1659 = vmax.f32 %v1637, 1e-08
      %v1660 = vmax.f32 %v1638, 1e-08
      %v1661 = vmax.f32 %v1639, 1e-08
      %v1662 = vmax.f32 %v1640, 1e-08
      %v1663 = vmax.f32 %v1641, 1e-08
      %v1664 = vmax.f32 %v1642, 1e-08
      %v1665 = vmax.f32 %v1643, 1e-08
      %v1666 = vmax.f32 %v1644, 1e-08
      %v1667 = vmax.f32 %v1645, 1e-08
      %v1668 = vmax.f32 %v1646, 1e-08
      %v1669 = vmax.f32 %v1647, 1e-08
      %v1670 = vmax.f32 %v1648, 1e-08
      %v1671 = vmax.f32 %v1649, 1e-08
      %v1672 = vmax.f32 %v1650, 1e-08
      %v1673 = vmax.f32 %v1651, 1e-08
      %v1674 = vmax.f32 %v1652, 1e-08
      %v1675 = vmax.f32 %v1653, 1e-08
      %v1676 = vmax.f32 %v1654, 1e-08
      %v1677 = vmax.f32 %v1655, 1e-08
      %v1678 = vmul.f32 %v1482, %v1482
      %v1679 = vmul.f32 %v1486, %v1486
      %v1680 = vmul.f32 %v1492, %v1492
      %v1681 = vmul.f32 %v1496, %v1496
      %v1682 = vmul.f32 %v1502, %v1502
      %v1683 = vmul.f32 %v1506, %v1506
      %v1684 = vmul.f32 %v1512, %v1512
      %v1685 = vmul.f32 %v1516, %v1516
      %v1686 = vmul.f32 %v1522, %v1522
      %v1687 = vmul.f32 %v1526, %v1526
      %v1688 = vmul.f32 %v1532, %v1532
      %v1689 = vmul.f32 %v1536, %v1536
      %v1690 = vmul.f32 %v1542, %v1542
      %v1691 = vmul.f32 %v1546, %v1546
      %v1692 = vmul.f32 %v1552, %v1552
      %v1693 = vmul.f32 %v1556, %v1556
      %v1694 = vmul.f32 %v1562, %v1562
      %v1695 = vmul.f32 %v1566, %v1566
      %v1696 = vmul.f32 %v1572, %v1572
      %v1697 = vmul.f32 %v1576, %v1576
      %v1698 = vmul.f32 %v1582, %v1582
      %v1699 = vmul.f32 %v1586, %v1586
      %v1700 = vmul.f32 %v1484, %v1484
      %v1701 = vmul.f32 %v1488, %v1488
      %v1702 = vmul.f32 %v1494, %v1494
      %v1703 = vmul.f32 %v1498, %v1498
      %v1704 = vmul.f32 %v1504, %v1504
      %v1705 = vmul.f32 %v1508, %v1508
      %v1706 = vmul.f32 %v1514, %v1514
      %v1707 = vmul.f32 %v1518, %v1518
      %v1708 = vmul.f32 %v1524, %v1524
      %v1709 = vmul.f32 %v1528, %v1528
      %v1710 = vmul.f32 %v1534, %v1534
      %v1711 = vmul.f32 %v1538, %v1538
      %v1712 = vmul.f32 %v1544, %v1544
      %v1713 = vmul.f32 %v1548, %v1548
      %v1714 = vmul.f32 %v1554, %v1554
      %v1715 = vmul.f32 %v1558, %v1558
      %v1716 = vmul.f32 %v1564, %v1564
      %v1717 = vmul.f32 %v1568, %v1568
      %v1718 = vmul.f32 %v1574, %v1574
      %v1719 = vmul.f32 %v1578, %v1578
      %v1720 = vmul.f32 %v1584, %v1584
      %v1721 = vmul.f32 %v1588, %v1588
      %v1722 = vadd.f32 %v1678, %v1700
      %v1723 = vadd.f32 %v1679, %v1701
      %v1724 = vadd.f32 %v1680, %v1702
      %v1725 = vadd.f32 %v1681, %v1703
      %v1726 = vadd.f32 %v1682, %v1704
      %v1727 = vadd.f32 %v1683, %v1705
      %v1728 = vadd.f32 %v1684, %v1706
      %v1729 = vadd.f32 %v1685, %v1707
      %v1730 = vadd.f32 %v1686, %v1708
      %v1731 = vadd.f32 %v1687, %v1709
      %v1732 = vadd.f32 %v1688, %v1710
      %v1733 = vadd.f32 %v1689, %v1711
      %v1734 = vadd.f32 %v1690, %v1712
      %v1735 = vadd.f32 %v1691, %v1713
      %v1736 = vadd.f32 %v1692, %v1714
      %v1737 = vadd.f32 %v1693, %v1715
      %v1738 = vadd.f32 %v1694, %v1716
      %v1739 = vadd.f32 %v1695, %v1717
      %v1740 = vadd.f32 %v1696, %v1718
      %v1741 = vadd.f32 %v1697, %v1719
      %v1742 = vadd.f32 %v1698, %v1720
      %v1743 = vadd.f32 %v1699, %v1721
      %v1744 = vmax.f32 %v1722, 1e-08
      %v1745 = vmax.f32 %v1723, 1e-08
      %v1746 = vmax.f32 %v1724, 1e-08
      %v1747 = vmax.f32 %v1725, 1e-08
      %v1748 = vmax.f32 %v1726, 1e-08
      %v1749 = vmax.f32 %v1727, 1e-08
      %v1750 = vmax.f32 %v1728, 1e-08
      %v1751 = vmax.f32 %v1729, 1e-08
      %v1752 = vmax.f32 %v1730, 1e-08
      %v1753 = vmax.f32 %v1731, 1e-08
      %v1754 = vmax.f32 %v1732, 1e-08
      %v1755 = vmax.f32 %v1733, 1e-08
      %v1756 = vmax.f32 %v1734, 1e-08
      %v1757 = vmax.f32 %v1735, 1e-08
      %v1758 = vmax.f32 %v1736, 1e-08
      %v1759 = vmax.f32 %v1737, 1e-08
      %v1760 = vmax.f32 %v1738, 1e-08
      %v1761 = vmax.f32 %v1739, 1e-08
      %v1762 = vmax.f32 %v1740, 1e-08
      %v1763 = vmax.f32 %v1741, 1e-08
      %v1764 = vmax.f32 %v1742, 1e-08
      %v1765 = vmax.f32 %v1743, 1e-08
      %v1766 = vrsqrt.pop %v1744
      %v1767 = vmul.f32 %v1744, %v1766
      %vm1768 = vcmp.eq.f32.partialorder %v1744, inf
      %v1769 = vsel %vm1768, %v1744, %v1767
      %vm1770 = vcmp.eq.f32.partialorder %v1744, 0.0
      %v1771 = vand.u32 %v1744, 2147483648
      %v1772 = vsel %vm1770, %v1771, %v1769
      %v1773 = vrsqrt.pop %v1745
      %v1774 = vmul.f32 %v1745, %v1773
      %vm1775 = vcmp.eq.f32.partialorder %v1745, inf
      %v1776 = vsel %vm1775, %v1745, %v1774
      %vm1777 = vcmp.eq.f32.partialorder %v1745, 0.0
      %v1778 = vand.u32 %v1745, 2147483648
      %v1779 = vsel %vm1777, %v1778, %v1776
      %v1780 = vrsqrt.pop %v1746
      %v1781 = vmul.f32 %v1746, %v1780
      %vm1782 = vcmp.eq.f32.partialorder %v1746, inf
      %v1783 = vsel %vm1782, %v1746, %v1781
      %vm1784 = vcmp.eq.f32.partialorder %v1746, 0.0
      %v1785 = vand.u32 %v1746, 2147483648
      %v1786 = vsel %vm1784, %v1785, %v1783
      %v1787 = vrsqrt.pop %v1747
      %v1788 = vmul.f32 %v1747, %v1787
      %vm1789 = vcmp.eq.f32.partialorder %v1747, inf
      %v1790 = vsel %vm1789, %v1747, %v1788
      %vm1791 = vcmp.eq.f32.partialorder %v1747, 0.0
      %v1792 = vand.u32 %v1747, 2147483648
      %v1793 = vsel %vm1791, %v1792, %v1790
      %v1794 = vrsqrt.pop %v1748
      %v1795 = vmul.f32 %v1748, %v1794
      %vm1796 = vcmp.eq.f32.partialorder %v1748, inf
      %v1797 = vsel %vm1796, %v1748, %v1795
      %vm1798 = vcmp.eq.f32.partialorder %v1748, 0.0
      %v1799 = vand.u32 %v1748, 2147483648
      %v1800 = vsel %vm1798, %v1799, %v1797
      %v1801 = vrsqrt.pop %v1749
      %v1802 = vmul.f32 %v1749, %v1801
      %vm1803 = vcmp.eq.f32.partialorder %v1749, inf
      %v1804 = vsel %vm1803, %v1749, %v1802
      %vm1805 = vcmp.eq.f32.partialorder %v1749, 0.0
      %v1806 = vand.u32 %v1749, 2147483648
      %v1807 = vsel %vm1805, %v1806, %v1804
      %v1808 = vrsqrt.pop %v1750
      %v1809 = vmul.f32 %v1750, %v1808
      %vm1810 = vcmp.eq.f32.partialorder %v1750, inf
      %v1811 = vsel %vm1810, %v1750, %v1809
      %vm1812 = vcmp.eq.f32.partialorder %v1750, 0.0
      %v1813 = vand.u32 %v1750, 2147483648
      %v1814 = vsel %vm1812, %v1813, %v1811
      %v1815 = vrsqrt.pop %v1751
      %v1816 = vmul.f32 %v1751, %v1815
      %vm1817 = vcmp.eq.f32.partialorder %v1751, inf
      %v1818 = vsel %vm1817, %v1751, %v1816
      %vm1819 = vcmp.eq.f32.partialorder %v1751, 0.0
      %v1820 = vand.u32 %v1751, 2147483648
      %v1821 = vsel %vm1819, %v1820, %v1818
      %v1822 = vrsqrt.pop %v1752
      %v1823 = vmul.f32 %v1752, %v1822
      %vm1824 = vcmp.eq.f32.partialorder %v1752, inf
      %v1825 = vsel %vm1824, %v1752, %v1823
      %vm1826 = vcmp.eq.f32.partialorder %v1752, 0.0
      %v1827 = vand.u32 %v1752, 2147483648
      %v1828 = vsel %vm1826, %v1827, %v1825
      %v1829 = vrsqrt.pop %v1753
      %v1830 = vmul.f32 %v1753, %v1829
      %vm1831 = vcmp.eq.f32.partialorder %v1753, inf
      %v1832 = vsel %vm1831, %v1753, %v1830
      %vm1833 = vcmp.eq.f32.partialorder %v1753, 0.0
      %v1834 = vand.u32 %v1753, 2147483648
      %v1835 = vsel %vm1833, %v1834, %v1832
      %v1836 = vrsqrt.pop %v1754
      %v1837 = vmul.f32 %v1754, %v1836
      %vm1838 = vcmp.eq.f32.partialorder %v1754, inf
      %v1839 = vsel %vm1838, %v1754, %v1837
      %vm1840 = vcmp.eq.f32.partialorder %v1754, 0.0
      %v1841 = vand.u32 %v1754, 2147483648
      %v1842 = vsel %vm1840, %v1841, %v1839
      %v1843 = vrsqrt.pop %v1755
      %v1844 = vmul.f32 %v1755, %v1843
      %vm1845 = vcmp.eq.f32.partialorder %v1755, inf
      %v1846 = vsel %vm1845, %v1755, %v1844
      %vm1847 = vcmp.eq.f32.partialorder %v1755, 0.0
      %v1848 = vand.u32 %v1755, 2147483648
      %v1849 = vsel %vm1847, %v1848, %v1846
      %v1850 = vrsqrt.pop %v1756
      %v1851 = vmul.f32 %v1756, %v1850
      %vm1852 = vcmp.eq.f32.partialorder %v1756, inf
      %v1853 = vsel %vm1852, %v1756, %v1851
      %vm1854 = vcmp.eq.f32.partialorder %v1756, 0.0
      %v1855 = vand.u32 %v1756, 2147483648
      %v1856 = vsel %vm1854, %v1855, %v1853
      %v1857 = vrsqrt.pop %v1757
      %v1858 = vmul.f32 %v1757, %v1857
      %vm1859 = vcmp.eq.f32.partialorder %v1757, inf
      %v1860 = vsel %vm1859, %v1757, %v1858
      %vm1861 = vcmp.eq.f32.partialorder %v1757, 0.0
      %v1862 = vand.u32 %v1757, 2147483648
      %v1863 = vsel %vm1861, %v1862, %v1860
      %v1864 = vrsqrt.pop %v1758
      %v1865 = vmul.f32 %v1758, %v1864
      %vm1866 = vcmp.eq.f32.partialorder %v1758, inf
      %v1867 = vsel %vm1866, %v1758, %v1865
      %vm1868 = vcmp.eq.f32.partialorder %v1758, 0.0
      %v1869 = vand.u32 %v1758, 2147483648
      %v1870 = vsel %vm1868, %v1869, %v1867
      %v1871 = vrsqrt.pop %v1759
      %v1872 = vmul.f32 %v1759, %v1871
      %vm1873 = vcmp.eq.f32.partialorder %v1759, inf
      %v1874 = vsel %vm1873, %v1759, %v1872
      %vm1875 = vcmp.eq.f32.partialorder %v1759, 0.0
      %v1876 = vand.u32 %v1759, 2147483648
      %v1877 = vsel %vm1875, %v1876, %v1874
      %v1878 = vrsqrt.pop %v1760
      %v1879 = vmul.f32 %v1760, %v1878
      %vm1880 = vcmp.eq.f32.partialorder %v1760, inf
      %v1881 = vsel %vm1880, %v1760, %v1879
      %vm1882 = vcmp.eq.f32.partialorder %v1760, 0.0
      %v1883 = vand.u32 %v1760, 2147483648
      %v1884 = vsel %vm1882, %v1883, %v1881
      %v1885 = vrsqrt.pop %v1761
      %v1886 = vmul.f32 %v1761, %v1885
      %vm1887 = vcmp.eq.f32.partialorder %v1761, inf
      %v1888 = vsel %vm1887, %v1761, %v1886
      %vm1889 = vcmp.eq.f32.partialorder %v1761, 0.0
      %v1890 = vand.u32 %v1761, 2147483648
      %v1891 = vsel %vm1889, %v1890, %v1888
      %v1892 = vrsqrt.pop %v1762
      %v1893 = vmul.f32 %v1762, %v1892
      %vm1894 = vcmp.eq.f32.partialorder %v1762, inf
      %v1895 = vsel %vm1894, %v1762, %v1893
      %vm1896 = vcmp.eq.f32.partialorder %v1762, 0.0
      %v1897 = vand.u32 %v1762, 2147483648
      %v1898 = vsel %vm1896, %v1897, %v1895
      %v1899 = vrsqrt.pop %v1763
      %v1900 = vmul.f32 %v1763, %v1899
      %vm1901 = vcmp.eq.f32.partialorder %v1763, inf
      %v1902 = vsel %vm1901, %v1763, %v1900
      %vm1903 = vcmp.eq.f32.partialorder %v1763, 0.0
      %v1904 = vand.u32 %v1763, 2147483648
      %v1905 = vsel %vm1903, %v1904, %v1902
      %v1906 = vrsqrt.pop %v1764
      %v1907 = vmul.f32 %v1764, %v1906
      %vm1908 = vcmp.eq.f32.partialorder %v1764, inf
      %v1909 = vsel %vm1908, %v1764, %v1907
      %vm1910 = vcmp.eq.f32.partialorder %v1764, 0.0
      %v1911 = vand.u32 %v1764, 2147483648
      %v1912 = vsel %vm1910, %v1911, %v1909
      %v1913 = vrsqrt.pop %v1765
      %v1914 = vmul.f32 %v1765, %v1913
      %vm1915 = vcmp.eq.f32.partialorder %v1765, inf
      %v1916 = vsel %vm1915, %v1765, %v1914
      %vm1917 = vcmp.eq.f32.partialorder %v1765, 0.0
      %v1918 = vand.u32 %v1765, 2147483648
      %v1919 = vsel %vm1917, %v1918, %v1916
      %v1920 = vrsqrt.pop %v1656
      %v1921 = vmul.f32 %v1656, %v1920
      %vm1922 = vcmp.eq.f32.partialorder %v1656, inf
      %v1923 = vsel %vm1922, %v1656, %v1921
      %vm1924 = vcmp.eq.f32.partialorder %v1656, 0.0
      %v1925 = vand.u32 %v1656, 2147483648
      %v1926 = vsel %vm1924, %v1925, %v1923
      %v1927 = vrsqrt.pop %v1657
      %v1928 = vmul.f32 %v1657, %v1927
      %vm1929 = vcmp.eq.f32.partialorder %v1657, inf
      %v1930 = vsel %vm1929, %v1657, %v1928
      %vm1931 = vcmp.eq.f32.partialorder %v1657, 0.0
      %v1932 = vand.u32 %v1657, 2147483648
      %v1933 = vsel %vm1931, %v1932, %v1930
      %v1934 = vrsqrt.pop %v1658
      %v1935 = vmul.f32 %v1658, %v1934
      %vm1936 = vcmp.eq.f32.partialorder %v1658, inf
      %v1937 = vsel %vm1936, %v1658, %v1935
      %vm1938 = vcmp.eq.f32.partialorder %v1658, 0.0
      %v1939 = vand.u32 %v1658, 2147483648
      %v1940 = vsel %vm1938, %v1939, %v1937
      %v1941 = vrsqrt.pop %v1659
      %v1942 = vmul.f32 %v1659, %v1941
      %vm1943 = vcmp.eq.f32.partialorder %v1659, inf
      %v1944 = vsel %vm1943, %v1659, %v1942
      %vm1945 = vcmp.eq.f32.partialorder %v1659, 0.0
      %v1946 = vand.u32 %v1659, 2147483648
      %v1947 = vsel %vm1945, %v1946, %v1944
      %v1948 = vrsqrt.pop %v1660
      %v1949 = vmul.f32 %v1660, %v1948
      %vm1950 = vcmp.eq.f32.partialorder %v1660, inf
      %v1951 = vsel %vm1950, %v1660, %v1949
      %vm1952 = vcmp.eq.f32.partialorder %v1660, 0.0
      %v1953 = vand.u32 %v1660, 2147483648
      %v1954 = vsel %vm1952, %v1953, %v1951
      %v1955 = vrsqrt.pop %v1661
      %v1956 = vmul.f32 %v1661, %v1955
      %vm1957 = vcmp.eq.f32.partialorder %v1661, inf
      %v1958 = vsel %vm1957, %v1661, %v1956
      %vm1959 = vcmp.eq.f32.partialorder %v1661, 0.0
      %v1960 = vand.u32 %v1661, 2147483648
      %v1961 = vsel %vm1959, %v1960, %v1958
      %v1962 = vrsqrt.pop %v1662
      %v1963 = vmul.f32 %v1662, %v1962
      %vm1964 = vcmp.eq.f32.partialorder %v1662, inf
      %v1965 = vsel %vm1964, %v1662, %v1963
      %vm1966 = vcmp.eq.f32.partialorder %v1662, 0.0
      %v1967 = vand.u32 %v1662, 2147483648
      %v1968 = vsel %vm1966, %v1967, %v1965
      %v1969 = vrsqrt.pop %v1663
      %v1970 = vmul.f32 %v1663, %v1969
      %vm1971 = vcmp.eq.f32.partialorder %v1663, inf
      %v1972 = vsel %vm1971, %v1663, %v1970
      %vm1973 = vcmp.eq.f32.partialorder %v1663, 0.0
      %v1974 = vand.u32 %v1663, 2147483648
      %v1975 = vsel %vm1973, %v1974, %v1972
      %v1976 = vrsqrt.pop %v1664
      %v1977 = vmul.f32 %v1664, %v1976
      %vm1978 = vcmp.eq.f32.partialorder %v1664, inf
      %v1979 = vsel %vm1978, %v1664, %v1977
      %vm1980 = vcmp.eq.f32.partialorder %v1664, 0.0
      %v1981 = vand.u32 %v1664, 2147483648
      %v1982 = vsel %vm1980, %v1981, %v1979
      %v1983 = vrsqrt.pop %v1665
      %v1984 = vmul.f32 %v1665, %v1983
      %vm1985 = vcmp.eq.f32.partialorder %v1665, inf
      %v1986 = vsel %vm1985, %v1665, %v1984
      %vm1987 = vcmp.eq.f32.partialorder %v1665, 0.0
      %v1988 = vand.u32 %v1665, 2147483648
      %v1989 = vsel %vm1987, %v1988, %v1986
      %v1990 = vrsqrt.pop %v1666
      %v1991 = vmul.f32 %v1666, %v1990
      %vm1992 = vcmp.eq.f32.partialorder %v1666, inf
      %v1993 = vsel %vm1992, %v1666, %v1991
      %vm1994 = vcmp.eq.f32.partialorder %v1666, 0.0
      %v1995 = vand.u32 %v1666, 2147483648
      %v1996 = vsel %vm1994, %v1995, %v1993
      %v1997 = vrsqrt.pop %v1667
      %v1998 = vmul.f32 %v1667, %v1997
      %vm1999 = vcmp.eq.f32.partialorder %v1667, inf
      %v2000 = vsel %vm1999, %v1667, %v1998
      %vm2001 = vcmp.eq.f32.partialorder %v1667, 0.0
      %v2002 = vand.u32 %v1667, 2147483648
      %v2003 = vsel %vm2001, %v2002, %v2000
      %v2004 = vrsqrt.pop %v1668
      %v2005 = vmul.f32 %v1668, %v2004
      %vm2006 = vcmp.eq.f32.partialorder %v1668, inf
      %v2007 = vsel %vm2006, %v1668, %v2005
      %vm2008 = vcmp.eq.f32.partialorder %v1668, 0.0
      %v2009 = vand.u32 %v1668, 2147483648
      %v2010 = vsel %vm2008, %v2009, %v2007
      %v2011 = vrsqrt.pop %v1669
      %v2012 = vmul.f32 %v1669, %v2011
      %vm2013 = vcmp.eq.f32.partialorder %v1669, inf
      %v2014 = vsel %vm2013, %v1669, %v2012
      %vm2015 = vcmp.eq.f32.partialorder %v1669, 0.0
      %v2016 = vand.u32 %v1669, 2147483648
      %v2017 = vsel %vm2015, %v2016, %v2014
      %v2018 = vrsqrt.pop %v1670
      %v2019 = vmul.f32 %v1670, %v2018
      %vm2020 = vcmp.eq.f32.partialorder %v1670, inf
      %v2021 = vsel %vm2020, %v1670, %v2019
      %vm2022 = vcmp.eq.f32.partialorder %v1670, 0.0
      %v2023 = vand.u32 %v1670, 2147483648
      %v2024 = vsel %vm2022, %v2023, %v2021
      %v2025 = vrsqrt.pop %v1671
      %v2026 = vmul.f32 %v1671, %v2025
      %vm2027 = vcmp.eq.f32.partialorder %v1671, inf
      %v2028 = vsel %vm2027, %v1671, %v2026
      %vm2029 = vcmp.eq.f32.partialorder %v1671, 0.0
      %v2030 = vand.u32 %v1671, 2147483648
      %v2031 = vsel %vm2029, %v2030, %v2028
      %v2032 = vrsqrt.pop %v1672
      %v2033 = vmul.f32 %v1672, %v2032
      %vm2034 = vcmp.eq.f32.partialorder %v1672, inf
      %v2035 = vsel %vm2034, %v1672, %v2033
      %vm2036 = vcmp.eq.f32.partialorder %v1672, 0.0
      %v2037 = vand.u32 %v1672, 2147483648
      %v2038 = vsel %vm2036, %v2037, %v2035
      %v2039 = vrsqrt.pop %v1673
      %v2040 = vmul.f32 %v1673, %v2039
      %vm2041 = vcmp.eq.f32.partialorder %v1673, inf
      %v2042 = vsel %vm2041, %v1673, %v2040
      %vm2043 = vcmp.eq.f32.partialorder %v1673, 0.0
      %v2044 = vand.u32 %v1673, 2147483648
      %v2045 = vsel %vm2043, %v2044, %v2042
      %v2046 = vrsqrt.pop %v1674
      %v2047 = vmul.f32 %v1674, %v2046
      %vm2048 = vcmp.eq.f32.partialorder %v1674, inf
      %v2049 = vsel %vm2048, %v1674, %v2047
      %vm2050 = vcmp.eq.f32.partialorder %v1674, 0.0
      %v2051 = vand.u32 %v1674, 2147483648
      %v2052 = vsel %vm2050, %v2051, %v2049
      %v2053 = vrsqrt.pop %v1675
      %v2054 = vmul.f32 %v1675, %v2053
      %vm2055 = vcmp.eq.f32.partialorder %v1675, inf
      %v2056 = vsel %vm2055, %v1675, %v2054
      %vm2057 = vcmp.eq.f32.partialorder %v1675, 0.0
      %v2058 = vand.u32 %v1675, 2147483648
      %v2059 = vsel %vm2057, %v2058, %v2056
      %v2060 = vrsqrt.pop %v1676
      %v2061 = vmul.f32 %v1676, %v2060
      %vm2062 = vcmp.eq.f32.partialorder %v1676, inf
      %v2063 = vsel %vm2062, %v1676, %v2061
      %vm2064 = vcmp.eq.f32.partialorder %v1676, 0.0
      %v2065 = vand.u32 %v1676, 2147483648
      %v2066 = vsel %vm2064, %v2065, %v2063
      %v2067 = vrsqrt.pop %v1677
      %v2068 = vmul.f32 %v1677, %v2067
      %vm2069 = vcmp.eq.f32.partialorder %v1677, inf
      %v2070 = vsel %vm2069, %v1677, %v2068
      %vm2071 = vcmp.eq.f32.partialorder %v1677, 0.0
      %v2072 = vand.u32 %v1677, 2147483648
      %v2073 = vsel %vm2071, %v2072, %v2070
      %v2074 = vsub.f32 %v1772, %v1926
      %v2075 = vsub.f32 %v1779, %v1933
      %v2076 = vsub.f32 %v1786, %v1940
      %v2077 = vsub.f32 %v1793, %v1947
      %v2078 = vsub.f32 %v1800, %v1954
      %v2079 = vsub.f32 %v1807, %v1961
      %v2080 = vsub.f32 %v1814, %v1968
      %v2081 = vsub.f32 %v1821, %v1975
      %v2082 = vsub.f32 %v1828, %v1982
      %v2083 = vsub.f32 %v1835, %v1989
      %v2084 = vsub.f32 %v1842, %v1996
      %v2085 = vsub.f32 %v1849, %v2003
      %v2086 = vsub.f32 %v1856, %v2010
      %v2087 = vsub.f32 %v1863, %v2017
      %v2088 = vsub.f32 %v1870, %v2024
      %v2089 = vsub.f32 %v1877, %v2031
      %v2090 = vsub.f32 %v1884, %v2038
      %v2091 = vsub.f32 %v1891, %v2045
      %v2092 = vsub.f32 %v1898, %v2052
      %v2093 = vsub.f32 %v1905, %v2059
      %v2094 = vsub.f32 %v1912, %v2066
      %v2095 = vsub.f32 %v1919, %v2073
      %v2096 = vmul.f32 %v2074, %v2074
      %v2097 = vmul.f32 %v2075, %v2075
      %v2098 = vmul.f32 %v2076, %v2076
      %v2099 = vmul.f32 %v2077, %v2077
      %v2100 = vmul.f32 %v2078, %v2078
      %v2101 = vmul.f32 %v2079, %v2079
      %v2102 = vmul.f32 %v2080, %v2080
      %v2103 = vmul.f32 %v2081, %v2081
      %v2104 = vmul.f32 %v2082, %v2082
      %v2105 = vmul.f32 %v2083, %v2083
      %v2106 = vmul.f32 %v2084, %v2084
      %v2107 = vmul.f32 %v2085, %v2085
      %v2108 = vmul.f32 %v2086, %v2086
      %v2109 = vmul.f32 %v2087, %v2087
      %v2110 = vmul.f32 %v2088, %v2088
      %v2111 = vmul.f32 %v2089, %v2089
      %v2112 = vmul.f32 %v2090, %v2090
      %v2113 = vmul.f32 %v2091, %v2091
      %v2114 = vmul.f32 %v2092, %v2092
      %v2115 = vmul.f32 %v2093, %v2093
      %v2116 = vmul.f32 %v2094, %v2094
      %v2117 = vmul.f32 %v2095, %v2095
      %v2118 = vadd.f32 %v2096, %v2097
      %v2119 = vadd.f32 %v2118, %v2098
      %v2120 = vadd.f32 %v2119, %v2099
      %v2121 = vadd.f32 %v2120, %v2100
      %v2122 = vadd.f32 %v2121, %v2101
      %v2123 = vadd.f32 %v2122, %v2102
      %v2124 = vadd.f32 %v2123, %v2103
      %v2125 = vadd.f32 %v2124, %v2104
      %v2126 = vadd.f32 %v2125, %v2105
      %v2127 = vadd.f32 %v2126, %v2106
      %v2128 = vadd.f32 %v2127, %v2107
      %v2129 = vadd.f32 %v2128, %v2108
      %v2130 = vadd.f32 %v2129, %v2109
      %v2131 = vadd.f32 %v2130, %v2110
      %v2132 = vadd.f32 %v2131, %v2111
      %v2133 = vadd.f32 %v2132, %v2112
      %v2134 = vadd.f32 %v2133, %v2113
      %v2135 = vadd.f32 %v2134, %v2114
      %v2136 = vadd.f32 %v2135, %v2115
      %v2137 = vadd.f32 %v2136, %v2116
      %v2138 = vadd.f32 %v2137, %v2117
      %v2139 = vrot.slane %v2138, 4
      %v2140 = vadd.f32 %v2138, %v2139
      %v2141 = vrot.slane %v2140, 2
      %v2142 = vadd.f32 %v2140, %v2141
      %v2143 = vrot.slane %v2142, 1
      %v2144 = vadd.f32 %v2142, %v2143
      %2145 = vst [vmem:[%s168] sm:$0x1] %v2144
      %v2146 = vadd.f32 %v1744, %v1745
      %v2147 = vadd.f32 %v2146, %v1746
      %v2148 = vadd.f32 %v2147, %v1747
      %v2149 = vadd.f32 %v2148, %v1748
      %v2150 = vadd.f32 %v2149, %v1749
      %v2151 = vadd.f32 %v2150, %v1750
      %v2152 = vadd.f32 %v2151, %v1751
      %v2153 = vadd.f32 %v2152, %v1752
      %v2154 = vadd.f32 %v2153, %v1753
      %v2155 = vadd.f32 %v2154, %v1754
      %v2156 = vadd.f32 %v2155, %v1755
      %v2157 = vadd.f32 %v2156, %v1756
      %v2158 = vadd.f32 %v2157, %v1757
      %v2159 = vadd.f32 %v2158, %v1758
      %v2160 = vadd.f32 %v2159, %v1759
      %v2161 = vadd.f32 %v2160, %v1760
      %v2162 = vadd.f32 %v2161, %v1761
      %v2163 = vadd.f32 %v2162, %v1762
      %v2164 = vadd.f32 %v2163, %v1763
      %v2165 = vadd.f32 %v2164, %v1764
      %v2166 = vadd.f32 %v2165, %v1765
      %v2167 = vrot.slane %v2166, 4
      %v2168 = vadd.f32 %v2166, %v2167
      %v2169 = vrot.slane %v2168, 2
      %v2170 = vadd.f32 %v2168, %v2169
      %v2171 = vrot.slane %v2170, 1
      %v2172 = vadd.f32 %v2170, %v2171
      %2173 = vst [vmem:[%s168 + $0x1] sm:$0x1] %v2172
      %v2174 = vlog2.pop %v1656
      %v2175 = vmul.f32 %v2174, 0.6931472
      %v2176 = vlog2.pop %v1657
      %v2177 = vmul.f32 %v2176, 0.6931472
      %v2178 = vlog2.pop %v1658
      %v2179 = vmul.f32 %v2178, 0.6931472
      %v2180 = vlog2.pop %v1659
      %v2181 = vmul.f32 %v2180, 0.6931472
      %v2182 = vlog2.pop %v1660
      %v2183 = vmul.f32 %v2182, 0.6931472
      %v2184 = vlog2.pop %v1661
      %v2185 = vmul.f32 %v2184, 0.6931472
      %v2186 = vlog2.pop %v1662
      %v2187 = vmul.f32 %v2186, 0.6931472
      %v2188 = vlog2.pop %v1663
      %v2189 = vmul.f32 %v2188, 0.6931472
      %v2190 = vlog2.pop %v1664
      %v2191 = vmul.f32 %v2190, 0.6931472
      %v2192 = vlog2.pop %v1665
      %v2193 = vmul.f32 %v2192, 0.6931472
      %v2194 = vlog2.pop %v1666
      %v2195 = vmul.f32 %v2194, 0.6931472
      %v2196 = vlog2.pop %v1667
      %v2197 = vmul.f32 %v2196, 0.6931472
      %v2198 = vlog2.pop %v1668
      %v2199 = vmul.f32 %v2198, 0.6931472
      %v2200 = vlog2.pop %v1669
      %v2201 = vmul.f32 %v2200, 0.6931472
      %v2202 = vlog2.pop %v1670
      %v2203 = vmul.f32 %v2202, 0.6931472
      %v2204 = vlog2.pop %v1671
      %v2205 = vmul.f32 %v2204, 0.6931472
      %v2206 = vlog2.pop %v1672
      %v2207 = vmul.f32 %v2206, 0.6931472
      %v2208 = vlog2.pop %v1673
      %v2209 = vmul.f32 %v2208, 0.6931472
      %v2210 = vlog2.pop %v1674
      %v2211 = vmul.f32 %v2210, 0.6931472
      %v2212 = vlog2.pop %v1675
      %v2213 = vmul.f32 %v2212, 0.6931472
      %v2214 = vlog2.pop %v1676
      %v2215 = vmul.f32 %v2214, 0.6931472
      %v2216 = vlog2.pop %v1677
      %v2217 = vmul.f32 %v2216, 0.6931472
      %v2218 = vlog2.pop %v1744
      %v2219 = vmul.f32 %v2218, 0.6931472
      %v2220 = vlog2.pop %v1745
      %v2221 = vmul.f32 %v2220, 0.6931472
      %v2222 = vlog2.pop %v1746
      %v2223 = vmul.f32 %v2222, 0.6931472
      %v2224 = vlog2.pop %v1747
      %v2225 = vmul.f32 %v2224, 0.6931472
      %v2226 = vlog2.pop %v1748
      %v2227 = vmul.f32 %v2226, 0.6931472
      %v2228 = vlog2.pop %v1749
      %v2229 = vmul.f32 %v2228, 0.6931472
      %v2230 = vlog2.pop %v1750
      %v2231 = vmul.f32 %v2230, 0.6931472
      %v2232 = vlog2.pop %v1751
      %v2233 = vmul.f32 %v2232, 0.6931472
      %v2234 = vlog2.pop %v1752
      %v2235 = vmul.f32 %v2234, 0.6931472
      %v2236 = vlog2.pop %v1753
      %v2237 = vmul.f32 %v2236, 0.6931472
      %v2238 = vlog2.pop %v1754
      %v2239 = vmul.f32 %v2238, 0.6931472
      %v2240 = vlog2.pop %v1755
      %v2241 = vmul.f32 %v2240, 0.6931472
      %v2242 = vlog2.pop %v1756
      %v2243 = vmul.f32 %v2242, 0.6931472
      %v2244 = vlog2.pop %v1757
      %v2245 = vmul.f32 %v2244, 0.6931472
      %v2246 = vlog2.pop %v1758
      %v2247 = vmul.f32 %v2246, 0.6931472
      %v2248 = vlog2.pop %v1759
      %v2249 = vmul.f32 %v2248, 0.6931472
      %v2250 = vlog2.pop %v1760
      %v2251 = vmul.f32 %v2250, 0.6931472
      %v2252 = vlog2.pop %v1761
      %v2253 = vmul.f32 %v2252, 0.6931472
      %v2254 = vlog2.pop %v1762
      %v2255 = vmul.f32 %v2254, 0.6931472
      %v2256 = vlog2.pop %v1763
      %v2257 = vmul.f32 %v2256, 0.6931472
      %v2258 = vlog2.pop %v1764
      %v2259 = vmul.f32 %v2258, 0.6931472
      %v2260 = vlog2.pop %v1765
      %v2261 = vmul.f32 %v2260, 0.6931472
      %v2262 = vsub.f32 %v2175, %v2219
      %v2263 = vsub.f32 %v2177, %v2221
      %v2264 = vsub.f32 %v2179, %v2223
      %v2265 = vsub.f32 %v2181, %v2225
      %v2266 = vsub.f32 %v2183, %v2227
      %v2267 = vsub.f32 %v2185, %v2229
      %v2268 = vsub.f32 %v2187, %v2231
      %v2269 = vsub.f32 %v2189, %v2233
      %v2270 = vsub.f32 %v2191, %v2235
      %v2271 = vsub.f32 %v2193, %v2237
      %v2272 = vsub.f32 %v2195, %v2239
      %v2273 = vsub.f32 %v2197, %v2241
      %v2274 = vsub.f32 %v2199, %v2243
      %v2275 = vsub.f32 %v2201, %v2245
      %v2276 = vsub.f32 %v2203, %v2247
      %v2277 = vsub.f32 %v2205, %v2249
      %v2278 = vsub.f32 %v2207, %v2251
      %v2279 = vsub.f32 %v2209, %v2253
      %v2280 = vsub.f32 %v2211, %v2255
      %v2281 = vsub.f32 %v2213, %v2257
      %v2282 = vsub.f32 %v2215, %v2259
      %v2283 = vsub.f32 %v2217, %v2261
      %v2284 = vand.u32 2147483647, %v2262
      %v2285 = vand.u32 2147483647, %v2263
      %v2286 = vand.u32 2147483647, %v2264
      %v2287 = vand.u32 2147483647, %v2265
      %v2288 = vand.u32 2147483647, %v2266
      %v2289 = vand.u32 2147483647, %v2267
      %v2290 = vand.u32 2147483647, %v2268
      %v2291 = vand.u32 2147483647, %v2269
      %v2292 = vand.u32 2147483647, %v2270
      %v2293 = vand.u32 2147483647, %v2271
      %v2294 = vand.u32 2147483647, %v2272
      %v2295 = vand.u32 2147483647, %v2273
      %v2296 = vand.u32 2147483647, %v2274
      %v2297 = vand.u32 2147483647, %v2275
      %v2298 = vand.u32 2147483647, %v2276
      %v2299 = vand.u32 2147483647, %v2277
      %v2300 = vand.u32 2147483647, %v2278
      %v2301 = vand.u32 2147483647, %v2279
      %v2302 = vand.u32 2147483647, %v2280
      %v2303 = vand.u32 2147483647, %v2281
      %v2304 = vand.u32 2147483647, %v2282
      %v2305 = vand.u32 2147483647, %v2283
      %v2306 = vadd.f32 %v2284, %v2285
      %v2307 = vadd.f32 %v2306, %v2286
      %v2308 = vadd.f32 %v2307, %v2287
      %v2309 = vadd.f32 %v2308, %v2288
      %v2310 = vadd.f32 %v2309, %v2289
      %v2311 = vadd.f32 %v2310, %v2290
      %v2312 = vadd.f32 %v2311, %v2291
      %v2313 = vadd.f32 %v2312, %v2292
      %v2314 = vadd.f32 %v2313, %v2293
      %v2315 = vadd.f32 %v2314, %v2294
      %v2316 = vadd.f32 %v2315, %v2295
      %v2317 = vadd.f32 %v2316, %v2296
      %v2318 = vadd.f32 %v2317, %v2297
      %v2319 = vadd.f32 %v2318, %v2298
      %v2320 = vadd.f32 %v2319, %v2299
      %v2321 = vadd.f32 %v2320, %v2300
      %v2322 = vadd.f32 %v2321, %v2301
      %v2323 = vadd.f32 %v2322, %v2302
      %v2324 = vadd.f32 %v2323, %v2303
      %v2325 = vadd.f32 %v2324, %v2304
      %v2326 = vadd.f32 %v2325, %v2305
      %v2327 = vrot.slane %v2326, 4
      %v2328 = vadd.f32 %v2326, %v2327
      %v2329 = vrot.slane %v2328, 2
      %v2330 = vadd.f32 %v2328, %v2329
      %v2331 = vrot.slane %v2330, 1
      %v2332 = vadd.f32 %v2330, %v2331
      %v2333 = vmul.f32 %v2332, 0.5
      %2334 = vst [vmem:[%s168 + $0x2] sm:$0x1] %v2333
      %p2335 = scmp.lt.s32.totalorder %s17, 0
      %s2336 = scalar_select %p2335, %s17, 0
      %p2337 = scmp.lt.s32.totalorder %s18, 1
      %s2338 = scalar_select %p2337, %s18, 1
      %s2339 = smul.addr %s2336, 2
      %s2340 = sadd.s32 %s2338, %s2339
      %s2341 = smul.addr %s2340, 4
      %s2342 = scalar_lea.vmem %s2, %s2341
      // Predicated region
      $region29: #{multi_reso_stft.5} parent=27 // pred_check
        %p2343 = pneg %p92
      $region30: #{multi_reso_stft.5} parent=27 // pred_check_branch
        %2345 = sbr.rel (%p2343) target = $region32
      $region31: #{multi_reso_stft.5} parent=27 // pred_region
        _
      $region32: #{multi_reso_stft.5} parent=27 // pred_fallthru
        _
    $region28: #{multi_reso_stft.5} parent=5 // pred_fallthru
      _
    %p2346 = scmp.le.s32.totalorder 2, %s8
    // Predicated region
    $region33: #{multi_reso_stft.5} parent=5 // pred_check
      %p2347 = pneg %p2346
    $region34: #{multi_reso_stft.5} parent=5 // pred_check_branch
      %2349 = sbr.rel (%p2347) target = $region36
    $region35: #{multi_reso_stft.5} parent=5 // pred_region
      %s2350 = ssub.s32 %s8, 2
      // Predicated region
      $region37: #{multi_reso_stft.5} parent=35 // pred_check
        %p2351 = pneg %p98
      $region38: #{multi_reso_stft.5} parent=35 // pred_check_branch
        %2353 = sbr.rel (%p2351) target = $region40
      $region39: #{multi_reso_stft.5} parent=35 // pred_region
        %p2354 = scmp.lt.s32.totalorder %s19, 0
        %s2355 = scalar_select %p2354, %s19, 0
        %p2356 = scmp.lt.s32.totalorder %s20, 1
        %s2357 = scalar_select %p2356, %s20, 1
        %s2358 = smul.addr %s2355, 2
        %s2359 = sadd.s32 %s2357, %s2358
        %s2360 = smul.addr %s2359, 4
        %s2361 = scalar_lea.vmem %s2, %s2360
      $region40: #{multi_reso_stft.5} parent=35 // pred_fallthru
        _
    $region36: #{multi_reso_stft.5} parent=5 // pred_fallthru
      _
  $region6: #{multi_reso_stft.5} parent=0 // loop_footer
    %s12 = sadd.s32 1, %s8
  $region7: #{multi_reso_stft.5} parent=0 // loop_footer_branch
    %7 = sbr.rel target = $region3
  $region8: #{multi_reso_stft.5} parent=0 // loop_exit
    _

// kernel: multi_reso_stft.4
$region0: #{multi_reso_stft.4}
  #allocation0 [shape = 'u32[]', space=smem, size = 0x4, offset = 0x4, fixed_abs, tag = 'smem constant byte address 0x4 - core index']
  #allocation1 [shape = 'u32[144,128]{1,0:T(1,128)}', space=vmem, size = 0x12000, scoped, tag = 'internal scratch']
  %s0 = inlined_call_operand.vmem [shape: bf16[96,2048], index: 0, kind: input, shape index: {}]
  %s1 = inlined_call_operand.vmem [shape: bf16[8,2048,256], index: 1, kind: input, shape index: {}]
  %s2 = inlined_call_operand.vmem [shape: f32[1,8,3,128], index: 2, kind: output, shape index: {}]
  %s3 = sld [smem:[#allocation0]]
  $region41: #{multi_reso_stft.4} parent=0
    _
  %s5 = ssub.s32 1, %s3
  %s6 = scalar_select 0, %s5, %s3
  loop: start=0, step=1, limit=10
  $region2: #{multi_reso_stft.4} parent=0 // loop_pre_header
    _
  $region3: #{multi_reso_stft.4} parent=0 // loop_header
    %s8 = sphi 0, %s12
    %p9 = scmp.ge.s32.totalorder %s8, 10
    %s15 = sphi 0, %s27
    %s16 = sphi 0, %s23
    %s17 = sphi 0, %s15
    %s18 = sphi 0, %s16
    %s19 = sphi 0, %s17
    %s20 = sphi 0, %s18
    %s30 = sphi 0, %s32
    %s33 = sphi 0, %s30
    %s34 = sphi 0, %s33
    %s50 = sphi 0, %s34
    %s54 = sphi 0, %s54
    %s56 = sphi 0, %s54
    %s57 = sphi 0, %s56
    %s71 = sphi 0, %s57
    %s79 = sphi 0, %s81
    %s82 = sphi 0, %s79
    %s83 = sphi 0, %s82
    %s99 = sphi 0, %s83
  $region4: #{multi_reso_stft.4} parent=0 // loop_header_branch
    %11 = sbr.rel (%p9) target = $region8
  $region5: #{multi_reso_stft.4} parent=0 // loop_body
    %s13 = ssub.s32 %s8, 1
    %s14 = ssub.s32 %s8, 2
    %s21 = sadd.s32 1, %s16
    %p22 = scmp.ge.s32.totalorder %s21, 8
    %s23 = scalar_select %p22, 0, %s21
    %s24 = sadd.s32 1, %s15
    %s25 = scalar_select %p22, %s24, %s15
    %p26 = scmp.ge.s32.totalorder %s25, 1
    %s27 = scalar_select %p26, 0, %s25
    %s28 = ssub.s32 %s15, %s27
    %p29 = scmp.eq.s32.totalorder %s28, 0
    %s31 = sadd.s32 %s30, 1
    %s32 = scalar_select %p29, %s30, %s31
    %p35 = pneg %p29
    %p36 = scmp.eq.s32.totalorder %s8, 7
    %p37 = por %p35, %p36
    %p38 = scmp.ne.s32.totalorder %s30, %s33
    %p39 = scmp.eq.s32.totalorder %s8, 0
    %p40 = por %p38, %p39
    %p41 = scmp.ne.s32.totalorder %s30, %s33
    %p42 = scmp.eq.s32.totalorder %s13, 7
    %p43 = por %p41, %p42
    %p44 = scmp.ne.s32.totalorder %s33, %s34
    %p45 = scmp.eq.s32.totalorder %s13, 0
    %p46 = por %p44, %p45
    %p47 = scmp.ne.s32.totalorder %s33, %s34
    %p48 = scmp.eq.s32.totalorder %s14, 7
    %p49 = por %p47, %p48
    %p51 = scmp.ne.s32.totalorder %s34, %s50
    %p52 = scmp.eq.s32.totalorder %s14, 0
    %p53 = por %p51, %p52
    %s55 = sadd.s32 %s54, 1
    %p58 = scmp.eq.s32.totalorder %s8, 7
    %p59 = scmp.ne.s32.totalorder %s54, %s56
    %p60 = scmp.eq.s32.totalorder %s8, 0
    %p61 = por %p59, %p60
    %p62 = scmp.ne.s32.totalorder %s54, %s56
    %p63 = scmp.eq.s32.totalorder %s13, 7
    %p64 = por %p62, %p63
    %p65 = scmp.ne.s32.totalorder %s56, %s57
    %p66 = scmp.eq.s32.totalorder %s13, 0
    %p67 = por %p65, %p66
    %p68 = scmp.ne.s32.totalorder %s56, %s57
    %p69 = scmp.eq.s32.totalorder %s14, 7
    %p70 = por %p68, %p69
    %p72 = scmp.ne.s32.totalorder %s57, %s71
    %p73 = scmp.eq.s32.totalorder %s14, 0
    %p74 = por %p72, %p73
    %s75 = ssub.s32 %s15, %s27
    %s76 = ssub.s32 %s16, %s23
    %s77 = sor.u32 %s75, %s76
    %p78 = scmp.eq.s32.totalorder %s77, 0
    %s80 = sadd.s32 %s79, 1
    %s81 = scalar_select %p78, %s79, %s80
    %p84 = pneg %p78
    %p85 = scmp.eq.s32.totalorder %s8, 7
    %p86 = por %p84, %p85
    %p87 = scmp.ne.s32.totalorder %s79, %s82
    %p88 = scmp.eq.s32.totalorder %s8, 0
    %p89 = por %p87, %p88
    %p90 = scmp.ne.s32.totalorder %s79, %s82
    %p91 = scmp.eq.s32.totalorder %s13, 7
    %p92 = por %p90, %p91
    %p93 = scmp.ne.s32.totalorder %s82, %s83
    %p94 = scmp.eq.s32.totalorder %s13, 0
    %p95 = por %p93, %p94
    %p96 = scmp.ne.s32.totalorder %s82, %s83
    %p97 = scmp.eq.s32.totalorder %s14, 7
    %p98 = por %p96, %p97
    %p100 = scmp.ne.s32.totalorder %s83, %s99
    %p101 = scmp.eq.s32.totalorder %s14, 0
    %p102 = por %p100, %p101
    %p103 = scmp.le.s32.totalorder 1, %s8
    %p104 = scmp.lt.s32.totalorder %s8, 9
    %p105 = pnand %p103, %p104
    %p106 = pneg %p105
    // Predicated region
    $region9: #{multi_reso_stft.4} parent=5 // pred_check
      _
    $region10: #{multi_reso_stft.4} parent=5 // pred_check_branch
      %108 = sbr.rel (%p105) target = $region12
    $region11: #{multi_reso_stft.4} parent=5 // pred_region
      %s109 = ssub.s32 %s8, 1
      // Predicated region
      $region13: #{multi_reso_stft.4} parent=11 // pred_check
        %p110 = pneg %p46
      $region14: #{multi_reso_stft.4} parent=11 // pred_check_branch
        %112 = sbr.rel (%p110) target = $region16
      $region15: #{multi_reso_stft.4} parent=11 // pred_region
        %s113 = smul.u32 12, %s17
        %p114 = scmp.lt.s32.totalorder %s113, 11
        %s115 = scalar_select %p114, %s113, 11
        %s116 = smul.addr %s115, 16
        %s117 = smul.addr %s116, 4
        %s118 = scalar_lea.vmem %s0, %s117
        %s119 = smul.u32 12, %s17
      $region16: #{multi_reso_stft.4} parent=11 // pred_fallthru
        _
      // Predicated region
      $region17: #{multi_reso_stft.4} parent=11 // pred_check
        %p120 = pneg %p67
      $region18: #{multi_reso_stft.4} parent=11 // pred_check_branch
        %122 = sbr.rel (%p120) target = $region20
      $region19: #{multi_reso_stft.4} parent=11 // pred_region
        _
      $region20: #{multi_reso_stft.4} parent=11 // pred_fallthru
        _
    $region12: #{multi_reso_stft.4} parent=5 // pred_fallthru
      _
    %p123 = scmp.lt.s32.totalorder %s8, 8
    // Predicated region
    $region21: #{multi_reso_stft.4} parent=5 // pred_check
      %p124 = pneg %p123
    $region22: #{multi_reso_stft.4} parent=5 // pred_check_branch
      %126 = sbr.rel (%p124) target = $region24
    $region23: #{multi_reso_stft.4} parent=5 // pred_region
      _
    $region24: #{multi_reso_stft.4} parent=5 // pred_fallthru
      _
    %p127 = scmp.le.s32.totalorder 1, %s8
    %p128 = scmp.lt.s32.totalorder %s8, 9
    %p129 = pnand %p127, %p128
    %p130 = pneg %p129
    // Predicated region
    $region25: #{multi_reso_stft.4} parent=5 // pred_check
      _
    $region26: #{multi_reso_stft.4} parent=5 // pred_check_branch
      %132 = sbr.rel (%p129) target = $region28
    $region27: #{multi_reso_stft.4} parent=5 // pred_region
      %s133 = ssub.s32 %s8, 1
      %s134 = smul.u32 12, %s17
      %p135 = scmp.lt.s32.totalorder %s134, 11
      %s136 = scalar_select %p135, %s134, 11
      %s137 = smul.addr %s136, 16
      %s138 = smul.addr %s137, 4
      %s139 = scalar_lea.vmem %s0, %s138
      %p140 = pneg %p46
      %p141 = pneg %p43
      %p142 = pneg %p67
      %p143 = pneg %p64
      %p144 = pneg %p95
      %p145 = pneg %p92
      %p146 = scmp.lt.s32.totalorder %s17, 0
      %s147 = scalar_select %p146, %s17, 0
      %p148 = scmp.lt.s32.totalorder %s18, 7
      %s149 = scalar_select %p148, %s18, 7
      %s150 = smul.addr %s147, 8
      %s151 = sadd.s32 %s149, %s150
      %s152 = smul.addr %s151, 4
      %s153 = scalar_lea.vmem %s2, %s152
      %s154 = smul.u32 12, %s17
      %p155 = scmp.lt.s32.totalorder %s154, 11
      %s156 = scalar_select %p155, %s154, 11
      %s157 = smul.addr %s156, 16
      %s158 = smul.addr %s157, 4
      %s159 = scalar_lea.vmem %s0, %s158
      %s160 = smul.u32 12, %s17
      %p161 = scmp.lt.s32.totalorder %s17, 0
      %s162 = scalar_select %p161, %s17, 0
      %p163 = scmp.lt.s32.totalorder %s18, 7
      %s164 = scalar_select %p163, %s18, 7
      %s165 = smul.addr %s162, 8
      %s166 = sadd.s32 %s164, %s165
      %s167 = smul.addr %s166, 4
      %s168 = scalar_lea.vmem %s2, %s167
      %s169 = smul.u32 %s18, 512
      %s170 = smul.addr %s169, 4
      %s171 = scalar_lea.vmem %s1, %s170
      %v172 = vld [vmem:[%s171] sm:$0xff]
      %v173 = vld [vmem:[%s171 + $0x8] sm:$0xff]
      %v174 = vld [vmem:[%s171 + $0x10] sm:$0xff]
      %v175 = vld [vmem:[%s171 + $0x18] sm:$0xff]
      %v176 = vld [vmem:[%s171 + $0x20] sm:$0xff]
      %v177 = vld [vmem:[%s171 + $0x28] sm:$0xff]
      %v178 = vld [vmem:[%s171 + $0x30] sm:$0xff]
      %v179 = vld [vmem:[%s171 + $0x38] sm:$0xff]
      %v180 = vld [vmem:[%s171 + $0x40] sm:$0xff]
      %v181 = vld [vmem:[%s171 + $0x48] sm:$0xff]
      %v182 = vld [vmem:[%s171 + $0x50] sm:$0xff]
      %v183 = vld [vmem:[%s171 + $0x58] sm:$0xff]
      %v184 = vld [vmem:[%s171 + $0x60] sm:$0xff]
      %v185 = vld [vmem:[%s171 + $0x68] sm:$0xff]
      %v186 = vld [vmem:[%s171 + $0x70] sm:$0xff]
      %v187 = vld [vmem:[%s171 + $0x78] sm:$0xff]
      %v188 = vld [vmem:[%s171 + $0x80] sm:$0xff]
      %v189 = vld [vmem:[%s171 + $0x88] sm:$0xff]
      %v190 = vld [vmem:[%s171 + $0x90] sm:$0xff]
      %v191 = vld [vmem:[%s171 + $0x98] sm:$0xff]
      %v192 = vld [vmem:[%s171 + $0xa0] sm:$0xff]
      %v193 = vld [vmem:[%s171 + $0xa8] sm:$0xff]
      %v194 = vld [vmem:[%s171 + $0xb0] sm:$0xff]
      %v195 = vld [vmem:[%s171 + $0xb8] sm:$0xff]
      %v196 = vld [vmem:[%s171 + $0xc0] sm:$0xff]
      %v197 = vld [vmem:[%s171 + $0xc8] sm:$0xff]
      %v198 = vld [vmem:[%s171 + $0xd0] sm:$0xff]
      %v199 = vld [vmem:[%s171 + $0xd8] sm:$0xff]
      %v200 = vld [vmem:[%s171 + $0xe0] sm:$0xff]
      %v201 = vld [vmem:[%s171 + $0xe8] sm:$0xff]
      %v202 = vld [vmem:[%s171 + $0xf0] sm:$0xff]
      %v203 = vld [vmem:[%s171 + $0xf8] sm:$0xff]
      %v204 = vld [vmem:[%s171 + $0x100] sm:$0xff]
      %v205 = vld [vmem:[%s171 + $0x108] sm:$0xff]
      %v206 = vld [vmem:[%s171 + $0x110] sm:$0xff]
      %v207 = vld [vmem:[%s171 + $0x118] sm:$0xff]
      %v208 = vld [vmem:[%s171 + $0x120] sm:$0xff]
      %v209 = vld [vmem:[%s171 + $0x128] sm:$0xff]
      %v210 = vld [vmem:[%s171 + $0x130] sm:$0xff]
      %v211 = vld [vmem:[%s171 + $0x138] sm:$0xff]
      %v212 = vld [vmem:[%s171 + $0x140] sm:$0xff]
      %v213 = vld [vmem:[%s171 + $0x148] sm:$0xff]
      %v214 = vld [vmem:[%s171 + $0x150] sm:$0xff]
      %v215 = vld [vmem:[%s171 + $0x158] sm:$0xff]
      %v216 = vld [vmem:[%s171 + $0x160] sm:$0xff]
      %v217 = vld [vmem:[%s171 + $0x168] sm:$0xff]
      %v218 = vld [vmem:[%s171 + $0x170] sm:$0xff]
      %v219 = vld [vmem:[%s171 + $0x178] sm:$0xff]
      %v220 = vld [vmem:[%s171 + $0x180] sm:$0xff]
      %v221 = vld [vmem:[%s171 + $0x188] sm:$0xff]
      %v222 = vld [vmem:[%s171 + $0x190] sm:$0xff]
      %v223 = vld [vmem:[%s171 + $0x198] sm:$0xff]
      %v224 = vld [vmem:[%s171 + $0x1a0] sm:$0xff]
      %v225 = vld [vmem:[%s171 + $0x1a8] sm:$0xff]
      %v226 = vld [vmem:[%s171 + $0x1b0] sm:$0xff]
      %v227 = vld [vmem:[%s171 + $0x1b8] sm:$0xff]
      %v228 = vld [vmem:[%s171 + $0x1c0] sm:$0xff]
      %v229 = vld [vmem:[%s171 + $0x1c8] sm:$0xff]
      %v230 = vld [vmem:[%s171 + $0x1d0] sm:$0xff]
      %v231 = vld [vmem:[%s171 + $0x1d8] sm:$0xff]
      %v232 = vld [vmem:[%s171 + $0x1e0] sm:$0xff]
      %v233 = vld [vmem:[%s171 + $0x1e8] sm:$0xff]
      %v234 = vld [vmem:[%s171 + $0x1f0] sm:$0xff]
      %v235 = vld [vmem:[%s171 + $0x1f8] sm:$0xff]
      %v236 = vld [vmem:[%s171 + $0x200] sm:$0xff]
      %v237 = vld [vmem:[%s171 + $0x208] sm:$0xff]
      %v238 = vld [vmem:[%s171 + $0x210] sm:$0xff]
      %v239 = vld [vmem:[%s171 + $0x218] sm:$0xff]
      %v240 = vld [vmem:[%s171 + $0x220] sm:$0xff]
      %v241 = vld [vmem:[%s171 + $0x228] sm:$0xff]
      %v242 = vld [vmem:[%s171 + $0x230] sm:$0xff]
      %v243 = vld [vmem:[%s171 + $0x238] sm:$0xff]
      %v244 = vld [vmem:[%s171 + $0x240] sm:$0xff]
      %v245 = vld [vmem:[%s171 + $0x248] sm:$0xff]
      %v246 = vld [vmem:[%s171 + $0x250] sm:$0xff]
      %v247 = vld [vmem:[%s171 + $0x258] sm:$0xff]
      %v248 = vld [vmem:[%s171 + $0x260] sm:$0xff]
      %v249 = vld [vmem:[%s171 + $0x268] sm:$0xff]
      %v250 = vld [vmem:[%s171 + $0x270] sm:$0xff]
      %v251 = vld [vmem:[%s171 + $0x278] sm:$0xff]
      %v252 = vld [vmem:[%s171 + $0x280] sm:$0xff]
      %v253 = vld [vmem:[%s171 + $0x288] sm:$0xff]
      %v254 = vld [vmem:[%s171 + $0x290] sm:$0xff]
      %v255 = vld [vmem:[%s171 + $0x298] sm:$0xff]
      %v256 = vld [vmem:[%s171 + $0x2a0] sm:$0xff]
      %v257 = vld [vmem:[%s171 + $0x2a8] sm:$0xff]
      %v258 = vld [vmem:[%s171 + $0x2b0] sm:$0xff]
      %v259 = vld [vmem:[%s171 + $0x2b8] sm:$0xff]
      %v260 = vld [vmem:[%s171 + $0x2c0] sm:$0xff]
      %v261 = vld [vmem:[%s171 + $0x2c8] sm:$0xff]
      %v262 = vld [vmem:[%s171 + $0x2d0] sm:$0xff]
      %v263 = vld [vmem:[%s171 + $0x2d8] sm:$0xff]
      %v264 = vld [vmem:[%s171 + $0x2e0] sm:$0xff]
      %v265 = vld [vmem:[%s171 + $0x2e8] sm:$0xff]
      %v266 = vld [vmem:[%s171 + $0x2f0] sm:$0xff]
      %v267 = vld [vmem:[%s171 + $0x2f8] sm:$0xff]
      %v268 = vld [vmem:[%s171 + $0x300] sm:$0xff]
      %v269 = vld [vmem:[%s171 + $0x308] sm:$0xff]
      %v270 = vld [vmem:[%s171 + $0x310] sm:$0xff]
      %v271 = vld [vmem:[%s171 + $0x318] sm:$0xff]
      %v272 = vld [vmem:[%s171 + $0x320] sm:$0xff]
      %v273 = vld [vmem:[%s171 + $0x328] sm:$0xff]
      %v274 = vld [vmem:[%s171 + $0x330] sm:$0xff]
      %v275 = vld [vmem:[%s171 + $0x338] sm:$0xff]
      %v276 = vld [vmem:[%s171 + $0x340] sm:$0xff]
      %v277 = vld [vmem:[%s171 + $0x348] sm:$0xff]
      %v278 = vld [vmem:[%s171 + $0x350] sm:$0xff]
      %v279 = vld [vmem:[%s171 + $0x358] sm:$0xff]
      %v280 = vld [vmem:[%s171 + $0x360] sm:$0xff]
      %v281 = vld [vmem:[%s171 + $0x368] sm:$0xff]
      %v282 = vld [vmem:[%s171 + $0x370] sm:$0xff]
      %v283 = vld [vmem:[%s171 + $0x378] sm:$0xff]
      %v284 = vld [vmem:[%s171 + $0x380] sm:$0xff]
      %v285 = vld [vmem:[%s171 + $0x388] sm:$0xff]
      %v286 = vld [vmem:[%s171 + $0x390] sm:$0xff]
      %v287 = vld [vmem:[%s171 + $0x398] sm:$0xff]
      %v288 = vld [vmem:[%s171 + $0x3a0] sm:$0xff]
      %v289 = vld [vmem:[%s171 + $0x3a8] sm:$0xff]
      %v290 = vld [vmem:[%s171 + $0x3b0] sm:$0xff]
      %v291 = vld [vmem:[%s171 + $0x3b8] sm:$0xff]
      %v292 = vld [vmem:[%s171 + $0x3c0] sm:$0xff]
      %v293 = vld [vmem:[%s171 + $0x3c8] sm:$0xff]
      %v294 = vld [vmem:[%s171 + $0x3d0] sm:$0xff]
      %v295 = vld [vmem:[%s171 + $0x3d8] sm:$0xff]
      %v296 = vld [vmem:[%s171 + $0x3e0] sm:$0xff]
      %v297 = vld [vmem:[%s171 + $0x3e8] sm:$0xff]
      %v298 = vld [vmem:[%s171 + $0x3f0] sm:$0xff]
      %v299 = vld [vmem:[%s171 + $0x3f8] sm:$0xff]
      %v300 = vld [vmem:[%s171 + $0x400] sm:$0xff]
      %v301 = vld [vmem:[%s171 + $0x408] sm:$0xff]
      %v302 = vld [vmem:[%s171 + $0x410] sm:$0xff]
      %v303 = vld [vmem:[%s171 + $0x418] sm:$0xff]
      %v304 = vld [vmem:[%s171 + $0x420] sm:$0xff]
      %v305 = vld [vmem:[%s171 + $0x428] sm:$0xff]
      %v306 = vld [vmem:[%s171 + $0x430] sm:$0xff]
      %v307 = vld [vmem:[%s171 + $0x438] sm:$0xff]
      %v308 = vld [vmem:[%s171 + $0x440] sm:$0xff]
      %v309 = vld [vmem:[%s171 + $0x448] sm:$0xff]
      %v310 = vld [vmem:[%s171 + $0x450] sm:$0xff]
      %v311 = vld [vmem:[%s171 + $0x458] sm:$0xff]
      %v312 = vld [vmem:[%s171 + $0x460] sm:$0xff]
      %v313 = vld [vmem:[%s171 + $0x468] sm:$0xff]
      %v314 = vld [vmem:[%s171 + $0x470] sm:$0xff]
      %v315 = vld [vmem:[%s171 + $0x478] sm:$0xff]
      %v316 = vld [vmem:[%s171 + $0x480] sm:$0xff]
      %v317 = vld [vmem:[%s171 + $0x488] sm:$0xff]
      %v318 = vld [vmem:[%s171 + $0x490] sm:$0xff]
      %v319 = vld [vmem:[%s171 + $0x498] sm:$0xff]
      %v320 = vld [vmem:[%s171 + $0x4a0] sm:$0xff]
      %v321 = vld [vmem:[%s171 + $0x4a8] sm:$0xff]
      %v322 = vld [vmem:[%s171 + $0x4b0] sm:$0xff]
      %v323 = vld [vmem:[%s171 + $0x4b8] sm:$0xff]
      %v324 = vld [vmem:[%s171 + $0x4c0] sm:$0xff]
      %v325 = vld [vmem:[%s171 + $0x4c8] sm:$0xff]
      %v326 = vld [vmem:[%s171 + $0x4d0] sm:$0xff]
      %v327 = vld [vmem:[%s171 + $0x4d8] sm:$0xff]
      %v328 = vld [vmem:[%s171 + $0x4e0] sm:$0xff]
      %v329 = vld [vmem:[%s171 + $0x4e8] sm:$0xff]
      %v330 = vld [vmem:[%s171 + $0x4f0] sm:$0xff]
      %v331 = vld [vmem:[%s171 + $0x4f8] sm:$0xff]
      %v332 = vld [vmem:[%s171 + $0x500] sm:$0xff]
      %v333 = vld [vmem:[%s171 + $0x508] sm:$0xff]
      %v334 = vld [vmem:[%s171 + $0x510] sm:$0xff]
      %v335 = vld [vmem:[%s171 + $0x518] sm:$0xff]
      %v336 = vld [vmem:[%s171 + $0x520] sm:$0xff]
      %v337 = vld [vmem:[%s171 + $0x528] sm:$0xff]
      %v338 = vld [vmem:[%s171 + $0x530] sm:$0xff]
      %v339 = vld [vmem:[%s171 + $0x538] sm:$0xff]
      %v340 = vld [vmem:[%s171 + $0x540] sm:$0xff]
      %v341 = vld [vmem:[%s171 + $0x548] sm:$0xff]
      %v342 = vld [vmem:[%s171 + $0x550] sm:$0xff]
      %v343 = vld [vmem:[%s171 + $0x558] sm:$0xff]
      %v344 = vld [vmem:[%s171 + $0x560] sm:$0xff]
      %v345 = vld [vmem:[%s171 + $0x568] sm:$0xff]
      %v346 = vld [vmem:[%s171 + $0x570] sm:$0xff]
      %v347 = vld [vmem:[%s171 + $0x578] sm:$0xff]
      %v348 = vld [vmem:[%s171 + $0x580] sm:$0xff]
      %v349 = vld [vmem:[%s171 + $0x588] sm:$0xff]
      %v350 = vld [vmem:[%s171 + $0x590] sm:$0xff]
      %v351 = vld [vmem:[%s171 + $0x598] sm:$0xff]
      %v352 = vld [vmem:[%s171 + $0x5a0] sm:$0xff]
      %v353 = vld [vmem:[%s171 + $0x5a8] sm:$0xff]
      %v354 = vld [vmem:[%s171 + $0x5b0] sm:$0xff]
      %v355 = vld [vmem:[%s171 + $0x5b8] sm:$0xff]
      %v356 = vld [vmem:[%s171 + $0x5c0] sm:$0xff]
      %v357 = vld [vmem:[%s171 + $0x5c8] sm:$0xff]
      %v358 = vld [vmem:[%s171 + $0x5d0] sm:$0xff]
      %v359 = vld [vmem:[%s171 + $0x5d8] sm:$0xff]
      %v360 = vld [vmem:[%s171 + $0x5e0] sm:$0xff]
      %v361 = vld [vmem:[%s171 + $0x5e8] sm:$0xff]
      %v362 = vld [vmem:[%s171 + $0x5f0] sm:$0xff]
      %v363 = vld [vmem:[%s171 + $0x5f8] sm:$0xff]
      %v364 = vld [vmem:[%s171 + $0x600] sm:$0xff]
      %v365 = vld [vmem:[%s171 + $0x608] sm:$0xff]
      %v366 = vld [vmem:[%s171 + $0x610] sm:$0xff]
      %v367 = vld [vmem:[%s171 + $0x618] sm:$0xff]
      %v368 = vld [vmem:[%s171 + $0x620] sm:$0xff]
      %v369 = vld [vmem:[%s171 + $0x628] sm:$0xff]
      %v370 = vld [vmem:[%s171 + $0x630] sm:$0xff]
      %v371 = vld [vmem:[%s171 + $0x638] sm:$0xff]
      %v372 = vld [vmem:[%s171 + $0x640] sm:$0xff]
      %v373 = vld [vmem:[%s171 + $0x648] sm:$0xff]
      %v374 = vld [vmem:[%s171 + $0x650] sm:$0xff]
      %v375 = vld [vmem:[%s171 + $0x658] sm:$0xff]
      %v376 = vld [vmem:[%s171 + $0x660] sm:$0xff]
      %v377 = vld [vmem:[%s171 + $0x668] sm:$0xff]
      %v378 = vld [vmem:[%s171 + $0x670] sm:$0xff]
      %v379 = vld [vmem:[%s171 + $0x678] sm:$0xff]
      %v380 = vld [vmem:[%s171 + $0x680] sm:$0xff]
      %v381 = vld [vmem:[%s171 + $0x688] sm:$0xff]
      %v382 = vld [vmem:[%s171 + $0x690] sm:$0xff]
      %v383 = vld [vmem:[%s171 + $0x698] sm:$0xff]
      %v384 = vld [vmem:[%s171 + $0x6a0] sm:$0xff]
      %v385 = vld [vmem:[%s171 + $0x6a8] sm:$0xff]
      %v386 = vld [vmem:[%s171 + $0x6b0] sm:$0xff]
      %v387 = vld [vmem:[%s171 + $0x6b8] sm:$0xff]
      %v388 = vld [vmem:[%s171 + $0x6c0] sm:$0xff]
      %v389 = vld [vmem:[%s171 + $0x6c8] sm:$0xff]
      %v390 = vld [vmem:[%s171 + $0x6d0] sm:$0xff]
      %v391 = vld [vmem:[%s171 + $0x6d8] sm:$0xff]
      %v392 = vld [vmem:[%s171 + $0x6e0] sm:$0xff]
      %v393 = vld [vmem:[%s171 + $0x6e8] sm:$0xff]
      %v394 = vld [vmem:[%s171 + $0x6f0] sm:$0xff]
      %v395 = vld [vmem:[%s171 + $0x6f8] sm:$0xff]
      %v396 = vld [vmem:[%s171 + $0x700] sm:$0xff]
      %v397 = vld [vmem:[%s171 + $0x708] sm:$0xff]
      %v398 = vld [vmem:[%s171 + $0x710] sm:$0xff]
      %v399 = vld [vmem:[%s171 + $0x718] sm:$0xff]
      %v400 = vld [vmem:[%s171 + $0x720] sm:$0xff]
      %v401 = vld [vmem:[%s171 + $0x728] sm:$0xff]
      %v402 = vld [vmem:[%s171 + $0x730] sm:$0xff]
      %v403 = vld [vmem:[%s171 + $0x738] sm:$0xff]
      %v404 = vld [vmem:[%s171 + $0x740] sm:$0xff]
      %v405 = vld [vmem:[%s171 + $0x748] sm:$0xff]
      %v406 = vld [vmem:[%s171 + $0x750] sm:$0xff]
      %v407 = vld [vmem:[%s171 + $0x758] sm:$0xff]
      %v408 = vld [vmem:[%s171 + $0x760] sm:$0xff]
      %v409 = vld [vmem:[%s171 + $0x768] sm:$0xff]
      %v410 = vld [vmem:[%s171 + $0x770] sm:$0xff]
      %v411 = vld [vmem:[%s171 + $0x778] sm:$0xff]
      %v412 = vld [vmem:[%s171 + $0x780] sm:$0xff]
      %v413 = vld [vmem:[%s171 + $0x788] sm:$0xff]
      %v414 = vld [vmem:[%s171 + $0x790] sm:$0xff]
      %v415 = vld [vmem:[%s171 + $0x798] sm:$0xff]
      %v416 = vld [vmem:[%s171 + $0x7a0] sm:$0xff]
      %v417 = vld [vmem:[%s171 + $0x7a8] sm:$0xff]
      %v418 = vld [vmem:[%s171 + $0x7b0] sm:$0xff]
      %v419 = vld [vmem:[%s171 + $0x7b8] sm:$0xff]
      %v420 = vld [vmem:[%s171 + $0x7c0] sm:$0xff]
      %v421 = vld [vmem:[%s171 + $0x7c8] sm:$0xff]
      %v422 = vld [vmem:[%s171 + $0x7d0] sm:$0xff]
      %v423 = vld [vmem:[%s171 + $0x7d8] sm:$0xff]
      %v424 = vld [vmem:[%s171 + $0x7e0] sm:$0xff]
      %v425 = vld [vmem:[%s171 + $0x7e8] sm:$0xff]
      %v426 = vld [vmem:[%s171 + $0x7f0] sm:$0xff]
      %v427 = vld [vmem:[%s171 + $0x7f8] sm:$0xff]
      %v428 = vld [vmem:[%s159] sm:$0xff]
      %v429 = vld [vmem:[%s159 + $0x8] sm:$0xff]
      %v430 = vld [vmem:[%s159 + $0x10] sm:$0xff]
      %v431 = vld [vmem:[%s159 + $0x18] sm:$0xff]
      %v432 = vld [vmem:[%s159 + $0x20] sm:$0xff]
      %v433 = vld [vmem:[%s159 + $0x28] sm:$0xff]
      %v434 = vld [vmem:[%s159 + $0x30] sm:$0xff]
      %v435 = vld [vmem:[%s159 + $0x38] sm:$0xff]
      %v436 = vld [vmem:[%s159 + $0x40] sm:$0xff]
      %v437 = vld [vmem:[%s159 + $0x48] sm:$0xff]
      %v438 = vld [vmem:[%s159 + $0x50] sm:$0xff]
      %v439 = vld [vmem:[%s159 + $0x58] sm:$0xff]
      %v440 = vld [vmem:[%s159 + $0x60] sm:$0xff]
      %v441 = vld [vmem:[%s159 + $0x68] sm:$0xff]
      %v442 = vld [vmem:[%s159 + $0x70] sm:$0xff]
      %v443 = vld [vmem:[%s159 + $0x78] sm:$0xff]
      %v444 = vld [vmem:[%s159 + $0x80] sm:$0xff]
      %v445 = vld [vmem:[%s159 + $0x88] sm:$0xff]
      %v446 = vld [vmem:[%s159 + $0x90] sm:$0xff]
      %v447 = vld [vmem:[%s159 + $0x98] sm:$0xff]
      %v448 = vld [vmem:[%s159 + $0xa0] sm:$0xff]
      %v449 = vld [vmem:[%s159 + $0xa8] sm:$0xff]
      %v450 = vld [vmem:[%s159 + $0xb0] sm:$0xff]
      %v451 = vld [vmem:[%s159 + $0xb8] sm:$0xff]
      %v452 = vld [vmem:[%s159 + $0xc0] sm:$0xff]
      %v453 = vld [vmem:[%s159 + $0xc8] sm:$0xff]
      %v454 = vld [vmem:[%s159 + $0xd0] sm:$0xff]
      %v455 = vld [vmem:[%s159 + $0xd8] sm:$0xff]
      %v456 = vld [vmem:[%s159 + $0xe0] sm:$0xff]
      %v457 = vld [vmem:[%s159 + $0xe8] sm:$0xff]
      %v458 = vld [vmem:[%s159 + $0xf0] sm:$0xff]
      %v459 = vld [vmem:[%s159 + $0xf8] sm:$0xff]
      %v460 = vld [vmem:[%s159 + $0x100] sm:$0xff]
      %v461 = vld [vmem:[%s159 + $0x108] sm:$0xff]
      %v462 = vld [vmem:[%s159 + $0x110] sm:$0xff]
      %v463 = vld [vmem:[%s159 + $0x118] sm:$0xff]
      %v464 = vld [vmem:[%s159 + $0x120] sm:$0xff]
      %v465 = vld [vmem:[%s159 + $0x128] sm:$0xff]
      %v466 = vld [vmem:[%s159 + $0x130] sm:$0xff]
      %v467 = vld [vmem:[%s159 + $0x138] sm:$0xff]
      %v468 = vld [vmem:[%s159 + $0x140] sm:$0xff]
      %v469 = vld [vmem:[%s159 + $0x148] sm:$0xff]
      %v470 = vld [vmem:[%s159 + $0x150] sm:$0xff]
      %v471 = vld [vmem:[%s159 + $0x158] sm:$0xff]
      %v472 = vld [vmem:[%s159 + $0x160] sm:$0xff]
      %v473 = vld [vmem:[%s159 + $0x168] sm:$0xff]
      %v474 = vld [vmem:[%s159 + $0x170] sm:$0xff]
      %v475 = vld [vmem:[%s159 + $0x178] sm:$0xff]
      %v476 = vld [vmem:[%s159 + $0x180] sm:$0xff]
      %v477 = vld [vmem:[%s159 + $0x188] sm:$0xff]
      %v478 = vld [vmem:[%s159 + $0x190] sm:$0xff]
      %v479 = vld [vmem:[%s159 + $0x198] sm:$0xff]
      %v480 = vld [vmem:[%s159 + $0x1a0] sm:$0xff]
      %v481 = vld [vmem:[%s159 + $0x1a8] sm:$0xff]
      %v482 = vld [vmem:[%s159 + $0x1b0] sm:$0xff]
      %v483 = vld [vmem:[%s159 + $0x1b8] sm:$0xff]
      %v484 = vld [vmem:[%s159 + $0x1c0] sm:$0xff]
      %v485 = vld [vmem:[%s159 + $0x1c8] sm:$0xff]
      %v486 = vld [vmem:[%s159 + $0x1d0] sm:$0xff]
      %v487 = vld [vmem:[%s159 + $0x1d8] sm:$0xff]
      %v488 = vld [vmem:[%s159 + $0x1e0] sm:$0xff]
      %v489 = vld [vmem:[%s159 + $0x1e8] sm:$0xff]
      %v490 = vld [vmem:[%s159 + $0x1f0] sm:$0xff]
      %v491 = vld [vmem:[%s159 + $0x1f8] sm:$0xff]
      %v492 = vld [vmem:[%s159 + $0x200] sm:$0xff]
      %v493 = vld [vmem:[%s159 + $0x208] sm:$0xff]
      %v494 = vld [vmem:[%s159 + $0x210] sm:$0xff]
      %v495 = vld [vmem:[%s159 + $0x218] sm:$0xff]
      %v496 = vld [vmem:[%s159 + $0x220] sm:$0xff]
      %v497 = vld [vmem:[%s159 + $0x228] sm:$0xff]
      %v498 = vld [vmem:[%s159 + $0x230] sm:$0xff]
      %v499 = vld [vmem:[%s159 + $0x238] sm:$0xff]
      %v500 = vld [vmem:[%s159 + $0x240] sm:$0xff]
      %v501 = vld [vmem:[%s159 + $0x248] sm:$0xff]
      %v502 = vld [vmem:[%s159 + $0x250] sm:$0xff]
      %v503 = vld [vmem:[%s159 + $0x258] sm:$0xff]
      %v504 = vld [vmem:[%s159 + $0x260] sm:$0xff]
      %v505 = vld [vmem:[%s159 + $0x268] sm:$0xff]
      %v506 = vld [vmem:[%s159 + $0x270] sm:$0xff]
      %v507 = vld [vmem:[%s159 + $0x278] sm:$0xff]
      %v508 = vld [vmem:[%s159 + $0x280] sm:$0xff]
      %v509 = vld [vmem:[%s159 + $0x288] sm:$0xff]
      %v510 = vld [vmem:[%s159 + $0x290] sm:$0xff]
      %v511 = vld [vmem:[%s159 + $0x298] sm:$0xff]
      %v512 = vld [vmem:[%s159 + $0x2a0] sm:$0xff]
      %v513 = vld [vmem:[%s159 + $0x2a8] sm:$0xff]
      %v514 = vld [vmem:[%s159 + $0x2b0] sm:$0xff]
      %v515 = vld [vmem:[%s159 + $0x2b8] sm:$0xff]
      %v516 = vld [vmem:[%s159 + $0x2c0] sm:$0xff]
      %v517 = vld [vmem:[%s159 + $0x2c8] sm:$0xff]
      %v518 = vld [vmem:[%s159 + $0x2d0] sm:$0xff]
      %v519 = vld [vmem:[%s159 + $0x2d8] sm:$0xff]
      %v520 = vld [vmem:[%s159 + $0x2e0] sm:$0xff]
      %v521 = vld [vmem:[%s159 + $0x2e8] sm:$0xff]
      %v522 = vld [vmem:[%s159 + $0x2f0] sm:$0xff]
      %v523 = vld [vmem:[%s159 + $0x2f8] sm:$0xff]
      %v620 = vunpack.c.l.b16 %v428
      %v621 = vunpack.c.h.b16 %v428
      %v622 = vunpack.c.l.b16 %v429
      %v623 = vunpack.c.h.b16 %v429
      %v624 = vunpack.c.l.b16 %v430
      %v625 = vunpack.c.h.b16 %v430
      %v626 = vunpack.c.l.b16 %v431
      %v627 = vunpack.c.h.b16 %v431
      %v628 = vunpack.c.l.b16 %v432
      %v629 = vunpack.c.h.b16 %v432
      %v630 = vunpack.c.l.b16 %v433
      %v631 = vunpack.c.h.b16 %v433
      %v632 = vunpack.c.l.b16 %v434
      %v633 = vunpack.c.h.b16 %v434
      %v634 = vunpack.c.l.b16 %v435
      %v635 = vunpack.c.h.b16 %v435
      %v636 = vunpack.c.l.b16 %v436
      %v637 = vunpack.c.h.b16 %v436
      %v638 = vunpack.c.l.b16 %v437
      %v639 = vunpack.c.h.b16 %v437
      %v640 = vunpack.c.l.b16 %v438
      %v641 = vunpack.c.h.b16 %v438
      %v642 = vunpack.c.l.b16 %v439
      %v643 = vunpack.c.h.b16 %v439
      %v644 = vunpack.c.l.b16 %v440
      %v645 = vunpack.c.h.b16 %v440
      %v646 = vunpack.c.l.b16 %v441
      %v647 = vunpack.c.h.b16 %v441
      %v648 = vunpack.c.l.b16 %v442
      %v649 = vunpack.c.h.b16 %v442
      %v650 = vunpack.c.l.b16 %v443
      %v651 = vunpack.c.h.b16 %v443
      %v652 = vunpack.c.l.b16 %v444
      %v653 = vunpack.c.h.b16 %v444
      %v654 = vunpack.c.l.b16 %v445
      %v655 = vunpack.c.h.b16 %v445
      %v656 = vunpack.c.l.b16 %v446
      %v657 = vunpack.c.h.b16 %v446
      %v658 = vunpack.c.l.b16 %v447
      %v659 = vunpack.c.h.b16 %v447
      %v660 = vunpack.c.l.b16 %v448
      %v661 = vunpack.c.h.b16 %v448
      %v662 = vunpack.c.l.b16 %v449
      %v663 = vunpack.c.h.b16 %v449
      %v664 = vunpack.c.l.b16 %v450
      %v665 = vunpack.c.h.b16 %v450
      %v666 = vunpack.c.l.b16 %v451
      %v667 = vunpack.c.h.b16 %v451
      %v668 = vunpack.c.l.b16 %v452
      %v669 = vunpack.c.h.b16 %v452
      %v670 = vunpack.c.l.b16 %v453
      %v671 = vunpack.c.h.b16 %v453
      %v672 = vunpack.c.l.b16 %v454
      %v673 = vunpack.c.h.b16 %v454
      %v674 = vunpack.c.l.b16 %v455
      %v675 = vunpack.c.h.b16 %v455
      %v676 = vunpack.c.l.b16 %v456
      %v677 = vunpack.c.h.b16 %v456
      %v678 = vunpack.c.l.b16 %v457
      %v679 = vunpack.c.h.b16 %v457
      %v680 = vunpack.c.l.b16 %v458
      %v681 = vunpack.c.h.b16 %v458
      %v682 = vunpack.c.l.b16 %v459
      %v683 = vunpack.c.h.b16 %v459
      %v684 = vunpack.c.l.b16 %v460
      %v685 = vunpack.c.h.b16 %v460
      %v686 = vunpack.c.l.b16 %v461
      %v687 = vunpack.c.h.b16 %v461
      %v688 = vunpack.c.l.b16 %v462
      %v689 = vunpack.c.h.b16 %v462
      %v690 = vunpack.c.l.b16 %v463
      %v691 = vunpack.c.h.b16 %v463
      %v692 = vunpack.c.l.b16 %v464
      %v693 = vunpack.c.h.b16 %v464
      %v694 = vunpack.c.l.b16 %v465
      %v695 = vunpack.c.h.b16 %v465
      %v696 = vunpack.c.l.b16 %v466
      %v697 = vunpack.c.h.b16 %v466
      %v698 = vunpack.c.l.b16 %v467
      %v699 = vunpack.c.h.b16 %v467
      %v700 = vunpack.c.l.b16 %v468
      %v701 = vunpack.c.h.b16 %v468
      %v702 = vunpack.c.l.b16 %v469
      %v703 = vunpack.c.h.b16 %v469
      %v704 = vunpack.c.l.b16 %v470
      %v705 = vunpack.c.h.b16 %v470
      %v706 = vunpack.c.l.b16 %v471
      %v707 = vunpack.c.h.b16 %v471
      %v708 = vunpack.c.l.b16 %v472
      %v709 = vunpack.c.h.b16 %v472
      %v710 = vunpack.c.l.b16 %v473
      %v711 = vunpack.c.h.b16 %v473
      %v712 = vunpack.c.l.b16 %v474
      %v713 = vunpack.c.h.b16 %v474
      %v714 = vunpack.c.l.b16 %v475
      %v715 = vunpack.c.h.b16 %v475
      %v716 = vunpack.c.l.b16 %v476
      %v717 = vunpack.c.h.b16 %v476
      %v718 = vunpack.c.l.b16 %v477
      %v719 = vunpack.c.h.b16 %v477
      %v720 = vunpack.c.l.b16 %v478
      %v721 = vunpack.c.h.b16 %v478
      %v722 = vunpack.c.l.b16 %v479
      %v723 = vunpack.c.h.b16 %v479
      %v724 = vunpack.c.l.b16 %v480
      %v725 = vunpack.c.h.b16 %v480
      %v726 = vunpack.c.l.b16 %v481
      %v727 = vunpack.c.h.b16 %v481
      %v728 = vunpack.c.l.b16 %v482
      %v729 = vunpack.c.h.b16 %v482
      %v730 = vunpack.c.l.b16 %v483
      %v731 = vunpack.c.h.b16 %v483
      %v732 = vunpack.c.l.b16 %v484
      %v733 = vunpack.c.h.b16 %v484
      %v734 = vunpack.c.l.b16 %v485
      %v735 = vunpack.c.h.b16 %v485
      %v736 = vunpack.c.l.b16 %v486
      %v737 = vunpack.c.h.b16 %v486
      %v738 = vunpack.c.l.b16 %v487
      %v739 = vunpack.c.h.b16 %v487
      %v740 = vunpack.c.l.b16 %v488
      %v741 = vunpack.c.h.b16 %v488
      %v742 = vunpack.c.l.b16 %v489
      %v743 = vunpack.c.h.b16 %v489
      %v744 = vunpack.c.l.b16 %v490
      %v745 = vunpack.c.h.b16 %v490
      %v746 = vunpack.c.l.b16 %v491
      %v747 = vunpack.c.h.b16 %v491
      %v748 = vunpack.c.l.b16 %v492
      %v749 = vunpack.c.h.b16 %v492
      %v750 = vunpack.c.l.b16 %v493
      %v751 = vunpack.c.h.b16 %v493
      %v752 = vunpack.c.l.b16 %v494
      %v753 = vunpack.c.h.b16 %v494
      %v754 = vunpack.c.l.b16 %v495
      %v755 = vunpack.c.h.b16 %v495
      %v756 = vunpack.c.l.b16 %v496
      %v757 = vunpack.c.h.b16 %v496
      %v758 = vunpack.c.l.b16 %v497
      %v759 = vunpack.c.h.b16 %v497
      %v760 = vunpack.c.l.b16 %v498
      %v761 = vunpack.c.h.b16 %v498
      %v762 = vunpack.c.l.b16 %v499
      %v763 = vunpack.c.h.b16 %v499
      %v764 = vunpack.c.l.b16 %v500
      %v765 = vunpack.c.h.b16 %v500
      %v766 = vunpack.c.l.b16 %v501
      %v767 = vunpack.c.h.b16 %v501
      %v768 = vunpack.c.l.b16 %v502
      %v769 = vunpack.c.h.b16 %v502
      %v770 = vunpack.c.l.b16 %v503
      %v771 = vunpack.c.h.b16 %v503
      %v772 = vunpack.c.l.b16 %v504
      %v773 = vunpack.c.h.b16 %v504
      %v774 = vunpack.c.l.b16 %v505
      %v775 = vunpack.c.h.b16 %v505
      %v776 = vunpack.c.l.b16 %v506
      %v777 = vunpack.c.h.b16 %v506
      %v778 = vunpack.c.l.b16 %v507
      %v779 = vunpack.c.h.b16 %v507
      %v780 = vunpack.c.l.b16 %v508
      %v781 = vunpack.c.h.b16 %v508
      %v782 = vunpack.c.l.b16 %v509
      %v783 = vunpack.c.h.b16 %v509
      %v784 = vunpack.c.l.b16 %v510
      %v785 = vunpack.c.h.b16 %v510
      %v786 = vunpack.c.l.b16 %v511
      %v787 = vunpack.c.h.b16 %v511
      %v788 = vunpack.c.l.b16 %v512
      %v789 = vunpack.c.h.b16 %v512
      %v790 = vunpack.c.l.b16 %v513
      %v791 = vunpack.c.h.b16 %v513
      %v792 = vunpack.c.l.b16 %v514
      %v793 = vunpack.c.h.b16 %v514
      %v794 = vunpack.c.l.b16 %v515
      %v795 = vunpack.c.h.b16 %v515
      %v796 = vunpack.c.l.b16 %v516
      %v797 = vunpack.c.h.b16 %v516
      %v798 = vunpack.c.l.b16 %v517
      %v799 = vunpack.c.h.b16 %v517
      %v800 = vunpack.c.l.b16 %v518
      %v801 = vunpack.c.h.b16 %v518
      %v802 = vunpack.c.l.b16 %v519
      %v803 = vunpack.c.h.b16 %v519
      %v804 = vunpack.c.l.b16 %v520
      %v805 = vunpack.c.h.b16 %v520
      %v806 = vunpack.c.l.b16 %v521
      %v807 = vunpack.c.h.b16 %v521
      %v808 = vunpack.c.l.b16 %v522
      %v809 = vunpack.c.h.b16 %v522
      %v810 = vunpack.c.l.b16 %v523
      %v811 = vunpack.c.h.b16 %v523
      %v812 = vpack.c.b16 %v636, %v620
      %v813 = vpack.c.b16 %v637, %v621
      %v814 = vpack.c.b16 %v638, %v622
      %v815 = vpack.c.b16 %v639, %v623
      %v816 = vpack.c.b16 %v640, %v624
      %v817 = vpack.c.b16 %v641, %v625
      %v818 = vpack.c.b16 %v642, %v626
      %v819 = vpack.c.b16 %v643, %v627
      %v820 = vpack.c.b16 %v644, %v628
      %v821 = vpack.c.b16 %v645, %v629
      %v822 = vpack.c.b16 %v646, %v630
      %v823 = vpack.c.b16 %v647, %v631
      %v824 = vpack.c.b16 %v648, %v632
      %v825 = vpack.c.b16 %v649, %v633
      %v826 = vpack.c.b16 %v650, %v634
      %v827 = vpack.c.b16 %v651, %v635
      %v828 = vpack.c.b16 %v668, %v652
      %v829 = vpack.c.b16 %v669, %v653
      %v830 = vpack.c.b16 %v670, %v654
      %v831 = vpack.c.b16 %v671, %v655
      %v832 = vpack.c.b16 %v672, %v656
      %v833 = vpack.c.b16 %v673, %v657
      %v834 = vpack.c.b16 %v674, %v658
      %v835 = vpack.c.b16 %v675, %v659
      %v836 = vpack.c.b16 %v676, %v660
      %v837 = vpack.c.b16 %v677, %v661
      %v838 = vpack.c.b16 %v678, %v662
      %v839 = vpack.c.b16 %v679, %v663
      %v840 = vpack.c.b16 %v680, %v664
      %v841 = vpack.c.b16 %v681, %v665
      %v842 = vpack.c.b16 %v682, %v666
      %v843 = vpack.c.b16 %v683, %v667
      %v844 = vpack.c.b16 %v700, %v684
      %v845 = vpack.c.b16 %v701, %v685
      %v846 = vpack.c.b16 %v702, %v686
      %v847 = vpack.c.b16 %v703, %v687
      %v848 = vpack.c.b16 %v704, %v688
      %v849 = vpack.c.b16 %v705, %v689
      %v850 = vpack.c.b16 %v706, %v690
      %v851 = vpack.c.b16 %v707, %v691
      %v852 = vpack.c.b16 %v708, %v692
      %v853 = vpack.c.b16 %v709, %v693
      %v854 = vpack.c.b16 %v710, %v694
      %v855 = vpack.c.b16 %v711, %v695
      %v856 = vpack.c.b16 %v712, %v696
      %v857 = vpack.c.b16 %v713, %v697
      %v858 = vpack.c.b16 %v714, %v698
      %v859 = vpack.c.b16 %v715, %v699
      %v860 = vpack.c.b16 %v732, %v716
      %v861 = vpack.c.b16 %v733, %v717
      %v862 = vpack.c.b16 %v734, %v718
      %v863 = vpack.c.b16 %v735, %v719
      %v864 = vpack.c.b16 %v736, %v720
      %v865 = vpack.c.b16 %v737, %v721
      %v866 = vpack.c.b16 %v738, %v722
      %v867 = vpack.c.b16 %v739, %v723
      %v868 = vpack.c.b16 %v740, %v724
      %v869 = vpack.c.b16 %v741, %v725
      %v870 = vpack.c.b16 %v742, %v726
      %v871 = vpack.c.b16 %v743, %v727
      %v872 = vpack.c.b16 %v744, %v728
      %v873 = vpack.c.b16 %v745, %v729
      %v874 = vpack.c.b16 %v746, %v730
      %v875 = vpack.c.b16 %v747, %v731
      %v876 = vpack.c.b16 %v764, %v748
      %v877 = vpack.c.b16 %v765, %v749
      %v878 = vpack.c.b16 %v766, %v750
      %v879 = vpack.c.b16 %v767, %v751
      %v880 = vpack.c.b16 %v768, %v752
      %v881 = vpack.c.b16 %v769, %v753
      %v882 = vpack.c.b16 %v770, %v754
      %v883 = vpack.c.b16 %v771, %v755
      %v884 = vpack.c.b16 %v772, %v756
      %v885 = vpack.c.b16 %v773, %v757
      %v886 = vpack.c.b16 %v774, %v758
      %v887 = vpack.c.b16 %v775, %v759
      %v888 = vpack.c.b16 %v776, %v760
      %v889 = vpack.c.b16 %v777, %v761
      %v890 = vpack.c.b16 %v778, %v762
      %v891 = vpack.c.b16 %v779, %v763
      %v892 = vpack.c.b16 %v796, %v780
      %v893 = vpack.c.b16 %v797, %v781
      %v894 = vpack.c.b16 %v798, %v782
      %v895 = vpack.c.b16 %v799, %v783
      %v896 = vpack.c.b16 %v800, %v784
      %v897 = vpack.c.b16 %v801, %v785
      %v898 = vpack.c.b16 %v802, %v786
      %v899 = vpack.c.b16 %v803, %v787
      %v900 = vpack.c.b16 %v804, %v788
      %v901 = vpack.c.b16 %v805, %v789
      %v902 = vpack.c.b16 %v806, %v790
      %v903 = vpack.c.b16 %v807, %v791
      %v904 = vpack.c.b16 %v808, %v792
      %v905 = vpack.c.b16 %v809, %v793
      %v906 = vpack.c.b16 %v810, %v794
      %v907 = vpack.c.b16 %v811, %v795
      %v1260 = vunpack.c.l.b16 %v172
      %v1261 = vunpack.c.h.b16 %v172
      %v1262 = vunpack.c.l.b16 %v173
      %v1263 = vunpack.c.h.b16 %v173
      %v1264 = vunpack.c.l.b16 %v174
      %v1265 = vunpack.c.h.b16 %v174
      %v1266 = vunpack.c.l.b16 %v175
      %v1267 = vunpack.c.h.b16 %v175
      %v1268 = vunpack.c.l.b16 %v176
      %v1269 = vunpack.c.h.b16 %v176
      %v1270 = vunpack.c.l.b16 %v177
      %v1271 = vunpack.c.h.b16 %v177
      %v1272 = vunpack.c.l.b16 %v178
      %v1273 = vunpack.c.h.b16 %v178
      %v1274 = vunpack.c.l.b16 %v179
      %v1275 = vunpack.c.h.b16 %v179
      %v1276 = vunpack.c.l.b16 %v180
      %v1277 = vunpack.c.h.b16 %v180
      %v1278 = vunpack.c.l.b16 %v181
      %v1279 = vunpack.c.h.b16 %v181
      %v1280 = vunpack.c.l.b16 %v182
      %v1281 = vunpack.c.h.b16 %v182
      %v1282 = vunpack.c.l.b16 %v183
      %v1283 = vunpack.c.h.b16 %v183
      %v1284 = vunpack.c.l.b16 %v184
      %v1285 = vunpack.c.h.b16 %v184
      %v1286 = vunpack.c.l.b16 %v185
      %v1287 = vunpack.c.h.b16 %v185
      %v1288 = vunpack.c.l.b16 %v186
      %v1289 = vunpack.c.h.b16 %v186
      %v1290 = vunpack.c.l.b16 %v187
      %v1291 = vunpack.c.h.b16 %v187
      %v1292 = vunpack.c.l.b16 %v188
      %v1293 = vunpack.c.h.b16 %v188
      %v1294 = vunpack.c.l.b16 %v189
      %v1295 = vunpack.c.h.b16 %v189
      %v1296 = vunpack.c.l.b16 %v190
      %v1297 = vunpack.c.h.b16 %v190
      %v1298 = vunpack.c.l.b16 %v191
      %v1299 = vunpack.c.h.b16 %v191
      %v1300 = vunpack.c.l.b16 %v192
      %v1301 = vunpack.c.h.b16 %v192
      %v1302 = vunpack.c.l.b16 %v193
      %v1303 = vunpack.c.h.b16 %v193
      %v1304 = vunpack.c.l.b16 %v194
      %v1305 = vunpack.c.h.b16 %v194
      %v1306 = vunpack.c.l.b16 %v195
      %v1307 = vunpack.c.h.b16 %v195
      %v1308 = vunpack.c.l.b16 %v196
      %v1309 = vunpack.c.h.b16 %v196
      %v1310 = vunpack.c.l.b16 %v197
      %v1311 = vunpack.c.h.b16 %v197
      %v1312 = vunpack.c.l.b16 %v198
      %v1313 = vunpack.c.h.b16 %v198
      %v1314 = vunpack.c.l.b16 %v199
      %v1315 = vunpack.c.h.b16 %v199
      %v1316 = vunpack.c.l.b16 %v200
      %v1317 = vunpack.c.h.b16 %v200
      %v1318 = vunpack.c.l.b16 %v201
      %v1319 = vunpack.c.h.b16 %v201
      %v1320 = vunpack.c.l.b16 %v202
      %v1321 = vunpack.c.h.b16 %v202
      %v1322 = vunpack.c.l.b16 %v203
      %v1323 = vunpack.c.h.b16 %v203
      %v1324 = vunpack.c.l.b16 %v204
      %v1325 = vunpack.c.h.b16 %v204
      %v1326 = vunpack.c.l.b16 %v205
      %v1327 = vunpack.c.h.b16 %v205
      %v1328 = vunpack.c.l.b16 %v206
      %v1329 = vunpack.c.h.b16 %v206
      %v1330 = vunpack.c.l.b16 %v207
      %v1331 = vunpack.c.h.b16 %v207
      %v1332 = vunpack.c.l.b16 %v208
      %v1333 = vunpack.c.h.b16 %v208
      %v1334 = vunpack.c.l.b16 %v209
      %v1335 = vunpack.c.h.b16 %v209
      %v1336 = vunpack.c.l.b16 %v210
      %v1337 = vunpack.c.h.b16 %v210
      %v1338 = vunpack.c.l.b16 %v211
      %v1339 = vunpack.c.h.b16 %v211
      %v1340 = vunpack.c.l.b16 %v212
      %v1341 = vunpack.c.h.b16 %v212
      %v1342 = vunpack.c.l.b16 %v213
      %v1343 = vunpack.c.h.b16 %v213
      %v1344 = vunpack.c.l.b16 %v214
      %v1345 = vunpack.c.h.b16 %v214
      %v1346 = vunpack.c.l.b16 %v215
      %v1347 = vunpack.c.h.b16 %v215
      %v1348 = vunpack.c.l.b16 %v216
      %v1349 = vunpack.c.h.b16 %v216
      %v1350 = vunpack.c.l.b16 %v217
      %v1351 = vunpack.c.h.b16 %v217
      %v1352 = vunpack.c.l.b16 %v218
      %v1353 = vunpack.c.h.b16 %v218
      %v1354 = vunpack.c.l.b16 %v219
      %v1355 = vunpack.c.h.b16 %v219
      %v1356 = vunpack.c.l.b16 %v220
      %v1357 = vunpack.c.h.b16 %v220
      %v1358 = vunpack.c.l.b16 %v221
      %v1359 = vunpack.c.h.b16 %v221
      %v1360 = vunpack.c.l.b16 %v222
      %v1361 = vunpack.c.h.b16 %v222
      %v1362 = vunpack.c.l.b16 %v223
      %v1363 = vunpack.c.h.b16 %v223
      %v1364 = vunpack.c.l.b16 %v224
      %v1365 = vunpack.c.h.b16 %v224
      %v1366 = vunpack.c.l.b16 %v225
      %v1367 = vunpack.c.h.b16 %v225
      %v1368 = vunpack.c.l.b16 %v226
      %v1369 = vunpack.c.h.b16 %v226
      %v1370 = vunpack.c.l.b16 %v227
      %v1371 = vunpack.c.h.b16 %v227
      %v1372 = vunpack.c.l.b16 %v228
      %v1373 = vunpack.c.h.b16 %v228
      %v1374 = vunpack.c.l.b16 %v229
      %v1375 = vunpack.c.h.b16 %v229
      %v1376 = vunpack.c.l.b16 %v230
      %v1377 = vunpack.c.h.b16 %v230
      %v1378 = vunpack.c.l.b16 %v231
      %v1379 = vunpack.c.h.b16 %v231
      %v1380 = vunpack.c.l.b16 %v232
      %v1381 = vunpack.c.h.b16 %v232
      %v1382 = vunpack.c.l.b16 %v233
      %v1383 = vunpack.c.h.b16 %v233
      %v1384 = vunpack.c.l.b16 %v234
      %v1385 = vunpack.c.h.b16 %v234
      %v1386 = vunpack.c.l.b16 %v235
      %v1387 = vunpack.c.h.b16 %v235
      %v1388 = vunpack.c.l.b16 %v236
      %v1389 = vunpack.c.h.b16 %v236
      %v1390 = vunpack.c.l.b16 %v237
      %v1391 = vunpack.c.h.b16 %v237
      %v1392 = vunpack.c.l.b16 %v238
      %v1393 = vunpack.c.h.b16 %v238
      %v1394 = vunpack.c.l.b16 %v239
      %v1395 = vunpack.c.h.b16 %v239
      %v1396 = vunpack.c.l.b16 %v240
      %v1397 = vunpack.c.h.b16 %v240
      %v1398 = vunpack.c.l.b16 %v241
      %v1399 = vunpack.c.h.b16 %v241
      %v1400 = vunpack.c.l.b16 %v242
      %v1401 = vunpack.c.h.b16 %v242
      %v1402 = vunpack.c.l.b16 %v243
      %v1403 = vunpack.c.h.b16 %v243
      %v1404 = vunpack.c.l.b16 %v244
      %v1405 = vunpack.c.h.b16 %v244
      %v1406 = vunpack.c.l.b16 %v245
      %v1407 = vunpack.c.h.b16 %v245
      %v1408 = vunpack.c.l.b16 %v246
      %v1409 = vunpack.c.h.b16 %v246
      %v1410 = vunpack.c.l.b16 %v247
      %v1411 = vunpack.c.h.b16 %v247
      %v1412 = vunpack.c.l.b16 %v248
      %v1413 = vunpack.c.h.b16 %v248
      %v1414 = vunpack.c.l.b16 %v249
      %v1415 = vunpack.c.h.b16 %v249
      %v1416 = vunpack.c.l.b16 %v250
      %v1417 = vunpack.c.h.b16 %v250
      %v1418 = vunpack.c.l.b16 %v251
      %v1419 = vunpack.c.h.b16 %v251
      %v1420 = vunpack.c.l.b16 %v252
      %v1421 = vunpack.c.h.b16 %v252
      %v1422 = vunpack.c.l.b16 %v253
      %v1423 = vunpack.c.h.b16 %v253
      %v1424 = vunpack.c.l.b16 %v254
      %v1425 = vunpack.c.h.b16 %v254
      %v1426 = vunpack.c.l.b16 %v255
      %v1427 = vunpack.c.h.b16 %v255
      %v1428 = vunpack.c.l.b16 %v256
      %v1429 = vunpack.c.h.b16 %v256
      %v1430 = vunpack.c.l.b16 %v257
      %v1431 = vunpack.c.h.b16 %v257
      %v1432 = vunpack.c.l.b16 %v258
      %v1433 = vunpack.c.h.b16 %v258
      %v1434 = vunpack.c.l.b16 %v259
      %v1435 = vunpack.c.h.b16 %v259
      %v1436 = vunpack.c.l.b16 %v260
      %v1437 = vunpack.c.h.b16 %v260
      %v1438 = vunpack.c.l.b16 %v261
      %v1439 = vunpack.c.h.b16 %v261
      %v1440 = vunpack.c.l.b16 %v262
      %v1441 = vunpack.c.h.b16 %v262
      %v1442 = vunpack.c.l.b16 %v263
      %v1443 = vunpack.c.h.b16 %v263
      %v1444 = vunpack.c.l.b16 %v264
      %v1445 = vunpack.c.h.b16 %v264
      %v1446 = vunpack.c.l.b16 %v265
      %v1447 = vunpack.c.h.b16 %v265
      %v1448 = vunpack.c.l.b16 %v266
      %v1449 = vunpack.c.h.b16 %v266
      %v1450 = vunpack.c.l.b16 %v267
      %v1451 = vunpack.c.h.b16 %v267
      %v1452 = vunpack.c.l.b16 %v268
      %v1453 = vunpack.c.h.b16 %v268
      %v1454 = vunpack.c.l.b16 %v269
      %v1455 = vunpack.c.h.b16 %v269
      %v1456 = vunpack.c.l.b16 %v270
      %v1457 = vunpack.c.h.b16 %v270
      %v1458 = vunpack.c.l.b16 %v271
      %v1459 = vunpack.c.h.b16 %v271
      %v1460 = vunpack.c.l.b16 %v272
      %v1461 = vunpack.c.h.b16 %v272
      %v1462 = vunpack.c.l.b16 %v273
      %v1463 = vunpack.c.h.b16 %v273
      %v1464 = vunpack.c.l.b16 %v274
      %v1465 = vunpack.c.h.b16 %v274
      %v1466 = vunpack.c.l.b16 %v275
      %v1467 = vunpack.c.h.b16 %v275
      %v1468 = vunpack.c.l.b16 %v276
      %v1469 = vunpack.c.h.b16 %v276
      %v1470 = vunpack.c.l.b16 %v277
      %v1471 = vunpack.c.h.b16 %v277
      %v1472 = vunpack.c.l.b16 %v278
      %v1473 = vunpack.c.h.b16 %v278
      %v1474 = vunpack.c.l.b16 %v279
      %v1475 = vunpack.c.h.b16 %v279
      %v1476 = vunpack.c.l.b16 %v280
      %v1477 = vunpack.c.h.b16 %v280
      %v1478 = vunpack.c.l.b16 %v281
      %v1479 = vunpack.c.h.b16 %v281
      %v1480 = vunpack.c.l.b16 %v282
      %v1481 = vunpack.c.h.b16 %v282
      %v1482 = vunpack.c.l.b16 %v283
      %v1483 = vunpack.c.h.b16 %v283
      %v1484 = vunpack.c.l.b16 %v284
      %v1485 = vunpack.c.h.b16 %v284
      %v1486 = vunpack.c.l.b16 %v285
      %v1487 = vunpack.c.h.b16 %v285
      %v1488 = vunpack.c.l.b16 %v286
      %v1489 = vunpack.c.h.b16 %v286
      %v1490 = vunpack.c.l.b16 %v287
      %v1491 = vunpack.c.h.b16 %v287
      %v1492 = vunpack.c.l.b16 %v288
      %v1493 = vunpack.c.h.b16 %v288
      %v1494 = vunpack.c.l.b16 %v289
      %v1495 = vunpack.c.h.b16 %v289
      %v1496 = vunpack.c.l.b16 %v290
      %v1497 = vunpack.c.h.b16 %v290
      %v1498 = vunpack.c.l.b16 %v291
      %v1499 = vunpack.c.h.b16 %v291
      %v1500 = vunpack.c.l.b16 %v292
      %v1501 = vunpack.c.h.b16 %v292
      %v1502 = vunpack.c.l.b16 %v293
      %v1503 = vunpack.c.h.b16 %v293
      %v1504 = vunpack.c.l.b16 %v294
      %v1505 = vunpack.c.h.b16 %v294
      %v1506 = vunpack.c.l.b16 %v295
      %v1507 = vunpack.c.h.b16 %v295
      %v1508 = vunpack.c.l.b16 %v296
      %v1509 = vunpack.c.h.b16 %v296
      %v1510 = vunpack.c.l.b16 %v297
      %v1511 = vunpack.c.h.b16 %v297
      %v1512 = vunpack.c.l.b16 %v298
      %v1513 = vunpack.c.h.b16 %v298
      %v1514 = vunpack.c.l.b16 %v299
      %v1515 = vunpack.c.h.b16 %v299
      %v1516 = vunpack.c.l.b16 %v300
      %v1517 = vunpack.c.h.b16 %v300
      %v1518 = vunpack.c.l.b16 %v301
      %v1519 = vunpack.c.h.b16 %v301
      %v1520 = vunpack.c.l.b16 %v302
      %v1521 = vunpack.c.h.b16 %v302
      %v1522 = vunpack.c.l.b16 %v303
      %v1523 = vunpack.c.h.b16 %v303
      %v1524 = vunpack.c.l.b16 %v304
      %v1525 = vunpack.c.h.b16 %v304
      %v1526 = vunpack.c.l.b16 %v305
      %v1527 = vunpack.c.h.b16 %v305
      %v1528 = vunpack.c.l.b16 %v306
      %v1529 = vunpack.c.h.b16 %v306
      %v1530 = vunpack.c.l.b16 %v307
      %v1531 = vunpack.c.h.b16 %v307
      %v1532 = vunpack.c.l.b16 %v308
      %v1533 = vunpack.c.h.b16 %v308
      %v1534 = vunpack.c.l.b16 %v309
      %v1535 = vunpack.c.h.b16 %v309
      %v1536 = vunpack.c.l.b16 %v310
      %v1537 = vunpack.c.h.b16 %v310
      %v1538 = vunpack.c.l.b16 %v311
      %v1539 = vunpack.c.h.b16 %v311
      %v1540 = vunpack.c.l.b16 %v312
      %v1541 = vunpack.c.h.b16 %v312
      %v1542 = vunpack.c.l.b16 %v313
      %v1543 = vunpack.c.h.b16 %v313
      %v1544 = vunpack.c.l.b16 %v314
      %v1545 = vunpack.c.h.b16 %v314
      %v1546 = vunpack.c.l.b16 %v315
      %v1547 = vunpack.c.h.b16 %v315
      %v1548 = vunpack.c.l.b16 %v316
      %v1549 = vunpack.c.h.b16 %v316
      %v1550 = vunpack.c.l.b16 %v317
      %v1551 = vunpack.c.h.b16 %v317
      %v1552 = vunpack.c.l.b16 %v318
      %v1553 = vunpack.c.h.b16 %v318
      %v1554 = vunpack.c.l.b16 %v319
      %v1555 = vunpack.c.h.b16 %v319
      %v1556 = vunpack.c.l.b16 %v320
      %v1557 = vunpack.c.h.b16 %v320
      %v1558 = vunpack.c.l.b16 %v321
      %v1559 = vunpack.c.h.b16 %v321
      %v1560 = vunpack.c.l.b16 %v322
      %v1561 = vunpack.c.h.b16 %v322
      %v1562 = vunpack.c.l.b16 %v323
      %v1563 = vunpack.c.h.b16 %v323
      %v1564 = vunpack.c.l.b16 %v324
      %v1565 = vunpack.c.h.b16 %v324
      %v1566 = vunpack.c.l.b16 %v325
      %v1567 = vunpack.c.h.b16 %v325
      %v1568 = vunpack.c.l.b16 %v326
      %v1569 = vunpack.c.h.b16 %v326
      %v1570 = vunpack.c.l.b16 %v327
      %v1571 = vunpack.c.h.b16 %v327
      %v1572 = vunpack.c.l.b16 %v328
      %v1573 = vunpack.c.h.b16 %v328
      %v1574 = vunpack.c.l.b16 %v329
      %v1575 = vunpack.c.h.b16 %v329
      %v1576 = vunpack.c.l.b16 %v330
      %v1577 = vunpack.c.h.b16 %v330
      %v1578 = vunpack.c.l.b16 %v331
      %v1579 = vunpack.c.h.b16 %v331
      %v1580 = vunpack.c.l.b16 %v332
      %v1581 = vunpack.c.h.b16 %v332
      %v1582 = vunpack.c.l.b16 %v333
      %v1583 = vunpack.c.h.b16 %v333
      %v1584 = vunpack.c.l.b16 %v334
      %v1585 = vunpack.c.h.b16 %v334
      %v1586 = vunpack.c.l.b16 %v335
      %v1587 = vunpack.c.h.b16 %v335
      %v1588 = vunpack.c.l.b16 %v336
      %v1589 = vunpack.c.h.b16 %v336
      %v1590 = vunpack.c.l.b16 %v337
      %v1591 = vunpack.c.h.b16 %v337
      %v1592 = vunpack.c.l.b16 %v338
      %v1593 = vunpack.c.h.b16 %v338
      %v1594 = vunpack.c.l.b16 %v339
      %v1595 = vunpack.c.h.b16 %v339
      %v1596 = vunpack.c.l.b16 %v340
      %v1597 = vunpack.c.h.b16 %v340
      %v1598 = vunpack.c.l.b16 %v341
      %v1599 = vunpack.c.h.b16 %v341
      %v1600 = vunpack.c.l.b16 %v342
      %v1601 = vunpack.c.h.b16 %v342
      %v1602 = vunpack.c.l.b16 %v343
      %v1603 = vunpack.c.h.b16 %v343
      %v1604 = vunpack.c.l.b16 %v344
      %v1605 = vunpack.c.h.b16 %v344
      %v1606 = vunpack.c.l.b16 %v345
      %v1607 = vunpack.c.h.b16 %v345
      %v1608 = vunpack.c.l.b16 %v346
      %v1609 = vunpack.c.h.b16 %v346
      %v1610 = vunpack.c.l.b16 %v347
      %v1611 = vunpack.c.h.b16 %v347
      %v1612 = vunpack.c.l.b16 %v348
      %v1613 = vunpack.c.h.b16 %v348
      %v1614 = vunpack.c.l.b16 %v349
      %v1615 = vunpack.c.h.b16 %v349
      %v1616 = vunpack.c.l.b16 %v350
      %v1617 = vunpack.c.h.b16 %v350
      %v1618 = vunpack.c.l.b16 %v351
      %v1619 = vunpack.c.h.b16 %v351
      %v1620 = vunpack.c.l.b16 %v352
      %v1621 = vunpack.c.h.b16 %v352
      %v1622 = vunpack.c.l.b16 %v353
      %v1623 = vunpack.c.h.b16 %v353
      %v1624 = vunpack.c.l.b16 %v354
      %v1625 = vunpack.c.h.b16 %v354
      %v1626 = vunpack.c.l.b16 %v355
      %v1627 = vunpack.c.h.b16 %v355
      %v1628 = vunpack.c.l.b16 %v356
      %v1629 = vunpack.c.h.b16 %v356
      %v1630 = vunpack.c.l.b16 %v357
      %v1631 = vunpack.c.h.b16 %v357
      %v1632 = vunpack.c.l.b16 %v358
      %v1633 = vunpack.c.h.b16 %v358
      %v1634 = vunpack.c.l.b16 %v359
      %v1635 = vunpack.c.h.b16 %v359
      %v1636 = vunpack.c.l.b16 %v360
      %v1637 = vunpack.c.h.b16 %v360
      %v1638 = vunpack.c.l.b16 %v361
      %v1639 = vunpack.c.h.b16 %v361
      %v1640 = vunpack.c.l.b16 %v362
      %v1641 = vunpack.c.h.b16 %v362
      %v1642 = vunpack.c.l.b16 %v363
      %v1643 = vunpack.c.h.b16 %v363
      %v1644 = vunpack.c.l.b16 %v364
      %v1645 = vunpack.c.h.b16 %v364
      %v1646 = vunpack.c.l.b16 %v365
      %v1647 = vunpack.c.h.b16 %v365
      %v1648 = vunpack.c.l.b16 %v366
      %v1649 = vunpack.c.h.b16 %v366
      %v1650 = vunpack.c.l.b16 %v367
      %v1651 = vunpack.c.h.b16 %v367
      %v1652 = vunpack.c.l.b16 %v368
      %v1653 = vunpack.c.h.b16 %v368
      %v1654 = vunpack.c.l.b16 %v369
      %v1655 = vunpack.c.h.b16 %v369
      %v1656 = vunpack.c.l.b16 %v370
      %v1657 = vunpack.c.h.b16 %v370
      %v1658 = vunpack.c.l.b16 %v371
      %v1659 = vunpack.c.h.b16 %v371
      %v1660 = vunpack.c.l.b16 %v372
      %v1661 = vunpack.c.h.b16 %v372
      %v1662 = vunpack.c.l.b16 %v373
      %v1663 = vunpack.c.h.b16 %v373
      %v1664 = vunpack.c.l.b16 %v374
      %v1665 = vunpack.c.h.b16 %v374
      %v1666 = vunpack.c.l.b16 %v375
      %v1667 = vunpack.c.h.b16 %v375
      %v1668 = vunpack.c.l.b16 %v376
      %v1669 = vunpack.c.h.b16 %v376
      %v1670 = vunpack.c.l.b16 %v377
      %v1671 = vunpack.c.h.b16 %v377
      %v1672 = vunpack.c.l.b16 %v378
      %v1673 = vunpack.c.h.b16 %v378
      %v1674 = vunpack.c.l.b16 %v379
      %v1675 = vunpack.c.h.b16 %v379
      %v1676 = vunpack.c.l.b16 %v380
      %v1677 = vunpack.c.h.b16 %v380
      %v1678 = vunpack.c.l.b16 %v381
      %v1679 = vunpack.c.h.b16 %v381
      %v1680 = vunpack.c.l.b16 %v382
      %v1681 = vunpack.c.h.b16 %v382
      %v1682 = vunpack.c.l.b16 %v383
      %v1683 = vunpack.c.h.b16 %v383
      %v1684 = vunpack.c.l.b16 %v384
      %v1685 = vunpack.c.h.b16 %v384
      %v1686 = vunpack.c.l.b16 %v385
      %v1687 = vunpack.c.h.b16 %v385
      %v1688 = vunpack.c.l.b16 %v386
      %v1689 = vunpack.c.h.b16 %v386
      %v1690 = vunpack.c.l.b16 %v387
      %v1691 = vunpack.c.h.b16 %v387
      %v1692 = vunpack.c.l.b16 %v388
      %v1693 = vunpack.c.h.b16 %v388
      %v1694 = vunpack.c.l.b16 %v389
      %v1695 = vunpack.c.h.b16 %v389
      %v1696 = vunpack.c.l.b16 %v390
      %v1697 = vunpack.c.h.b16 %v390
      %v1698 = vunpack.c.l.b16 %v391
      %v1699 = vunpack.c.h.b16 %v391
      %v1700 = vunpack.c.l.b16 %v392
      %v1701 = vunpack.c.h.b16 %v392
      %v1702 = vunpack.c.l.b16 %v393
      %v1703 = vunpack.c.h.b16 %v393
      %v1704 = vunpack.c.l.b16 %v394
      %v1705 = vunpack.c.h.b16 %v394
      %v1706 = vunpack.c.l.b16 %v395
      %v1707 = vunpack.c.h.b16 %v395
      %v1708 = vunpack.c.l.b16 %v396
      %v1709 = vunpack.c.h.b16 %v396
      %v1710 = vunpack.c.l.b16 %v397
      %v1711 = vunpack.c.h.b16 %v397
      %v1712 = vunpack.c.l.b16 %v398
      %v1713 = vunpack.c.h.b16 %v398
      %v1714 = vunpack.c.l.b16 %v399
      %v1715 = vunpack.c.h.b16 %v399
      %v1716 = vunpack.c.l.b16 %v400
      %v1717 = vunpack.c.h.b16 %v400
      %v1718 = vunpack.c.l.b16 %v401
      %v1719 = vunpack.c.h.b16 %v401
      %v1720 = vunpack.c.l.b16 %v402
      %v1721 = vunpack.c.h.b16 %v402
      %v1722 = vunpack.c.l.b16 %v403
      %v1723 = vunpack.c.h.b16 %v403
      %v1724 = vunpack.c.l.b16 %v404
      %v1725 = vunpack.c.h.b16 %v404
      %v1726 = vunpack.c.l.b16 %v405
      %v1727 = vunpack.c.h.b16 %v405
      %v1728 = vunpack.c.l.b16 %v406
      %v1729 = vunpack.c.h.b16 %v406
      %v1730 = vunpack.c.l.b16 %v407
      %v1731 = vunpack.c.h.b16 %v407
      %v1732 = vunpack.c.l.b16 %v408
      %v1733 = vunpack.c.h.b16 %v408
      %v1734 = vunpack.c.l.b16 %v409
      %v1735 = vunpack.c.h.b16 %v409
      %v1736 = vunpack.c.l.b16 %v410
      %v1737 = vunpack.c.h.b16 %v410
      %v1738 = vunpack.c.l.b16 %v411
      %v1739 = vunpack.c.h.b16 %v411
      %v1740 = vunpack.c.l.b16 %v412
      %v1741 = vunpack.c.h.b16 %v412
      %v1742 = vunpack.c.l.b16 %v413
      %v1743 = vunpack.c.h.b16 %v413
      %v1744 = vunpack.c.l.b16 %v414
      %v1745 = vunpack.c.h.b16 %v414
      %v1746 = vunpack.c.l.b16 %v415
      %v1747 = vunpack.c.h.b16 %v415
      %v1748 = vunpack.c.l.b16 %v416
      %v1749 = vunpack.c.h.b16 %v416
      %v1750 = vunpack.c.l.b16 %v417
      %v1751 = vunpack.c.h.b16 %v417
      %v1752 = vunpack.c.l.b16 %v418
      %v1753 = vunpack.c.h.b16 %v418
      %v1754 = vunpack.c.l.b16 %v419
      %v1755 = vunpack.c.h.b16 %v419
      %v1756 = vunpack.c.l.b16 %v420
      %v1757 = vunpack.c.h.b16 %v420
      %v1758 = vunpack.c.l.b16 %v421
      %v1759 = vunpack.c.h.b16 %v421
      %v1760 = vunpack.c.l.b16 %v422
      %v1761 = vunpack.c.h.b16 %v422
      %v1762 = vunpack.c.l.b16 %v423
      %v1763 = vunpack.c.h.b16 %v423
      %v1764 = vunpack.c.l.b16 %v424
      %v1765 = vunpack.c.h.b16 %v424
      %v1766 = vunpack.c.l.b16 %v425
      %v1767 = vunpack.c.h.b16 %v425
      %v1768 = vunpack.c.l.b16 %v426
      %v1769 = vunpack.c.h.b16 %v426
      %v1770 = vunpack.c.l.b16 %v427
      %v1771 = vunpack.c.h.b16 %v427
      %v1772 = vpack.c.b16 %v1262, %v1260
      %v1773 = vpack.c.b16 %v1263, %v1261
      %v1774 = vpack.c.b16 %v1266, %v1264
      %v1775 = vpack.c.b16 %v1267, %v1265
      %v1776 = vpack.c.b16 %v1270, %v1268
      %v1777 = vpack.c.b16 %v1271, %v1269
      %v1778 = vpack.c.b16 %v1274, %v1272
      %v1779 = vpack.c.b16 %v1275, %v1273
      %v1780 = vpack.c.b16 %v1278, %v1276
      %v1781 = vpack.c.b16 %v1279, %v1277
      %v1782 = vpack.c.b16 %v1282, %v1280
      %v1783 = vpack.c.b16 %v1283, %v1281
      %v1784 = vpack.c.b16 %v1286, %v1284
      %v1785 = vpack.c.b16 %v1287, %v1285
      %v1786 = vpack.c.b16 %v1290, %v1288
      %v1787 = vpack.c.b16 %v1291, %v1289
      %v1788 = vpack.c.b16 %v1294, %v1292
      %v1789 = vpack.c.b16 %v1295, %v1293
      %v1790 = vpack.c.b16 %v1298, %v1296
      %v1791 = vpack.c.b16 %v1299, %v1297
      %v1792 = vpack.c.b16 %v1302, %v1300
      %v1793 = vpack.c.b16 %v1303, %v1301
      %v1794 = vpack.c.b16 %v1306, %v1304
      %v1795 = vpack.c.b16 %v1307, %v1305
      %v1796 = vpack.c.b16 %v1310, %v1308
      %v1797 = vpack.c.b16 %v1311, %v1309
      %v1798 = vpack.c.b16 %v1314, %v1312
      %v1799 = vpack.c.b16 %v1315, %v1313
      %v1800 = vpack.c.b16 %v1318, %v1316
      %v1801 = vpack.c.b16 %v1319, %v1317
      %v1802 = vpack.c.b16 %v1322, %v1320
      %v1803 = vpack.c.b16 %v1323, %v1321
      %v1804 = vpack.c.b16 %v1326, %v1324
      %v1805 = vpack.c.b16 %v1327, %v1325
      %v1806 = vpack.c.b16 %v1330, %v1328
      %v1807 = vpack.c.b16 %v1331, %v1329
      %v1808 = vpack.c.b16 %v1334, %v1332
      %v1809 = vpack.c.b16 %v1335, %v1333
      %v1810 = vpack.c.b16 %v1338, %v1336
      %v1811 = vpack.c.b16 %v1339, %v1337
      %v1812 = vpack.c.b16 %v1342, %v1340
      %v1813 = vpack.c.b16 %v1343, %v1341
      %v1814 = vpack.c.b16 %v1346, %v1344
      %v1815 = vpack.c.b16 %v1347, %v1345
      %v1816 = vpack.c.b16 %v1350, %v1348
      %v1817 = vpack.c.b16 %v1351, %v1349
      %v1818 = vpack.c.b16 %v1354, %v1352
      %v1819 = vpack.c.b16 %v1355, %v1353
      %v1820 = vpack.c.b16 %v1358, %v1356
      %v1821 = vpack.c.b16 %v1359, %v1357
      %v1822 = vpack.c.b16 %v1362, %v1360
      %v1823 = vpack.c.b16 %v1363, %v1361
      %v1824 = vpack.c.b16 %v1366, %v1364
      %v1825 = vpack.c.b16 %v1367, %v1365
      %v1826 = vpack.c.b16 %v1370, %v1368
      %v1827 = vpack.c.b16 %v1371, %v1369
      %v1828 = vpack.c.b16 %v1374, %v1372
      %v1829 = vpack.c.b16 %v1375, %v1373
      %v1830 = vpack.c.b16 %v1378, %v1376
      %v1831 = vpack.c.b16 %v1379, %v1377
      %v1832 = vpack.c.b16 %v1382, %v1380
      %v1833 = vpack.c.b16 %v1383, %v1381
      %v1834 = vpack.c.b16 %v1386, %v1384
      %v1835 = vpack.c.b16 %v1387, %v1385
      %v1836 = vpack.c.b16 %v1390, %v1388
      %v1837 = vpack.c.b16 %v1391, %v1389
      %v1838 = vpack.c.b16 %v1394, %v1392
      %v1839 = vpack.c.b16 %v1395, %v1393
      %v1840 = vpack.c.b16 %v1398, %v1396
      %v1841 = vpack.c.b16 %v1399, %v1397
      %v1842 = vpack.c.b16 %v1402, %v1400
      %v1843 = vpack.c.b16 %v1403, %v1401
      %v1844 = vpack.c.b16 %v1406, %v1404
      %v1845 = vpack.c.b16 %v1407, %v1405
      %v1846 = vpack.c.b16 %v1410, %v1408
      %v1847 = vpack.c.b16 %v1411, %v1409
      %v1848 = vpack.c.b16 %v1414, %v1412
      %v1849 = vpack.c.b16 %v1415, %v1413
      %v1850 = vpack.c.b16 %v1418, %v1416
      %v1851 = vpack.c.b16 %v1419, %v1417
      %v1852 = vpack.c.b16 %v1422, %v1420
      %v1853 = vpack.c.b16 %v1423, %v1421
      %v1854 = vpack.c.b16 %v1426, %v1424
      %v1855 = vpack.c.b16 %v1427, %v1425
      %v1856 = vpack.c.b16 %v1430, %v1428
      %v1857 = vpack.c.b16 %v1431, %v1429
      %v1858 = vpack.c.b16 %v1434, %v1432
      %v1859 = vpack.c.b16 %v1435, %v1433
      %v1860 = vpack.c.b16 %v1438, %v1436
      %v1861 = vpack.c.b16 %v1439, %v1437
      %v1862 = vpack.c.b16 %v1442, %v1440
      %v1863 = vpack.c.b16 %v1443, %v1441
      %v1864 = vpack.c.b16 %v1446, %v1444
      %v1865 = vpack.c.b16 %v1447, %v1445
      %v1866 = vpack.c.b16 %v1450, %v1448
      %v1867 = vpack.c.b16 %v1451, %v1449
      %v1868 = vpack.c.b16 %v1454, %v1452
      %v1869 = vpack.c.b16 %v1455, %v1453
      %v1870 = vpack.c.b16 %v1458, %v1456
      %v1871 = vpack.c.b16 %v1459, %v1457
      %v1872 = vpack.c.b16 %v1462, %v1460
      %v1873 = vpack.c.b16 %v1463, %v1461
      %v1874 = vpack.c.b16 %v1466, %v1464
      %v1875 = vpack.c.b16 %v1467, %v1465
      %v1876 = vpack.c.b16 %v1470, %v1468
      %v1877 = vpack.c.b16 %v1471, %v1469
      %v1878 = vpack.c.b16 %v1474, %v1472
      %v1879 = vpack.c.b16 %v1475, %v1473
      %v1880 = vpack.c.b16 %v1478, %v1476
      %v1881 = vpack.c.b16 %v1479, %v1477
      %v1882 = vpack.c.b16 %v1482, %v1480
      %v1883 = vpack.c.b16 %v1483, %v1481
      %v1884 = vpack.c.b16 %v1486, %v1484
      %v1885 = vpack.c.b16 %v1487, %v1485
      %v1886 = vpack.c.b16 %v1490, %v1488
      %v1887 = vpack.c.b16 %v1491, %v1489
      %v1888 = vpack.c.b16 %v1494, %v1492
      %v1889 = vpack.c.b16 %v1495, %v1493
      %v1890 = vpack.c.b16 %v1498, %v1496
      %v1891 = vpack.c.b16 %v1499, %v1497
      %v1892 = vpack.c.b16 %v1502, %v1500
      %v1893 = vpack.c.b16 %v1503, %v1501
      %v1894 = vpack.c.b16 %v1506, %v1504
      %v1895 = vpack.c.b16 %v1507, %v1505
      %v1896 = vpack.c.b16 %v1510, %v1508
      %v1897 = vpack.c.b16 %v1511, %v1509
      %v1898 = vpack.c.b16 %v1514, %v1512
      %v1899 = vpack.c.b16 %v1515, %v1513
      %v1900 = vpack.c.b16 %v1518, %v1516
      %v1901 = vpack.c.b16 %v1519, %v1517
      %v1902 = vpack.c.b16 %v1522, %v1520
      %v1903 = vpack.c.b16 %v1523, %v1521
      %v1904 = vpack.c.b16 %v1526, %v1524
      %v1905 = vpack.c.b16 %v1527, %v1525
      %v1906 = vpack.c.b16 %v1530, %v1528
      %v1907 = vpack.c.b16 %v1531, %v1529
      %v1908 = vpack.c.b16 %v1534, %v1532
      %v1909 = vpack.c.b16 %v1535, %v1533
      %v1910 = vpack.c.b16 %v1538, %v1536
      %v1911 = vpack.c.b16 %v1539, %v1537
      %v1912 = vpack.c.b16 %v1542, %v1540
      %v1913 = vpack.c.b16 %v1543, %v1541
      %v1914 = vpack.c.b16 %v1546, %v1544
      %v1915 = vpack.c.b16 %v1547, %v1545
      %v1916 = vpack.c.b16 %v1550, %v1548
      %v1917 = vpack.c.b16 %v1551, %v1549
      %v1918 = vpack.c.b16 %v1554, %v1552
      %v1919 = vpack.c.b16 %v1555, %v1553
      %v1920 = vpack.c.b16 %v1558, %v1556
      %v1921 = vpack.c.b16 %v1559, %v1557
      %v1922 = vpack.c.b16 %v1562, %v1560
      %v1923 = vpack.c.b16 %v1563, %v1561
      %v1924 = vpack.c.b16 %v1566, %v1564
      %v1925 = vpack.c.b16 %v1567, %v1565
      %v1926 = vpack.c.b16 %v1570, %v1568
      %v1927 = vpack.c.b16 %v1571, %v1569
      %v1928 = vpack.c.b16 %v1574, %v1572
      %v1929 = vpack.c.b16 %v1575, %v1573
      %v1930 = vpack.c.b16 %v1578, %v1576
      %v1931 = vpack.c.b16 %v1579, %v1577
      %v1932 = vpack.c.b16 %v1582, %v1580
      %v1933 = vpack.c.b16 %v1583, %v1581
      %v1934 = vpack.c.b16 %v1586, %v1584
      %v1935 = vpack.c.b16 %v1587, %v1585
      %v1936 = vpack.c.b16 %v1590, %v1588
      %v1937 = vpack.c.b16 %v1591, %v1589
      %v1938 = vpack.c.b16 %v1594, %v1592
      %v1939 = vpack.c.b16 %v1595, %v1593
      %v1940 = vpack.c.b16 %v1598, %v1596
      %v1941 = vpack.c.b16 %v1599, %v1597
      %v1942 = vpack.c.b16 %v1602, %v1600
      %v1943 = vpack.c.b16 %v1603, %v1601
      %v1944 = vpack.c.b16 %v1606, %v1604
      %v1945 = vpack.c.b16 %v1607, %v1605
      %v1946 = vpack.c.b16 %v1610, %v1608
      %v1947 = vpack.c.b16 %v1611, %v1609
      %v1948 = vpack.c.b16 %v1614, %v1612
      %v1949 = vpack.c.b16 %v1615, %v1613
      %v1950 = vpack.c.b16 %v1618, %v1616
      %v1951 = vpack.c.b16 %v1619, %v1617
      %v1952 = vpack.c.b16 %v1622, %v1620
      %v1953 = vpack.c.b16 %v1623, %v1621
      %v1954 = vpack.c.b16 %v1626, %v1624
      %v1955 = vpack.c.b16 %v1627, %v1625
      %v1956 = vpack.c.b16 %v1630, %v1628
      %v1957 = vpack.c.b16 %v1631, %v1629
      %v1958 = vpack.c.b16 %v1634, %v1632
      %v1959 = vpack.c.b16 %v1635, %v1633
      %v1960 = vpack.c.b16 %v1638, %v1636
      %v1961 = vpack.c.b16 %v1639, %v1637
      %v1962 = vpack.c.b16 %v1642, %v1640
      %v1963 = vpack.c.b16 %v1643, %v1641
      %v1964 = vpack.c.b16 %v1646, %v1644
      %v1965 = vpack.c.b16 %v1647, %v1645
      %v1966 = vpack.c.b16 %v1650, %v1648
      %v1967 = vpack.c.b16 %v1651, %v1649
      %v1968 = vpack.c.b16 %v1654, %v1652
      %v1969 = vpack.c.b16 %v1655, %v1653
      %v1970 = vpack.c.b16 %v1658, %v1656
      %v1971 = vpack.c.b16 %v1659, %v1657
      %v1972 = vpack.c.b16 %v1662, %v1660
      %v1973 = vpack.c.b16 %v1663, %v1661
      %v1974 = vpack.c.b16 %v1666, %v1664
      %v1975 = vpack.c.b16 %v1667, %v1665
      %v1976 = vpack.c.b16 %v1670, %v1668
      %v1977 = vpack.c.b16 %v1671, %v1669
      %v1978 = vpack.c.b16 %v1674, %v1672
      %v1979 = vpack.c.b16 %v1675, %v1673
      %v1980 = vpack.c.b16 %v1678, %v1676
      %v1981 = vpack.c.b16 %v1679, %v1677
      %v1982 = vpack.c.b16 %v1682, %v1680
      %v1983 = vpack.c.b16 %v1683, %v1681
      %v1984 = vpack.c.b16 %v1686, %v1684
      %v1985 = vpack.c.b16 %v1687, %v1685
      %v1986 = vpack.c.b16 %v1690, %v1688
      %v1987 = vpack.c.b16 %v1691, %v1689
      %v1988 = vpack.c.b16 %v1694, %v1692
      %v1989 = vpack.c.b16 %v1695, %v1693
      %v1990 = vpack.c.b16 %v1698, %v1696
      %v1991 = vpack.c.b16 %v1699, %v1697
      %v1992 = vpack.c.b16 %v1702, %v1700
      %v1993 = vpack.c.b16 %v1703, %v1701
      %v1994 = vpack.c.b16 %v1706, %v1704
      %v1995 = vpack.c.b16 %v1707, %v1705
      %v1996 = vpack.c.b16 %v1710, %v1708
      %v1997 = vpack.c.b16 %v1711, %v1709
      %v1998 = vpack.c.b16 %v1714, %v1712
      %v1999 = vpack.c.b16 %v1715, %v1713
      %v2000 = vpack.c.b16 %v1718, %v1716
      %v2001 = vpack.c.b16 %v1719, %v1717
      %v2002 = vpack.c.b16 %v1722, %v1720
      %v2003 = vpack.c.b16 %v1723, %v1721
      %v2004 = vpack.c.b16 %v1726, %v1724
      %v2005 = vpack.c.b16 %v1727, %v1725
      %v2006 = vpack.c.b16 %v1730, %v1728
      %v2007 = vpack.c.b16 %v1731, %v1729
      %v2008 = vpack.c.b16 %v1734, %v1732
      %v2009 = vpack.c.b16 %v1735, %v1733
      %v2010 = vpack.c.b16 %v1738, %v1736
      %v2011 = vpack.c.b16 %v1739, %v1737
      %v2012 = vpack.c.b16 %v1742, %v1740
      %v2013 = vpack.c.b16 %v1743, %v1741
      %v2014 = vpack.c.b16 %v1746, %v1744
      %v2015 = vpack.c.b16 %v1747, %v1745
      %v2016 = vpack.c.b16 %v1750, %v1748
      %v2017 = vpack.c.b16 %v1751, %v1749
      %v2018 = vpack.c.b16 %v1754, %v1752
      %v2019 = vpack.c.b16 %v1755, %v1753
      %v2020 = vpack.c.b16 %v1758, %v1756
      %v2021 = vpack.c.b16 %v1759, %v1757
      %v2022 = vpack.c.b16 %v1762, %v1760
      %v2023 = vpack.c.b16 %v1763, %v1761
      %v2024 = vpack.c.b16 %v1766, %v1764
      %v2025 = vpack.c.b16 %v1767, %v1765
      %v2026 = vpack.c.b16 %v1770, %v1768
      %v2027 = vpack.c.b16 %v1771, %v1769
      %2284 = vmatprep.subr.bf16.mxu0 %v1787
      %2285 = vmatpush1.bf16.msra.mxu0 %v1786
      %2286 = vmatprep.subr.bf16.mxu0 %v1785
      %2287 = vmatpush1.bf16.msra.mxu0 %v1784
      %2288 = vmatprep.subr.bf16.mxu0 %v1783
      %2289 = vmatpush1.bf16.msra.mxu0 %v1782
      %2290 = vmatprep.subr.bf16.mxu0 %v1781
      %2291 = vmatpush1.bf16.msra.mxu0 %v1780
      %2292 = vmatprep.subr.bf16.mxu0 %v1779
      %2293 = vmatpush1.bf16.msra.mxu0 %v1778
      %2294 = vmatprep.subr.bf16.mxu0 %v1777
      %2295 = vmatpush1.bf16.msra.mxu0 %v1776
      %2296 = vmatprep.subr.bf16.mxu0 %v1775
      %2297 = vmatpush1.bf16.msra.mxu0 %v1774
      %2298 = vmatprep.subr.bf16.mxu0 %v1773
      %2299 = vmatpush1.bf16.msra.mxu0 %v1772
      %2300 = vmatprep.subr.bf16.mxu0 %v1803
      %2301 = vmatpush2.bf16.msra.mxu0 %v1802
      %2302 = vmatprep.subr.bf16.mxu0 %v1801
      %2303 = vmatpush2.bf16.msra.mxu0 %v1800
      %2304 = vmatprep.subr.bf16.mxu0 %v1799
      %2305 = vmatpush2.bf16.msra.mxu0 %v1798
      %2306 = vmatprep.subr.bf16.mxu0 %v1797
      %2307 = vmatpush2.bf16.msra.mxu0 %v1796
      %2308 = vmatprep.subr.bf16.mxu0 %v1795
      %2309 = vmatpush2.bf16.msra.mxu0 %v1794
      %2310 = vmatprep.subr.bf16.mxu0 %v1793
      %2311 = vmatpush2.bf16.msra.mxu0 %v1792
      %2312 = vmatprep.subr.bf16.mxu0 %v1791
      %2313 = vmatpush2.bf16.msra.mxu0 %v1790
      %2314 = vmatprep.subr.bf16.mxu0 %v1789
      %2315 = vmatpush2.bf16.msra.mxu0 %v1788
      %2316 = vmatprep.mubr.bf16.mxu0 %v813
      %2317 = vmatmul.mubr.bf16.gmra.mxu0 %v812
      %v2318 = vpop.f32.mrf.mxu0
      %v2319 = vadd.f32 0.0, %v2318
      %v2320 = vpop.f32.mrf.mxu0
      %v2321 = vadd.f32 0.0, %v2320
      %v2322 = vpop.f32.mrf.mxu0
      %v2323 = vadd.f32 0.0, %v2322
      %v2324 = vpop.f32.mrf.mxu0
      %v2325 = vadd.f32 0.0, %v2324
      %2326 = vmatprep.mubr.bf16.mxu0 %v829
      %2327 = vmatmul.mubr.bf16.gmra.mxu0 %v828
      %v2328 = vpop.f32.mrf.mxu0
      %v2329 = vadd.f32 0.0, %v2328
      %v2330 = vpop.f32.mrf.mxu0
      %v2331 = vadd.f32 0.0, %v2330
      %v2332 = vpop.f32.mrf.mxu0
      %v2333 = vadd.f32 0.0, %v2332
      %v2334 = vpop.f32.mrf.mxu0
      %v2335 = vadd.f32 0.0, %v2334
      %2336 = vmatprep.mubr.bf16.mxu0 %v845
      %2337 = vmatmul.mubr.bf16.gmra.mxu0 %v844
      %v2338 = vpop.f32.mrf.mxu0
      %v2339 = vadd.f32 0.0, %v2338
      %v2340 = vpop.f32.mrf.mxu0
      %v2341 = vadd.f32 0.0, %v2340
      %v2342 = vpop.f32.mrf.mxu0
      %v2343 = vadd.f32 0.0, %v2342
      %v2344 = vpop.f32.mrf.mxu0
      %v2345 = vadd.f32 0.0, %v2344
      %2346 = vmatprep.mubr.bf16.mxu0 %v861
      %2347 = vmatmul.mubr.bf16.gmra.mxu0 %v860
      %v2348 = vpop.f32.mrf.mxu0
      %v2349 = vadd.f32 0.0, %v2348
      %v2350 = vpop.f32.mrf.mxu0
      %v2351 = vadd.f32 0.0, %v2350
      %v2352 = vpop.f32.mrf.mxu0
      %v2353 = vadd.f32 0.0, %v2352
      %v2354 = vpop.f32.mrf.mxu0
      %v2355 = vadd.f32 0.0, %v2354
      %2356 = vmatprep.mubr.bf16.mxu0 %v877
      %2357 = vmatmul.mubr.bf16.gmra.mxu0 %v876
      %v2358 = vpop.f32.mrf.mxu0
      %v2359 = vadd.f32 0.0, %v2358
      %v2360 = vpop.f32.mrf.mxu0
      %v2361 = vadd.f32 0.0, %v2360
      %v2362 = vpop.f32.mrf.mxu0
      %v2363 = vadd.f32 0.0, %v2362
      %v2364 = vpop.f32.mrf.mxu0
      %v2365 = vadd.f32 0.0, %v2364
      %2366 = vmatprep.mubr.bf16.mxu0 %v893
      %2367 = vmatmul.mubr.bf16.gmra.mxu0 %v892
      %v2368 = vpop.f32.mrf.mxu0
      %v2369 = vadd.f32 0.0, %v2368
      %v2370 = vpop.f32.mrf.mxu0
      %v2371 = vadd.f32 0.0, %v2370
      %v2372 = vpop.f32.mrf.mxu0
      %v2373 = vadd.f32 0.0, %v2372
      %v2374 = vpop.f32.mrf.mxu0
      %v2375 = vadd.f32 0.0, %v2374
      %2376 = vdwg.mxu0
      %2377 = vmatprep.subr.bf16.mxu0 %v1819
      %2378 = vmatpush1.bf16.msra.mxu0 %v1818
      %2379 = vmatprep.subr.bf16.mxu0 %v1817
      %2380 = vmatpush1.bf16.msra.mxu0 %v1816
      %2381 = vmatprep.subr.bf16.mxu0 %v1815
      %2382 = vmatpush1.bf16.msra.mxu0 %v1814
      %2383 = vmatprep.subr.bf16.mxu0 %v1813
      %2384 = vmatpush1.bf16.msra.mxu0 %v1812
      %2385 = vmatprep.subr.bf16.mxu0 %v1811
      %2386 = vmatpush1.bf16.msra.mxu0 %v1810
      %2387 = vmatprep.subr.bf16.mxu0 %v1809
      %2388 = vmatpush1.bf16.msra.mxu0 %v1808
      %2389 = vmatprep.subr.bf16.mxu0 %v1807
      %2390 = vmatpush1.bf16.msra.mxu0 %v1806
      %2391 = vmatprep.subr.bf16.mxu0 %v1805
      %2392 = vmatpush1.bf16.msra.mxu0 %v1804
      %2393 = vmatprep.subr.bf16.mxu0 %v1835
      %2394 = vmatpush2.bf16.msra.mxu0 %v1834
      %2395 = vmatprep.subr.bf16.mxu0 %v1833
      %2396 = vmatpush2.bf16.msra.mxu0 %v1832
      %2397 = vmatprep.subr.bf16.mxu0 %v1831
      %2398 = vmatpush2.bf16.msra.mxu0 %v1830
      %2399 = vmatprep.subr.bf16.mxu0 %v1829
      %2400 = vmatpush2.bf16.msra.mxu0 %v1828
      %2401 = vmatprep.subr.bf16.mxu0 %v1827
      %2402 = vmatpush2.bf16.msra.mxu0 %v1826
      %2403 = vmatprep.subr.bf16.mxu0 %v1825
      %2404 = vmatpush2.bf16.msra.mxu0 %v1824
      %2405 = vmatprep.subr.bf16.mxu0 %v1823
      %2406 = vmatpush2.bf16.msra.mxu0 %v1822
      %2407 = vmatprep.subr.bf16.mxu0 %v1821
      %2408 = vmatpush2.bf16.msra.mxu0 %v1820
      %2409 = vmatprep.mubr.bf16.mxu0 %v815
      %2410 = vmatmul.mubr.bf16.gmra.mxu0 %v814
      %v2411 = vpop.f32.mrf.mxu0
      %v2412 = vadd.f32 %v2319, %v2411
      %v2413 = vpop.f32.mrf.mxu0
      %v2414 = vadd.f32 %v2321, %v2413
      %v2415 = vpop.f32.mrf.mxu0
      %v2416 = vadd.f32 %v2323, %v2415
      %v2417 = vpop.f32.mrf.mxu0
      %v2418 = vadd.f32 %v2325, %v2417
      %2419 = vmatprep.mubr.bf16.mxu0 %v831
      %2420 = vmatmul.mubr.bf16.gmra.mxu0 %v830
      %v2421 = vpop.f32.mrf.mxu0
      %v2422 = vadd.f32 %v2329, %v2421
      %v2423 = vpop.f32.mrf.mxu0
      %v2424 = vadd.f32 %v2331, %v2423
      %v2425 = vpop.f32.mrf.mxu0
      %v2426 = vadd.f32 %v2333, %v2425
      %v2427 = vpop.f32.mrf.mxu0
      %v2428 = vadd.f32 %v2335, %v2427
      %2429 = vmatprep.mubr.bf16.mxu0 %v847
      %2430 = vmatmul.mubr.bf16.gmra.mxu0 %v846
      %v2431 = vpop.f32.mrf.mxu0
      %v2432 = vadd.f32 %v2339, %v2431
      %v2433 = vpop.f32.mrf.mxu0
      %v2434 = vadd.f32 %v2341, %v2433
      %v2435 = vpop.f32.mrf.mxu0
      %v2436 = vadd.f32 %v2343, %v2435
      %v2437 = vpop.f32.mrf.mxu0
      %v2438 = vadd.f32 %v2345, %v2437
      %2439 = vmatprep.mubr.bf16.mxu0 %v863
      %2440 = vmatmul.mubr.bf16.gmra.mxu0 %v862
      %v2441 = vpop.f32.mrf.mxu0
      %v2442 = vadd.f32 %v2349, %v2441
      %v2443 = vpop.f32.mrf.mxu0
      %v2444 = vadd.f32 %v2351, %v2443
      %v2445 = vpop.f32.mrf.mxu0
      %v2446 = vadd.f32 %v2353, %v2445
      %v2447 = vpop.f32.mrf.mxu0
      %v2448 = vadd.f32 %v2355, %v2447
      %2449 = vmatprep.mubr.bf16.mxu0 %v879
      %2450 = vmatmul.mubr.bf16.gmra.mxu0 %v878
      %v2451 = vpop.f32.mrf.mxu0
      %v2452 = vadd.f32 %v2359, %v2451
      %v2453 = vpop.f32.mrf.mxu0
      %v2454 = vadd.f32 %v2361, %v2453
      %v2455 = vpop.f32.mrf.mxu0
      %v2456 = vadd.f32 %v2363, %v2455
      %v2457 = vpop.f32.mrf.mxu0
      %v2458 = vadd.f32 %v2365, %v2457
      %2459 = vmatprep.mubr.bf16.mxu0 %v895
      %2460 = vmatmul.mubr.bf16.gmra.mxu0 %v894
      %v2461 = vpop.f32.mrf.mxu0
      %v2462 = vadd.f32 %v2369, %v2461
      %v2463 = vpop.f32.mrf.mxu0
      %v2464 = vadd.f32 %v2371, %v2463
      %v2465 = vpop.f32.mrf.mxu0
      %v2466 = vadd.f32 %v2373, %v2465
      %v2467 = vpop.f32.mrf.mxu0
      %v2468 = vadd.f32 %v2375, %v2467
      %2469 = vdwg.mxu0
      %2470 = vmatprep.subr.bf16.mxu0 %v1851
      %2471 = vmatpush1.bf16.msra.mxu0 %v1850
      %2472 = vmatprep.subr.bf16.mxu0 %v1849
      %2473 = vmatpush1.bf16.msra.mxu0 %v1848
      %2474 = vmatprep.subr.bf16.mxu0 %v1847
      %2475 = vmatpush1.bf16.msra.mxu0 %v1846
      %2476 = vmatprep.subr.bf16.mxu0 %v1845
      %2477 = vmatpush1.bf16.msra.mxu0 %v1844
      %2478 = vmatprep.subr.bf16.mxu0 %v1843
      %2479 = vmatpush1.bf16.msra.mxu0 %v1842
      %2480 = vmatprep.subr.bf16.mxu0 %v1841
      %2481 = vmatpush1.bf16.msra.mxu0 %v1840
      %2482 = vmatprep.subr.bf16.mxu0 %v1839
      %2483 = vmatpush1.bf16.msra.mxu0 %v1838
      %2484 = vmatprep.subr.bf16.mxu0 %v1837
      %2485 = vmatpush1.bf16.msra.mxu0 %v1836
      %2486 = vmatprep.subr.bf16.mxu0 %v1867
      %2487 = vmatpush2.bf16.msra.mxu0 %v1866
      %2488 = vmatprep.subr.bf16.mxu0 %v1865
      %2489 = vmatpush2.bf16.msra.mxu0 %v1864
      %2490 = vmatprep.subr.bf16.mxu0 %v1863
      %2491 = vmatpush2.bf16.msra.mxu0 %v1862
      %2492 = vmatprep.subr.bf16.mxu0 %v1861
      %2493 = vmatpush2.bf16.msra.mxu0 %v1860
      %2494 = vmatprep.subr.bf16.mxu0 %v1859
      %2495 = vmatpush2.bf16.msra.mxu0 %v1858
      %2496 = vmatprep.subr.bf16.mxu0 %v1857
      %2497 = vmatpush2.bf16.msra.mxu0 %v1856
      %2498 = vmatprep.subr.bf16.mxu0 %v1855
      %2499 = vmatpush2.bf16.msra.mxu0 %v1854
      %2500 = vmatprep.subr.bf16.mxu0 %v1853
      %2501 = vmatpush2.bf16.msra.mxu0 %v1852
      %2502 = vmatprep.mubr.bf16.mxu0 %v817
      %2503 = vmatmul.mubr.bf16.gmra.mxu0 %v816
      %v2504 = vpop.f32.mrf.mxu0
      %v2505 = vadd.f32 %v2412, %v2504
      %v2506 = vpop.f32.mrf.mxu0
      %v2507 = vadd.f32 %v2414, %v2506
      %v2508 = vpop.f32.mrf.mxu0
      %v2509 = vadd.f32 %v2416, %v2508
      %v2510 = vpop.f32.mrf.mxu0
      %v2511 = vadd.f32 %v2418, %v2510
      %2512 = vmatprep.mubr.bf16.mxu0 %v833
      %2513 = vmatmul.mubr.bf16.gmra.mxu0 %v832
      %v2514 = vpop.f32.mrf.mxu0
      %v2515 = vadd.f32 %v2422, %v2514
      %v2516 = vpop.f32.mrf.mxu0
      %v2517 = vadd.f32 %v2424, %v2516
      %v2518 = vpop.f32.mrf.mxu0
      %v2519 = vadd.f32 %v2426, %v2518
      %v2520 = vpop.f32.mrf.mxu0
      %v2521 = vadd.f32 %v2428, %v2520
      %2522 = vmatprep.mubr.bf16.mxu0 %v849
      %2523 = vmatmul.mubr.bf16.gmra.mxu0 %v848
      %v2524 = vpop.f32.mrf.mxu0
      %v2525 = vadd.f32 %v2432, %v2524
      %v2526 = vpop.f32.mrf.mxu0
      %v2527 = vadd.f32 %v2434, %v2526
      %v2528 = vpop.f32.mrf.mxu0
      %v2529 = vadd.f32 %v2436, %v2528
      %v2530 = vpop.f32.mrf.mxu0
      %v2531 = vadd.f32 %v2438, %v2530
      %2532 = vmatprep.mubr.bf16.mxu0 %v865
      %2533 = vmatmul.mubr.bf16.gmra.mxu0 %v864
      %v2534 = vpop.f32.mrf.mxu0
      %v2535 = vadd.f32 %v2442, %v2534
      %v2536 = vpop.f32.mrf.mxu0
      %v2537 = vadd.f32 %v2444, %v2536
      %v2538 = vpop.f32.mrf.mxu0
      %v2539 = vadd.f32 %v2446, %v2538
      %v2540 = vpop.f32.mrf.mxu0
      %v2541 = vadd.f32 %v2448, %v2540
      %2542 = vmatprep.mubr.bf16.mxu0 %v881
      %2543 = vmatmul.mubr.bf16.gmra.mxu0 %v880
      %v2544 = vpop.f32.mrf.mxu0
      %v2545 = vadd.f32 %v2452, %v2544
      %v2546 = vpop.f32.mrf.mxu0
      %v2547 = vadd.f32 %v2454, %v2546
      %v2548 = vpop.f32.mrf.mxu0
      %v2549 = vadd.f32 %v2456, %v2548
      %v2550 = vpop.f32.mrf.mxu0
      %v2551 = vadd.f32 %v2458, %v2550
      %2552 = vmatprep.mubr.bf16.mxu0 %v897
      %2553 = vmatmul.mubr.bf16.gmra.mxu0 %v896
      %v2554 = vpop.f32.mrf.mxu0
      %v2555 = vadd.f32 %v2462, %v2554
      %v2556 = vpop.f32.mrf.mxu0
      %v2557 = vadd.f32 %v2464, %v2556
      %v2558 = vpop.f32.mrf.mxu0
      %v2559 = vadd.f32 %v2466, %v2558
      %v2560 = vpop.f32.mrf.mxu0
      %v2561 = vadd.f32 %v2468, %v2560
      %2562 = vdwg.mxu0
      %2563 = vmatprep.subr.bf16.mxu0 %v1883
      %2564 = vmatpush1.bf16.msra.mxu0 %v1882
      %2565 = vmatprep.subr.bf16.mxu0 %v1881
      %2566 = vmatpush1.bf16.msra.mxu0 %v1880
      %2567 = vmatprep.subr.bf16.mxu0 %v1879
      %2568 = vmatpush1.bf16.msra.mxu0 %v1878
      %2569 = vmatprep.subr.bf16.mxu0 %v1877
      %2570 = vmatpush1.bf16.msra.mxu0 %v1876
      %2571 = vmatprep.subr.bf16.mxu0 %v1875
      %2572 = vmatpush1.bf16.msra.mxu0 %v1874
      %2573 = vmatprep.subr.bf16.mxu0 %v1873
      %2574 = vmatpush1.bf16.msra.mxu0 %v1872
      %2575 = vmatprep.subr.bf16.mxu0 %v1871
      %2576 = vmatpush1.bf16.msra.mxu0 %v1870
      %2577 = vmatprep.subr.bf16.mxu0 %v1869
      %2578 = vmatpush1.bf16.msra.mxu0 %v1868
      %2579 = vmatprep.subr.bf16.mxu0 %v1899
      %2580 = vmatpush2.bf16.msra.mxu0 %v1898
      %2581 = vmatprep.subr.bf16.mxu0 %v1897
      %2582 = vmatpush2.bf16.msra.mxu0 %v1896
      %2583 = vmatprep.subr.bf16.mxu0 %v1895
      %2584 = vmatpush2.bf16.msra.mxu0 %v1894
      %2585 = vmatprep.subr.bf16.mxu0 %v1893
      %2586 = vmatpush2.bf16.msra.mxu0 %v1892
      %2587 = vmatprep.subr.bf16.mxu0 %v1891
      %2588 = vmatpush2.bf16.msra.mxu0 %v1890
      %2589 = vmatprep.subr.bf16.mxu0 %v1889
      %2590 = vmatpush2.bf16.msra.mxu0 %v1888
      %2591 = vmatprep.subr.bf16.mxu0 %v1887
      %2592 = vmatpush2.bf16.msra.mxu0 %v1886
      %2593 = vmatprep.subr.bf16.mxu0 %v1885
      %2594 = vmatpush2.bf16.msra.mxu0 %v1884
      %2595 = vmatprep.mubr.bf16.mxu0 %v819
      %2596 = vmatmul.mubr.bf16.gmra.mxu0 %v818
      %v2597 = vpop.f32.mrf.mxu0
      %v2598 = vadd.f32 %v2505, %v2597
      %v2599 = vpop.f32.mrf.mxu0
      %v2600 = vadd.f32 %v2507, %v2599
      %v2601 = vpop.f32.mrf.mxu0
      %v2602 = vadd.f32 %v2509, %v2601
      %v2603 = vpop.f32.mrf.mxu0
      %v2604 = vadd.f32 %v2511, %v2603
      %2605 = vmatprep.mubr.bf16.mxu0 %v835
      %2606 = vmatmul.mubr.bf16.gmra.mxu0 %v834
      %v2607 = vpop.f32.mrf.mxu0
      %v2608 = vadd.f32 %v2515, %v2607
      %v2609 = vpop.f32.mrf.mxu0
      %v2610 = vadd.f32 %v2517, %v2609
      %v2611 = vpop.f32.mrf.mxu0
      %v2612 = vadd.f32 %v2519, %v2611
      %v2613 = vpop.f32.mrf.mxu0
      %v2614 = vadd.f32 %v2521, %v2613
      %2615 = vmatprep.mubr.bf16.mxu0 %v851
      %2616 = vmatmul.mubr.bf16.gmra.mxu0 %v850
      %v2617 = vpop.f32.mrf.mxu0
      %v2618 = vadd.f32 %v2525, %v2617
      %v2619 = vpop.f32.mrf.mxu0
      %v2620 = vadd.f32 %v2527, %v2619
      %v2621 = vpop.f32.mrf.mxu0
      %v2622 = vadd.f32 %v2529, %v2621
      %v2623 = vpop.f32.mrf.mxu0
      %v2624 = vadd.f32 %v2531, %v2623
      %2625 = vmatprep.mubr.bf16.mxu0 %v867
      %2626 = vmatmul.mubr.bf16.gmra.mxu0 %v866
      %v2627 = vpop.f32.mrf.mxu0
      %v2628 = vadd.f32 %v2535, %v2627
      %v2629 = vpop.f32.mrf.mxu0
      %v2630 = vadd.f32 %v2537, %v2629
      %v2631 = vpop.f32.mrf.mxu0
      %v2632 = vadd.f32 %v2539, %v2631
      %v2633 = vpop.f32.mrf.mxu0
      %v2634 = vadd.f32 %v2541, %v2633
      %2635 = vmatprep.mubr.bf16.mxu0 %v883
      %2636 = vmatmul.mubr.bf16.gmra.mxu0 %v882
      %v2637 = vpop.f32.mrf.mxu0
      %v2638 = vadd.f32 %v2545, %v2637
      %v2639 = vpop.f32.mrf.mxu0
      %v2640 = vadd.f32 %v2547, %v2639
      %v2641 = vpop.f32.mrf.mxu0
      %v2642 = vadd.f32 %v2549, %v2641
      %v2643 = vpop.f32.mrf.mxu0
      %v2644 = vadd.f32 %v2551, %v2643
      %2645 = vmatprep.mubr.bf16.mxu0 %v899
      %2646 = vmatmul.mubr.bf16.gmra.mxu0 %v898
      %v2647 = vpop.f32.mrf.mxu0
      %v2648 = vadd.f32 %v2555, %v2647
      %v2649 = vpop.f32.mrf.mxu0
      %v2650 = vadd.f32 %v2557, %v2649
      %v2651 = vpop.f32.mrf.mxu0
      %v2652 = vadd.f32 %v2559, %v2651
      %v2653 = vpop.f32.mrf.mxu0
      %v2654 = vadd.f32 %v2561, %v2653
      %2655 = vdwg.mxu0
      %2656 = vmatprep.subr.bf16.mxu0 %v1915
      %2657 = vmatpush1.bf16.msra.mxu0 %v1914
      %2658 = vmatprep.subr.bf16.mxu0 %v1913
      %2659 = vmatpush1.bf16.msra.mxu0 %v1912
      %2660 = vmatprep.subr.bf16.mxu0 %v1911
      %2661 = vmatpush1.bf16.msra.mxu0 %v1910
      %2662 = vmatprep.subr.bf16.mxu0 %v1909
      %2663 = vmatpush1.bf16.msra.mxu0 %v1908
      %2664 = vmatprep.subr.bf16.mxu0 %v1907
      %2665 = vmatpush1.bf16.msra.mxu0 %v1906
      %2666 = vmatprep.subr.bf16.mxu0 %v1905
      %2667 = vmatpush1.bf16.msra.mxu0 %v1904
      %2668 = vmatprep.subr.bf16.mxu0 %v1903
      %2669 = vmatpush1.bf16.msra.mxu0 %v1902
      %2670 = vmatprep.subr.bf16.mxu0 %v1901
      %2671 = vmatpush1.bf16.msra.mxu0 %v1900
      %2672 = vmatprep.subr.bf16.mxu0 %v1931
      %2673 = vmatpush2.bf16.msra.mxu0 %v1930
      %2674 = vmatprep.subr.bf16.mxu0 %v1929
      %2675 = vmatpush2.bf16.msra.mxu0 %v1928
      %2676 = vmatprep.subr.bf16.mxu0 %v1927
      %2677 = vmatpush2.bf16.msra.mxu0 %v1926
      %2678 = vmatprep.subr.bf16.mxu0 %v1925
      %2679 = vmatpush2.bf16.msra.mxu0 %v1924
      %2680 = vmatprep.subr.bf16.mxu0 %v1923
      %2681 = vmatpush2.bf16.msra.mxu0 %v1922
      %2682 = vmatprep.subr.bf16.mxu0 %v1921
      %2683 = vmatpush2.bf16.msra.mxu0 %v1920
      %2684 = vmatprep.subr.bf16.mxu0 %v1919
      %2685 = vmatpush2.bf16.msra.mxu0 %v1918
      %2686 = vmatprep.subr.bf16.mxu0 %v1917
      %2687 = vmatpush2.bf16.msra.mxu0 %v1916
      %2688 = vmatprep.mubr.bf16.mxu0 %v821
      %2689 = vmatmul.mubr.bf16.gmra.mxu0 %v820
      %v2690 = vpop.f32.mrf.mxu0
      %v2691 = vadd.f32 %v2598, %v2690
      %v2692 = vpop.f32.mrf.mxu0
      %v2693 = vadd.f32 %v2600, %v2692
      %v2694 = vpop.f32.mrf.mxu0
      %v2695 = vadd.f32 %v2602, %v2694
      %v2696 = vpop.f32.mrf.mxu0
      %v2697 = vadd.f32 %v2604, %v2696
      %2698 = vmatprep.mubr.bf16.mxu0 %v837
      %2699 = vmatmul.mubr.bf16.gmra.mxu0 %v836
      %v2700 = vpop.f32.mrf.mxu0
      %v2701 = vadd.f32 %v2608, %v2700
      %v2702 = vpop.f32.mrf.mxu0
      %v2703 = vadd.f32 %v2610, %v2702
      %v2704 = vpop.f32.mrf.mxu0
      %v2705 = vadd.f32 %v2612, %v2704
      %v2706 = vpop.f32.mrf.mxu0
      %v2707 = vadd.f32 %v2614, %v2706
      %2708 = vmatprep.mubr.bf16.mxu0 %v853
      %2709 = vmatmul.mubr.bf16.gmra.mxu0 %v852
      %v2710 = vpop.f32.mrf.mxu0
      %v2711 = vadd.f32 %v2618, %v2710
      %v2712 = vpop.f32.mrf.mxu0
      %v2713 = vadd.f32 %v2620, %v2712
      %v2714 = vpop.f32.mrf.mxu0
      %v2715 = vadd.f32 %v2622, %v2714
      %v2716 = vpop.f32.mrf.mxu0
      %v2717 = vadd.f32 %v2624, %v2716
      %2718 = vmatprep.mubr.bf16.mxu0 %v869
      %2719 = vmatmul.mubr.bf16.gmra.mxu0 %v868
      %v2720 = vpop.f32.mrf.mxu0
      %v2721 = vadd.f32 %v2628, %v2720
      %v2722 = vpop.f32.mrf.mxu0
      %v2723 = vadd.f32 %v2630, %v2722
      %v2724 = vpop.f32.mrf.mxu0
      %v2725 = vadd.f32 %v2632, %v2724
      %v2726 = vpop.f32.mrf.mxu0
      %v2727 = vadd.f32 %v2634, %v2726
      %2728 = vmatprep.mubr.bf16.mxu0 %v885
      %2729 = vmatmul.mubr.bf16.gmra.mxu0 %v884
      %v2730 = vpop.f32.mrf.mxu0
      %v2731 = vadd.f32 %v2638, %v2730
      %v2732 = vpop.f32.mrf.mxu0
      %v2733 = vadd.f32 %v2640, %v2732
      %v2734 = vpop.f32.mrf.mxu0
      %v2735 = vadd.f32 %v2642, %v2734
      %v2736 = vpop.f32.mrf.mxu0
      %v2737 = vadd.f32 %v2644, %v2736
      %2738 = vmatprep.mubr.bf16.mxu0 %v901
      %2739 = vmatmul.mubr.bf16.gmra.mxu0 %v900
      %v2740 = vpop.f32.mrf.mxu0
      %v2741 = vadd.f32 %v2648, %v2740
      %v2742 = vpop.f32.mrf.mxu0
      %v2743 = vadd.f32 %v2650, %v2742
      %v2744 = vpop.f32.mrf.mxu0
      %v2745 = vadd.f32 %v2652, %v2744
      %v2746 = vpop.f32.mrf.mxu0
      %v2747 = vadd.f32 %v2654, %v2746
      %2748 = vdwg.mxu0
      %2749 = vmatprep.subr.bf16.mxu0 %v1947
      %2750 = vmatpush1.bf16.msra.mxu0 %v1946
      %2751 = vmatprep.subr.bf16.mxu0 %v1945
      %2752 = vmatpush1.bf16.msra.mxu0 %v1944
      %2753 = vmatprep.subr.bf16.mxu0 %v1943
      %2754 = vmatpush1.bf16.msra.mxu0 %v1942
      %2755 = vmatprep.subr.bf16.mxu0 %v1941
      %2756 = vmatpush1.bf16.msra.mxu0 %v1940
      %2757 = vmatprep.subr.bf16.mxu0 %v1939
      %2758 = vmatpush1.bf16.msra.mxu0 %v1938
      %2759 = vmatprep.subr.bf16.mxu0 %v1937
      %2760 = vmatpush1.bf16.msra.mxu0 %v1936
      %2761 = vmatprep.subr.bf16.mxu0 %v1935
      %2762 = vmatpush1.bf16.msra.mxu0 %v1934
      %2763 = vmatprep.subr.bf16.mxu0 %v1933
      %2764 = vmatpush1.bf16.msra.mxu0 %v1932
      %2765 = vmatprep.subr.bf16.mxu0 %v1963
      %2766 = vmatpush2.bf16.msra.mxu0 %v1962
      %2767 = vmatprep.subr.bf16.mxu0 %v1961
      %2768 = vmatpush2.bf16.msra.mxu0 %v1960
      %2769 = vmatprep.subr.bf16.mxu0 %v1959
      %2770 = vmatpush2.bf16.msra.mxu0 %v1958
      %2771 = vmatprep.subr.bf16.mxu0 %v1957
      %2772 = vmatpush2.bf16.msra.mxu0 %v1956
      %2773 = vmatprep.subr.bf16.mxu0 %v1955
      %2774 = vmatpush2.bf16.msra.mxu0 %v1954
      %2775 = vmatprep.subr.bf16.mxu0 %v1953
      %2776 = vmatpush2.bf16.msra.mxu0 %v1952
      %2777 = vmatprep.subr.bf16.mxu0 %v1951
      %2778 = vmatpush2.bf16.msra.mxu0 %v1950
      %2779 = vmatprep.subr.bf16.mxu0 %v1949
      %2780 = vmatpush2.bf16.msra.mxu0 %v1948
      %2781 = vmatprep.mubr.bf16.mxu0 %v823
      %2782 = vmatmul.mubr.bf16.gmra.mxu0 %v822
      %v2783 = vpop.f32.mrf.mxu0
      %v2784 = vadd.f32 %v2691, %v2783
      %v2785 = vpop.f32.mrf.mxu0
      %v2786 = vadd.f32 %v2693, %v2785
      %v2787 = vpop.f32.mrf.mxu0
      %v2788 = vadd.f32 %v2695, %v2787
      %v2789 = vpop.f32.mrf.mxu0
      %v2790 = vadd.f32 %v2697, %v2789
      %2791 = vmatprep.mubr.bf16.mxu0 %v839
      %2792 = vmatmul.mubr.bf16.gmra.mxu0 %v838
      %v2793 = vpop.f32.mrf.mxu0
      %v2794 = vadd.f32 %v2701, %v2793
      %v2795 = vpop.f32.mrf.mxu0
      %v2796 = vadd.f32 %v2703, %v2795
      %v2797 = vpop.f32.mrf.mxu0
      %v2798 = vadd.f32 %v2705, %v2797
      %v2799 = vpop.f32.mrf.mxu0
      %v2800 = vadd.f32 %v2707, %v2799
      %2801 = vmatprep.mubr.bf16.mxu0 %v855
      %2802 = vmatmul.mubr.bf16.gmra.mxu0 %v854
      %v2803 = vpop.f32.mrf.mxu0
      %v2804 = vadd.f32 %v2711, %v2803
      %v2805 = vpop.f32.mrf.mxu0
      %v2806 = vadd.f32 %v2713, %v2805
      %v2807 = vpop.f32.mrf.mxu0
      %v2808 = vadd.f32 %v2715, %v2807
      %v2809 = vpop.f32.mrf.mxu0
      %v2810 = vadd.f32 %v2717, %v2809
      %2811 = vmatprep.mubr.bf16.mxu0 %v871
      %2812 = vmatmul.mubr.bf16.gmra.mxu0 %v870
      %v2813 = vpop.f32.mrf.mxu0
      %v2814 = vadd.f32 %v2721, %v2813
      %v2815 = vpop.f32.mrf.mxu0
      %v2816 = vadd.f32 %v2723, %v2815
      %v2817 = vpop.f32.mrf.mxu0
      %v2818 = vadd.f32 %v2725, %v2817
      %v2819 = vpop.f32.mrf.mxu0
      %v2820 = vadd.f32 %v2727, %v2819
      %2821 = vmatprep.mubr.bf16.mxu0 %v887
      %2822 = vmatmul.mubr.bf16.gmra.mxu0 %v886
      %v2823 = vpop.f32.mrf.mxu0
      %v2824 = vadd.f32 %v2731, %v2823
      %v2825 = vpop.f32.mrf.mxu0
      %v2826 = vadd.f32 %v2733, %v2825
      %v2827 = vpop.f32.mrf.mxu0
      %v2828 = vadd.f32 %v2735, %v2827
      %v2829 = vpop.f32.mrf.mxu0
      %v2830 = vadd.f32 %v2737, %v2829
      %2831 = vmatprep.mubr.bf16.mxu0 %v903
      %2832 = vmatmul.mubr.bf16.gmra.mxu0 %v902
      %v2833 = vpop.f32.mrf.mxu0
      %v2834 = vadd.f32 %v2741, %v2833
      %v2835 = vpop.f32.mrf.mxu0
      %v2836 = vadd.f32 %v2743, %v2835
      %v2837 = vpop.f32.mrf.mxu0
      %v2838 = vadd.f32 %v2745, %v2837
      %v2839 = vpop.f32.mrf.mxu0
      %v2840 = vadd.f32 %v2747, %v2839
      %2841 = vdwg.mxu0
      %2842 = vmatprep.subr.bf16.mxu0 %v1979
      %2843 = vmatpush1.bf16.msra.mxu0 %v1978
      %2844 = vmatprep.subr.bf16.mxu0 %v1977
      %2845 = vmatpush1.bf16.msra.mxu0 %v1976
      %2846 = vmatprep.subr.bf16.mxu0 %v1975
      %2847 = vmatpush1.bf16.msra.mxu0 %v1974
      %2848 = vmatprep.subr.bf16.mxu0 %v1973
      %2849 = vmatpush1.bf16.msra.mxu0 %v1972
      %2850 = vmatprep.subr.bf16.mxu0 %v1971
      %2851 = vmatpush1.bf16.msra.mxu0 %v1970
      %2852 = vmatprep.subr.bf16.mxu0 %v1969
      %2853 = vmatpush1.bf16.msra.mxu0 %v1968
      %2854 = vmatprep.subr.bf16.mxu0 %v1967
      %2855 = vmatpush1.bf16.msra.mxu0 %v1966
      %2856 = vmatprep.subr.bf16.mxu0 %v1965
      %2857 = vmatpush1.bf16.msra.mxu0 %v1964
      %2858 = vmatprep.subr.bf16.mxu0 %v1995
      %2859 = vmatpush2.bf16.msra.mxu0 %v1994
      %2860 = vmatprep.subr.bf16.mxu0 %v1993
      %2861 = vmatpush2.bf16.msra.mxu0 %v1992
      %2862 = vmatprep.subr.bf16.mxu0 %v1991
      %2863 = vmatpush2.bf16.msra.mxu0 %v1990
      %2864 = vmatprep.subr.bf16.mxu0 %v1989
      %2865 = vmatpush2.bf16.msra.mxu0 %v1988
      %2866 = vmatprep.subr.bf16.mxu0 %v1987
      %2867 = vmatpush2.bf16.msra.mxu0 %v1986
      %2868 = vmatprep.subr.bf16.mxu0 %v1985
      %2869 = vmatpush2.bf16.msra.mxu0 %v1984
      %2870 = vmatprep.subr.bf16.mxu0 %v1983
      %2871 = vmatpush2.bf16.msra.mxu0 %v1982
      %2872 = vmatprep.subr.bf16.mxu0 %v1981
      %2873 = vmatpush2.bf16.msra.mxu0 %v1980
      %2874 = vmatprep.mubr.bf16.mxu0 %v825
      %2875 = vmatmul.mubr.bf16.gmra.mxu0 %v824
      %v2876 = vpop.f32.mrf.mxu0
      %v2877 = vadd.f32 %v2784, %v2876
      %v2878 = vpop.f32.mrf.mxu0
      %v2879 = vadd.f32 %v2786, %v2878
      %v2880 = vpop.f32.mrf.mxu0
      %v2881 = vadd.f32 %v2788, %v2880
      %v2882 = vpop.f32.mrf.mxu0
      %v2883 = vadd.f32 %v2790, %v2882
      %2884 = vmatprep.mubr.bf16.mxu0 %v841
      %2885 = vmatmul.mubr.bf16.gmra.mxu0 %v840
      %v2886 = vpop.f32.mrf.mxu0
      %v2887 = vadd.f32 %v2794, %v2886
      %v2888 = vpop.f32.mrf.mxu0
      %v2889 = vadd.f32 %v2796, %v2888
      %v2890 = vpop.f32.mrf.mxu0
      %v2891 = vadd.f32 %v2798, %v2890
      %v2892 = vpop.f32.mrf.mxu0
      %v2893 = vadd.f32 %v2800, %v2892
      %2894 = vmatprep.mubr.bf16.mxu0 %v857
      %2895 = vmatmul.mubr.bf16.gmra.mxu0 %v856
      %v2896 = vpop.f32.mrf.mxu0
      %v2897 = vadd.f32 %v2804, %v2896
      %v2898 = vpop.f32.mrf.mxu0
      %v2899 = vadd.f32 %v2806, %v2898
      %v2900 = vpop.f32.mrf.mxu0
      %v2901 = vadd.f32 %v2808, %v2900
      %v2902 = vpop.f32.mrf.mxu0
      %v2903 = vadd.f32 %v2810, %v2902
      %2904 = vmatprep.mubr.bf16.mxu0 %v873
      %2905 = vmatmul.mubr.bf16.gmra.mxu0 %v872
      %v2906 = vpop.f32.mrf.mxu0
      %v2907 = vadd.f32 %v2814, %v2906
      %v2908 = vpop.f32.mrf.mxu0
      %v2909 = vadd.f32 %v2816, %v2908
      %v2910 = vpop.f32.mrf.mxu0
      %v2911 = vadd.f32 %v2818, %v2910
      %v2912 = vpop.f32.mrf.mxu0
      %v2913 = vadd.f32 %v2820, %v2912
      %2914 = vmatprep.mubr.bf16.mxu0 %v889
      %2915 = vmatmul.mubr.bf16.gmra.mxu0 %v888
      %v2916 = vpop.f32.mrf.mxu0
      %v2917 = vadd.f32 %v2824, %v2916
      %v2918 = vpop.f32.mrf.mxu0
      %v2919 = vadd.f32 %v2826, %v2918
      %v2920 = vpop.f32.mrf.mxu0
      %v2921 = vadd.f32 %v2828, %v2920
      %v2922 = vpop.f32.mrf.mxu0
      %v2923 = vadd.f32 %v2830, %v2922
      %2924 = vmatprep.mubr.bf16.mxu0 %v905
      %2925 = vmatmul.mubr.bf16.gmra.mxu0 %v904
      %v2926 = vpop.f32.mrf.mxu0
      %v2927 = vadd.f32 %v2834, %v2926
      %v2928 = vpop.f32.mrf.mxu0
      %v2929 = vadd.f32 %v2836, %v2928
      %v2930 = vpop.f32.mrf.mxu0
      %v2931 = vadd.f32 %v2838, %v2930
      %v2932 = vpop.f32.mrf.mxu0
      %v2933 = vadd.f32 %v2840, %v2932
      %2934 = vdwg.mxu0
      %2935 = vmatprep.subr.bf16.mxu0 %v2011
      %2936 = vmatpush1.bf16.msra.mxu0 %v2010
      %2937 = vmatprep.subr.bf16.mxu0 %v2009
      %2938 = vmatpush1.bf16.msra.mxu0 %v2008
      %2939 = vmatprep.subr.bf16.mxu0 %v2007
      %2940 = vmatpush1.bf16.msra.mxu0 %v2006
      %2941 = vmatprep.subr.bf16.mxu0 %v2005
      %2942 = vmatpush1.bf16.msra.mxu0 %v2004
      %2943 = vmatprep.subr.bf16.mxu0 %v2003
      %2944 = vmatpush1.bf16.msra.mxu0 %v2002
      %2945 = vmatprep.subr.bf16.mxu0 %v2001
      %2946 = vmatpush1.bf16.msra.mxu0 %v2000
      %2947 = vmatprep.subr.bf16.mxu0 %v1999
      %2948 = vmatpush1.bf16.msra.mxu0 %v1998
      %2949 = vmatprep.subr.bf16.mxu0 %v1997
      %2950 = vmatpush1.bf16.msra.mxu0 %v1996
      %2951 = vmatprep.subr.bf16.mxu0 %v2027
      %2952 = vmatpush2.bf16.msra.mxu0 %v2026
      %2953 = vmatprep.subr.bf16.mxu0 %v2025
      %2954 = vmatpush2.bf16.msra.mxu0 %v2024
      %2955 = vmatprep.subr.bf16.mxu0 %v2023
      %2956 = vmatpush2.bf16.msra.mxu0 %v2022
      %2957 = vmatprep.subr.bf16.mxu0 %v2021
      %2958 = vmatpush2.bf16.msra.mxu0 %v2020
      %2959 = vmatprep.subr.bf16.mxu0 %v2019
      %2960 = vmatpush2.bf16.msra.mxu0 %v2018
      %2961 = vmatprep.subr.bf16.mxu0 %v2017
      %2962 = vmatpush2.bf16.msra.mxu0 %v2016
      %2963 = vmatprep.subr.bf16.mxu0 %v2015
      %2964 = vmatpush2.bf16.msra.mxu0 %v2014
      %2965 = vmatprep.subr.bf16.mxu0 %v2013
      %2966 = vmatpush2.bf16.msra.mxu0 %v2012
      %2967 = vmatprep.mubr.bf16.mxu0 %v827
      %2968 = vmatmul.mubr.bf16.gmra.mxu0 %v826
      %v2969 = vpop.f32.mrf.mxu0
      %v2970 = vadd.f32 %v2877, %v2969
      %v2971 = vpop.f32.mrf.mxu0
      %v2972 = vadd.f32 %v2879, %v2971
      %v2973 = vpop.f32.mrf.mxu0
      %v2974 = vadd.f32 %v2881, %v2973
      %v2975 = vpop.f32.mrf.mxu0
      %v2976 = vadd.f32 %v2883, %v2975
      %2977 = vmatprep.mubr.bf16.mxu0 %v843
      %2978 = vmatmul.mubr.bf16.gmra.mxu0 %v842
      %v2979 = vpop.f32.mrf.mxu0
      %v2980 = vadd.f32 %v2887, %v2979
      %v2981 = vpop.f32.mrf.mxu0
      %v2982 = vadd.f32 %v2889, %v2981
      %v2983 = vpop.f32.mrf.mxu0
      %v2984 = vadd.f32 %v2891, %v2983
      %v2985 = vpop.f32.mrf.mxu0
      %v2986 = vadd.f32 %v2893, %v2985
      %2987 = vmatprep.mubr.bf16.mxu0 %v859
      %2988 = vmatmul.mubr.bf16.gmra.mxu0 %v858
      %v2989 = vpop.f32.mrf.mxu0
      %v2990 = vadd.f32 %v2897, %v2989
      %v2991 = vpop.f32.mrf.mxu0
      %v2992 = vadd.f32 %v2899, %v2991
      %v2993 = vpop.f32.mrf.mxu0
      %v2994 = vadd.f32 %v2901, %v2993
      %v2995 = vpop.f32.mrf.mxu0
      %v2996 = vadd.f32 %v2903, %v2995
      %2997 = vmatprep.mubr.bf16.mxu0 %v875
      %2998 = vmatmul.mubr.bf16.gmra.mxu0 %v874
      %v2999 = vpop.f32.mrf.mxu0
      %v3000 = vadd.f32 %v2907, %v2999
      %v3001 = vpop.f32.mrf.mxu0
      %v3002 = vadd.f32 %v2909, %v3001
      %v3003 = vpop.f32.mrf.mxu0
      %v3004 = vadd.f32 %v2911, %v3003
      %v3005 = vpop.f32.mrf.mxu0
      %v3006 = vadd.f32 %v2913, %v3005
      %3007 = vmatprep.mubr.bf16.mxu0 %v891
      %3008 = vmatmul.mubr.bf16.gmra.mxu0 %v890
      %v3009 = vpop.f32.mrf.mxu0
      %v3010 = vadd.f32 %v2917, %v3009
      %v3011 = vpop.f32.mrf.mxu0
      %v3012 = vadd.f32 %v2919, %v3011
      %v3013 = vpop.f32.mrf.mxu0
      %v3014 = vadd.f32 %v2921, %v3013
      %v3015 = vpop.f32.mrf.mxu0
      %v3016 = vadd.f32 %v2923, %v3015
      %3017 = vmatprep.mubr.bf16.mxu0 %v907
      %3018 = vmatmul.mubr.bf16.gmra.mxu0 %v906
      %v3019 = vpop.f32.mrf.mxu0
      %v3020 = vadd.f32 %v2927, %v3019
      %v3021 = vpop.f32.mrf.mxu0
      %v3022 = vadd.f32 %v2929, %v3021
      %v3023 = vpop.f32.mrf.mxu0
      %v3024 = vadd.f32 %v2931, %v3023
      %v3025 = vpop.f32.mrf.mxu0
      %v3026 = vadd.f32 %v2933, %v3025
      %3027 = vdwg.mxu0
      %v3028 = vmul.f32 %v2970, %v2970
      %v3029 = vmul.f32 %v2974, %v2974
      %v3030 = vmul.f32 %v2980, %v2980
      %v3031 = vmul.f32 %v2984, %v2984
      %v3032 = vmul.f32 %v2990, %v2990
      %v3033 = vmul.f32 %v2994, %v2994
      %v3034 = vmul.f32 %v2972, %v2972
      %v3035 = vmul.f32 %v2976, %v2976
      %v3036 = vmul.f32 %v2982, %v2982
      %v3037 = vmul.f32 %v2986, %v2986
      %v3038 = vmul.f32 %v2992, %v2992
      %v3039 = vmul.f32 %v2996, %v2996
      %v3040 = vadd.f32 %v3028, %v3034
      %v3041 = vadd.f32 %v3029, %v3035
      %v3042 = vadd.f32 %v3030, %v3036
      %v3043 = vadd.f32 %v3031, %v3037
      %v3044 = vadd.f32 %v3032, %v3038
      %v3045 = vadd.f32 %v3033, %v3039
      %v3046 = vmax.f32 %v3040, 1e-08
      %v3047 = vmax.f32 %v3041, 1e-08
      %v3048 = vmax.f32 %v3042, 1e-08
      %v3049 = vmax.f32 %v3043, 1e-08
      %v3050 = vmax.f32 %v3044, 1e-08
      %v3051 = vmax.f32 %v3045, 1e-08
      %v3052 = vmul.f32 %v3000, %v3000
      %v3053 = vmul.f32 %v3004, %v3004
      %v3054 = vmul.f32 %v3010, %v3010
      %v3055 = vmul.f32 %v3014, %v3014
      %v3056 = vmul.f32 %v3020, %v3020
      %v3057 = vmul.f32 %v3024, %v3024
      %v3058 = vmul.f32 %v3002, %v3002
      %v3059 = vmul.f32 %v3006, %v3006
      %v3060 = vmul.f32 %v3012, %v3012
      %v3061 = vmul.f32 %v3016, %v3016
      %v3062 = vmul.f32 %v3022, %v3022
      %v3063 = vmul.f32 %v3026, %v3026
      %v3064 = vadd.f32 %v3052, %v3058
      %v3065 = vadd.f32 %v3053, %v3059
      %v3066 = vadd.f32 %v3054, %v3060
      %v3067 = vadd.f32 %v3055, %v3061
      %v3068 = vadd.f32 %v3056, %v3062
      %v3069 = vadd.f32 %v3057, %v3063
      %v3070 = vmax.f32 %v3064, 1e-08
      %v3071 = vmax.f32 %v3065, 1e-08
      %v3072 = vmax.f32 %v3066, 1e-08
      %v3073 = vmax.f32 %v3067, 1e-08
      %v3074 = vmax.f32 %v3068, 1e-08
      %v3075 = vmax.f32 %v3069, 1e-08
      %v3076 = vrsqrt.pop %v3070
      %v3077 = vmul.f32 %v3070, %v3076
      %vm3078 = vcmp.eq.f32.partialorder %v3070, inf
      %v3079 = vsel %vm3078, %v3070, %v3077
      %vm3080 = vcmp.eq.f32.partialorder %v3070, 0.0
      %v3081 = vand.u32 %v3070, 2147483648
      %v3082 = vsel %vm3080, %v3081, %v3079
      %v3083 = vrsqrt.pop %v3071
      %v3084 = vmul.f32 %v3071, %v3083
      %vm3085 = vcmp.eq.f32.partialorder %v3071, inf
      %v3086 = vsel %vm3085, %v3071, %v3084
      %vm3087 = vcmp.eq.f32.partialorder %v3071, 0.0
      %v3088 = vand.u32 %v3071, 2147483648
      %v3089 = vsel %vm3087, %v3088, %v3086
      %v3090 = vrsqrt.pop %v3072
      %v3091 = vmul.f32 %v3072, %v3090
      %vm3092 = vcmp.eq.f32.partialorder %v3072, inf
      %v3093 = vsel %vm3092, %v3072, %v3091
      %vm3094 = vcmp.eq.f32.partialorder %v3072, 0.0
      %v3095 = vand.u32 %v3072, 2147483648
      %v3096 = vsel %vm3094, %v3095, %v3093
      %v3097 = vrsqrt.pop %v3073
      %v3098 = vmul.f32 %v3073, %v3097
      %vm3099 = vcmp.eq.f32.partialorder %v3073, inf
      %v3100 = vsel %vm3099, %v3073, %v3098
      %vm3101 = vcmp.eq.f32.partialorder %v3073, 0.0
      %v3102 = vand.u32 %v3073, 2147483648
      %v3103 = vsel %vm3101, %v3102, %v3100
      %v3104 = vrsqrt.pop %v3074
      %v3105 = vmul.f32 %v3074, %v3104
      %vm3106 = vcmp.eq.f32.partialorder %v3074, inf
      %v3107 = vsel %vm3106, %v3074, %v3105
      %vm3108 = vcmp.eq.f32.partialorder %v3074, 0.0
      %v3109 = vand.u32 %v3074, 2147483648
      %v3110 = vsel %vm3108, %v3109, %v3107
      %v3111 = vrsqrt.pop %v3075
      %v3112 = vmul.f32 %v3075, %v3111
      %vm3113 = vcmp.eq.f32.partialorder %v3075, inf
      %v3114 = vsel %vm3113, %v3075, %v3112
      %vm3115 = vcmp.eq.f32.partialorder %v3075, 0.0
      %v3116 = vand.u32 %v3075, 2147483648
      %v3117 = vsel %vm3115, %v3116, %v3114
      %v3118 = vrsqrt.pop %v3046
      %v3119 = vmul.f32 %v3046, %v3118
      %vm3120 = vcmp.eq.f32.partialorder %v3046, inf
      %v3121 = vsel %vm3120, %v3046, %v3119
      %vm3122 = vcmp.eq.f32.partialorder %v3046, 0.0
      %v3123 = vand.u32 %v3046, 2147483648
      %v3124 = vsel %vm3122, %v3123, %v3121
      %v3125 = vrsqrt.pop %v3047
      %v3126 = vmul.f32 %v3047, %v3125
      %vm3127 = vcmp.eq.f32.partialorder %v3047, inf
      %v3128 = vsel %vm3127, %v3047, %v3126
      %vm3129 = vcmp.eq.f32.partialorder %v3047, 0.0
      %v3130 = vand.u32 %v3047, 2147483648
      %v3131 = vsel %vm3129, %v3130, %v3128
      %v3132 = vrsqrt.pop %v3048
      %v3133 = vmul.f32 %v3048, %v3132
      %vm3134 = vcmp.eq.f32.partialorder %v3048, inf
      %v3135 = vsel %vm3134, %v3048, %v3133
      %vm3136 = vcmp.eq.f32.partialorder %v3048, 0.0
      %v3137 = vand.u32 %v3048, 2147483648
      %v3138 = vsel %vm3136, %v3137, %v3135
      %v3139 = vrsqrt.pop %v3049
      %v3140 = vmul.f32 %v3049, %v3139
      %vm3141 = vcmp.eq.f32.partialorder %v3049, inf
      %v3142 = vsel %vm3141, %v3049, %v3140
      %vm3143 = vcmp.eq.f32.partialorder %v3049, 0.0
      %v3144 = vand.u32 %v3049, 2147483648
      %v3145 = vsel %vm3143, %v3144, %v3142
      %v3146 = vrsqrt.pop %v3050
      %v3147 = vmul.f32 %v3050, %v3146
      %vm3148 = vcmp.eq.f32.partialorder %v3050, inf
      %v3149 = vsel %vm3148, %v3050, %v3147
      %vm3150 = vcmp.eq.f32.partialorder %v3050, 0.0
      %v3151 = vand.u32 %v3050, 2147483648
      %v3152 = vsel %vm3150, %v3151, %v3149
      %v3153 = vrsqrt.pop %v3051
      %v3154 = vmul.f32 %v3051, %v3153
      %vm3155 = vcmp.eq.f32.partialorder %v3051, inf
      %v3156 = vsel %vm3155, %v3051, %v3154
      %vm3157 = vcmp.eq.f32.partialorder %v3051, 0.0
      %v3158 = vand.u32 %v3051, 2147483648
      %v3159 = vsel %vm3157, %v3158, %v3156
      %v3160 = vsub.f32 %v3082, %v3124
      %v3161 = vsub.f32 %v3089, %v3131
      %v3162 = vsub.f32 %v3096, %v3138
      %v3163 = vsub.f32 %v3103, %v3145
      %v3164 = vsub.f32 %v3110, %v3152
      %v3165 = vsub.f32 %v3117, %v3159
      %v3166 = vmul.f32 %v3160, %v3160
      %v3167 = vmul.f32 %v3161, %v3161
      %v3168 = vmul.f32 %v3162, %v3162
      %v3169 = vmul.f32 %v3163, %v3163
      %v3170 = vmul.f32 %v3164, %v3164
      %v3171 = vmul.f32 %v3165, %v3165
      %v3172 = vadd.f32 %v3166, %v3167
      %v3173 = vadd.f32 %v3172, %v3168
      %v3174 = vadd.f32 %v3173, %v3169
      %v3175 = vadd.f32 %v3174, %v3170
      %v3176 = vadd.f32 %v3175, %v3171
      %v3177 = vrot.slane %v3176, 4
      %v3178 = vadd.f32 %v3176, %v3177
      %v3179 = vrot.slane %v3178, 2
      %v3180 = vadd.f32 %v3178, %v3179
      %v3181 = vrot.slane %v3180, 1
      %v3182 = vadd.f32 %v3180, %v3181
      %3183 = vst [vmem:[%s168] sm:$0x1] %v3182
      %v3184 = vadd.f32 %v3070, %v3071
      %v3185 = vadd.f32 %v3184, %v3072
      %v3186 = vadd.f32 %v3185, %v3073
      %v3187 = vadd.f32 %v3186, %v3074
      %v3188 = vadd.f32 %v3187, %v3075
      %v3189 = vrot.slane %v3188, 4
      %v3190 = vadd.f32 %v3188, %v3189
      %v3191 = vrot.slane %v3190, 2
      %v3192 = vadd.f32 %v3190, %v3191
      %v3193 = vrot.slane %v3192, 1
      %v3194 = vadd.f32 %v3192, %v3193
      %3195 = vst [vmem:[%s168 + $0x1] sm:$0x1] %v3194
      %v3196 = vlog2.pop %v3046
      %v3197 = vmul.f32 %v3196, 0.6931472
      %v3198 = vlog2.pop %v3047
      %v3199 = vmul.f32 %v3198, 0.6931472
      %v3200 = vlog2.pop %v3048
      %v3201 = vmul.f32 %v3200, 0.6931472
      %v3202 = vlog2.pop %v3049
      %v3203 = vmul.f32 %v3202, 0.6931472
      %v3204 = vlog2.pop %v3050
      %v3205 = vmul.f32 %v3204, 0.6931472
      %v3206 = vlog2.pop %v3051
      %v3207 = vmul.f32 %v3206, 0.6931472
      %v3208 = vlog2.pop %v3070
      %v3209 = vmul.f32 %v3208, 0.6931472
      %v3210 = vlog2.pop %v3071
      %v3211 = vmul.f32 %v3210, 0.6931472
      %v3212 = vlog2.pop %v3072
      %v3213 = vmul.f32 %v3212, 0.6931472
      %v3214 = vlog2.pop %v3073
      %v3215 = vmul.f32 %v3214, 0.6931472
      %v3216 = vlog2.pop %v3074
      %v3217 = vmul.f32 %v3216, 0.6931472
      %v3218 = vlog2.pop %v3075
      %v3219 = vmul.f32 %v3218, 0.6931472
      %v3220 = vsub.f32 %v3197, %v3209
      %v3221 = vsub.f32 %v3199, %v3211
      %v3222 = vsub.f32 %v3201, %v3213
      %v3223 = vsub.f32 %v3203, %v3215
      %v3224 = vsub.f32 %v3205, %v3217
      %v3225 = vsub.f32 %v3207, %v3219
      %v3226 = vand.u32 2147483647, %v3220
      %v3227 = vand.u32 2147483647, %v3221
      %v3228 = vand.u32 2147483647, %v3222
      %v3229 = vand.u32 2147483647, %v3223
      %v3230 = vand.u32 2147483647, %v3224
      %v3231 = vand.u32 2147483647, %v3225
      %v3232 = vadd.f32 %v3226, %v3227
      %v3233 = vadd.f32 %v3232, %v3228
      %v3234 = vadd.f32 %v3233, %v3229
      %v3235 = vadd.f32 %v3234, %v3230
      %v3236 = vadd.f32 %v3235, %v3231
      %v3237 = vrot.slane %v3236, 4
      %v3238 = vadd.f32 %v3236, %v3237
      %v3239 = vrot.slane %v3238, 2
      %v3240 = vadd.f32 %v3238, %v3239
      %v3241 = vrot.slane %v3240, 1
      %v3242 = vadd.f32 %v3240, %v3241
      %v3243 = vmul.f32 %v3242, 0.5
      %3244 = vst [vmem:[%s168 + $0x2] sm:$0x1] %v3243
      %p3245 = scmp.lt.s32.totalorder %s17, 0
      %s3246 = scalar_select %p3245, %s17, 0
      %p3247 = scmp.lt.s32.totalorder %s18, 7
      %s3248 = scalar_select %p3247, %s18, 7
      %s3249 = smul.addr %s3246, 8
      %s3250 = sadd.s32 %s3248, %s3249
      %s3251 = smul.addr %s3250, 4
      %s3252 = scalar_lea.vmem %s2, %s3251
      // Predicated region
      $region29: #{multi_reso_stft.4} parent=27 // pred_check
        %p3253 = pneg %p92
      $region30: #{multi_reso_stft.4} parent=27 // pred_check_branch
        %3255 = sbr.rel (%p3253) target = $region32
      $region31: #{multi_reso_stft.4} parent=27 // pred_region
        _
      $region32: #{multi_reso_stft.4} parent=27 // pred_fallthru
        _
    $region28: #{multi_reso_stft.4} parent=5 // pred_fallthru
      _
    %p3256 = scmp.le.s32.totalorder 2, %s8
    // Predicated region
    $region33: #{multi_reso_stft.4} parent=5 // pred_check
      %p3257 = pneg %p3256
    $region34: #{multi_reso_stft.4} parent=5 // pred_check_branch
      %3259 = sbr.rel (%p3257) target = $region36
    $region35: #{multi_reso_stft.4} parent=5 // pred_region
      %s3260 = ssub.s32 %s8, 2
      // Predicated region
      $region37: #{multi_reso_stft.4} parent=35 // pred_check
        %p3261 = pneg %p98
      $region38: #{multi_reso_stft.4} parent=35 // pred_check_branch
        %3263 = sbr.rel (%p3261) target = $region40
      $region39: #{multi_reso_stft.4} parent=35 // pred_region
        %p3264 = scmp.lt.s32.totalorder %s19, 0
        %s3265 = scalar_select %p3264, %s19, 0
        %p3266 = scmp.lt.s32.totalorder %s20, 7
        %s3267 = scalar_select %p3266, %s20, 7
        %s3268 = smul.addr %s3265, 8
        %s3269 = sadd.s32 %s3267, %s3268
        %s3270 = smul.addr %s3269, 4
        %s3271 = scalar_lea.vmem %s2, %s3270
      $region40: #{multi_reso_stft.4} parent=35 // pred_fallthru
        _
    $region36: #{multi_reso_stft.4} parent=5 // pred_fallthru
      _
  $region6: #{multi_reso_stft.4} parent=0 // loop_footer
    %s12 = sadd.s32 1, %s8
  $region7: #{multi_reso_stft.4} parent=0 // loop_footer_branch
    %7 = sbr.rel target = $region3
  $region8: #{multi_reso_stft.4} parent=0 // loop_exit
    _

</llo_original>
